<compile_context>
chip_gen: v6e
topology: v6e:2x2x1
jax: 0.10.0
libtpu: 0.0.40
codegen_flags: <defaults>
</compile_context>

<pallas_src>
import jax
import jax.numpy as jnp
from jax import lax
from jax.experimental import pallas as pl
from jax.experimental.pallas import tpu as pltpu

C_EMB = 128          # embedding / OA channel width
C_QK = C_EMB // 4    # 32
C_CAT = 4 * C_EMB    # 512
C_OUT = 1024
NUM_OA = 4
BN_EPS = 1e-5


def _leaky_relu(x, slope=0.2):
    return jnp.where(x > 0, x, slope * x)


def spct_kernel(h1_ref,                       # [1, N, 128] bf16 (post first LBR)
                w2_ref, bn2b_ref,             # [128,128] bf16, [1,128] f32
                wqv_ref, bv_ref,              # [4,128,160] bf16, [4,1,128] f32
                wt_ref, bt_ref,               # [4,128,128] bf16, [4,1,128] f32
                wlt_hbm_ref,                  # [1024,512] bf16 in HBM (pl.ANY)
                bnlb_ref,                     # [1024,1] f32
                out_ref, omax_ref, omean_ref,
                wlt_vmem, wl_sem):
    f32 = jnp.float32
    bf16 = jnp.bfloat16

    # Stage the (large, last-used) final-linear weight into VMEM now; the DMA
    # overlaps the embedding + 4 OA blocks and is awaited right before the
    # final matmul.  Issued per grid step so megacore batch-splitting is safe.
    pltpu.make_async_copy(wlt_hbm_ref, wlt_vmem, wl_sem).start()

    # ---------------- Embedding LBR #2 (BN scale folded into w2) ----------------
    h = jnp.dot(h1_ref[0], w2_ref[...], preferred_element_type=f32)
    h = jnp.maximum(h + bn2b_ref[...], 0.0)                     # [N, 128] f32

    # ---------------- 4 stacked Offset-Attention blocks ----------------
    h_t_blocks = []
    for i in range(NUM_OA):
        hb = h.astype(bf16)

        # fused [v | q] projection: one MXU pass, then tile-aligned slices
        qv = jnp.dot(hb, wqv_ref[i], preferred_element_type=f32)        # [N, 160]
        v = qv[:, :C_EMB] + bv_ref[i]                                   # [N, 128]
        q = qv[:, C_EMB:].astype(bf16)                                  # [N, 32]

        # energy[n, m] = <q_n, q_m>  -> exactly symmetric
        # (q_conv.weight is k_conv.weight, both bias-free, in the reference)
        energy = lax.dot_general(q, q, (((1,), (1,)), ((), ())),
                                 preferred_element_type=f32)            # [N, N]

        # attn^T directly: softmax over axis=0 (== transposed row softmax, since
        # energy is symmetric).  Divide goes through the EUP (approx reciprocal).
        cmax = jnp.max(energy, axis=0, keepdims=True)                   # [1, N]
        e = jnp.exp(energy - cmax)
        attn_t = e * pl.reciprocal(jnp.sum(e, axis=0, keepdims=True),
                                   approx=True)                         # [N, N]

        # second normalization (torch .sum(dim=1)) folded as a per-row scale
        # applied AFTER the matmul.
        rscale = pl.reciprocal(1e-9 + jnp.sum(attn_t, axis=-1, keepdims=True),
                               approx=True)                             # [N, 1]
        x_r = jnp.dot(attn_t.astype(bf16), v.astype(bf16),
                      preferred_element_type=f32) * rscale              # [N, 128]

        # trans_conv -> (folded) BN -> ReLU, residual add
        t = jnp.dot((h - x_r).astype(bf16), wt_ref[i],
                    preferred_element_type=f32) + bt_ref[i]
        h = h + jnp.maximum(t, 0.0)                                     # [N, 128]

        # keep this block's output in NCW orientation (bf16 [128, N]); replaces
        # the old f32 [N,1024] running accumulator (4 small XLU transposes
        # instead of 4 read-modify-write passes over a 512 KB f32 buffer).
        h_t_blocks.append(jnp.transpose(h).astype(bf16))                # [128, N]

    h_cat_t = jnp.concatenate(h_t_blocks, axis=0)                       # [512, N]

    # ---------------- final linear (one K=512 MXU pass, NCW orientation) --------
    pltpu.make_async_copy(wlt_hbm_ref, wlt_vmem, wl_sem).wait()
    out = jnp.dot(wlt_vmem[...], h_cat_t, preferred_element_type=f32)   # [1024, N]
    out = _leaky_relu(out + bnlb_ref[...], 0.2)

    out_ref[0] = out                                                    # [1024, N]
    omax_ref[0] = jnp.max(out, axis=-1, keepdims=True)                  # [1024, 1]
    omean_ref[0] = jnp.mean(out, axis=-1, keepdims=True)                # [1024, 1]


def init_params(key):
    """Deterministic synthetic parameters in PyTorch-equivalent form
    (Conv1d weights transposed to [in, out]; BatchNorm as running stats folded
    to per-channel scale/bias)."""
    ks = iter(jax.random.split(key, 64))

    def conv_w(cin, cout):
        return jax.random.normal(next(ks), (cin, cout), jnp.float32) / jnp.sqrt(cin)

    def conv_b(c):
        return 0.01 * jax.random.normal(next(ks), (1, c), jnp.float32)

    def bn_fold(c):
        gamma = 1.0 + 0.1 * jax.random.normal(next(ks), (1, c), jnp.float32)
        beta = 0.1 * jax.random.normal(next(ks), (1, c), jnp.float32)
        rmean = 0.1 * jax.random.normal(next(ks), (1, c), jnp.float32)
        rvar = 1.0 + 0.1 * jnp.abs(jax.random.normal(next(ks), (1, c), jnp.float32))
        scale = gamma / jnp.sqrt(rvar + BN_EPS)
        bias = beta - rmean * scale
        return scale, bias

    p = {}
    p["w1"] = conv_w(3, C_EMB)
    p["bn1s"], p["bn1b"] = bn_fold(C_EMB)
    p["w2"] = conv_w(C_EMB, C_EMB)
    p["bn2s"], p["bn2b"] = bn_fold(C_EMB)

    wqk, wv, bv, wt, bt, oas, oab = [], [], [], [], [], [], []
    for _ in range(NUM_OA):
        wqk.append(conv_w(C_EMB, C_QK))        # shared by q_conv and k_conv
        wv.append(conv_w(C_EMB, C_EMB))
        bv.append(conv_b(C_EMB))
        wt.append(conv_w(C_EMB, C_EMB))
        bt.append(conv_b(C_EMB))
        s, b = bn_fold(C_EMB)
        oas.append(s)
        oab.append(b)
    p["wqk"] = jnp.stack(wqk)   # [4, 128, 32]
    p["wv"] = jnp.stack(wv)     # [4, 128, 128]
    p["bv"] = jnp.stack(bv)     # [4, 1, 128]
    p["wt"] = jnp.stack(wt)     # [4, 128, 128]
    p["bt"] = jnp.stack(bt)     # [4, 1, 128]
    p["oas"] = jnp.stack(oas)   # [4, 1, 128]
    p["oab"] = jnp.stack(oab)   # [4, 1, 128]

    p["wl"] = conv_w(C_CAT, C_OUT)
    p["bnls"], p["bnlb"] = bn_fold(C_OUT)
    return p


def prepare_params(params):
    """One-time param prep: fold BN scales into the preceding conv weights,
    fuse the q/v projections, transpose the final linear to NCW orientation,
    and cast MXU weights to bf16 (biases stay f32)."""
    bf16 = jnp.bfloat16
    p = {}
    # Embedding: w1 stays f32 (used in the wrapper's tiny K=3 projection).
    p["w1"] = params["w1"] * params["bn1s"]                       # [3, 128]
    p["bn1b"] = params["bn1b"]                                    # [1, 128]
    p["w2"] = (params["w2"] * params["bn2s"]).astype(bf16)        # [128, 128]
    p["bn2b"] = params["bn2b"]                                    # [1, 128]
    # OA blocks: fused [v | q] projection weight (v first so both slices are
    # lane-tile aligned); trans_conv BN folded into wt/bt.
    # NOTE: the kernel's symmetric-energy softmax shortcut requires
    # q_conv.weight == k_conv.weight with no bias (true in the reference module).
    p["wqv"] = jnp.concatenate([params["wv"], params["wqk"]],
                               axis=-1).astype(bf16)              # [4, 128, 160]
    p["bv"] = params["bv"]                                        # [4, 1, 128]
    p["wt"] = (params["wt"] * params["oas"]).astype(bf16)         # [4, 128, 128]
    p["bt"] = params["bt"] * params["oas"] + params["oab"]        # [4, 1, 128]
    # Final linear: fold BN scale, transpose to [out, in] so the kernel's last
    # matmul directly produces the [1024, N] NCW output slab.
    p["wl_t"] = jnp.transpose(params["wl"] * params["bnls"]).astype(bf16)  # [1024, 512]
    p["bnlb_col"] = jnp.transpose(params["bnlb"])                          # [1024, 1]
    return p


@jax.jit
def spct_forward(x_ncw, prepared):
    """x_ncw: [B, 3, N] (PyTorch NCW), N a multiple of 128.
    Returns (x [B,1024,N], x_max [B,1024], x_mean [B,1024])."""
    B, _, N = x_ncw.shape
    assert N % 128 == 0, "N must be a multiple of 128 for the lane-dense output"
    x = jnp.transpose(x_ncw, (0, 2, 1)).astype(jnp.float32)       # [B, N, 3]

    # First LBR in the wrapper: the K=3 projection fuses with the transpose in
    # XLA and avoids a 3-wide lane dim inside the kernel.  Cast to bf16 (the
    # kernel would cast before the next matmul anyway) to halve input DMA.
    h1 = jnp.maximum(jnp.einsum("bnc,cd->bnd", x, prepared["w1"]) + prepared["bn1b"],
                     0.0).astype(jnp.bfloat16)                    # [B, N, 128]

    weights = [prepared["w2"], prepared["bn2b"],
               prepared["wqv"], prepared["bv"],
               prepared["wt"], prepared["bt"]]
    args = [h1] + weights + [prepared["wl_t"], prepared["bnlb_col"]]

    def weight_spec(a):
        nd = a.ndim
        return pl.BlockSpec(a.shape, lambda b, nd=nd: (0,) * nd)

    in_specs = ([pl.BlockSpec((1, N, C_EMB), lambda b: (b, 0, 0))]
                + [weight_spec(a) for a in weights]
                + [pl.BlockSpec(memory_space=pl.ANY),             # wl_t: manual DMA
                   weight_spec(prepared["bnlb_col"])])

    out_shape = (
        jax.ShapeDtypeStruct((B, C_OUT, N), jnp.float32),
        jax.ShapeDtypeStruct((B, C_OUT, 1), jnp.float32),
        jax.ShapeDtypeStruct((B, C_OUT, 1), jnp.float32),
    )
    out_specs = (
        pl.BlockSpec((1, C_OUT, N), lambda b: (b, 0, 0)),
        pl.BlockSpec((1, C_OUT, 1), lambda b: (b, 0, 0)),
        pl.BlockSpec((1, C_OUT, 1), lambda b: (b, 0, 0)),
    )

    scratch_shapes = [
        pltpu.VMEM((C_OUT, C_CAT), jnp.bfloat16),   # staged wl^T
        pltpu.SemaphoreType.DMA(()),
    ]

    # VMEM budget derived from actual buffer sizes (+ headroom), clamped to
    # v7x's 64 MiB physical VMEM (v5e/v6e have 128 MiB).
    def nbytes(a):
        return int(a.size) * a.dtype.itemsize

    est = (
        2 * (N * C_EMB * 2)                                   # h1 blocks (bf16, 2 bufs)
        + 2 * sum(nbytes(a) for a in weights)                 # small weights (2 bufs)
        + 2 * (C_OUT * 128 * 4)                               # bnlb block, lane-padded
        + nbytes(prepared["wl_t"])                            # manual staging (1 buf)
        + 2 * (C_OUT * N * 4)                                 # out blocks
        + 4 * (C_OUT * 128 * 4)                               # omax/omean blocks (padded)
        + 8 * (N * N * 4)                                     # attention intermediates
        + 2 * (C_OUT * N * 4) + 8 * (N * C_EMB * 4)           # final slab + OA temps
    )
    vmem_limit = min(64 * 1024 * 1024, int(est) + 16 * 1024 * 1024)

    out, omax, omean = pl.pallas_call(
        spct_kernel,
        out_shape=out_shape,
        grid=(B,),
        in_specs=in_specs,
        out_specs=out_specs,
        scratch_shapes=scratch_shapes,
        compiler_params=pltpu.CompilerParams(
            # Batch axis stays parallel (both v7x TCs get work when B >= 2; for
            # B == 1 a second parallel axis would be needed to fill the chip).
            dimension_semantics=("parallel",),
            vmem_limit_bytes=vmem_limit,
        ),
    )(*args)

    return out, omax[:, :, 0], omean[:, :, 0]


if __name__ == "__main__":
    key = jax.random.PRNGKey(0)
    kp, kx = jax.random.split(key)
    params = init_params(kp)
    prepared = prepare_params(params)

    B, N = 2, 128                                # B point clouds of N 3-D points
    x = jax.random.normal(kx, (B, 3, N), jnp.float32)

    out_x, x_max, x_mean = spct_forward(x, prepared)
    jax.block_until_ready((out_x, x_max, x_mean))

    assert out_x.shape == (B, C_OUT, N)
    assert x_max.shape == (B, C_OUT)
    assert x_mean.shape == (B, C_OUT)
    assert bool(jnp.all(jnp.isfinite(out_x)))
    print("KERNEL_OK")
</pallas_src>

<mosaic_0001>
module attributes {stable_mosaic.version = 11 : i64} {
  func.func @spct_kernel(%arg0: i32, %arg1: memref<1x128x128xbf16, #tpu.memory_space<vmem>>, %arg2: memref<128x128xbf16, #tpu.memory_space<vmem>>, %arg3: memref<1x128xf32, #tpu.memory_space<vmem>>, %arg4: memref<4x128x160xbf16, #tpu.memory_space<vmem>>, %arg5: memref<4x1x128xf32, #tpu.memory_space<vmem>>, %arg6: memref<4x128x128xbf16, #tpu.memory_space<vmem>>, %arg7: memref<4x1x128xf32, #tpu.memory_space<vmem>>, %arg8: memref<1024x512xbf16, #tpu.memory_space<any>>, %arg9: memref<1024x1xf32, #tpu.memory_space<vmem>>, %arg10: memref<1x1024x128xf32, #tpu.memory_space<vmem>>, %arg11: memref<1x1024x1xf32, #tpu.memory_space<vmem>>, %arg12: memref<1x1024x1xf32, #tpu.memory_space<vmem>>, %arg13: memref<1024x512xbf16, #tpu.memory_space<vmem>>, %arg14: memref<!tpu.dma_semaphore, #tpu.memory_space<semaphore_mem>>) attributes {dimension_semantics = [#tpu.dimension_semantics<parallel>], iteration_bounds = array<i64: 2>, scalar_prefetch = 0 : i64, scratch_operands = 2 : i64, tpu.core_type = #tpu.core_type<tc>, window_params = [{transform_indices = @transform_0, window_bounds = array<i64: 1, 128, 128>}, {pipeline_mode = #tpu.pipeline_mode<synchronous>, transform_indices = @transform_1, window_bounds = array<i64: 128, 128>}, {pipeline_mode = #tpu.pipeline_mode<synchronous>, transform_indices = @transform_2, window_bounds = array<i64: 1, 128>}, {pipeline_mode = #tpu.pipeline_mode<synchronous>, transform_indices = @transform_3, window_bounds = array<i64: 4, 128, 160>}, {pipeline_mode = #tpu.pipeline_mode<synchronous>, transform_indices = @transform_4, window_bounds = array<i64: 4, 1, 128>}, {pipeline_mode = #tpu.pipeline_mode<synchronous>, transform_indices = @transform_5, window_bounds = array<i64: 4, 128, 128>}, {pipeline_mode = #tpu.pipeline_mode<synchronous>, transform_indices = @transform_6, window_bounds = array<i64: 4, 1, 128>}, {}, {pipeline_mode = #tpu.pipeline_mode<synchronous>, transform_indices = @transform_8, window_bounds = array<i64: 1024, 1>}, {transform_indices = @transform_9, window_bounds = array<i64: 1, 1024, 128>}, {transform_indices = @transform_10, window_bounds = array<i64: 1, 1024, 1>}, {transform_indices = @transform_11, window_bounds = array<i64: 1, 1024, 1>}]} {
    tpu.enqueue_dma source(%arg8 : memref<1024x512xbf16, #tpu.memory_space<any>>) target(%arg13 : memref<1024x512xbf16, #tpu.memory_space<vmem>>) target_semaphore(%arg14 : memref<!tpu.dma_semaphore, #tpu.memory_space<semaphore_mem>>)
    %c0 = arith.constant 0 : index
    %c0_0 = arith.constant 0 : index
    %c0_1 = arith.constant 0 : index
    %0 = vector.load %arg1[%c0, %c0_0, %c0_1] : memref<1x128x128xbf16, #tpu.memory_space<vmem>>, vector<1x128x128xbf16>
    %1 = vector.shape_cast %0 : vector<1x128x128xbf16> to vector<128x128xbf16>
    %c0_2 = arith.constant 0 : index
    %c0_3 = arith.constant 0 : index
    %2 = vector.load %arg2[%c0_2, %c0_3] : memref<128x128xbf16, #tpu.memory_space<vmem>>, vector<128x128xbf16>
    %cst = arith.constant dense<0.000000e+00> : vector<128x128xf32>
    %3 = tpu.matmul %1, %2, %cst {dimension_numbers = #tpu.dot_dimension_numbers<[1], [0], [0], [1], [0, 0, 1, 1], [], []>} : vector<128x128xbf16>, vector<128x128xbf16>, vector<128x128xf32> -> vector<128x128xf32>
    %c0_4 = arith.constant 0 : index
    %c0_5 = arith.constant 0 : index
    %4 = vector.load %arg3[%c0_4, %c0_5] : memref<1x128xf32, #tpu.memory_space<vmem>>, vector<1x128xf32>
    %5 = vector.broadcast %4 : vector<1x128xf32> to vector<128x128xf32>
    %6 = arith.addf %3, %5 : vector<128x128xf32>
    %cst_6 = arith.constant 0.000000e+00 : f32
    %7 = vector.broadcast %cst_6 : f32 to vector<128x128xf32>
    %8 = arith.maximumf %6, %7 : vector<128x128xf32>
    %9 = arith.truncf %8 : vector<128x128xf32> to vector<128x128xbf16>
    %c0_7 = arith.constant 0 : index
    %c0_8 = arith.constant 0 : index
    %c0_9 = arith.constant 0 : index
    %10 = vector.load %arg4[%c0_7, %c0_8, %c0_9] : memref<4x128x160xbf16, #tpu.memory_space<vmem>>, vector<1x128x160xbf16>
    %11 = vector.shape_cast %10 : vector<1x128x160xbf16> to vector<128x160xbf16>
    %cst_10 = arith.constant dense<0.000000e+00> : vector<128x160xf32>
    %12 = tpu.matmul %9, %11, %cst_10 {dimension_numbers = #tpu.dot_dimension_numbers<[1], [0], [0], [1], [0, 0, 1, 1], [], []>} : vector<128x128xbf16>, vector<128x160xbf16>, vector<128x160xf32> -> vector<128x160xf32>
    %13 = vector.extract_strided_slice %12 {offsets = [0, 0], sizes = [128, 128], strides = [1, 1]} : vector<128x160xf32> to vector<128x128xf32>
    %c0_11 = arith.constant 0 : index
    %c0_12 = arith.constant 0 : index
    %c0_13 = arith.constant 0 : index
    %14 = vector.load %arg5[%c0_11, %c0_12, %c0_13] : memref<4x1x128xf32, #tpu.memory_space<vmem>>, vector<1x1x128xf32>
    %15 = vector.shape_cast %14 : vector<1x1x128xf32> to vector<1x128xf32>
    %16 = vector.broadcast %15 : vector<1x128xf32> to vector<128x128xf32>
    %17 = arith.addf %13, %16 : vector<128x128xf32>
    %18 = vector.extract_strided_slice %12 {offsets = [0, 128], sizes = [128, 32], strides = [1, 1]} : vector<128x160xf32> to vector<128x32xf32>
    %19 = arith.truncf %18 : vector<128x32xf32> to vector<128x32xbf16>
    %cst_14 = arith.constant dense<0.000000e+00> : vector<128x128xf32>
    %20 = tpu.matmul %19, %19, %cst_14 {dimension_numbers = #tpu.dot_dimension_numbers<[1], [1], [0], [0], [0, 0, 1, 0], [], []>} : vector<128x32xbf16>, vector<128x32xbf16>, vector<128x128xf32> -> vector<128x128xf32>
    %cst_15 = arith.constant dense<0xFF800000> : vector<128xf32>
    %21 = vector.multi_reduction <maximumf>, %20, %cst_15 [0] : vector<128x128xf32> to vector<128xf32>
    %22 = vector.shape_cast %21 : vector<128xf32> to vector<1x128xf32>
    %23 = vector.broadcast %22 : vector<1x128xf32> to vector<128x128xf32>
    %24 = arith.subf %20, %23 : vector<128x128xf32>
    %25 = math.exp %24 : vector<128x128xf32>
    %cst_16 = arith.constant dense<0.000000e+00> : vector<128xf32>
    %26 = vector.multi_reduction <add>, %25, %cst_16 [0] : vector<128x128xf32> to vector<128xf32>
    %27 = vector.shape_cast %26 : vector<128xf32> to vector<1x128xf32>
    %28 = tpu.reciprocal %27 {approx = true} : vector<1x128xf32> -> vector<1x128xf32>
    %29 = vector.broadcast %28 : vector<1x128xf32> to vector<128x128xf32>
    %30 = arith.mulf %25, %29 : vector<128x128xf32>
    %cst_17 = arith.constant dense<0.000000e+00> : vector<128xf32>
    %31 = vector.multi_reduction <add>, %30, %cst_17 [1] : vector<128x128xf32> to vector<128xf32>
    %32 = vector.shape_cast %31 : vector<128xf32> to vector<128x1xf32>
    %cst_18 = arith.constant 9.99999971E-10 : f32
    %33 = vector.broadcast %cst_18 : f32 to vector<128x1xf32>
    %34 = arith.addf %33, %32 : vector<128x1xf32>
    %35 = tpu.reciprocal %34 {approx = true} : vector<128x1xf32> -> vector<128x1xf32>
    %36 = arith.truncf %30 : vector<128x128xf32> to vector<128x128xbf16>
    %37 = arith.truncf %17 : vector<128x128xf32> to vector<128x128xbf16>
    %cst_19 = arith.constant dense<0.000000e+00> : vector<128x128xf32>
    %38 = tpu.matmul %36, %37, %cst_19 {dimension_numbers = #tpu.dot_dimension_numbers<[1], [0], [0], [1], [0, 0, 1, 1], [], []>} : vector<128x128xbf16>, vector<128x128xbf16>, vector<128x128xf32> -> vector<128x128xf32>
    %39 = vector.broadcast %35 : vector<128x1xf32> to vector<128x128xf32>
    %40 = arith.mulf %38, %39 : vector<128x128xf32>
    %41 = arith.subf %8, %40 : vector<128x128xf32>
    %42 = arith.truncf %41 : vector<128x128xf32> to vector<128x128xbf16>
    %c0_20 = arith.constant 0 : index
    %c0_21 = arith.constant 0 : index
    %c0_22 = arith.constant 0 : index
    %43 = vector.load %arg6[%c0_20, %c0_21, %c0_22] : memref<4x128x128xbf16, #tpu.memory_space<vmem>>, vector<1x128x128xbf16>
    %44 = vector.shape_cast %43 : vector<1x128x128xbf16> to vector<128x128xbf16>
    %cst_23 = arith.constant dense<0.000000e+00> : vector<128x128xf32>
    %45 = tpu.matmul %42, %44, %cst_23 {dimension_numbers = #tpu.dot_dimension_numbers<[1], [0], [0], [1], [0, 0, 1, 1], [], []>} : vector<128x128xbf16>, vector<128x128xbf16>, vector<128x128xf32> -> vector<128x128xf32>
    %c0_24 = arith.constant 0 : index
    %c0_25 = arith.constant 0 : index
    %c0_26 = arith.constant 0 : index
    %46 = vector.load %arg7[%c0_24, %c0_25, %c0_26] : memref<4x1x128xf32, #tpu.memory_space<vmem>>, vector<1x1x128xf32>
    %47 = vector.shape_cast %46 : vector<1x1x128xf32> to vector<1x128xf32>
    %48 = vector.broadcast %47 : vector<1x128xf32> to vector<128x128xf32>
    %49 = arith.addf %45, %48 : vector<128x128xf32>
    %cst_27 = arith.constant 0.000000e+00 : f32
    %50 = vector.broadcast %cst_27 : f32 to vector<128x128xf32>
    %51 = arith.maximumf %49, %50 : vector<128x128xf32>
    %52 = arith.addf %8, %51 : vector<128x128xf32>
    %53 = tpu.transpose %52, [1, 0] : vector<128x128xf32> -> vector<128x128xf32>
    %54 = arith.truncf %53 : vector<128x128xf32> to vector<128x128xbf16>
    %55 = arith.truncf %52 : vector<128x128xf32> to vector<128x128xbf16>
    %c1 = arith.constant 1 : index
    %c0_28 = arith.constant 0 : index
    %c0_29 = arith.constant 0 : index
    %56 = vector.load %arg4[%c1, %c0_28, %c0_29] : memref<4x128x160xbf16, #tpu.memory_space<vmem>>, vector<1x128x160xbf16>
    %57 = vector.shape_cast %56 : vector<1x128x160xbf16> to vector<128x160xbf16>
    %cst_30 = arith.constant dense<0.000000e+00> : vector<128x160xf32>
    %58 = tpu.matmul %55, %57, %cst_30 {dimension_numbers = #tpu.dot_dimension_numbers<[1], [0], [0], [1], [0, 0, 1, 1], [], []>} : vector<128x128xbf16>, vector<128x160xbf16>, vector<128x160xf32> -> vector<128x160xf32>
    %59 = vector.extract_strided_slice %58 {offsets = [0, 0], sizes = [128, 128], strides = [1, 1]} : vector<128x160xf32> to vector<128x128xf32>
    %c1_31 = arith.constant 1 : index
    %c0_32 = arith.constant 0 : index
    %c0_33 = arith.constant 0 : index
    %60 = vector.load %arg5[%c1_31, %c0_32, %c0_33] : memref<4x1x128xf32, #tpu.memory_space<vmem>>, vector<1x1x128xf32>
    %61 = vector.shape_cast %60 : vector<1x1x128xf32> to vector<1x128xf32>
    %62 = vector.broadcast %61 : vector<1x128xf32> to vector<128x128xf32>
    %63 = arith.addf %59, %62 : vector<128x128xf32>
    %64 = vector.extract_strided_slice %58 {offsets = [0, 128], sizes = [128, 32], strides = [1, 1]} : vector<128x160xf32> to vector<128x32xf32>
    %65 = arith.truncf %64 : vector<128x32xf32> to vector<128x32xbf16>
    %cst_34 = arith.constant dense<0.000000e+00> : vector<128x128xf32>
    %66 = tpu.matmul %65, %65, %cst_34 {dimension_numbers = #tpu.dot_dimension_numbers<[1], [1], [0], [0], [0, 0, 1, 0], [], []>} : vector<128x32xbf16>, vector<128x32xbf16>, vector<128x128xf32> -> vector<128x128xf32>
    %cst_35 = arith.constant dense<0xFF800000> : vector<128xf32>
    %67 = vector.multi_reduction <maximumf>, %66, %cst_35 [0] : vector<128x128xf32> to vector<128xf32>
    %68 = vector.shape_cast %67 : vector<128xf32> to vector<1x128xf32>
    %69 = vector.broadcast %68 : vector<1x128xf32> to vector<128x128xf32>
    %70 = arith.subf %66, %69 : vector<128x128xf32>
    %71 = math.exp %70 : vector<128x128xf32>
    %cst_36 = arith.constant dense<0.000000e+00> : vector<128xf32>
    %72 = vector.multi_reduction <add>, %71, %cst_36 [0] : vector<128x128xf32> to vector<128xf32>
    %73 = vector.shape_cast %72 : vector<128xf32> to vector<1x128xf32>
    %74 = tpu.reciprocal %73 {approx = true} : vector<1x128xf32> -> vector<1x128xf32>
    %75 = vector.broadcast %74 : vector<1x128xf32> to vector<128x128xf32>
    %76 = arith.mulf %71, %75 : vector<128x128xf32>
    %cst_37 = arith.constant dense<0.000000e+00> : vector<128xf32>
    %77 = vector.multi_reduction <add>, %76, %cst_37 [1] : vector<128x128xf32> to vector<128xf32>
    %78 = vector.shape_cast %77 : vector<128xf32> to vector<128x1xf32>
    %cst_38 = arith.constant 9.99999971E-10 : f32
    %79 = vector.broadcast %cst_38 : f32 to vector<128x1xf32>
    %80 = arith.addf %79, %78 : vector<128x1xf32>
    %81 = tpu.reciprocal %80 {approx = true} : vector<128x1xf32> -> vector<128x1xf32>
    %82 = arith.truncf %76 : vector<128x128xf32> to vector<128x128xbf16>
    %83 = arith.truncf %63 : vector<128x128xf32> to vector<128x128xbf16>
    %cst_39 = arith.constant dense<0.000000e+00> : vector<128x128xf32>
    %84 = tpu.matmul %82, %83, %cst_39 {dimension_numbers = #tpu.dot_dimension_numbers<[1], [0], [0], [1], [0, 0, 1, 1], [], []>} : vector<128x128xbf16>, vector<128x128xbf16>, vector<128x128xf32> -> vector<128x128xf32>
    %85 = vector.broadcast %81 : vector<128x1xf32> to vector<128x128xf32>
    %86 = arith.mulf %84, %85 : vector<128x128xf32>
    %87 = arith.subf %52, %86 : vector<128x128xf32>
    %88 = arith.truncf %87 : vector<128x128xf32> to vector<128x128xbf16>
    %c1_40 = arith.constant 1 : index
    %c0_41 = arith.constant 0 : index
    %c0_42 = arith.constant 0 : index
    %89 = vector.load %arg6[%c1_40, %c0_41, %c0_42] : memref<4x128x128xbf16, #tpu.memory_space<vmem>>, vector<1x128x128xbf16>
    %90 = vector.shape_cast %89 : vector<1x128x128xbf16> to vector<128x128xbf16>
    %cst_43 = arith.constant dense<0.000000e+00> : vector<128x128xf32>
    %91 = tpu.matmul %88, %90, %cst_43 {dimension_numbers = #tpu.dot_dimension_numbers<[1], [0], [0], [1], [0, 0, 1, 1], [], []>} : vector<128x128xbf16>, vector<128x128xbf16>, vector<128x128xf32> -> vector<128x128xf32>
    %c1_44 = arith.constant 1 : index
    %c0_45 = arith.constant 0 : index
    %c0_46 = arith.constant 0 : index
    %92 = vector.load %arg7[%c1_44, %c0_45, %c0_46] : memref<4x1x128xf32, #tpu.memory_space<vmem>>, vector<1x1x128xf32>
    %93 = vector.shape_cast %92 : vector<1x1x128xf32> to vector<1x128xf32>
    %94 = vector.broadcast %93 : vector<1x128xf32> to vector<128x128xf32>
    %95 = arith.addf %91, %94 : vector<128x128xf32>
    %cst_47 = arith.constant 0.000000e+00 : f32
    %96 = vector.broadcast %cst_47 : f32 to vector<128x128xf32>
    %97 = arith.maximumf %95, %96 : vector<128x128xf32>
    %98 = arith.addf %52, %97 : vector<128x128xf32>
    %99 = tpu.transpose %98, [1, 0] : vector<128x128xf32> -> vector<128x128xf32>
    %100 = arith.truncf %99 : vector<128x128xf32> to vector<128x128xbf16>
    %101 = arith.truncf %98 : vector<128x128xf32> to vector<128x128xbf16>
    %c2 = arith.constant 2 : index
    %c0_48 = arith.constant 0 : index
    %c0_49 = arith.constant 0 : index
    %102 = vector.load %arg4[%c2, %c0_48, %c0_49] : memref<4x128x160xbf16, #tpu.memory_space<vmem>>, vector<1x128x160xbf16>
    %103 = vector.shape_cast %102 : vector<1x128x160xbf16> to vector<128x160xbf16>
    %cst_50 = arith.constant dense<0.000000e+00> : vector<128x160xf32>
    %104 = tpu.matmul %101, %103, %cst_50 {dimension_numbers = #tpu.dot_dimension_numbers<[1], [0], [0], [1], [0, 0, 1, 1], [], []>} : vector<128x128xbf16>, vector<128x160xbf16>, vector<128x160xf32> -> vector<128x160xf32>
    %105 = vector.extract_strided_slice %104 {offsets = [0, 0], sizes = [128, 128], strides = [1, 1]} : vector<128x160xf32> to vector<128x128xf32>
    %c2_51 = arith.constant 2 : index
    %c0_52 = arith.constant 0 : index
    %c0_53 = arith.constant 0 : index
    %106 = vector.load %arg5[%c2_51, %c0_52, %c0_53] : memref<4x1x128xf32, #tpu.memory_space<vmem>>, vector<1x1x128xf32>
    %107 = vector.shape_cast %106 : vector<1x1x128xf32> to vector<1x128xf32>
    %108 = vector.broadcast %107 : vector<1x128xf32> to vector<128x128xf32>
    %109 = arith.addf %105, %108 : vector<128x128xf32>
    %110 = vector.extract_strided_slice %104 {offsets = [0, 128], sizes = [128, 32], strides = [1, 1]} : vector<128x160xf32> to vector<128x32xf32>
    %111 = arith.truncf %110 : vector<128x32xf32> to vector<128x32xbf16>
    %cst_54 = arith.constant dense<0.000000e+00> : vector<128x128xf32>
    %112 = tpu.matmul %111, %111, %cst_54 {dimension_numbers = #tpu.dot_dimension_numbers<[1], [1], [0], [0], [0, 0, 1, 0], [], []>} : vector<128x32xbf16>, vector<128x32xbf16>, vector<128x128xf32> -> vector<128x128xf32>
    %cst_55 = arith.constant dense<0xFF800000> : vector<128xf32>
    %113 = vector.multi_reduction <maximumf>, %112, %cst_55 [0] : vector<128x128xf32> to vector<128xf32>
    %114 = vector.shape_cast %113 : vector<128xf32> to vector<1x128xf32>
    %115 = vector.broadcast %114 : vector<1x128xf32> to vector<128x128xf32>
    %116 = arith.subf %112, %115 : vector<128x128xf32>
    %117 = math.exp %116 : vector<128x128xf32>
    %cst_56 = arith.constant dense<0.000000e+00> : vector<128xf32>
    %118 = vector.multi_reduction <add>, %117, %cst_56 [0] : vector<128x128xf32> to vector<128xf32>
    %119 = vector.shape_cast %118 : vector<128xf32> to vector<1x128xf32>
    %120 = tpu.reciprocal %119 {approx = true} : vector<1x128xf32> -> vector<1x128xf32>
    %121 = vector.broadcast %120 : vector<1x128xf32> to vector<128x128xf32>
    %122 = arith.mulf %117, %121 : vector<128x128xf32>
    %cst_57 = arith.constant dense<0.000000e+00> : vector<128xf32>
    %123 = vector.multi_reduction <add>, %122, %cst_57 [1] : vector<128x128xf32> to vector<128xf32>
    %124 = vector.shape_cast %123 : vector<128xf32> to vector<128x1xf32>
    %cst_58 = arith.constant 9.99999971E-10 : f32
    %125 = vector.broadcast %cst_58 : f32 to vector<128x1xf32>
    %126 = arith.addf %125, %124 : vector<128x1xf32>
    %127 = tpu.reciprocal %126 {approx = true} : vector<128x1xf32> -> vector<128x1xf32>
    %128 = arith.truncf %122 : vector<128x128xf32> to vector<128x128xbf16>
    %129 = arith.truncf %109 : vector<128x128xf32> to vector<128x128xbf16>
    %cst_59 = arith.constant dense<0.000000e+00> : vector<128x128xf32>
    %130 = tpu.matmul %128, %129, %cst_59 {dimension_numbers = #tpu.dot_dimension_numbers<[1], [0], [0], [1], [0, 0, 1, 1], [], []>} : vector<128x128xbf16>, vector<128x128xbf16>, vector<128x128xf32> -> vector<128x128xf32>
    %131 = vector.broadcast %127 : vector<128x1xf32> to vector<128x128xf32>
    %132 = arith.mulf %130, %131 : vector<128x128xf32>
    %133 = arith.subf %98, %132 : vector<128x128xf32>
    %134 = arith.truncf %133 : vector<128x128xf32> to vector<128x128xbf16>
    %c2_60 = arith.constant 2 : index
    %c0_61 = arith.constant 0 : index
    %c0_62 = arith.constant 0 : index
    %135 = vector.load %arg6[%c2_60, %c0_61, %c0_62] : memref<4x128x128xbf16, #tpu.memory_space<vmem>>, vector<1x128x128xbf16>
    %136 = vector.shape_cast %135 : vector<1x128x128xbf16> to vector<128x128xbf16>
    %cst_63 = arith.constant dense<0.000000e+00> : vector<128x128xf32>
    %137 = tpu.matmul %134, %136, %cst_63 {dimension_numbers = #tpu.dot_dimension_numbers<[1], [0], [0], [1], [0, 0, 1, 1], [], []>} : vector<128x128xbf16>, vector<128x128xbf16>, vector<128x128xf32> -> vector<128x128xf32>
    %c2_64 = arith.constant 2 : index
    %c0_65 = arith.constant 0 : index
    %c0_66 = arith.constant 0 : index
    %138 = vector.load %arg7[%c2_64, %c0_65, %c0_66] : memref<4x1x128xf32, #tpu.memory_space<vmem>>, vector<1x1x128xf32>
    %139 = vector.shape_cast %138 : vector<1x1x128xf32> to vector<1x128xf32>
    %140 = vector.broadcast %139 : vector<1x128xf32> to vector<128x128xf32>
    %141 = arith.addf %137, %140 : vector<128x128xf32>
    %cst_67 = arith.constant 0.000000e+00 : f32
    %142 = vector.broadcast %cst_67 : f32 to vector<128x128xf32>
    %143 = arith.maximumf %141, %142 : vector<128x128xf32>
    %144 = arith.addf %98, %143 : vector<128x128xf32>
    %145 = tpu.transpose %144, [1, 0] : vector<128x128xf32> -> vector<128x128xf32>
    %146 = arith.truncf %145 : vector<128x128xf32> to vector<128x128xbf16>
    %147 = arith.truncf %144 : vector<128x128xf32> to vector<128x128xbf16>
    %c3 = arith.constant 3 : index
    %c0_68 = arith.constant 0 : index
    %c0_69 = arith.constant 0 : index
    %148 = vector.load %arg4[%c3, %c0_68, %c0_69] : memref<4x128x160xbf16, #tpu.memory_space<vmem>>, vector<1x128x160xbf16>
    %149 = vector.shape_cast %148 : vector<1x128x160xbf16> to vector<128x160xbf16>
    %cst_70 = arith.constant dense<0.000000e+00> : vector<128x160xf32>
    %150 = tpu.matmul %147, %149, %cst_70 {dimension_numbers = #tpu.dot_dimension_numbers<[1], [0], [0], [1], [0, 0, 1, 1], [], []>} : vector<128x128xbf16>, vector<128x160xbf16>, vector<128x160xf32> -> vector<128x160xf32>
    %151 = vector.extract_strided_slice %150 {offsets = [0, 0], sizes = [128, 128], strides = [1, 1]} : vector<128x160xf32> to vector<128x128xf32>
    %c3_71 = arith.constant 3 : index
    %c0_72 = arith.constant 0 : index
    %c0_73 = arith.constant 0 : index
    %152 = vector.load %arg5[%c3_71, %c0_72, %c0_73] : memref<4x1x128xf32, #tpu.memory_space<vmem>>, vector<1x1x128xf32>
    %153 = vector.shape_cast %152 : vector<1x1x128xf32> to vector<1x128xf32>
    %154 = vector.broadcast %153 : vector<1x128xf32> to vector<128x128xf32>
    %155 = arith.addf %151, %154 : vector<128x128xf32>
    %156 = vector.extract_strided_slice %150 {offsets = [0, 128], sizes = [128, 32], strides = [1, 1]} : vector<128x160xf32> to vector<128x32xf32>
    %157 = arith.truncf %156 : vector<128x32xf32> to vector<128x32xbf16>
    %cst_74 = arith.constant dense<0.000000e+00> : vector<128x128xf32>
    %158 = tpu.matmul %157, %157, %cst_74 {dimension_numbers = #tpu.dot_dimension_numbers<[1], [1], [0], [0], [0, 0, 1, 0], [], []>} : vector<128x32xbf16>, vector<128x32xbf16>, vector<128x128xf32> -> vector<128x128xf32>
    %cst_75 = arith.constant dense<0xFF800000> : vector<128xf32>
    %159 = vector.multi_reduction <maximumf>, %158, %cst_75 [0] : vector<128x128xf32> to vector<128xf32>
    %160 = vector.shape_cast %159 : vector<128xf32> to vector<1x128xf32>
    %161 = vector.broadcast %160 : vector<1x128xf32> to vector<128x128xf32>
    %162 = arith.subf %158, %161 : vector<128x128xf32>
    %163 = math.exp %162 : vector<128x128xf32>
    %cst_76 = arith.constant dense<0.000000e+00> : vector<128xf32>
    %164 = vector.multi_reduction <add>, %163, %cst_76 [0] : vector<128x128xf32> to vector<128xf32>
    %165 = vector.shape_cast %164 : vector<128xf32> to vector<1x128xf32>
    %166 = tpu.reciprocal %165 {approx = true} : vector<1x128xf32> -> vector<1x128xf32>
    %167 = vector.broadcast %166 : vector<1x128xf32> to vector<128x128xf32>
    %168 = arith.mulf %163, %167 : vector<128x128xf32>
    %cst_77 = arith.constant dense<0.000000e+00> : vector<128xf32>
    %169 = vector.multi_reduction <add>, %168, %cst_77 [1] : vector<128x128xf32> to vector<128xf32>
    %170 = vector.shape_cast %169 : vector<128xf32> to vector<128x1xf32>
    %cst_78 = arith.constant 9.99999971E-10 : f32
    %171 = vector.broadcast %cst_78 : f32 to vector<128x1xf32>
    %172 = arith.addf %171, %170 : vector<128x1xf32>
    %173 = tpu.reciprocal %172 {approx = true} : vector<128x1xf32> -> vector<128x1xf32>
    %174 = arith.truncf %168 : vector<128x128xf32> to vector<128x128xbf16>
    %175 = arith.truncf %155 : vector<128x128xf32> to vector<128x128xbf16>
    %cst_79 = arith.constant dense<0.000000e+00> : vector<128x128xf32>
    %176 = tpu.matmul %174, %175, %cst_79 {dimension_numbers = #tpu.dot_dimension_numbers<[1], [0], [0], [1], [0, 0, 1, 1], [], []>} : vector<128x128xbf16>, vector<128x128xbf16>, vector<128x128xf32> -> vector<128x128xf32>
    %177 = vector.broadcast %173 : vector<128x1xf32> to vector<128x128xf32>
    %178 = arith.mulf %176, %177 : vector<128x128xf32>
    %179 = arith.subf %144, %178 : vector<128x128xf32>
    %180 = arith.truncf %179 : vector<128x128xf32> to vector<128x128xbf16>
    %c3_80 = arith.constant 3 : index
    %c0_81 = arith.constant 0 : index
    %c0_82 = arith.constant 0 : index
    %181 = vector.load %arg6[%c3_80, %c0_81, %c0_82] : memref<4x128x128xbf16, #tpu.memory_space<vmem>>, vector<1x128x128xbf16>
    %182 = vector.shape_cast %181 : vector<1x128x128xbf16> to vector<128x128xbf16>
    %cst_83 = arith.constant dense<0.000000e+00> : vector<128x128xf32>
    %183 = tpu.matmul %180, %182, %cst_83 {dimension_numbers = #tpu.dot_dimension_numbers<[1], [0], [0], [1], [0, 0, 1, 1], [], []>} : vector<128x128xbf16>, vector<128x128xbf16>, vector<128x128xf32> -> vector<128x128xf32>
    %c3_84 = arith.constant 3 : index
    %c0_85 = arith.constant 0 : index
    %c0_86 = arith.constant 0 : index
    %184 = vector.load %arg7[%c3_84, %c0_85, %c0_86] : memref<4x1x128xf32, #tpu.memory_space<vmem>>, vector<1x1x128xf32>
    %185 = vector.shape_cast %184 : vector<1x1x128xf32> to vector<1x128xf32>
    %186 = vector.broadcast %185 : vector<1x128xf32> to vector<128x128xf32>
    %187 = arith.addf %183, %186 : vector<128x128xf32>
    %cst_87 = arith.constant 0.000000e+00 : f32
    %188 = vector.broadcast %cst_87 : f32 to vector<128x128xf32>
    %189 = arith.maximumf %187, %188 : vector<128x128xf32>
    %190 = arith.addf %144, %189 : vector<128x128xf32>
    %191 = tpu.transpose %190, [1, 0] : vector<128x128xf32> -> vector<128x128xf32>
    %192 = arith.truncf %191 : vector<128x128xf32> to vector<128x128xbf16>
    %193 = tpu.concatenate %54, %100, %146, %192 in 0 : vector<128x128xbf16>, vector<128x128xbf16>, vector<128x128xbf16>, vector<128x128xbf16> -> vector<512x128xbf16>
    tpu.wait_dma2 semaphore(%arg14 : memref<!tpu.dma_semaphore, #tpu.memory_space<semaphore_mem>>) src(%arg8 : memref<1024x512xbf16, #tpu.memory_space<any>>) dst(%arg13 : memref<1024x512xbf16, #tpu.memory_space<vmem>>)
    %c0_88 = arith.constant 0 : index
    %c0_89 = arith.constant 0 : index
    %194 = vector.load %arg13[%c0_88, %c0_89] : memref<1024x512xbf16, #tpu.memory_space<vmem>>, vector<1024x512xbf16>
    %cst_90 = arith.constant dense<0.000000e+00> : vector<1024x128xf32>
    %195 = tpu.matmul %194, %193, %cst_90 {dimension_numbers = #tpu.dot_dimension_numbers<[1], [0], [0], [1], [0, 0, 1, 1], [], []>} : vector<1024x512xbf16>, vector<512x128xbf16>, vector<1024x128xf32> -> vector<1024x128xf32>
    %c0_91 = arith.constant 0 : index
    %c0_92 = arith.constant 0 : index
    %196 = vector.load %arg9[%c0_91, %c0_92] : memref<1024x1xf32, #tpu.memory_space<vmem>>, vector<1024x1xf32>
    %197 = vector.broadcast %196 : vector<1024x1xf32> to vector<1024x128xf32>
    %198 = arith.addf %195, %197 : vector<1024x128xf32>
    %cst_93 = arith.constant 0.000000e+00 : f32
    %199 = vector.broadcast %cst_93 : f32 to vector<1024x128xf32>
    %200 = arith.cmpf ogt, %198, %199 : vector<1024x128xf32>
    %cst_94 = arith.constant 2.000000e-01 : f32
    %201 = vector.broadcast %cst_94 : f32 to vector<1024x128xf32>
    %202 = arith.mulf %201, %198 : vector<1024x128xf32>
    %203 = arith.select %200, %198, %202 : vector<1024x128xi1>, vector<1024x128xf32>
    %c0_95 = arith.constant 0 : index
    %c0_96 = arith.constant 0 : index
    %c0_97 = arith.constant 0 : index
    %204 = vector.load %arg10[%c0_95, %c0_96, %c0_97] : memref<1x1024x128xf32, #tpu.memory_space<vmem>>, vector<1x1024x128xf32>
    %205 = vector.shape_cast %204 : vector<1x1024x128xf32> to vector<1024x128xf32>
    %206 = vector.shape_cast %203 : vector<1024x128xf32> to vector<1x1024x128xf32>
    tpu.vector_store %arg10[%c0_95, %c0_96, %c0_97], %206 {strides = array<i32>} : memref<1x1024x128xf32, #tpu.memory_space<vmem>>, vector<1x1024x128xf32>,
    %cst_98 = arith.constant dense<0xFF800000> : vector<1024xf32>
    %207 = vector.multi_reduction <maximumf>, %203, %cst_98 [1] : vector<1024x128xf32> to vector<1024xf32>
    %208 = vector.shape_cast %207 : vector<1024xf32> to vector<1024x1xf32>
    %c0_99 = arith.constant 0 : index
    %c0_100 = arith.constant 0 : index
    %c0_101 = arith.constant 0 : index
    %209 = vector.load %arg11[%c0_99, %c0_100, %c0_101] : memref<1x1024x1xf32, #tpu.memory_space<vmem>>, vector<1x1024x1xf32>
    %210 = vector.shape_cast %209 : vector<1x1024x1xf32> to vector<1024x1xf32>
    %211 = vector.shape_cast %208 : vector<1024x1xf32> to vector<1x1024x1xf32>
    tpu.vector_store %arg11[%c0_99, %c0_100, %c0_101], %211 {strides = array<i32>} : memref<1x1024x1xf32, #tpu.memory_space<vmem>>, vector<1x1024x1xf32>,
    %cst_102 = arith.constant dense<0.000000e+00> : vector<1024xf32>
    %212 = vector.multi_reduction <add>, %203, %cst_102 [1] : vector<1024x128xf32> to vector<1024xf32>
    %213 = vector.shape_cast %212 : vector<1024xf32> to vector<1024x1xf32>
    %cst_103 = arith.constant 1.280000e+02 : f32
    %214 = vector.broadcast %cst_103 : f32 to vector<1024x1xf32>
    %215 = arith.divf %213, %214 : vector<1024x1xf32>
    %c0_104 = arith.constant 0 : index
    %c0_105 = arith.constant 0 : index
    %c0_106 = arith.constant 0 : index
    %216 = vector.load %arg12[%c0_104, %c0_105, %c0_106] : memref<1x1024x1xf32, #tpu.memory_space<vmem>>, vector<1x1024x1xf32>
    %217 = vector.shape_cast %216 : vector<1x1024x1xf32> to vector<1024x1xf32>
    %218 = vector.shape_cast %215 : vector<1024x1xf32> to vector<1x1024x1xf32>
    tpu.vector_store %arg12[%c0_104, %c0_105, %c0_106], %218 {strides = array<i32>} : memref<1x1024x1xf32, #tpu.memory_space<vmem>>, vector<1x1024x1xf32>,
    return
  }
  func.func @transform_0(%arg0: i32) -> (i32, i32, i32) {
    %c0_i32 = arith.constant 0 : i32
    %c0_i32_0 = arith.constant 0 : i32
    %c0_i32_1 = arith.constant 0 : i32
    return %arg0, %c0_i32, %c0_i32_0 : i32, i32, i32
  }
  func.func @transform_1(%arg0: i32) -> (i32, i32) {
    %c0_i32 = arith.constant 0 : i32
    %c0_i32_0 = arith.constant 0 : i32
    %c0_i32_1 = arith.constant 0 : i32
    return %c0_i32, %c0_i32_0 : i32, i32
  }
  func.func @transform_2(%arg0: i32) -> (i32, i32) {
    %c0_i32 = arith.constant 0 : i32
    %c0_i32_0 = arith.constant 0 : i32
    %c0_i32_1 = arith.constant 0 : i32
    return %c0_i32, %c0_i32_0 : i32, i32
  }
  func.func @transform_3(%arg0: i32) -> (i32, i32, i32) {
    %c0_i32 = arith.constant 0 : i32
    %c0_i32_0 = arith.constant 0 : i32
    %c0_i32_1 = arith.constant 0 : i32
    %c0_i32_2 = arith.constant 0 : i32
    return %c0_i32, %c0_i32_0, %c0_i32_1 : i32, i32, i32
  }
  func.func @transform_4(%arg0: i32) -> (i32, i32, i32) {
    %c0_i32 = arith.constant 0 : i32
    %c0_i32_0 = arith.constant 0 : i32
    %c0_i32_1 = arith.constant 0 : i32
    %c0_i32_2 = arith.constant 0 : i32
    return %c0_i32, %c0_i32_0, %c0_i32_1 : i32, i32, i32
  }
  func.func @transform_5(%arg0: i32) -> (i32, i32, i32) {
    %c0_i32 = arith.constant 0 : i32
    %c0_i32_0 = arith.constant 0 : i32
    %c0_i32_1 = arith.constant 0 : i32
    %c0_i32_2 = arith.constant 0 : i32
    return %c0_i32, %c0_i32_0, %c0_i32_1 : i32, i32, i32
  }
  func.func @transform_6(%arg0: i32) -> (i32, i32, i32) {
    %c0_i32 = arith.constant 0 : i32
    %c0_i32_0 = arith.constant 0 : i32
    %c0_i32_1 = arith.constant 0 : i32
    %c0_i32_2 = arith.constant 0 : i32
    return %c0_i32, %c0_i32_0, %c0_i32_1 : i32, i32, i32
  }
  func.func @transform_8(%arg0: i32) -> (i32, i32) {
    %c0_i32 = arith.constant 0 : i32
    %c0_i32_0 = arith.constant 0 : i32
    %c0_i32_1 = arith.constant 0 : i32
    return %c0_i32, %c0_i32_0 : i32, i32
  }
  func.func @transform_9(%arg0: i32) -> (i32, i32, i32) {
    %c0_i32 = arith.constant 0 : i32
    %c0_i32_0 = arith.constant 0 : i32
    %c0_i32_1 = arith.constant 0 : i32
    return %arg0, %c0_i32, %c0_i32_0 : i32, i32, i32
  }
  func.func @transform_10(%arg0: i32) -> (i32, i32, i32) {
    %c0_i32 = arith.constant 0 : i32
    %c0_i32_0 = arith.constant 0 : i32
    %c0_i32_1 = arith.constant 0 : i32
    return %arg0, %c0_i32, %c0_i32_0 : i32, i32, i32
  }
  func.func @transform_11(%arg0: i32) -> (i32, i32, i32) {
    %c0_i32 = arith.constant 0 : i32
    %c0_i32_0 = arith.constant 0 : i32
    %c0_i32_1 = arith.constant 0 : i32
    return %arg0, %c0_i32, %c0_i32_0 : i32, i32, i32
  }
}

</mosaic_0001>

<llo_original>
// kernel: spct_forward.1
$region0: #{spct_forward.1}
  #allocation0 [shape = 'u32[]', space=smem, size = 0x4, offset = 0x4, fixed_abs, tag = 'smem constant byte address 0x4 - core index']
  #allocation1 [shape = 'u32[144,128]{1,0:T(1,128)}', space=vmem, size = 0x12000, scoped, tag = 'internal scratch']
  #allocation2 [shape = 'bf16[1024,512]{1,0:T(8,128)(2,1)}', space=vmem, size = 0x100000, scoped, tag = 'scratch operand']
  #allocation3 [shape = 's32[1]{0}', space=sflag, size = 0x4, scoped, tag = 'scratch operand']
  #allocation6 [shape = 's32[]', space=sflag, size = 0x4, offset = 0, fixed_abs, tag = 'sflag constant byte address 0x0 - dummy sync flag']
  #allocation7 [shape = 's32[]', space=sflag, size = 0x4, offset = 0, fixed_abs, tag = 'sflag constant byte address 0x0 - dummy sync flag']
  #allocation8 [shape = 'u32[]', space=smem, size = 0x4, offset = 0x44, fixed_abs, tag = 'smem constant byte address 0x44 - assertion arg 0']
  #allocation9 [shape = 'u32[]', space=smem, size = 0x4, offset = 0x48, fixed_abs, tag = 'smem constant byte address 0x48 - assertion arg 1']
  %s0 = inlined_call_operand.vmem [shape: bf16[2,128,128], index: 0, kind: input, shape index: {}]
  %s1 = inlined_call_operand.vmem [shape: bf16[128,128], index: 1, kind: input, shape index: {}]
  %s2 = inlined_call_operand.vmem [shape: f32[1,128], index: 2, kind: input, shape index: {}]
  %s3 = inlined_call_operand.vmem [shape: bf16[4,128,160], index: 3, kind: input, shape index: {}]
  %s4 = inlined_call_operand.vmem [shape: f32[4,1,128], index: 4, kind: input, shape index: {}]
  %s5 = inlined_call_operand.vmem [shape: bf16[4,128,128], index: 5, kind: input, shape index: {}]
  %s6 = inlined_call_operand.vmem [shape: f32[4,1,128], index: 6, kind: input, shape index: {}]
  %s7 = inlined_call_operand.hbm [shape: bf16[1024,512], index: 7, kind: input, shape index: {}]
  %s8 = inlined_call_operand.vmem [shape: f32[1024,1], index: 8, kind: input, shape index: {}]
  %s9 = inlined_call_operand.hbm [shape: f32[2,1024,128], index: 9, kind: output, shape index: {0}]
  %s10 = inlined_call_operand.vmem [shape: f32[2,1024,1], index: 10, kind: output, shape index: {1}]
  %s11 = inlined_call_operand.vmem [shape: f32[2,1024,1], index: 11, kind: output, shape index: {2}]
  %12 = xla_tuple %s9, %s10, %s11
  %s13 = sld [smem:[#allocation0]]
  $region85: #{spct_forward.1} parent=0
    _
  %s15 = ssub.s32 1, %s13
  %s16 = scalar_select 0, %s15, %s13
  $region1: #{spct_forward.1} parent=0
    #allocation4 [shape = 'u8[1048576]{0}', space=vmem, size = 0x100000, scoped, tag = 'output window, operand 0']
    #allocation5 [shape = 's32[2]{0}', space=sflag, size = 0x8, scoped, tag = 'scoped memory for spct_forward.1']
    %17 = vsyncpa [#allocation5], 0
    %s18 = scalar_lea.sflag [#allocation5], 1
    %19 = vsyncpa %s18, 0
    loop: start=0, step=1, limit=4
    $region2: #{spct_forward.1} parent=1 // loop_pre_header
      _
    $region3: #{spct_forward.1} parent=1 // loop_header
      %s21 = sphi 0, %s25
      %p22 = scmp.ge.s32.totalorder %s21, 4
      %s31 = sphi 0, %s33
      %s34 = sphi 0, %s31
      %s35 = sphi 0, %s34
      %s51 = sphi 0, %s35
      %s55 = sphi 0, %s55
      %s57 = sphi 0, %s55
      %s58 = sphi 0, %s57
      %s72 = sphi 0, %s58
      %s76 = sphi 0, %s76
      %s78 = sphi 0, %s76
      %s79 = sphi 0, %s78
      %s93 = sphi 0, %s79
      %s97 = sphi 0, %s97
      %s99 = sphi 0, %s97
      %s100 = sphi 0, %s99
      %s114 = sphi 0, %s100
      %s118 = sphi 0, %s118
      %s120 = sphi 0, %s118
      %s121 = sphi 0, %s120
      %s135 = sphi 0, %s121
      %s139 = sphi 0, %s139
      %s141 = sphi 0, %s139
      %s142 = sphi 0, %s141
      %s156 = sphi 0, %s142
      %s160 = sphi 0, %s160
      %s162 = sphi 0, %s160
      %s163 = sphi 0, %s162
      %s177 = sphi 0, %s163
      %s181 = sphi 0, %s181
      %s183 = sphi 0, %s181
      %s184 = sphi 0, %s183
      %s198 = sphi 0, %s184
      %s204 = sphi 0, %s206
      %s207 = sphi 0, %s204
      %s208 = sphi 0, %s207
      %s224 = sphi 0, %s208
      %s230 = sphi 0, %s232
      %s233 = sphi 0, %s230
      %s234 = sphi 0, %s233
      %s250 = sphi 0, %s234
      %s256 = sphi 0, %s258
      %s259 = sphi 0, %s256
      %s260 = sphi 0, %s259
      %s276 = sphi 0, %s260
    $region4: #{spct_forward.1} parent=1 // loop_header_branch
      %24 = sbr.rel (%p22) target = $region8
    $region5: #{spct_forward.1} parent=1 // loop_body
      %s26 = ssub.s32 %s21, 1
      %s27 = ssub.s32 %s21, 2
      %s28 = sadd.s32 %s21, 1
      %s29 = ssub.s32 %s21, %s28
      %p30 = scmp.eq.s32.totalorder %s29, 0
      %s32 = sadd.s32 %s31, 1
      %s33 = scalar_select %p30, %s31, %s32
      %p36 = pneg %p30
      %p37 = scmp.eq.s32.totalorder %s21, 1
      %p38 = por %p36, %p37
      %p39 = scmp.ne.s32.totalorder %s31, %s34
      %p40 = scmp.eq.s32.totalorder %s21, 0
      %p41 = por %p39, %p40
      %p42 = scmp.ne.s32.totalorder %s31, %s34
      %p43 = scmp.eq.s32.totalorder %s26, 1
      %p44 = por %p42, %p43
      %p45 = scmp.ne.s32.totalorder %s34, %s35
      %p46 = scmp.eq.s32.totalorder %s26, 0
      %p47 = por %p45, %p46
      %p48 = scmp.ne.s32.totalorder %s34, %s35
      %p49 = scmp.eq.s32.totalorder %s27, 1
      %p50 = por %p48, %p49
      %p52 = scmp.ne.s32.totalorder %s35, %s51
      %p53 = scmp.eq.s32.totalorder %s27, 0
      %p54 = por %p52, %p53
      %s56 = sadd.s32 %s55, 1
      %p59 = scmp.eq.s32.totalorder %s21, 1
      %p60 = scmp.ne.s32.totalorder %s55, %s57
      %p61 = scmp.eq.s32.totalorder %s21, 0
      %p62 = por %p60, %p61
      %p63 = scmp.ne.s32.totalorder %s55, %s57
      %p64 = scmp.eq.s32.totalorder %s26, 1
      %p65 = por %p63, %p64
      %p66 = scmp.ne.s32.totalorder %s57, %s58
      %p67 = scmp.eq.s32.totalorder %s26, 0
      %p68 = por %p66, %p67
      %p69 = scmp.ne.s32.totalorder %s57, %s58
      %p70 = scmp.eq.s32.totalorder %s27, 1
      %p71 = por %p69, %p70
      %p73 = scmp.ne.s32.totalorder %s58, %s72
      %p74 = scmp.eq.s32.totalorder %s27, 0
      %p75 = por %p73, %p74
      %s77 = sadd.s32 %s76, 1
      %p80 = scmp.eq.s32.totalorder %s21, 1
      %p81 = scmp.ne.s32.totalorder %s76, %s78
      %p82 = scmp.eq.s32.totalorder %s21, 0
      %p83 = por %p81, %p82
      %p84 = scmp.ne.s32.totalorder %s76, %s78
      %p85 = scmp.eq.s32.totalorder %s26, 1
      %p86 = por %p84, %p85
      %p87 = scmp.ne.s32.totalorder %s78, %s79
      %p88 = scmp.eq.s32.totalorder %s26, 0
      %p89 = por %p87, %p88
      %p90 = scmp.ne.s32.totalorder %s78, %s79
      %p91 = scmp.eq.s32.totalorder %s27, 1
      %p92 = por %p90, %p91
      %p94 = scmp.ne.s32.totalorder %s79, %s93
      %p95 = scmp.eq.s32.totalorder %s27, 0
      %p96 = por %p94, %p95
      %s98 = sadd.s32 %s97, 1
      %p101 = scmp.eq.s32.totalorder %s21, 1
      %p102 = scmp.ne.s32.totalorder %s97, %s99
      %p103 = scmp.eq.s32.totalorder %s21, 0
      %p104 = por %p102, %p103
      %p105 = scmp.ne.s32.totalorder %s97, %s99
      %p106 = scmp.eq.s32.totalorder %s26, 1
      %p107 = por %p105, %p106
      %p108 = scmp.ne.s32.totalorder %s99, %s100
      %p109 = scmp.eq.s32.totalorder %s26, 0
      %p110 = por %p108, %p109
      %p111 = scmp.ne.s32.totalorder %s99, %s100
      %p112 = scmp.eq.s32.totalorder %s27, 1
      %p113 = por %p111, %p112
      %p115 = scmp.ne.s32.totalorder %s100, %s114
      %p116 = scmp.eq.s32.totalorder %s27, 0
      %p117 = por %p115, %p116
      %s119 = sadd.s32 %s118, 1
      %p122 = scmp.eq.s32.totalorder %s21, 1
      %p123 = scmp.ne.s32.totalorder %s118, %s120
      %p124 = scmp.eq.s32.totalorder %s21, 0
      %p125 = por %p123, %p124
      %p126 = scmp.ne.s32.totalorder %s118, %s120
      %p127 = scmp.eq.s32.totalorder %s26, 1
      %p128 = por %p126, %p127
      %p129 = scmp.ne.s32.totalorder %s120, %s121
      %p130 = scmp.eq.s32.totalorder %s26, 0
      %p131 = por %p129, %p130
      %p132 = scmp.ne.s32.totalorder %s120, %s121
      %p133 = scmp.eq.s32.totalorder %s27, 1
      %p134 = por %p132, %p133
      %p136 = scmp.ne.s32.totalorder %s121, %s135
      %p137 = scmp.eq.s32.totalorder %s27, 0
      %p138 = por %p136, %p137
      %s140 = sadd.s32 %s139, 1
      %p143 = scmp.eq.s32.totalorder %s21, 1
      %p144 = scmp.ne.s32.totalorder %s139, %s141
      %p145 = scmp.eq.s32.totalorder %s21, 0
      %p146 = por %p144, %p145
      %p147 = scmp.ne.s32.totalorder %s139, %s141
      %p148 = scmp.eq.s32.totalorder %s26, 1
      %p149 = por %p147, %p148
      %p150 = scmp.ne.s32.totalorder %s141, %s142
      %p151 = scmp.eq.s32.totalorder %s26, 0
      %p152 = por %p150, %p151
      %p153 = scmp.ne.s32.totalorder %s141, %s142
      %p154 = scmp.eq.s32.totalorder %s27, 1
      %p155 = por %p153, %p154
      %p157 = scmp.ne.s32.totalorder %s142, %s156
      %p158 = scmp.eq.s32.totalorder %s27, 0
      %p159 = por %p157, %p158
      %s161 = sadd.s32 %s160, 1
      %p164 = scmp.eq.s32.totalorder %s21, 1
      %p165 = scmp.ne.s32.totalorder %s160, %s162
      %p166 = scmp.eq.s32.totalorder %s21, 0
      %p167 = por %p165, %p166
      %p168 = scmp.ne.s32.totalorder %s160, %s162
      %p169 = scmp.eq.s32.totalorder %s26, 1
      %p170 = por %p168, %p169
      %p171 = scmp.ne.s32.totalorder %s162, %s163
      %p172 = scmp.eq.s32.totalorder %s26, 0
      %p173 = por %p171, %p172
      %p174 = scmp.ne.s32.totalorder %s162, %s163
      %p175 = scmp.eq.s32.totalorder %s27, 1
      %p176 = por %p174, %p175
      %p178 = scmp.ne.s32.totalorder %s163, %s177
      %p179 = scmp.eq.s32.totalorder %s27, 0
      %p180 = por %p178, %p179
      %s182 = sadd.s32 %s181, 1
      %p185 = scmp.eq.s32.totalorder %s21, 1
      %p186 = scmp.ne.s32.totalorder %s181, %s183
      %p187 = scmp.eq.s32.totalorder %s21, 0
      %p188 = por %p186, %p187
      %p189 = scmp.ne.s32.totalorder %s181, %s183
      %p190 = scmp.eq.s32.totalorder %s26, 1
      %p191 = por %p189, %p190
      %p192 = scmp.ne.s32.totalorder %s183, %s184
      %p193 = scmp.eq.s32.totalorder %s26, 0
      %p194 = por %p192, %p193
      %p195 = scmp.ne.s32.totalorder %s183, %s184
      %p196 = scmp.eq.s32.totalorder %s27, 1
      %p197 = por %p195, %p196
      %p199 = scmp.ne.s32.totalorder %s184, %s198
      %p200 = scmp.eq.s32.totalorder %s27, 0
      %p201 = por %p199, %p200
      %s202 = ssub.s32 %s21, %s28
      %p203 = scmp.eq.s32.totalorder %s202, 0
      %s205 = sadd.s32 %s204, 1
      %s206 = scalar_select %p203, %s204, %s205
      %p209 = pneg %p203
      %p210 = scmp.eq.s32.totalorder %s21, 1
      %p211 = por %p209, %p210
      %p212 = scmp.ne.s32.totalorder %s204, %s207
      %p213 = scmp.eq.s32.totalorder %s21, 0
      %p214 = por %p212, %p213
      %p215 = scmp.ne.s32.totalorder %s204, %s207
      %p216 = scmp.eq.s32.totalorder %s26, 1
      %p217 = por %p215, %p216
      %p218 = scmp.ne.s32.totalorder %s207, %s208
      %p219 = scmp.eq.s32.totalorder %s26, 0
      %p220 = por %p218, %p219
      %p221 = scmp.ne.s32.totalorder %s207, %s208
      %p222 = scmp.eq.s32.totalorder %s27, 1
      %p223 = por %p221, %p222
      %p225 = scmp.ne.s32.totalorder %s208, %s224
      %p226 = scmp.eq.s32.totalorder %s27, 0
      %p227 = por %p225, %p226
      %s228 = ssub.s32 %s21, %s28
      %p229 = scmp.eq.s32.totalorder %s228, 0
      %s231 = sadd.s32 %s230, 1
      %s232 = scalar_select %p229, %s230, %s231
      %p235 = pneg %p229
      %p236 = scmp.eq.s32.totalorder %s21, 1
      %p237 = por %p235, %p236
      %p238 = scmp.ne.s32.totalorder %s230, %s233
      %p239 = scmp.eq.s32.totalorder %s21, 0
      %p240 = por %p238, %p239
      %p241 = scmp.ne.s32.totalorder %s230, %s233
      %p242 = scmp.eq.s32.totalorder %s26, 1
      %p243 = por %p241, %p242
      %p244 = scmp.ne.s32.totalorder %s233, %s234
      %p245 = scmp.eq.s32.totalorder %s26, 0
      %p246 = por %p244, %p245
      %p247 = scmp.ne.s32.totalorder %s233, %s234
      %p248 = scmp.eq.s32.totalorder %s27, 1
      %p249 = por %p247, %p248
      %p251 = scmp.ne.s32.totalorder %s234, %s250
      %p252 = scmp.eq.s32.totalorder %s27, 0
      %p253 = por %p251, %p252
      %s254 = ssub.s32 %s21, %s28
      %p255 = scmp.eq.s32.totalorder %s254, 0
      %s257 = sadd.s32 %s256, 1
      %s258 = scalar_select %p255, %s256, %s257
      %p261 = pneg %p255
      %p262 = scmp.eq.s32.totalorder %s21, 1
      %p263 = por %p261, %p262
      %p264 = scmp.ne.s32.totalorder %s256, %s259
      %p265 = scmp.eq.s32.totalorder %s21, 0
      %p266 = por %p264, %p265
      %p267 = scmp.ne.s32.totalorder %s256, %s259
      %p268 = scmp.eq.s32.totalorder %s26, 1
      %p269 = por %p267, %p268
      %p270 = scmp.ne.s32.totalorder %s259, %s260
      %p271 = scmp.eq.s32.totalorder %s26, 0
      %p272 = por %p270, %p271
      %p273 = scmp.ne.s32.totalorder %s259, %s260
      %p274 = scmp.eq.s32.totalorder %s27, 1
      %p275 = por %p273, %p274
      %p277 = scmp.ne.s32.totalorder %s260, %s276
      %p278 = scmp.eq.s32.totalorder %s27, 0
      %p279 = por %p277, %p278
      %p280 = scmp.le.s32.totalorder 1, %s21
      %p281 = scmp.lt.s32.totalorder %s21, 3
      %p282 = pnand %p280, %p281
      %p283 = pneg %p282
      // Predicated region
      $region9: #{spct_forward.1} parent=5 // pred_check
        _
      $region10: #{spct_forward.1} parent=5 // pred_check_branch
        %285 = sbr.rel (%p282) target = $region12
      $region11: #{spct_forward.1} parent=5 // pred_region
        %s286 = ssub.s32 %s21, 1
        // Predicated region
        $region13: #{spct_forward.1} parent=11 // pred_check
          %p287 = pneg %p68
        $region14: #{spct_forward.1} parent=11 // pred_check_branch
          %289 = sbr.rel (%p287) target = $region16
        $region15: #{spct_forward.1} parent=11 // pred_region
          _
        $region16: #{spct_forward.1} parent=11 // pred_fallthru
          _
        // Predicated region
        $region17: #{spct_forward.1} parent=11 // pred_check
          %p290 = pneg %p89
        $region18: #{spct_forward.1} parent=11 // pred_check_branch
          %292 = sbr.rel (%p290) target = $region20
        $region19: #{spct_forward.1} parent=11 // pred_region
          _
        $region20: #{spct_forward.1} parent=11 // pred_fallthru
          _
        // Predicated region
        $region21: #{spct_forward.1} parent=11 // pred_check
          %p293 = pneg %p110
        $region22: #{spct_forward.1} parent=11 // pred_check_branch
          %295 = sbr.rel (%p293) target = $region24
        $region23: #{spct_forward.1} parent=11 // pred_region
          _
        $region24: #{spct_forward.1} parent=11 // pred_fallthru
          _
        // Predicated region
        $region25: #{spct_forward.1} parent=11 // pred_check
          %p296 = pneg %p131
        $region26: #{spct_forward.1} parent=11 // pred_check_branch
          %298 = sbr.rel (%p296) target = $region28
        $region27: #{spct_forward.1} parent=11 // pred_region
          _
        $region28: #{spct_forward.1} parent=11 // pred_fallthru
          _
        // Predicated region
        $region29: #{spct_forward.1} parent=11 // pred_check
          %p299 = pneg %p152
        $region30: #{spct_forward.1} parent=11 // pred_check_branch
          %301 = sbr.rel (%p299) target = $region32
        $region31: #{spct_forward.1} parent=11 // pred_region
          _
        $region32: #{spct_forward.1} parent=11 // pred_fallthru
          _
        // Predicated region
        $region33: #{spct_forward.1} parent=11 // pred_check
          %p302 = pneg %p173
        $region34: #{spct_forward.1} parent=11 // pred_check_branch
          %304 = sbr.rel (%p302) target = $region36
        $region35: #{spct_forward.1} parent=11 // pred_region
          _
        $region36: #{spct_forward.1} parent=11 // pred_fallthru
          _
        // Predicated region
        $region37: #{spct_forward.1} parent=11 // pred_check
          %p305 = pneg %p194
        $region38: #{spct_forward.1} parent=11 // pred_check_branch
          %307 = sbr.rel (%p305) target = $region40
        $region39: #{spct_forward.1} parent=11 // pred_region
          _
        $region40: #{spct_forward.1} parent=11 // pred_fallthru
          _
      $region12: #{spct_forward.1} parent=5 // pred_fallthru
        _
      %p308 = scmp.lt.s32.totalorder %s21, 2
      // Predicated region
      $region41: #{spct_forward.1} parent=5 // pred_check
        %p309 = pneg %p308
      $region42: #{spct_forward.1} parent=5 // pred_check_branch
        %311 = sbr.rel (%p309) target = $region44
      $region43: #{spct_forward.1} parent=5 // pred_region
        // Predicated region
        $region45: #{spct_forward.1} parent=43 // pred_check
          %p312 = pneg %p41
        $region46: #{spct_forward.1} parent=43 // pred_check_branch
          %314 = sbr.rel (%p312) target = $region48
        $region47: #{spct_forward.1} parent=43 // pred_region
          %p315 = scmp.lt.s32.totalorder %s21, 1
          %s316 = scalar_select %p315, %s21, 1
          %s317 = smul.addr %s316, 16
          %s318 = smul.addr %s317, 4
          %s319 = scalar_lea.vmem %s0, %s318
        $region48: #{spct_forward.1} parent=43 // pred_fallthru
          _
      $region44: #{spct_forward.1} parent=5 // pred_fallthru
        _
      %p320 = scmp.le.s32.totalorder 1, %s21
      %p321 = scmp.lt.s32.totalorder %s21, 3
      %p322 = pnand %p320, %p321
      %p323 = pneg %p322
      // Predicated region
      $region49: #{spct_forward.1} parent=5 // pred_check
        _
      $region50: #{spct_forward.1} parent=5 // pred_check_branch
        %325 = sbr.rel (%p322) target = $region52
      $region51: #{spct_forward.1} parent=5 // pred_region
        %s326 = ssub.s32 %s21, 1
        %p327 = scmp.lt.s32.totalorder %s26, 1
        %s328 = scalar_select %p327, %s26, 1
        %s329 = smul.addr %s328, 16
        %s330 = smul.addr %s329, 4
        %s331 = scalar_lea.vmem %s0, %s330
        %p332 = pneg %p47
        %p333 = pneg %p44
        %p334 = pneg %p68
        %p335 = pneg %p65
        %p336 = pneg %p89
        %p337 = pneg %p86
        %p338 = pneg %p110
        %p339 = pneg %p107
        %p340 = pneg %p131
        %p341 = pneg %p128
        %p342 = pneg %p152
        %p343 = pneg %p149
        %p344 = pneg %p173
        %p345 = pneg %p170
        %p346 = pneg %p194
        %p347 = pneg %p191
        %p348 = pneg %p220
        %p349 = pneg %p217
        %s350 = sand.u32 %s207, 1
        %s351 = scalar_lea.sflag [#allocation5], %s350
        %s352 = sand.u32 %s207, 1
        %s353 = smul.addr %s352, 1024
        %s354 = scalar_lea.vmem [#allocation4], %s353
        %p355 = pneg %p246
        %p356 = pneg %p243
        %p357 = scmp.lt.s32.totalorder %s26, 1
        %s358 = scalar_select %p357, %s26, 1
        %s359 = smul.addr %s358, 128
        %s360 = smul.addr %s359, 8
        %s361 = scalar_lea.vmem %s10, %s360
        %p362 = pneg %p272
        %p363 = pneg %p269
        %p364 = scmp.lt.s32.totalorder %s26, 1
        %s365 = scalar_select %p364, %s26, 1
        %s366 = smul.addr %s365, 128
        %s367 = smul.addr %s366, 8
        %s368 = scalar_lea.vmem %s11, %s367
        %p369 = scmp.lt.s32.totalorder %s26, 1
        %s370 = scalar_select %p369, %s26, 1
        %s371 = smul.addr %s370, 16
        %s372 = smul.addr %s371, 4
        %s373 = scalar_lea.vmem %s0, %s372
        %p374 = scmp.lt.s32.totalorder %s26, 1
        %s375 = scalar_select %p374, %s26, 1
        %s376 = smul.addr %s375, 128
        %s377 = smul.addr %s376, 8
        %s378 = scalar_lea.vmem %s10, %s377
        %p379 = scmp.lt.s32.totalorder %s26, 1
        %s380 = scalar_select %p379, %s26, 1
        %s381 = smul.addr %s380, 128
        %s382 = smul.addr %s381, 8
        %s383 = scalar_lea.vmem %s11, %s382
        // Predicated region
        $region53: #{spct_forward.1} parent=51 // pred_check
          _
        $region54: #{spct_forward.1} parent=51 // pred_check_branch
          %386 = sbr.rel target = $region56
        $region55: #{spct_forward.1} parent=51 // pred_region
          %387 = sst [smem:[#allocation8]] [#allocation7]
          %388 = sst [smem:[#allocation9]] [#allocation6]
        $region56: #{spct_forward.1} parent=51 // pred_fallthru
          _
        %390 = shalt.err (0)
        %s392 = sshll.u32 [#allocation2], 4
        %s393 = int_to_ptr.vmem [resolvable:$true] %s392
        %395 = dma.hbm_to_vmem [thread:$0]  %s7, 32768, %s393, [#allocation3]
        %v396 = vld [vmem:[%s373] sm:$0xf]
        %v397 = vld [vmem:[%s373 + $0x4] sm:$0xf]
        %v398 = vld [vmem:[%s373 + $0x8] sm:$0xf]
        %v399 = vld [vmem:[%s373 + $0xc] sm:$0xf]
        %v400 = vld [vmem:[%s373 + $0x10] sm:$0xf]
        %v401 = vld [vmem:[%s373 + $0x14] sm:$0xf]
        %v402 = vld [vmem:[%s373 + $0x18] sm:$0xf]
        %v403 = vld [vmem:[%s373 + $0x1c] sm:$0xf]
        %v404 = vld [vmem:[%s373 + $0x20] sm:$0xf]
        %v405 = vld [vmem:[%s373 + $0x24] sm:$0xf]
        %v406 = vld [vmem:[%s373 + $0x28] sm:$0xf]
        %v407 = vld [vmem:[%s373 + $0x2c] sm:$0xf]
        %v408 = vld [vmem:[%s373 + $0x30] sm:$0xf]
        %v409 = vld [vmem:[%s373 + $0x34] sm:$0xf]
        %v410 = vld [vmem:[%s373 + $0x38] sm:$0xf]
        %v411 = vld [vmem:[%s373 + $0x3c] sm:$0xf]
        %v412 = vld [vmem:[%s1] sm:$0xf]
        %v413 = vld [vmem:[%s1 + $0x4] sm:$0xf]
        %v414 = vld [vmem:[%s1 + $0x8] sm:$0xf]
        %v415 = vld [vmem:[%s1 + $0xc] sm:$0xf]
        %v416 = vld [vmem:[%s1 + $0x10] sm:$0xf]
        %v417 = vld [vmem:[%s1 + $0x14] sm:$0xf]
        %v418 = vld [vmem:[%s1 + $0x18] sm:$0xf]
        %v419 = vld [vmem:[%s1 + $0x1c] sm:$0xf]
        %v420 = vld [vmem:[%s1 + $0x20] sm:$0xf]
        %v421 = vld [vmem:[%s1 + $0x24] sm:$0xf]
        %v422 = vld [vmem:[%s1 + $0x28] sm:$0xf]
        %v423 = vld [vmem:[%s1 + $0x2c] sm:$0xf]
        %v424 = vld [vmem:[%s1 + $0x30] sm:$0xf]
        %v425 = vld [vmem:[%s1 + $0x34] sm:$0xf]
        %v426 = vld [vmem:[%s1 + $0x38] sm:$0xf]
        %v427 = vld [vmem:[%s1 + $0x3c] sm:$0xf]
        %v428 = vld [vmem:[%s2] sm:$0x1]
        %v430 = vlaneseq
        %v431 = vshrl.u32 %v430, 7
        %v432 = vsub.s32 0, %v431
        %v433 = vrot.slane %v428, %v432
        %v451 = vunpack.c.l.b16 %v396
        %v452 = vunpack.c.l.b16 %v397
        %v453 = vunpack.c.l.b16 %v398
        %v454 = vunpack.c.l.b16 %v399
        %v455 = vunpack.c.l.b16 %v400
        %v456 = vunpack.c.l.b16 %v401
        %v457 = vunpack.c.l.b16 %v402
        %v458 = vunpack.c.l.b16 %v403
        %v459 = vunpack.c.l.b16 %v404
        %v460 = vunpack.c.l.b16 %v405
        %v461 = vunpack.c.l.b16 %v406
        %v462 = vunpack.c.l.b16 %v407
        %v463 = vunpack.c.l.b16 %v408
        %v464 = vunpack.c.l.b16 %v409
        %v465 = vunpack.c.l.b16 %v410
        %v466 = vunpack.c.l.b16 %v411
        %v467 = vpack.c.b16 %v452, %v451
        %v468 = vpack.c.b16 %v454, %v453
        %v469 = vpack.c.b16 %v456, %v455
        %v470 = vpack.c.b16 %v458, %v457
        %v471 = vpack.c.b16 %v460, %v459
        %v472 = vpack.c.b16 %v462, %v461
        %v473 = vpack.c.b16 %v464, %v463
        %v474 = vpack.c.b16 %v466, %v465
        %v499 = vunpack.c.l.b16 %v412
        %v500 = vunpack.c.l.b16 %v413
        %v501 = vunpack.c.l.b16 %v414
        %v502 = vunpack.c.l.b16 %v415
        %v503 = vunpack.c.l.b16 %v416
        %v504 = vunpack.c.l.b16 %v417
        %v505 = vunpack.c.l.b16 %v418
        %v506 = vunpack.c.l.b16 %v419
        %v507 = vunpack.c.l.b16 %v420
        %v508 = vunpack.c.l.b16 %v421
        %v509 = vunpack.c.l.b16 %v422
        %v510 = vunpack.c.l.b16 %v423
        %v511 = vunpack.c.l.b16 %v424
        %v512 = vunpack.c.l.b16 %v425
        %v513 = vunpack.c.l.b16 %v426
        %v514 = vunpack.c.l.b16 %v427
        %v515 = vpack.c.b16 %v500, %v499
        %v516 = vpack.c.b16 %v502, %v501
        %v517 = vpack.c.b16 %v504, %v503
        %v518 = vpack.c.b16 %v506, %v505
        %v519 = vpack.c.b16 %v508, %v507
        %v520 = vpack.c.b16 %v510, %v509
        %v521 = vpack.c.b16 %v512, %v511
        %v522 = vpack.c.b16 %v514, %v513
        %531 = vmatprep.subr.bf16.mxu0 0
        %532 = vmatpush1.bf16.msra.mxu0 %v522
        %533 = vmatprep.subr.bf16.mxu0 0
        %534 = vmatpush1.bf16.msra.mxu0 %v521
        %535 = vmatprep.subr.bf16.mxu0 0
        %536 = vmatpush1.bf16.msra.mxu0 %v520
        %537 = vmatprep.subr.bf16.mxu0 0
        %538 = vmatpush1.bf16.msra.mxu0 %v519
        %539 = vmatprep.subr.bf16.mxu0 0
        %540 = vmatpush1.bf16.msra.mxu0 %v518
        %541 = vmatprep.subr.bf16.mxu0 0
        %542 = vmatpush1.bf16.msra.mxu0 %v517
        %543 = vmatprep.subr.bf16.mxu0 0
        %544 = vmatpush1.bf16.msra.mxu0 %v516
        %545 = vmatprep.subr.bf16.mxu0 0
        %546 = vmatpush1.bf16.msra.mxu0 %v515
        %547 = vmatprep.subr.bf16.mxu0 0
        %548 = vmatpush2.bf16.msra.mxu0 0
        %549 = vmatprep.subr.bf16.mxu0 0
        %550 = vmatpush2.bf16.msra.mxu0 0
        %551 = vmatprep.subr.bf16.mxu0 0
        %552 = vmatpush2.bf16.msra.mxu0 0
        %553 = vmatprep.subr.bf16.mxu0 0
        %554 = vmatpush2.bf16.msra.mxu0 0
        %555 = vmatprep.subr.bf16.mxu0 0
        %556 = vmatpush2.bf16.msra.mxu0 0
        %557 = vmatprep.subr.bf16.mxu0 0
        %558 = vmatpush2.bf16.msra.mxu0 0
        %559 = vmatprep.subr.bf16.mxu0 0
        %560 = vmatpush2.bf16.msra.mxu0 0
        %561 = vmatprep.subr.bf16.mxu0 0
        %562 = vmatpush2.bf16.msra.mxu0 0
        %563 = vmatprep.mubr.bf16.mxu0 0
        %564 = vmatmul.mubr.bf16.gmra.mxu0 %v467
        %v565 = vpop.f32.mrf.mxu0
        %v566 = vadd.f32 %v433, %v565
        %v567 = vpop.f32.mrf.mxu0
        %v568 = vpop.f32.mrf.mxu0
        %v569 = vadd.f32 %v433, %v568
        %v570 = vpop.f32.mrf.mxu0
        %571 = vmatprep.mubr.bf16.mxu0 0
        %572 = vmatmul.mubr.bf16.gmra.mxu0 %v468
        %v573 = vpop.f32.mrf.mxu0
        %v574 = vadd.f32 %v433, %v573
        %v575 = vpop.f32.mrf.mxu0
        %v576 = vpop.f32.mrf.mxu0
        %v577 = vadd.f32 %v433, %v576
        %v578 = vpop.f32.mrf.mxu0
        %579 = vmatprep.mubr.bf16.mxu0 0
        %580 = vmatmul.mubr.bf16.gmra.mxu0 %v469
        %v581 = vpop.f32.mrf.mxu0
        %v582 = vadd.f32 %v433, %v581
        %v583 = vpop.f32.mrf.mxu0
        %v584 = vpop.f32.mrf.mxu0
        %v585 = vadd.f32 %v433, %v584
        %v586 = vpop.f32.mrf.mxu0
        %587 = vmatprep.mubr.bf16.mxu0 0
        %588 = vmatmul.mubr.bf16.gmra.mxu0 %v470
        %v589 = vpop.f32.mrf.mxu0
        %v590 = vadd.f32 %v433, %v589
        %v591 = vpop.f32.mrf.mxu0
        %v592 = vpop.f32.mrf.mxu0
        %v593 = vadd.f32 %v433, %v592
        %v594 = vpop.f32.mrf.mxu0
        %595 = vmatprep.mubr.bf16.mxu0 0
        %596 = vmatmul.mubr.bf16.gmra.mxu0 %v471
        %v597 = vpop.f32.mrf.mxu0
        %v598 = vadd.f32 %v433, %v597
        %v599 = vpop.f32.mrf.mxu0
        %v600 = vpop.f32.mrf.mxu0
        %v601 = vadd.f32 %v433, %v600
        %v602 = vpop.f32.mrf.mxu0
        %603 = vmatprep.mubr.bf16.mxu0 0
        %604 = vmatmul.mubr.bf16.gmra.mxu0 %v472
        %v605 = vpop.f32.mrf.mxu0
        %v606 = vadd.f32 %v433, %v605
        %v607 = vpop.f32.mrf.mxu0
        %v608 = vpop.f32.mrf.mxu0
        %v609 = vadd.f32 %v433, %v608
        %v610 = vpop.f32.mrf.mxu0
        %611 = vmatprep.mubr.bf16.mxu0 0
        %612 = vmatmul.mubr.bf16.gmra.mxu0 %v473
        %v613 = vpop.f32.mrf.mxu0
        %v614 = vadd.f32 %v433, %v613
        %v615 = vpop.f32.mrf.mxu0
        %v616 = vpop.f32.mrf.mxu0
        %v617 = vadd.f32 %v433, %v616
        %v618 = vpop.f32.mrf.mxu0
        %619 = vmatprep.mubr.bf16.mxu0 0
        %620 = vmatmul.mubr.bf16.gmra.mxu0 %v474
        %v621 = vpop.f32.mrf.mxu0
        %v622 = vadd.f32 %v433, %v621
        %v623 = vpop.f32.mrf.mxu0
        %v624 = vpop.f32.mrf.mxu0
        %v625 = vadd.f32 %v433, %v624
        %v626 = vpop.f32.mrf.mxu0
        %627 = vdwg.mxu0
        %v628 = vmax.f32 %v566, 0.0
        %v629 = vmax.f32 %v569, 0.0
        %v630 = vmax.f32 %v574, 0.0
        %v631 = vmax.f32 %v577, 0.0
        %v632 = vmax.f32 %v582, 0.0
        %v633 = vmax.f32 %v585, 0.0
        %v634 = vmax.f32 %v590, 0.0
        %v635 = vmax.f32 %v593, 0.0
        %v636 = vmax.f32 %v598, 0.0
        %v637 = vmax.f32 %v601, 0.0
        %v638 = vmax.f32 %v606, 0.0
        %v639 = vmax.f32 %v609, 0.0
        %v640 = vmax.f32 %v614, 0.0
        %v641 = vmax.f32 %v617, 0.0
        %v642 = vmax.f32 %v622, 0.0
        %v643 = vmax.f32 %v625, 0.0
        %v644 = vpack.c.bf16 %v629, %v628
        %v645 = vpack.c.bf16 %v631, %v630
        %v646 = vpack.c.bf16 %v633, %v632
        %v647 = vpack.c.bf16 %v635, %v634
        %v648 = vpack.c.bf16 %v637, %v636
        %v649 = vpack.c.bf16 %v639, %v638
        %v650 = vpack.c.bf16 %v641, %v640
        %v651 = vpack.c.bf16 %v643, %v642
        %v652 = vld [vmem:[%s3] sm:$0xff]
        %v653 = vld [vmem:[%s3 + $0x8] sm:$0xff]
        %v654 = vld [vmem:[%s3 + $0x10] sm:$0xff]
        %v655 = vld [vmem:[%s3 + $0x18] sm:$0xff]
        %v656 = vld [vmem:[%s3 + $0x20] sm:$0xff]
        %v657 = vld [vmem:[%s3 + $0x28] sm:$0xff]
        %v658 = vld [vmem:[%s3 + $0x30] sm:$0xff]
        %v659 = vld [vmem:[%s3 + $0x38] sm:$0xff]
        %v660 = vld [vmem:[%s3 + $0x40] sm:$0xff]
        %v661 = vld [vmem:[%s3 + $0x48] sm:$0xff]
        %v662 = vld [vmem:[%s3 + $0x50] sm:$0xff]
        %v663 = vld [vmem:[%s3 + $0x58] sm:$0xff]
        %v664 = vld [vmem:[%s3 + $0x60] sm:$0xff]
        %v665 = vld [vmem:[%s3 + $0x68] sm:$0xff]
        %v666 = vld [vmem:[%s3 + $0x70] sm:$0xff]
        %v667 = vld [vmem:[%s3 + $0x78] sm:$0xff]
        %v684 = vunpack.c.l.b16 %v652
        %v685 = vunpack.c.h.b16 %v652
        %v686 = vunpack.c.l.b16 %v653
        %v687 = vunpack.c.h.b16 %v653
        %v688 = vunpack.c.l.b16 %v654
        %v689 = vunpack.c.h.b16 %v654
        %v690 = vunpack.c.l.b16 %v655
        %v691 = vunpack.c.h.b16 %v655
        %v692 = vunpack.c.l.b16 %v656
        %v693 = vunpack.c.h.b16 %v656
        %v694 = vunpack.c.l.b16 %v657
        %v695 = vunpack.c.h.b16 %v657
        %v696 = vunpack.c.l.b16 %v658
        %v697 = vunpack.c.h.b16 %v658
        %v698 = vunpack.c.l.b16 %v659
        %v699 = vunpack.c.h.b16 %v659
        %v700 = vunpack.c.l.b16 %v660
        %v701 = vunpack.c.h.b16 %v660
        %v702 = vunpack.c.l.b16 %v661
        %v703 = vunpack.c.h.b16 %v661
        %v704 = vunpack.c.l.b16 %v662
        %v705 = vunpack.c.h.b16 %v662
        %v706 = vunpack.c.l.b16 %v663
        %v707 = vunpack.c.h.b16 %v663
        %v708 = vunpack.c.l.b16 %v664
        %v709 = vunpack.c.h.b16 %v664
        %v710 = vunpack.c.l.b16 %v665
        %v711 = vunpack.c.h.b16 %v665
        %v712 = vunpack.c.l.b16 %v666
        %v713 = vunpack.c.h.b16 %v666
        %v714 = vunpack.c.l.b16 %v667
        %v715 = vunpack.c.h.b16 %v667
        %v716 = vpack.c.b16 %v686, %v684
        %v717 = vpack.c.b16 %v687, %v685
        %v718 = vpack.c.b16 %v690, %v688
        %v719 = vpack.c.b16 %v691, %v689
        %v720 = vpack.c.b16 %v694, %v692
        %v721 = vpack.c.b16 %v695, %v693
        %v722 = vpack.c.b16 %v698, %v696
        %v723 = vpack.c.b16 %v699, %v697
        %v724 = vpack.c.b16 %v702, %v700
        %v725 = vpack.c.b16 %v703, %v701
        %v726 = vpack.c.b16 %v706, %v704
        %v727 = vpack.c.b16 %v707, %v705
        %v728 = vpack.c.b16 %v710, %v708
        %v729 = vpack.c.b16 %v711, %v709
        %v730 = vpack.c.b16 %v714, %v712
        %v731 = vpack.c.b16 %v715, %v713
        %748 = vmatprep.subr.bf16.mxu0 %v731
        %749 = vmatpush1.bf16.msra.mxu0 %v730
        %750 = vmatprep.subr.bf16.mxu0 %v729
        %751 = vmatpush1.bf16.msra.mxu0 %v728
        %752 = vmatprep.subr.bf16.mxu0 %v727
        %753 = vmatpush1.bf16.msra.mxu0 %v726
        %754 = vmatprep.subr.bf16.mxu0 %v725
        %755 = vmatpush1.bf16.msra.mxu0 %v724
        %756 = vmatprep.subr.bf16.mxu0 %v723
        %757 = vmatpush1.bf16.msra.mxu0 %v722
        %758 = vmatprep.subr.bf16.mxu0 %v721
        %759 = vmatpush1.bf16.msra.mxu0 %v720
        %760 = vmatprep.subr.bf16.mxu0 %v719
        %761 = vmatpush1.bf16.msra.mxu0 %v718
        %762 = vmatprep.subr.bf16.mxu0 %v717
        %763 = vmatpush1.bf16.msra.mxu0 %v716
        %764 = vmatprep.subr.bf16.mxu0 0
        %765 = vmatpush2.bf16.msra.mxu0 0
        %766 = vmatprep.subr.bf16.mxu0 0
        %767 = vmatpush2.bf16.msra.mxu0 0
        %768 = vmatprep.subr.bf16.mxu0 0
        %769 = vmatpush2.bf16.msra.mxu0 0
        %770 = vmatprep.subr.bf16.mxu0 0
        %771 = vmatpush2.bf16.msra.mxu0 0
        %772 = vmatprep.subr.bf16.mxu0 0
        %773 = vmatpush2.bf16.msra.mxu0 0
        %774 = vmatprep.subr.bf16.mxu0 0
        %775 = vmatpush2.bf16.msra.mxu0 0
        %776 = vmatprep.subr.bf16.mxu0 0
        %777 = vmatpush2.bf16.msra.mxu0 0
        %778 = vmatprep.subr.bf16.mxu0 0
        %779 = vmatpush2.bf16.msra.mxu0 0
        %780 = vmatprep.mubr.bf16.mxu0 0
        %781 = vmatmul.mubr.bf16.gmra.mxu0 %v644
        %v782 = vpop.f32.mrf.mxu0
        %v783 = vadd.f32 0.0, %v782
        %v784 = vpop.f32.mrf.mxu0
        %v785 = vadd.f32 0.0, %v784
        %v786 = vpop.f32.mrf.mxu0
        %v787 = vadd.f32 0.0, %v786
        %v788 = vpop.f32.mrf.mxu0
        %v789 = vadd.f32 0.0, %v788
        %790 = vmatprep.mubr.bf16.mxu0 0
        %791 = vmatmul.mubr.bf16.gmra.mxu0 %v645
        %v792 = vpop.f32.mrf.mxu0
        %v793 = vadd.f32 0.0, %v792
        %v794 = vpop.f32.mrf.mxu0
        %v795 = vadd.f32 0.0, %v794
        %v796 = vpop.f32.mrf.mxu0
        %v797 = vadd.f32 0.0, %v796
        %v798 = vpop.f32.mrf.mxu0
        %v799 = vadd.f32 0.0, %v798
        %800 = vmatprep.mubr.bf16.mxu0 0
        %801 = vmatmul.mubr.bf16.gmra.mxu0 %v646
        %v802 = vpop.f32.mrf.mxu0
        %v803 = vadd.f32 0.0, %v802
        %v804 = vpop.f32.mrf.mxu0
        %v805 = vadd.f32 0.0, %v804
        %v806 = vpop.f32.mrf.mxu0
        %v807 = vadd.f32 0.0, %v806
        %v808 = vpop.f32.mrf.mxu0
        %v809 = vadd.f32 0.0, %v808
        %810 = vmatprep.mubr.bf16.mxu0 0
        %811 = vmatmul.mubr.bf16.gmra.mxu0 %v647
        %v812 = vpop.f32.mrf.mxu0
        %v813 = vadd.f32 0.0, %v812
        %v814 = vpop.f32.mrf.mxu0
        %v815 = vadd.f32 0.0, %v814
        %v816 = vpop.f32.mrf.mxu0
        %v817 = vadd.f32 0.0, %v816
        %v818 = vpop.f32.mrf.mxu0
        %v819 = vadd.f32 0.0, %v818
        %820 = vmatprep.mubr.bf16.mxu0 0
        %821 = vmatmul.mubr.bf16.gmra.mxu0 %v648
        %v822 = vpop.f32.mrf.mxu0
        %v823 = vadd.f32 0.0, %v822
        %v824 = vpop.f32.mrf.mxu0
        %v825 = vadd.f32 0.0, %v824
        %v826 = vpop.f32.mrf.mxu0
        %v827 = vadd.f32 0.0, %v826
        %v828 = vpop.f32.mrf.mxu0
        %v829 = vadd.f32 0.0, %v828
        %830 = vmatprep.mubr.bf16.mxu0 0
        %831 = vmatmul.mubr.bf16.gmra.mxu0 %v649
        %v832 = vpop.f32.mrf.mxu0
        %v833 = vadd.f32 0.0, %v832
        %v834 = vpop.f32.mrf.mxu0
        %v835 = vadd.f32 0.0, %v834
        %v836 = vpop.f32.mrf.mxu0
        %v837 = vadd.f32 0.0, %v836
        %v838 = vpop.f32.mrf.mxu0
        %v839 = vadd.f32 0.0, %v838
        %840 = vmatprep.mubr.bf16.mxu0 0
        %841 = vmatmul.mubr.bf16.gmra.mxu0 %v650
        %v842 = vpop.f32.mrf.mxu0
        %v843 = vadd.f32 0.0, %v842
        %v844 = vpop.f32.mrf.mxu0
        %v845 = vadd.f32 0.0, %v844
        %v846 = vpop.f32.mrf.mxu0
        %v847 = vadd.f32 0.0, %v846
        %v848 = vpop.f32.mrf.mxu0
        %v849 = vadd.f32 0.0, %v848
        %850 = vmatprep.mubr.bf16.mxu0 0
        %851 = vmatmul.mubr.bf16.gmra.mxu0 %v651
        %v852 = vpop.f32.mrf.mxu0
        %v853 = vadd.f32 0.0, %v852
        %v854 = vpop.f32.mrf.mxu0
        %v855 = vadd.f32 0.0, %v854
        %v856 = vpop.f32.mrf.mxu0
        %v857 = vadd.f32 0.0, %v856
        %v858 = vpop.f32.mrf.mxu0
        %v859 = vadd.f32 0.0, %v858
        %860 = vdwg.mxu0
        %v861 = vld [vmem:[%s4] sm:$0x1]
        %v863 = vlaneseq
        %v864 = vshrl.u32 %v863, 7
        %v865 = vsub.s32 0, %v864
        %v866 = vrot.slane %v861, %v865
        %v868 = vadd.f32 %v783, %v866
        %v869 = vadd.f32 %v787, %v866
        %v870 = vadd.f32 %v793, %v866
        %v871 = vadd.f32 %v797, %v866
        %v872 = vadd.f32 %v803, %v866
        %v873 = vadd.f32 %v807, %v866
        %v874 = vadd.f32 %v813, %v866
        %v875 = vadd.f32 %v817, %v866
        %v876 = vadd.f32 %v823, %v866
        %v877 = vadd.f32 %v827, %v866
        %v878 = vadd.f32 %v833, %v866
        %v879 = vadd.f32 %v837, %v866
        %v880 = vadd.f32 %v843, %v866
        %v881 = vadd.f32 %v847, %v866
        %v882 = vadd.f32 %v853, %v866
        %v883 = vadd.f32 %v857, %v866
        %v884 = vpack.c.bf16 %v789, %v785
        %v885 = vpack.c.bf16 %v799, %v795
        %v886 = vpack.c.bf16 %v809, %v805
        %v887 = vpack.c.bf16 %v819, %v815
        %v888 = vpack.c.bf16 %v829, %v825
        %v889 = vpack.c.bf16 %v839, %v835
        %v890 = vpack.c.bf16 %v849, %v845
        %v891 = vpack.c.bf16 %v859, %v855
        %vm892 = vcmask 261120
        %v894 = vsel %vm892, %v884, 0
        %v897 = vsel %vm892, %v885, 0
        %v900 = vsel %vm892, %v886, 0
        %v903 = vsel %vm892, %v887, 0
        %v906 = vsel %vm892, %v888, 0
        %v909 = vsel %vm892, %v889, 0
        %v912 = vsel %vm892, %v890, 0
        %v915 = vsel %vm892, %v891, 0
        %917 = vmatprep.subr.bf16.mxu0 0
        %918 = vmatpush1.bf16.xpose.msra.mxu0 %v915
        %919 = vmatprep.subr.bf16.mxu0 0
        %920 = vmatpush1.bf16.xpose.msra.mxu0 %v912
        %921 = vmatprep.subr.bf16.mxu0 0
        %922 = vmatpush1.bf16.xpose.msra.mxu0 %v909
        %923 = vmatprep.subr.bf16.mxu0 0
        %924 = vmatpush1.bf16.xpose.msra.mxu0 %v906
        %925 = vmatprep.subr.bf16.mxu0 0
        %926 = vmatpush1.bf16.xpose.msra.mxu0 %v903
        %927 = vmatprep.subr.bf16.mxu0 0
        %928 = vmatpush1.bf16.xpose.msra.mxu0 %v900
        %929 = vmatprep.subr.bf16.mxu0 0
        %930 = vmatpush1.bf16.xpose.msra.mxu0 %v897
        %931 = vmatprep.subr.bf16.mxu0 0
        %932 = vmatpush1.bf16.xpose.msra.mxu0 %v894
        %933 = vmatprep.subr.bf16.mxu0 0
        %934 = vmatpush2.bf16.xpose.msra.mxu0 0
        %935 = vmatprep.subr.bf16.mxu0 0
        %936 = vmatpush2.bf16.xpose.msra.mxu0 0
        %937 = vmatprep.subr.bf16.mxu0 0
        %938 = vmatpush2.bf16.xpose.msra.mxu0 0
        %939 = vmatprep.subr.bf16.mxu0 0
        %940 = vmatpush2.bf16.xpose.msra.mxu0 0
        %941 = vmatprep.subr.bf16.mxu0 0
        %942 = vmatpush2.bf16.xpose.msra.mxu0 0
        %943 = vmatprep.subr.bf16.mxu0 0
        %944 = vmatpush2.bf16.xpose.msra.mxu0 0
        %945 = vmatprep.subr.bf16.mxu0 0
        %946 = vmatpush2.bf16.xpose.msra.mxu0 0
        %947 = vmatprep.subr.bf16.mxu0 0
        %948 = vmatpush2.bf16.xpose.msra.mxu0 0
        %949 = vmatprep.mubr.bf16.mxu0 0
        %950 = vmatmul.mubr.bf16.gmra.mxu0 %v894
        %v951 = vpop.f32.mrf.mxu0
        %v952 = vadd.f32 0.0, %v951
        %v953 = vpop.f32.mrf.mxu0
        %v954 = vpop.f32.mrf.mxu0
        %v955 = vadd.f32 0.0, %v954
        %v956 = vpop.f32.mrf.mxu0
        %957 = vmatprep.mubr.bf16.mxu0 0
        %958 = vmatmul.mubr.bf16.gmra.mxu0 %v897
        %v959 = vpop.f32.mrf.mxu0
        %v960 = vadd.f32 0.0, %v959
        %v961 = vpop.f32.mrf.mxu0
        %v962 = vpop.f32.mrf.mxu0
        %v963 = vadd.f32 0.0, %v962
        %v964 = vpop.f32.mrf.mxu0
        %965 = vmatprep.mubr.bf16.mxu0 0
        %966 = vmatmul.mubr.bf16.gmra.mxu0 %v900
        %v967 = vpop.f32.mrf.mxu0
        %v968 = vadd.f32 0.0, %v967
        %v969 = vpop.f32.mrf.mxu0
        %v970 = vpop.f32.mrf.mxu0
        %v971 = vadd.f32 0.0, %v970
        %v972 = vpop.f32.mrf.mxu0
        %973 = vmatprep.mubr.bf16.mxu0 0
        %974 = vmatmul.mubr.bf16.gmra.mxu0 %v903
        %v975 = vpop.f32.mrf.mxu0
        %v976 = vadd.f32 0.0, %v975
        %v977 = vpop.f32.mrf.mxu0
        %v978 = vpop.f32.mrf.mxu0
        %v979 = vadd.f32 0.0, %v978
        %v980 = vpop.f32.mrf.mxu0
        %981 = vmatprep.mubr.bf16.mxu0 0
        %982 = vmatmul.mubr.bf16.gmra.mxu0 %v906
        %v983 = vpop.f32.mrf.mxu0
        %v984 = vadd.f32 0.0, %v983
        %v985 = vpop.f32.mrf.mxu0
        %v986 = vpop.f32.mrf.mxu0
        %v987 = vadd.f32 0.0, %v986
        %v988 = vpop.f32.mrf.mxu0
        %989 = vmatprep.mubr.bf16.mxu0 0
        %990 = vmatmul.mubr.bf16.gmra.mxu0 %v909
        %v991 = vpop.f32.mrf.mxu0
        %v992 = vadd.f32 0.0, %v991
        %v993 = vpop.f32.mrf.mxu0
        %v994 = vpop.f32.mrf.mxu0
        %v995 = vadd.f32 0.0, %v994
        %v996 = vpop.f32.mrf.mxu0
        %997 = vmatprep.mubr.bf16.mxu0 0
        %998 = vmatmul.mubr.bf16.gmra.mxu0 %v912
        %v999 = vpop.f32.mrf.mxu0
        %v1000 = vadd.f32 0.0, %v999
        %v1001 = vpop.f32.mrf.mxu0
        %v1002 = vpop.f32.mrf.mxu0
        %v1003 = vadd.f32 0.0, %v1002
        %v1004 = vpop.f32.mrf.mxu0
        %1005 = vmatprep.mubr.bf16.mxu0 0
        %1006 = vmatmul.mubr.bf16.gmra.mxu0 %v915
        %v1007 = vpop.f32.mrf.mxu0
        %v1008 = vadd.f32 0.0, %v1007
        %v1009 = vpop.f32.mrf.mxu0
        %v1010 = vpop.f32.mrf.mxu0
        %v1011 = vadd.f32 0.0, %v1010
        %v1012 = vpop.f32.mrf.mxu0
        %1013 = vdwg.mxu0
        %v1014 = vmax.f32 %v952, %v968
        %v1015 = vmax.f32 %v955, %v971
        %v1016 = vmax.f32 %v960, %v976
        %v1017 = vmax.f32 %v963, %v979
        %v1018 = vmax.f32 %v1014, %v984
        %v1019 = vmax.f32 %v1015, %v987
        %v1020 = vmax.f32 %v1016, %v992
        %v1021 = vmax.f32 %v1017, %v995
        %v1022 = vmax.f32 %v1018, %v1000
        %v1023 = vmax.f32 %v1019, %v1003
        %v1024 = vmax.f32 %v1020, %v1008
        %v1025 = vmax.f32 %v1021, %v1011
        %v1026 = vmax.f32 %v1022, %v1023
        %v1027 = vmax.f32 %v1024, %v1025
        %v1028 = vmax.f32 %v1026, %v1027
        %v1029 = vrot.slane %v1028, 4
        %v1030 = vmax.f32 %v1028, %v1029
        %v1031 = vrot.slane %v1030, 2
        %v1032 = vmax.f32 %v1030, %v1031
        %v1033 = vrot.slane %v1032, 1
        %v1034 = vmax.f32 %v1032, %v1033
        %v1035 = vsub.f32 %v952, %v1034
        %v1036 = vsub.f32 %v955, %v1034
        %v1037 = vsub.f32 %v960, %v1034
        %v1038 = vsub.f32 %v963, %v1034
        %v1039 = vsub.f32 %v968, %v1034
        %v1040 = vsub.f32 %v971, %v1034
        %v1041 = vsub.f32 %v976, %v1034
        %v1042 = vsub.f32 %v979, %v1034
        %v1043 = vsub.f32 %v984, %v1034
        %v1044 = vsub.f32 %v987, %v1034
        %v1045 = vsub.f32 %v992, %v1034
        %v1046 = vsub.f32 %v995, %v1034
        %v1047 = vsub.f32 %v1000, %v1034
        %v1048 = vsub.f32 %v1003, %v1034
        %v1049 = vsub.f32 %v1008, %v1034
        %v1050 = vsub.f32 %v1011, %v1034
        %v1051 = vmul.f32 %v1035, 1.442695
        %v1052 = vpow.pop %v1051
        %v1053 = vmul.f32 %v1036, 1.442695
        %v1054 = vpow.pop %v1053
        %v1055 = vmul.f32 %v1037, 1.442695
        %v1056 = vpow.pop %v1055
        %v1057 = vmul.f32 %v1038, 1.442695
        %v1058 = vpow.pop %v1057
        %v1059 = vmul.f32 %v1039, 1.442695
        %v1060 = vpow.pop %v1059
        %v1061 = vmul.f32 %v1040, 1.442695
        %v1062 = vpow.pop %v1061
        %v1063 = vmul.f32 %v1041, 1.442695
        %v1064 = vpow.pop %v1063
        %v1065 = vmul.f32 %v1042, 1.442695
        %v1066 = vpow.pop %v1065
        %v1067 = vmul.f32 %v1043, 1.442695
        %v1068 = vpow.pop %v1067
        %v1069 = vmul.f32 %v1044, 1.442695
        %v1070 = vpow.pop %v1069
        %v1071 = vmul.f32 %v1045, 1.442695
        %v1072 = vpow.pop %v1071
        %v1073 = vmul.f32 %v1046, 1.442695
        %v1074 = vpow.pop %v1073
        %v1075 = vmul.f32 %v1047, 1.442695
        %v1076 = vpow.pop %v1075
        %v1077 = vmul.f32 %v1048, 1.442695
        %v1078 = vpow.pop %v1077
        %v1079 = vmul.f32 %v1049, 1.442695
        %v1080 = vpow.pop %v1079
        %v1081 = vmul.f32 %v1050, 1.442695
        %v1082 = vpow.pop %v1081
        %v1083 = vadd.f32 %v1052, %v1054
        %v1084 = vadd.f32 %v1083, %v1056
        %v1085 = vadd.f32 %v1084, %v1058
        %v1086 = vadd.f32 %v1085, %v1060
        %v1087 = vadd.f32 %v1086, %v1062
        %v1088 = vadd.f32 %v1087, %v1064
        %v1089 = vadd.f32 %v1088, %v1066
        %v1090 = vadd.f32 %v1089, %v1068
        %v1091 = vadd.f32 %v1090, %v1070
        %v1092 = vadd.f32 %v1091, %v1072
        %v1093 = vadd.f32 %v1092, %v1074
        %v1094 = vadd.f32 %v1093, %v1076
        %v1095 = vadd.f32 %v1094, %v1078
        %v1096 = vadd.f32 %v1095, %v1080
        %v1097 = vadd.f32 %v1096, %v1082
        %v1098 = vrot.slane %v1097, 4
        %v1099 = vadd.f32 %v1097, %v1098
        %v1100 = vrot.slane %v1099, 2
        %v1101 = vadd.f32 %v1099, %v1100
        %v1102 = vrot.slane %v1101, 1
        %v1103 = vadd.f32 %v1101, %v1102
        %v1104 = vrcp.pop %v1103
        %v1105 = vmul.f32 %v1052, %v1104
        %v1106 = vmul.f32 %v1054, %v1104
        %v1107 = vmul.f32 %v1056, %v1104
        %v1108 = vmul.f32 %v1058, %v1104
        %v1109 = vmul.f32 %v1060, %v1104
        %v1110 = vmul.f32 %v1062, %v1104
        %v1111 = vmul.f32 %v1064, %v1104
        %v1112 = vmul.f32 %v1066, %v1104
        %v1113 = vmul.f32 %v1068, %v1104
        %v1114 = vmul.f32 %v1070, %v1104
        %v1115 = vmul.f32 %v1072, %v1104
        %v1116 = vmul.f32 %v1074, %v1104
        %v1117 = vmul.f32 %v1076, %v1104
        %v1118 = vmul.f32 %v1078, %v1104
        %v1119 = vmul.f32 %v1080, %v1104
        %v1120 = vmul.f32 %v1082, %v1104
        %1121 = vadd.xlane.f32.xlu0 %v1105
        %v1122 = vpop.xlane.xlu0 %1121
        %1123 = vadd.xlane.f32.xlu0 %v1106
        %v1124 = vpop.xlane.xlu0 %1123
        %1125 = vadd.xlane.f32.xlu0 %v1107
        %v1126 = vpop.xlane.xlu0 %1125
        %1127 = vadd.xlane.f32.xlu0 %v1108
        %v1128 = vpop.xlane.xlu0 %1127
        %1129 = vadd.xlane.f32.xlu0 %v1109
        %v1130 = vpop.xlane.xlu0 %1129
        %1131 = vadd.xlane.f32.xlu0 %v1110
        %v1132 = vpop.xlane.xlu0 %1131
        %1133 = vadd.xlane.f32.xlu0 %v1111
        %v1134 = vpop.xlane.xlu0 %1133
        %1135 = vadd.xlane.f32.xlu0 %v1112
        %v1136 = vpop.xlane.xlu0 %1135
        %1137 = vadd.xlane.f32.xlu0 %v1113
        %v1138 = vpop.xlane.xlu0 %1137
        %1139 = vadd.xlane.f32.xlu0 %v1114
        %v1140 = vpop.xlane.xlu0 %1139
        %1141 = vadd.xlane.f32.xlu0 %v1115
        %v1142 = vpop.xlane.xlu0 %1141
        %1143 = vadd.xlane.f32.xlu0 %v1116
        %v1144 = vpop.xlane.xlu0 %1143
        %1145 = vadd.xlane.f32.xlu0 %v1117
        %v1146 = vpop.xlane.xlu0 %1145
        %1147 = vadd.xlane.f32.xlu0 %v1118
        %v1148 = vpop.xlane.xlu0 %1147
        %1149 = vadd.xlane.f32.xlu0 %v1119
        %v1150 = vpop.xlane.xlu0 %1149
        %1151 = vadd.xlane.f32.xlu0 %v1120
        %v1152 = vpop.xlane.xlu0 %1151
        %v1153 = vadd.f32 %v1122, 1e-09
        %v1154 = vadd.f32 %v1124, 1e-09
        %v1155 = vadd.f32 %v1126, 1e-09
        %v1156 = vadd.f32 %v1128, 1e-09
        %v1157 = vadd.f32 %v1130, 1e-09
        %v1158 = vadd.f32 %v1132, 1e-09
        %v1159 = vadd.f32 %v1134, 1e-09
        %v1160 = vadd.f32 %v1136, 1e-09
        %v1161 = vadd.f32 %v1138, 1e-09
        %v1162 = vadd.f32 %v1140, 1e-09
        %v1163 = vadd.f32 %v1142, 1e-09
        %v1164 = vadd.f32 %v1144, 1e-09
        %v1165 = vadd.f32 %v1146, 1e-09
        %v1166 = vadd.f32 %v1148, 1e-09
        %v1167 = vadd.f32 %v1150, 1e-09
        %v1168 = vadd.f32 %v1152, 1e-09
        %v1169 = vrcp.pop %v1153
        %v1170 = vrcp.pop %v1154
        %v1171 = vrcp.pop %v1155
        %v1172 = vrcp.pop %v1156
        %v1173 = vrcp.pop %v1157
        %v1174 = vrcp.pop %v1158
        %v1175 = vrcp.pop %v1159
        %v1176 = vrcp.pop %v1160
        %v1177 = vrcp.pop %v1161
        %v1178 = vrcp.pop %v1162
        %v1179 = vrcp.pop %v1163
        %v1180 = vrcp.pop %v1164
        %v1181 = vrcp.pop %v1165
        %v1182 = vrcp.pop %v1166
        %v1183 = vrcp.pop %v1167
        %v1184 = vrcp.pop %v1168
        %v1185 = vpack.c.bf16 %v1106, %v1105
        %v1186 = vpack.c.bf16 %v1108, %v1107
        %v1187 = vpack.c.bf16 %v1110, %v1109
        %v1188 = vpack.c.bf16 %v1112, %v1111
        %v1189 = vpack.c.bf16 %v1114, %v1113
        %v1190 = vpack.c.bf16 %v1116, %v1115
        %v1191 = vpack.c.bf16 %v1118, %v1117
        %v1192 = vpack.c.bf16 %v1120, %v1119
        %v1193 = vpack.c.bf16 %v869, %v868
        %v1194 = vpack.c.bf16 %v871, %v870
        %v1195 = vpack.c.bf16 %v873, %v872
        %v1196 = vpack.c.bf16 %v875, %v874
        %v1197 = vpack.c.bf16 %v877, %v876
        %v1198 = vpack.c.bf16 %v879, %v878
        %v1199 = vpack.c.bf16 %v881, %v880
        %v1200 = vpack.c.bf16 %v883, %v882
        %1201 = vmatprep.subr.bf16.mxu0 0
        %1202 = vmatpush1.bf16.msra.mxu0 %v1200
        %1203 = vmatprep.subr.bf16.mxu0 0
        %1204 = vmatpush1.bf16.msra.mxu0 %v1199
        %1205 = vmatprep.subr.bf16.mxu0 0
        %1206 = vmatpush1.bf16.msra.mxu0 %v1198
        %1207 = vmatprep.subr.bf16.mxu0 0
        %1208 = vmatpush1.bf16.msra.mxu0 %v1197
        %1209 = vmatprep.subr.bf16.mxu0 0
        %1210 = vmatpush1.bf16.msra.mxu0 %v1196
        %1211 = vmatprep.subr.bf16.mxu0 0
        %1212 = vmatpush1.bf16.msra.mxu0 %v1195
        %1213 = vmatprep.subr.bf16.mxu0 0
        %1214 = vmatpush1.bf16.msra.mxu0 %v1194
        %1215 = vmatprep.subr.bf16.mxu0 0
        %1216 = vmatpush1.bf16.msra.mxu0 %v1193
        %1217 = vmatprep.subr.bf16.mxu0 0
        %1218 = vmatpush2.bf16.msra.mxu0 0
        %1219 = vmatprep.subr.bf16.mxu0 0
        %1220 = vmatpush2.bf16.msra.mxu0 0
        %1221 = vmatprep.subr.bf16.mxu0 0
        %1222 = vmatpush2.bf16.msra.mxu0 0
        %1223 = vmatprep.subr.bf16.mxu0 0
        %1224 = vmatpush2.bf16.msra.mxu0 0
        %1225 = vmatprep.subr.bf16.mxu0 0
        %1226 = vmatpush2.bf16.msra.mxu0 0
        %1227 = vmatprep.subr.bf16.mxu0 0
        %1228 = vmatpush2.bf16.msra.mxu0 0
        %1229 = vmatprep.subr.bf16.mxu0 0
        %1230 = vmatpush2.bf16.msra.mxu0 0
        %1231 = vmatprep.subr.bf16.mxu0 0
        %1232 = vmatpush2.bf16.msra.mxu0 0
        %1233 = vmatprep.mubr.bf16.mxu0 0
        %1234 = vmatmul.mubr.bf16.gmra.mxu0 %v1185
        %v1235 = vpop.f32.mrf.mxu0
        %v1236 = vadd.f32 0.0, %v1235
        %v1237 = vpop.f32.mrf.mxu0
        %v1238 = vpop.f32.mrf.mxu0
        %v1239 = vadd.f32 0.0, %v1238
        %v1240 = vpop.f32.mrf.mxu0
        %1241 = vmatprep.mubr.bf16.mxu0 0
        %1242 = vmatmul.mubr.bf16.gmra.mxu0 %v1186
        %v1243 = vpop.f32.mrf.mxu0
        %v1244 = vadd.f32 0.0, %v1243
        %v1245 = vpop.f32.mrf.mxu0
        %v1246 = vpop.f32.mrf.mxu0
        %v1247 = vadd.f32 0.0, %v1246
        %v1248 = vpop.f32.mrf.mxu0
        %1249 = vmatprep.mubr.bf16.mxu0 0
        %1250 = vmatmul.mubr.bf16.gmra.mxu0 %v1187
        %v1251 = vpop.f32.mrf.mxu0
        %v1252 = vadd.f32 0.0, %v1251
        %v1253 = vpop.f32.mrf.mxu0
        %v1254 = vpop.f32.mrf.mxu0
        %v1255 = vadd.f32 0.0, %v1254
        %v1256 = vpop.f32.mrf.mxu0
        %1257 = vmatprep.mubr.bf16.mxu0 0
        %1258 = vmatmul.mubr.bf16.gmra.mxu0 %v1188
        %v1259 = vpop.f32.mrf.mxu0
        %v1260 = vadd.f32 0.0, %v1259
        %v1261 = vpop.f32.mrf.mxu0
        %v1262 = vpop.f32.mrf.mxu0
        %v1263 = vadd.f32 0.0, %v1262
        %v1264 = vpop.f32.mrf.mxu0
        %1265 = vmatprep.mubr.bf16.mxu0 0
        %1266 = vmatmul.mubr.bf16.gmra.mxu0 %v1189
        %v1267 = vpop.f32.mrf.mxu0
        %v1268 = vadd.f32 0.0, %v1267
        %v1269 = vpop.f32.mrf.mxu0
        %v1270 = vpop.f32.mrf.mxu0
        %v1271 = vadd.f32 0.0, %v1270
        %v1272 = vpop.f32.mrf.mxu0
        %1273 = vmatprep.mubr.bf16.mxu0 0
        %1274 = vmatmul.mubr.bf16.gmra.mxu0 %v1190
        %v1275 = vpop.f32.mrf.mxu0
        %v1276 = vadd.f32 0.0, %v1275
        %v1277 = vpop.f32.mrf.mxu0
        %v1278 = vpop.f32.mrf.mxu0
        %v1279 = vadd.f32 0.0, %v1278
        %v1280 = vpop.f32.mrf.mxu0
        %1281 = vmatprep.mubr.bf16.mxu0 0
        %1282 = vmatmul.mubr.bf16.gmra.mxu0 %v1191
        %v1283 = vpop.f32.mrf.mxu0
        %v1284 = vadd.f32 0.0, %v1283
        %v1285 = vpop.f32.mrf.mxu0
        %v1286 = vpop.f32.mrf.mxu0
        %v1287 = vadd.f32 0.0, %v1286
        %v1288 = vpop.f32.mrf.mxu0
        %1289 = vmatprep.mubr.bf16.mxu0 0
        %1290 = vmatmul.mubr.bf16.gmra.mxu0 %v1192
        %v1291 = vpop.f32.mrf.mxu0
        %v1292 = vadd.f32 0.0, %v1291
        %v1293 = vpop.f32.mrf.mxu0
        %v1294 = vpop.f32.mrf.mxu0
        %v1295 = vadd.f32 0.0, %v1294
        %v1296 = vpop.f32.mrf.mxu0
        %1297 = vdwg.mxu0
        %v1298 = vmul.f32 %v1236, %v1169
        %v1299 = vmul.f32 %v1239, %v1170
        %v1300 = vmul.f32 %v1244, %v1171
        %v1301 = vmul.f32 %v1247, %v1172
        %v1302 = vmul.f32 %v1252, %v1173
        %v1303 = vmul.f32 %v1255, %v1174
        %v1304 = vmul.f32 %v1260, %v1175
        %v1305 = vmul.f32 %v1263, %v1176
        %v1306 = vmul.f32 %v1268, %v1177
        %v1307 = vmul.f32 %v1271, %v1178
        %v1308 = vmul.f32 %v1276, %v1179
        %v1309 = vmul.f32 %v1279, %v1180
        %v1310 = vmul.f32 %v1284, %v1181
        %v1311 = vmul.f32 %v1287, %v1182
        %v1312 = vmul.f32 %v1292, %v1183
        %v1313 = vmul.f32 %v1295, %v1184
        %v1314 = vsub.f32 %v628, %v1298
        %v1315 = vsub.f32 %v629, %v1299
        %v1316 = vsub.f32 %v630, %v1300
        %v1317 = vsub.f32 %v631, %v1301
        %v1318 = vsub.f32 %v632, %v1302
        %v1319 = vsub.f32 %v633, %v1303
        %v1320 = vsub.f32 %v634, %v1304
        %v1321 = vsub.f32 %v635, %v1305
        %v1322 = vsub.f32 %v636, %v1306
        %v1323 = vsub.f32 %v637, %v1307
        %v1324 = vsub.f32 %v638, %v1308
        %v1325 = vsub.f32 %v639, %v1309
        %v1326 = vsub.f32 %v640, %v1310
        %v1327 = vsub.f32 %v641, %v1311
        %v1328 = vsub.f32 %v642, %v1312
        %v1329 = vsub.f32 %v643, %v1313
        %v1330 = vpack.c.bf16 %v1315, %v1314
        %v1331 = vpack.c.bf16 %v1317, %v1316
        %v1332 = vpack.c.bf16 %v1319, %v1318
        %v1333 = vpack.c.bf16 %v1321, %v1320
        %v1334 = vpack.c.bf16 %v1323, %v1322
        %v1335 = vpack.c.bf16 %v1325, %v1324
        %v1336 = vpack.c.bf16 %v1327, %v1326
        %v1337 = vpack.c.bf16 %v1329, %v1328
        %v1338 = vld [vmem:[%s5] sm:$0xf]
        %v1339 = vld [vmem:[%s5 + $0x4] sm:$0xf]
        %v1340 = vld [vmem:[%s5 + $0x8] sm:$0xf]
        %v1341 = vld [vmem:[%s5 + $0xc] sm:$0xf]
        %v1342 = vld [vmem:[%s5 + $0x10] sm:$0xf]
        %v1343 = vld [vmem:[%s5 + $0x14] sm:$0xf]
        %v1344 = vld [vmem:[%s5 + $0x18] sm:$0xf]
        %v1345 = vld [vmem:[%s5 + $0x1c] sm:$0xf]
        %v1346 = vld [vmem:[%s5 + $0x20] sm:$0xf]
        %v1347 = vld [vmem:[%s5 + $0x24] sm:$0xf]
        %v1348 = vld [vmem:[%s5 + $0x28] sm:$0xf]
        %v1349 = vld [vmem:[%s5 + $0x2c] sm:$0xf]
        %v1350 = vld [vmem:[%s5 + $0x30] sm:$0xf]
        %v1351 = vld [vmem:[%s5 + $0x34] sm:$0xf]
        %v1352 = vld [vmem:[%s5 + $0x38] sm:$0xf]
        %v1353 = vld [vmem:[%s5 + $0x3c] sm:$0xf]
        %v1354 = vld [vmem:[%s6] sm:$0x1]
        %v1356 = vlaneseq
        %v1357 = vshrl.u32 %v1356, 7
        %v1358 = vsub.s32 0, %v1357
        %v1359 = vrot.slane %v1354, %v1358
        %v1377 = vunpack.c.l.b16 %v1338
        %v1378 = vunpack.c.l.b16 %v1339
        %v1379 = vunpack.c.l.b16 %v1340
        %v1380 = vunpack.c.l.b16 %v1341
        %v1381 = vunpack.c.l.b16 %v1342
        %v1382 = vunpack.c.l.b16 %v1343
        %v1383 = vunpack.c.l.b16 %v1344
        %v1384 = vunpack.c.l.b16 %v1345
        %v1385 = vunpack.c.l.b16 %v1346
        %v1386 = vunpack.c.l.b16 %v1347
        %v1387 = vunpack.c.l.b16 %v1348
        %v1388 = vunpack.c.l.b16 %v1349
        %v1389 = vunpack.c.l.b16 %v1350
        %v1390 = vunpack.c.l.b16 %v1351
        %v1391 = vunpack.c.l.b16 %v1352
        %v1392 = vunpack.c.l.b16 %v1353
        %v1393 = vpack.c.b16 %v1378, %v1377
        %v1394 = vpack.c.b16 %v1380, %v1379
        %v1395 = vpack.c.b16 %v1382, %v1381
        %v1396 = vpack.c.b16 %v1384, %v1383
        %v1397 = vpack.c.b16 %v1386, %v1385
        %v1398 = vpack.c.b16 %v1388, %v1387
        %v1399 = vpack.c.b16 %v1390, %v1389
        %v1400 = vpack.c.b16 %v1392, %v1391
        %1409 = vmatprep.subr.bf16.mxu0 0
        %1410 = vmatpush1.bf16.msra.mxu0 %v1400
        %1411 = vmatprep.subr.bf16.mxu0 0
        %1412 = vmatpush1.bf16.msra.mxu0 %v1399
        %1413 = vmatprep.subr.bf16.mxu0 0
        %1414 = vmatpush1.bf16.msra.mxu0 %v1398
        %1415 = vmatprep.subr.bf16.mxu0 0
        %1416 = vmatpush1.bf16.msra.mxu0 %v1397
        %1417 = vmatprep.subr.bf16.mxu0 0
        %1418 = vmatpush1.bf16.msra.mxu0 %v1396
        %1419 = vmatprep.subr.bf16.mxu0 0
        %1420 = vmatpush1.bf16.msra.mxu0 %v1395
        %1421 = vmatprep.subr.bf16.mxu0 0
        %1422 = vmatpush1.bf16.msra.mxu0 %v1394
        %1423 = vmatprep.subr.bf16.mxu0 0
        %1424 = vmatpush1.bf16.msra.mxu0 %v1393
        %1425 = vmatprep.subr.bf16.mxu0 0
        %1426 = vmatpush2.bf16.msra.mxu0 0
        %1427 = vmatprep.subr.bf16.mxu0 0
        %1428 = vmatpush2.bf16.msra.mxu0 0
        %1429 = vmatprep.subr.bf16.mxu0 0
        %1430 = vmatpush2.bf16.msra.mxu0 0
        %1431 = vmatprep.subr.bf16.mxu0 0
        %1432 = vmatpush2.bf16.msra.mxu0 0
        %1433 = vmatprep.subr.bf16.mxu0 0
        %1434 = vmatpush2.bf16.msra.mxu0 0
        %1435 = vmatprep.subr.bf16.mxu0 0
        %1436 = vmatpush2.bf16.msra.mxu0 0
        %1437 = vmatprep.subr.bf16.mxu0 0
        %1438 = vmatpush2.bf16.msra.mxu0 0
        %1439 = vmatprep.subr.bf16.mxu0 0
        %1440 = vmatpush2.bf16.msra.mxu0 0
        %1441 = vmatprep.mubr.bf16.mxu0 0
        %1442 = vmatmul.mubr.bf16.gmra.mxu0 %v1330
        %v1443 = vpop.f32.mrf.mxu0
        %v1444 = vadd.f32 %v1359, %v1443
        %v1445 = vpop.f32.mrf.mxu0
        %v1446 = vpop.f32.mrf.mxu0
        %v1447 = vadd.f32 %v1359, %v1446
        %v1448 = vpop.f32.mrf.mxu0
        %1449 = vmatprep.mubr.bf16.mxu0 0
        %1450 = vmatmul.mubr.bf16.gmra.mxu0 %v1331
        %v1451 = vpop.f32.mrf.mxu0
        %v1452 = vadd.f32 %v1359, %v1451
        %v1453 = vpop.f32.mrf.mxu0
        %v1454 = vpop.f32.mrf.mxu0
        %v1455 = vadd.f32 %v1359, %v1454
        %v1456 = vpop.f32.mrf.mxu0
        %1457 = vmatprep.mubr.bf16.mxu0 0
        %1458 = vmatmul.mubr.bf16.gmra.mxu0 %v1332
        %v1459 = vpop.f32.mrf.mxu0
        %v1460 = vadd.f32 %v1359, %v1459
        %v1461 = vpop.f32.mrf.mxu0
        %v1462 = vpop.f32.mrf.mxu0
        %v1463 = vadd.f32 %v1359, %v1462
        %v1464 = vpop.f32.mrf.mxu0
        %1465 = vmatprep.mubr.bf16.mxu0 0
        %1466 = vmatmul.mubr.bf16.gmra.mxu0 %v1333
        %v1467 = vpop.f32.mrf.mxu0
        %v1468 = vadd.f32 %v1359, %v1467
        %v1469 = vpop.f32.mrf.mxu0
        %v1470 = vpop.f32.mrf.mxu0
        %v1471 = vadd.f32 %v1359, %v1470
        %v1472 = vpop.f32.mrf.mxu0
        %1473 = vmatprep.mubr.bf16.mxu0 0
        %1474 = vmatmul.mubr.bf16.gmra.mxu0 %v1334
        %v1475 = vpop.f32.mrf.mxu0
        %v1476 = vadd.f32 %v1359, %v1475
        %v1477 = vpop.f32.mrf.mxu0
        %v1478 = vpop.f32.mrf.mxu0
        %v1479 = vadd.f32 %v1359, %v1478
        %v1480 = vpop.f32.mrf.mxu0
        %1481 = vmatprep.mubr.bf16.mxu0 0
        %1482 = vmatmul.mubr.bf16.gmra.mxu0 %v1335
        %v1483 = vpop.f32.mrf.mxu0
        %v1484 = vadd.f32 %v1359, %v1483
        %v1485 = vpop.f32.mrf.mxu0
        %v1486 = vpop.f32.mrf.mxu0
        %v1487 = vadd.f32 %v1359, %v1486
        %v1488 = vpop.f32.mrf.mxu0
        %1489 = vmatprep.mubr.bf16.mxu0 0
        %1490 = vmatmul.mubr.bf16.gmra.mxu0 %v1336
        %v1491 = vpop.f32.mrf.mxu0
        %v1492 = vadd.f32 %v1359, %v1491
        %v1493 = vpop.f32.mrf.mxu0
        %v1494 = vpop.f32.mrf.mxu0
        %v1495 = vadd.f32 %v1359, %v1494
        %v1496 = vpop.f32.mrf.mxu0
        %1497 = vmatprep.mubr.bf16.mxu0 0
        %1498 = vmatmul.mubr.bf16.gmra.mxu0 %v1337
        %v1499 = vpop.f32.mrf.mxu0
        %v1500 = vadd.f32 %v1359, %v1499
        %v1501 = vpop.f32.mrf.mxu0
        %v1502 = vpop.f32.mrf.mxu0
        %v1503 = vadd.f32 %v1359, %v1502
        %v1504 = vpop.f32.mrf.mxu0
        %1505 = vdwg.mxu0
        %v1506 = vmax.f32 %v1444, 0.0
        %v1507 = vmax.f32 %v1447, 0.0
        %v1508 = vmax.f32 %v1452, 0.0
        %v1509 = vmax.f32 %v1455, 0.0
        %v1510 = vmax.f32 %v1460, 0.0
        %v1511 = vmax.f32 %v1463, 0.0
        %v1512 = vmax.f32 %v1468, 0.0
        %v1513 = vmax.f32 %v1471, 0.0
        %v1514 = vmax.f32 %v1476, 0.0
        %v1515 = vmax.f32 %v1479, 0.0
        %v1516 = vmax.f32 %v1484, 0.0
        %v1517 = vmax.f32 %v1487, 0.0
        %v1518 = vmax.f32 %v1492, 0.0
        %v1519 = vmax.f32 %v1495, 0.0
        %v1520 = vmax.f32 %v1500, 0.0
        %v1521 = vmax.f32 %v1503, 0.0
        %v1522 = vadd.f32 %v628, %v1506
        %v1523 = vadd.f32 %v629, %v1507
        %v1524 = vadd.f32 %v630, %v1508
        %v1525 = vadd.f32 %v631, %v1509
        %v1526 = vadd.f32 %v632, %v1510
        %v1527 = vadd.f32 %v633, %v1511
        %v1528 = vadd.f32 %v634, %v1512
        %v1529 = vadd.f32 %v635, %v1513
        %v1530 = vadd.f32 %v636, %v1514
        %v1531 = vadd.f32 %v637, %v1515
        %v1532 = vadd.f32 %v638, %v1516
        %v1533 = vadd.f32 %v639, %v1517
        %v1534 = vadd.f32 %v640, %v1518
        %v1535 = vadd.f32 %v641, %v1519
        %v1536 = vadd.f32 %v642, %v1520
        %v1537 = vadd.f32 %v643, %v1521
        %1538 = vxpose.xlu0.b32.start [1/16] %v1522, 128
        %1539 = vxpose.xlu0.b32.cont [2/16] %v1523, 128
        %1540 = vxpose.xlu0.b32.cont [3/16] %v1524, 128
        %1541 = vxpose.xlu0.b32.cont [4/16] %v1525, 128
        %1542 = vxpose.xlu0.b32.cont [5/16] %v1526, 128
        %1543 = vxpose.xlu0.b32.cont [6/16] %v1527, 128
        %1544 = vxpose.xlu0.b32.cont [7/16] %v1528, 128
        %1545 = vxpose.xlu0.b32.cont [8/16] %v1529, 128
        %1546 = vxpose.xlu0.b32.cont [9/16] %v1530, 128
        %1547 = vxpose.xlu0.b32.cont [10/16] %v1531, 128
        %1548 = vxpose.xlu0.b32.cont [11/16] %v1532, 128
        %1549 = vxpose.xlu0.b32.cont [12/16] %v1533, 128
        %1550 = vxpose.xlu0.b32.cont [13/16] %v1534, 128
        %1551 = vxpose.xlu0.b32.cont [14/16] %v1535, 128
        %1552 = vxpose.xlu0.b32.cont [15/16] %v1536, 128
        %1553 = vxpose.xlu0.b32.end [16/16] %v1537, 128
        %v1554 = vpop.trf.xlu0
        %v1555 = vpop.trf.xlu0
        %v1556 = vpop.trf.xlu0
        %v1557 = vpop.trf.xlu0
        %v1558 = vpop.trf.xlu0
        %v1559 = vpop.trf.xlu0
        %v1560 = vpop.trf.xlu0
        %v1561 = vpop.trf.xlu0
        %v1562 = vpop.trf.xlu0
        %v1563 = vpop.trf.xlu0
        %v1564 = vpop.trf.xlu0
        %v1565 = vpop.trf.xlu0
        %v1566 = vpop.trf.xlu0
        %v1567 = vpop.trf.xlu0
        %v1568 = vpop.trf.xlu0
        %v1569 = vpop.trf.xlu0
        %v1570 = vpack.c.bf16 %v1555, %v1554
        %v1571 = vpack.c.bf16 %v1557, %v1556
        %v1572 = vpack.c.bf16 %v1559, %v1558
        %v1573 = vpack.c.bf16 %v1561, %v1560
        %v1574 = vpack.c.bf16 %v1563, %v1562
        %v1575 = vpack.c.bf16 %v1565, %v1564
        %v1576 = vpack.c.bf16 %v1567, %v1566
        %v1577 = vpack.c.bf16 %v1569, %v1568
        %v1578 = vpack.c.bf16 %v1523, %v1522
        %v1579 = vpack.c.bf16 %v1525, %v1524
        %v1580 = vpack.c.bf16 %v1527, %v1526
        %v1581 = vpack.c.bf16 %v1529, %v1528
        %v1582 = vpack.c.bf16 %v1531, %v1530
        %v1583 = vpack.c.bf16 %v1533, %v1532
        %v1584 = vpack.c.bf16 %v1535, %v1534
        %v1585 = vpack.c.bf16 %v1537, %v1536
        %s1586 = scalar_lea.vmem %s3, 128
        %v1587 = vld [vmem:[%s1586] sm:$0xff]
        %v1588 = vld [vmem:[%s1586 + $0x8] sm:$0xff]
        %v1589 = vld [vmem:[%s1586 + $0x10] sm:$0xff]
        %v1590 = vld [vmem:[%s1586 + $0x18] sm:$0xff]
        %v1591 = vld [vmem:[%s1586 + $0x20] sm:$0xff]
        %v1592 = vld [vmem:[%s1586 + $0x28] sm:$0xff]
        %v1593 = vld [vmem:[%s1586 + $0x30] sm:$0xff]
        %v1594 = vld [vmem:[%s1586 + $0x38] sm:$0xff]
        %v1595 = vld [vmem:[%s1586 + $0x40] sm:$0xff]
        %v1596 = vld [vmem:[%s1586 + $0x48] sm:$0xff]
        %v1597 = vld [vmem:[%s1586 + $0x50] sm:$0xff]
        %v1598 = vld [vmem:[%s1586 + $0x58] sm:$0xff]
        %v1599 = vld [vmem:[%s1586 + $0x60] sm:$0xff]
        %v1600 = vld [vmem:[%s1586 + $0x68] sm:$0xff]
        %v1601 = vld [vmem:[%s1586 + $0x70] sm:$0xff]
        %v1602 = vld [vmem:[%s1586 + $0x78] sm:$0xff]
        %v1619 = vunpack.c.l.b16 %v1587
        %v1620 = vunpack.c.h.b16 %v1587
        %v1621 = vunpack.c.l.b16 %v1588
        %v1622 = vunpack.c.h.b16 %v1588
        %v1623 = vunpack.c.l.b16 %v1589
        %v1624 = vunpack.c.h.b16 %v1589
        %v1625 = vunpack.c.l.b16 %v1590
        %v1626 = vunpack.c.h.b16 %v1590
        %v1627 = vunpack.c.l.b16 %v1591
        %v1628 = vunpack.c.h.b16 %v1591
        %v1629 = vunpack.c.l.b16 %v1592
        %v1630 = vunpack.c.h.b16 %v1592
        %v1631 = vunpack.c.l.b16 %v1593
        %v1632 = vunpack.c.h.b16 %v1593
        %v1633 = vunpack.c.l.b16 %v1594
        %v1634 = vunpack.c.h.b16 %v1594
        %v1635 = vunpack.c.l.b16 %v1595
        %v1636 = vunpack.c.h.b16 %v1595
        %v1637 = vunpack.c.l.b16 %v1596
        %v1638 = vunpack.c.h.b16 %v1596
        %v1639 = vunpack.c.l.b16 %v1597
        %v1640 = vunpack.c.h.b16 %v1597
        %v1641 = vunpack.c.l.b16 %v1598
        %v1642 = vunpack.c.h.b16 %v1598
        %v1643 = vunpack.c.l.b16 %v1599
        %v1644 = vunpack.c.h.b16 %v1599
        %v1645 = vunpack.c.l.b16 %v1600
        %v1646 = vunpack.c.h.b16 %v1600
        %v1647 = vunpack.c.l.b16 %v1601
        %v1648 = vunpack.c.h.b16 %v1601
        %v1649 = vunpack.c.l.b16 %v1602
        %v1650 = vunpack.c.h.b16 %v1602
        %v1651 = vpack.c.b16 %v1621, %v1619
        %v1652 = vpack.c.b16 %v1622, %v1620
        %v1653 = vpack.c.b16 %v1625, %v1623
        %v1654 = vpack.c.b16 %v1626, %v1624
        %v1655 = vpack.c.b16 %v1629, %v1627
        %v1656 = vpack.c.b16 %v1630, %v1628
        %v1657 = vpack.c.b16 %v1633, %v1631
        %v1658 = vpack.c.b16 %v1634, %v1632
        %v1659 = vpack.c.b16 %v1637, %v1635
        %v1660 = vpack.c.b16 %v1638, %v1636
        %v1661 = vpack.c.b16 %v1641, %v1639
        %v1662 = vpack.c.b16 %v1642, %v1640
        %v1663 = vpack.c.b16 %v1645, %v1643
        %v1664 = vpack.c.b16 %v1646, %v1644
        %v1665 = vpack.c.b16 %v1649, %v1647
        %v1666 = vpack.c.b16 %v1650, %v1648
        %1683 = vmatprep.subr.bf16.mxu0 %v1666
        %1684 = vmatpush1.bf16.msra.mxu0 %v1665
        %1685 = vmatprep.subr.bf16.mxu0 %v1664
        %1686 = vmatpush1.bf16.msra.mxu0 %v1663
        %1687 = vmatprep.subr.bf16.mxu0 %v1662
        %1688 = vmatpush1.bf16.msra.mxu0 %v1661
        %1689 = vmatprep.subr.bf16.mxu0 %v1660
        %1690 = vmatpush1.bf16.msra.mxu0 %v1659
        %1691 = vmatprep.subr.bf16.mxu0 %v1658
        %1692 = vmatpush1.bf16.msra.mxu0 %v1657
        %1693 = vmatprep.subr.bf16.mxu0 %v1656
        %1694 = vmatpush1.bf16.msra.mxu0 %v1655
        %1695 = vmatprep.subr.bf16.mxu0 %v1654
        %1696 = vmatpush1.bf16.msra.mxu0 %v1653
        %1697 = vmatprep.subr.bf16.mxu0 %v1652
        %1698 = vmatpush1.bf16.msra.mxu0 %v1651
        %1699 = vmatprep.subr.bf16.mxu0 0
        %1700 = vmatpush2.bf16.msra.mxu0 0
        %1701 = vmatprep.subr.bf16.mxu0 0
        %1702 = vmatpush2.bf16.msra.mxu0 0
        %1703 = vmatprep.subr.bf16.mxu0 0
        %1704 = vmatpush2.bf16.msra.mxu0 0
        %1705 = vmatprep.subr.bf16.mxu0 0
        %1706 = vmatpush2.bf16.msra.mxu0 0
        %1707 = vmatprep.subr.bf16.mxu0 0
        %1708 = vmatpush2.bf16.msra.mxu0 0
        %1709 = vmatprep.subr.bf16.mxu0 0
        %1710 = vmatpush2.bf16.msra.mxu0 0
        %1711 = vmatprep.subr.bf16.mxu0 0
        %1712 = vmatpush2.bf16.msra.mxu0 0
        %1713 = vmatprep.subr.bf16.mxu0 0
        %1714 = vmatpush2.bf16.msra.mxu0 0
        %1715 = vmatprep.mubr.bf16.mxu0 0
        %1716 = vmatmul.mubr.bf16.gmra.mxu0 %v1578
        %v1717 = vpop.f32.mrf.mxu0
        %v1718 = vadd.f32 0.0, %v1717
        %v1719 = vpop.f32.mrf.mxu0
        %v1720 = vadd.f32 0.0, %v1719
        %v1721 = vpop.f32.mrf.mxu0
        %v1722 = vadd.f32 0.0, %v1721
        %v1723 = vpop.f32.mrf.mxu0
        %v1724 = vadd.f32 0.0, %v1723
        %1725 = vmatprep.mubr.bf16.mxu0 0
        %1726 = vmatmul.mubr.bf16.gmra.mxu0 %v1579
        %v1727 = vpop.f32.mrf.mxu0
        %v1728 = vadd.f32 0.0, %v1727
        %v1729 = vpop.f32.mrf.mxu0
        %v1730 = vadd.f32 0.0, %v1729
        %v1731 = vpop.f32.mrf.mxu0
        %v1732 = vadd.f32 0.0, %v1731
        %v1733 = vpop.f32.mrf.mxu0
        %v1734 = vadd.f32 0.0, %v1733
        %1735 = vmatprep.mubr.bf16.mxu0 0
        %1736 = vmatmul.mubr.bf16.gmra.mxu0 %v1580
        %v1737 = vpop.f32.mrf.mxu0
        %v1738 = vadd.f32 0.0, %v1737
        %v1739 = vpop.f32.mrf.mxu0
        %v1740 = vadd.f32 0.0, %v1739
        %v1741 = vpop.f32.mrf.mxu0
        %v1742 = vadd.f32 0.0, %v1741
        %v1743 = vpop.f32.mrf.mxu0
        %v1744 = vadd.f32 0.0, %v1743
        %1745 = vmatprep.mubr.bf16.mxu0 0
        %1746 = vmatmul.mubr.bf16.gmra.mxu0 %v1581
        %v1747 = vpop.f32.mrf.mxu0
        %v1748 = vadd.f32 0.0, %v1747
        %v1749 = vpop.f32.mrf.mxu0
        %v1750 = vadd.f32 0.0, %v1749
        %v1751 = vpop.f32.mrf.mxu0
        %v1752 = vadd.f32 0.0, %v1751
        %v1753 = vpop.f32.mrf.mxu0
        %v1754 = vadd.f32 0.0, %v1753
        %1755 = vmatprep.mubr.bf16.mxu0 0
        %1756 = vmatmul.mubr.bf16.gmra.mxu0 %v1582
        %v1757 = vpop.f32.mrf.mxu0
        %v1758 = vadd.f32 0.0, %v1757
        %v1759 = vpop.f32.mrf.mxu0
        %v1760 = vadd.f32 0.0, %v1759
        %v1761 = vpop.f32.mrf.mxu0
        %v1762 = vadd.f32 0.0, %v1761
        %v1763 = vpop.f32.mrf.mxu0
        %v1764 = vadd.f32 0.0, %v1763
        %1765 = vmatprep.mubr.bf16.mxu0 0
        %1766 = vmatmul.mubr.bf16.gmra.mxu0 %v1583
        %v1767 = vpop.f32.mrf.mxu0
        %v1768 = vadd.f32 0.0, %v1767
        %v1769 = vpop.f32.mrf.mxu0
        %v1770 = vadd.f32 0.0, %v1769
        %v1771 = vpop.f32.mrf.mxu0
        %v1772 = vadd.f32 0.0, %v1771
        %v1773 = vpop.f32.mrf.mxu0
        %v1774 = vadd.f32 0.0, %v1773
        %1775 = vmatprep.mubr.bf16.mxu0 0
        %1776 = vmatmul.mubr.bf16.gmra.mxu0 %v1584
        %v1777 = vpop.f32.mrf.mxu0
        %v1778 = vadd.f32 0.0, %v1777
        %v1779 = vpop.f32.mrf.mxu0
        %v1780 = vadd.f32 0.0, %v1779
        %v1781 = vpop.f32.mrf.mxu0
        %v1782 = vadd.f32 0.0, %v1781
        %v1783 = vpop.f32.mrf.mxu0
        %v1784 = vadd.f32 0.0, %v1783
        %1785 = vmatprep.mubr.bf16.mxu0 0
        %1786 = vmatmul.mubr.bf16.gmra.mxu0 %v1585
        %v1787 = vpop.f32.mrf.mxu0
        %v1788 = vadd.f32 0.0, %v1787
        %v1789 = vpop.f32.mrf.mxu0
        %v1790 = vadd.f32 0.0, %v1789
        %v1791 = vpop.f32.mrf.mxu0
        %v1792 = vadd.f32 0.0, %v1791
        %v1793 = vpop.f32.mrf.mxu0
        %v1794 = vadd.f32 0.0, %v1793
        %1795 = vdwg.mxu0
        %s1796 = scalar_lea.vmem %s4, 1
        %v1797 = vld [vmem:[%s1796] sm:$0x1]
        %v1799 = vlaneseq
        %v1800 = vshrl.u32 %v1799, 7
        %v1801 = vsub.s32 0, %v1800
        %v1802 = vrot.slane %v1797, %v1801
        %v1804 = vadd.f32 %v1718, %v1802
        %v1805 = vadd.f32 %v1722, %v1802
        %v1806 = vadd.f32 %v1728, %v1802
        %v1807 = vadd.f32 %v1732, %v1802
        %v1808 = vadd.f32 %v1738, %v1802
        %v1809 = vadd.f32 %v1742, %v1802
        %v1810 = vadd.f32 %v1748, %v1802
        %v1811 = vadd.f32 %v1752, %v1802
        %v1812 = vadd.f32 %v1758, %v1802
        %v1813 = vadd.f32 %v1762, %v1802
        %v1814 = vadd.f32 %v1768, %v1802
        %v1815 = vadd.f32 %v1772, %v1802
        %v1816 = vadd.f32 %v1778, %v1802
        %v1817 = vadd.f32 %v1782, %v1802
        %v1818 = vadd.f32 %v1788, %v1802
        %v1819 = vadd.f32 %v1792, %v1802
        %v1820 = vpack.c.bf16 %v1724, %v1720
        %v1821 = vpack.c.bf16 %v1734, %v1730
        %v1822 = vpack.c.bf16 %v1744, %v1740
        %v1823 = vpack.c.bf16 %v1754, %v1750
        %v1824 = vpack.c.bf16 %v1764, %v1760
        %v1825 = vpack.c.bf16 %v1774, %v1770
        %v1826 = vpack.c.bf16 %v1784, %v1780
        %v1827 = vpack.c.bf16 %v1794, %v1790
        %v1829 = vsel %vm892, %v1820, 0
        %v1832 = vsel %vm892, %v1821, 0
        %v1835 = vsel %vm892, %v1822, 0
        %v1838 = vsel %vm892, %v1823, 0
        %v1841 = vsel %vm892, %v1824, 0
        %v1844 = vsel %vm892, %v1825, 0
        %v1847 = vsel %vm892, %v1826, 0
        %v1850 = vsel %vm892, %v1827, 0
        %1852 = vmatprep.subr.bf16.mxu0 0
        %1853 = vmatpush1.bf16.xpose.msra.mxu0 %v1850
        %1854 = vmatprep.subr.bf16.mxu0 0
        %1855 = vmatpush1.bf16.xpose.msra.mxu0 %v1847
        %1856 = vmatprep.subr.bf16.mxu0 0
        %1857 = vmatpush1.bf16.xpose.msra.mxu0 %v1844
        %1858 = vmatprep.subr.bf16.mxu0 0
        %1859 = vmatpush1.bf16.xpose.msra.mxu0 %v1841
        %1860 = vmatprep.subr.bf16.mxu0 0
        %1861 = vmatpush1.bf16.xpose.msra.mxu0 %v1838
        %1862 = vmatprep.subr.bf16.mxu0 0
        %1863 = vmatpush1.bf16.xpose.msra.mxu0 %v1835
        %1864 = vmatprep.subr.bf16.mxu0 0
        %1865 = vmatpush1.bf16.xpose.msra.mxu0 %v1832
        %1866 = vmatprep.subr.bf16.mxu0 0
        %1867 = vmatpush1.bf16.xpose.msra.mxu0 %v1829
        %1868 = vmatprep.subr.bf16.mxu0 0
        %1869 = vmatpush2.bf16.xpose.msra.mxu0 0
        %1870 = vmatprep.subr.bf16.mxu0 0
        %1871 = vmatpush2.bf16.xpose.msra.mxu0 0
        %1872 = vmatprep.subr.bf16.mxu0 0
        %1873 = vmatpush2.bf16.xpose.msra.mxu0 0
        %1874 = vmatprep.subr.bf16.mxu0 0
        %1875 = vmatpush2.bf16.xpose.msra.mxu0 0
        %1876 = vmatprep.subr.bf16.mxu0 0
        %1877 = vmatpush2.bf16.xpose.msra.mxu0 0
        %1878 = vmatprep.subr.bf16.mxu0 0
        %1879 = vmatpush2.bf16.xpose.msra.mxu0 0
        %1880 = vmatprep.subr.bf16.mxu0 0
        %1881 = vmatpush2.bf16.xpose.msra.mxu0 0
        %1882 = vmatprep.subr.bf16.mxu0 0
        %1883 = vmatpush2.bf16.xpose.msra.mxu0 0
        %1884 = vmatprep.mubr.bf16.mxu0 0
        %1885 = vmatmul.mubr.bf16.gmra.mxu0 %v1829
        %v1886 = vpop.f32.mrf.mxu0
        %v1887 = vadd.f32 0.0, %v1886
        %v1888 = vpop.f32.mrf.mxu0
        %v1889 = vpop.f32.mrf.mxu0
        %v1890 = vadd.f32 0.0, %v1889
        %v1891 = vpop.f32.mrf.mxu0
        %1892 = vmatprep.mubr.bf16.mxu0 0
        %1893 = vmatmul.mubr.bf16.gmra.mxu0 %v1832
        %v1894 = vpop.f32.mrf.mxu0
        %v1895 = vadd.f32 0.0, %v1894
        %v1896 = vpop.f32.mrf.mxu0
        %v1897 = vpop.f32.mrf.mxu0
        %v1898 = vadd.f32 0.0, %v1897
        %v1899 = vpop.f32.mrf.mxu0
        %1900 = vmatprep.mubr.bf16.mxu0 0
        %1901 = vmatmul.mubr.bf16.gmra.mxu0 %v1835
        %v1902 = vpop.f32.mrf.mxu0
        %v1903 = vadd.f32 0.0, %v1902
        %v1904 = vpop.f32.mrf.mxu0
        %v1905 = vpop.f32.mrf.mxu0
        %v1906 = vadd.f32 0.0, %v1905
        %v1907 = vpop.f32.mrf.mxu0
        %1908 = vmatprep.mubr.bf16.mxu0 0
        %1909 = vmatmul.mubr.bf16.gmra.mxu0 %v1838
        %v1910 = vpop.f32.mrf.mxu0
        %v1911 = vadd.f32 0.0, %v1910
        %v1912 = vpop.f32.mrf.mxu0
        %v1913 = vpop.f32.mrf.mxu0
        %v1914 = vadd.f32 0.0, %v1913
        %v1915 = vpop.f32.mrf.mxu0
        %1916 = vmatprep.mubr.bf16.mxu0 0
        %1917 = vmatmul.mubr.bf16.gmra.mxu0 %v1841
        %v1918 = vpop.f32.mrf.mxu0
        %v1919 = vadd.f32 0.0, %v1918
        %v1920 = vpop.f32.mrf.mxu0
        %v1921 = vpop.f32.mrf.mxu0
        %v1922 = vadd.f32 0.0, %v1921
        %v1923 = vpop.f32.mrf.mxu0
        %1924 = vmatprep.mubr.bf16.mxu0 0
        %1925 = vmatmul.mubr.bf16.gmra.mxu0 %v1844
        %v1926 = vpop.f32.mrf.mxu0
        %v1927 = vadd.f32 0.0, %v1926
        %v1928 = vpop.f32.mrf.mxu0
        %v1929 = vpop.f32.mrf.mxu0
        %v1930 = vadd.f32 0.0, %v1929
        %v1931 = vpop.f32.mrf.mxu0
        %1932 = vmatprep.mubr.bf16.mxu0 0
        %1933 = vmatmul.mubr.bf16.gmra.mxu0 %v1847
        %v1934 = vpop.f32.mrf.mxu0
        %v1935 = vadd.f32 0.0, %v1934
        %v1936 = vpop.f32.mrf.mxu0
        %v1937 = vpop.f32.mrf.mxu0
        %v1938 = vadd.f32 0.0, %v1937
        %v1939 = vpop.f32.mrf.mxu0
        %1940 = vmatprep.mubr.bf16.mxu0 0
        %1941 = vmatmul.mubr.bf16.gmra.mxu0 %v1850
        %v1942 = vpop.f32.mrf.mxu0
        %v1943 = vadd.f32 0.0, %v1942
        %v1944 = vpop.f32.mrf.mxu0
        %v1945 = vpop.f32.mrf.mxu0
        %v1946 = vadd.f32 0.0, %v1945
        %v1947 = vpop.f32.mrf.mxu0
        %1948 = vdwg.mxu0
        %v1949 = vmax.f32 %v1887, %v1903
        %v1950 = vmax.f32 %v1890, %v1906
        %v1951 = vmax.f32 %v1895, %v1911
        %v1952 = vmax.f32 %v1898, %v1914
        %v1953 = vmax.f32 %v1949, %v1919
        %v1954 = vmax.f32 %v1950, %v1922
        %v1955 = vmax.f32 %v1951, %v1927
        %v1956 = vmax.f32 %v1952, %v1930
        %v1957 = vmax.f32 %v1953, %v1935
        %v1958 = vmax.f32 %v1954, %v1938
        %v1959 = vmax.f32 %v1955, %v1943
        %v1960 = vmax.f32 %v1956, %v1946
        %v1961 = vmax.f32 %v1957, %v1958
        %v1962 = vmax.f32 %v1959, %v1960
        %v1963 = vmax.f32 %v1961, %v1962
        %v1964 = vrot.slane %v1963, 4
        %v1965 = vmax.f32 %v1963, %v1964
        %v1966 = vrot.slane %v1965, 2
        %v1967 = vmax.f32 %v1965, %v1966
        %v1968 = vrot.slane %v1967, 1
        %v1969 = vmax.f32 %v1967, %v1968
        %v1970 = vsub.f32 %v1887, %v1969
        %v1971 = vsub.f32 %v1890, %v1969
        %v1972 = vsub.f32 %v1895, %v1969
        %v1973 = vsub.f32 %v1898, %v1969
        %v1974 = vsub.f32 %v1903, %v1969
        %v1975 = vsub.f32 %v1906, %v1969
        %v1976 = vsub.f32 %v1911, %v1969
        %v1977 = vsub.f32 %v1914, %v1969
        %v1978 = vsub.f32 %v1919, %v1969
        %v1979 = vsub.f32 %v1922, %v1969
        %v1980 = vsub.f32 %v1927, %v1969
        %v1981 = vsub.f32 %v1930, %v1969
        %v1982 = vsub.f32 %v1935, %v1969
        %v1983 = vsub.f32 %v1938, %v1969
        %v1984 = vsub.f32 %v1943, %v1969
        %v1985 = vsub.f32 %v1946, %v1969
        %v1986 = vmul.f32 %v1970, 1.442695
        %v1987 = vpow.pop %v1986
        %v1988 = vmul.f32 %v1971, 1.442695
        %v1989 = vpow.pop %v1988
        %v1990 = vmul.f32 %v1972, 1.442695
        %v1991 = vpow.pop %v1990
        %v1992 = vmul.f32 %v1973, 1.442695
        %v1993 = vpow.pop %v1992
        %v1994 = vmul.f32 %v1974, 1.442695
        %v1995 = vpow.pop %v1994
        %v1996 = vmul.f32 %v1975, 1.442695
        %v1997 = vpow.pop %v1996
        %v1998 = vmul.f32 %v1976, 1.442695
        %v1999 = vpow.pop %v1998
        %v2000 = vmul.f32 %v1977, 1.442695
        %v2001 = vpow.pop %v2000
        %v2002 = vmul.f32 %v1978, 1.442695
        %v2003 = vpow.pop %v2002
        %v2004 = vmul.f32 %v1979, 1.442695
        %v2005 = vpow.pop %v2004
        %v2006 = vmul.f32 %v1980, 1.442695
        %v2007 = vpow.pop %v2006
        %v2008 = vmul.f32 %v1981, 1.442695
        %v2009 = vpow.pop %v2008
        %v2010 = vmul.f32 %v1982, 1.442695
        %v2011 = vpow.pop %v2010
        %v2012 = vmul.f32 %v1983, 1.442695
        %v2013 = vpow.pop %v2012
        %v2014 = vmul.f32 %v1984, 1.442695
        %v2015 = vpow.pop %v2014
        %v2016 = vmul.f32 %v1985, 1.442695
        %v2017 = vpow.pop %v2016
        %v2018 = vadd.f32 %v1987, %v1989
        %v2019 = vadd.f32 %v2018, %v1991
        %v2020 = vadd.f32 %v2019, %v1993
        %v2021 = vadd.f32 %v2020, %v1995
        %v2022 = vadd.f32 %v2021, %v1997
        %v2023 = vadd.f32 %v2022, %v1999
        %v2024 = vadd.f32 %v2023, %v2001
        %v2025 = vadd.f32 %v2024, %v2003
        %v2026 = vadd.f32 %v2025, %v2005
        %v2027 = vadd.f32 %v2026, %v2007
        %v2028 = vadd.f32 %v2027, %v2009
        %v2029 = vadd.f32 %v2028, %v2011
        %v2030 = vadd.f32 %v2029, %v2013
        %v2031 = vadd.f32 %v2030, %v2015
        %v2032 = vadd.f32 %v2031, %v2017
        %v2033 = vrot.slane %v2032, 4
        %v2034 = vadd.f32 %v2032, %v2033
        %v2035 = vrot.slane %v2034, 2
        %v2036 = vadd.f32 %v2034, %v2035
        %v2037 = vrot.slane %v2036, 1
        %v2038 = vadd.f32 %v2036, %v2037
        %v2039 = vrcp.pop %v2038
        %v2040 = vmul.f32 %v1987, %v2039
        %v2041 = vmul.f32 %v1989, %v2039
        %v2042 = vmul.f32 %v1991, %v2039
        %v2043 = vmul.f32 %v1993, %v2039
        %v2044 = vmul.f32 %v1995, %v2039
        %v2045 = vmul.f32 %v1997, %v2039
        %v2046 = vmul.f32 %v1999, %v2039
        %v2047 = vmul.f32 %v2001, %v2039
        %v2048 = vmul.f32 %v2003, %v2039
        %v2049 = vmul.f32 %v2005, %v2039
        %v2050 = vmul.f32 %v2007, %v2039
        %v2051 = vmul.f32 %v2009, %v2039
        %v2052 = vmul.f32 %v2011, %v2039
        %v2053 = vmul.f32 %v2013, %v2039
        %v2054 = vmul.f32 %v2015, %v2039
        %v2055 = vmul.f32 %v2017, %v2039
        %2056 = vadd.xlane.f32.xlu0 %v2040
        %v2057 = vpop.xlane.xlu0 %2056
        %2058 = vadd.xlane.f32.xlu0 %v2041
        %v2059 = vpop.xlane.xlu0 %2058
        %2060 = vadd.xlane.f32.xlu0 %v2042
        %v2061 = vpop.xlane.xlu0 %2060
        %2062 = vadd.xlane.f32.xlu0 %v2043
        %v2063 = vpop.xlane.xlu0 %2062
        %2064 = vadd.xlane.f32.xlu0 %v2044
        %v2065 = vpop.xlane.xlu0 %2064
        %2066 = vadd.xlane.f32.xlu0 %v2045
        %v2067 = vpop.xlane.xlu0 %2066
        %2068 = vadd.xlane.f32.xlu0 %v2046
        %v2069 = vpop.xlane.xlu0 %2068
        %2070 = vadd.xlane.f32.xlu0 %v2047
        %v2071 = vpop.xlane.xlu0 %2070
        %2072 = vadd.xlane.f32.xlu0 %v2048
        %v2073 = vpop.xlane.xlu0 %2072
        %2074 = vadd.xlane.f32.xlu0 %v2049
        %v2075 = vpop.xlane.xlu0 %2074
        %2076 = vadd.xlane.f32.xlu0 %v2050
        %v2077 = vpop.xlane.xlu0 %2076
        %2078 = vadd.xlane.f32.xlu0 %v2051
        %v2079 = vpop.xlane.xlu0 %2078
        %2080 = vadd.xlane.f32.xlu0 %v2052
        %v2081 = vpop.xlane.xlu0 %2080
        %2082 = vadd.xlane.f32.xlu0 %v2053
        %v2083 = vpop.xlane.xlu0 %2082
        %2084 = vadd.xlane.f32.xlu0 %v2054
        %v2085 = vpop.xlane.xlu0 %2084
        %2086 = vadd.xlane.f32.xlu0 %v2055
        %v2087 = vpop.xlane.xlu0 %2086
        %v2088 = vadd.f32 %v2057, 1e-09
        %v2089 = vadd.f32 %v2059, 1e-09
        %v2090 = vadd.f32 %v2061, 1e-09
        %v2091 = vadd.f32 %v2063, 1e-09
        %v2092 = vadd.f32 %v2065, 1e-09
        %v2093 = vadd.f32 %v2067, 1e-09
        %v2094 = vadd.f32 %v2069, 1e-09
        %v2095 = vadd.f32 %v2071, 1e-09
        %v2096 = vadd.f32 %v2073, 1e-09
        %v2097 = vadd.f32 %v2075, 1e-09
        %v2098 = vadd.f32 %v2077, 1e-09
        %v2099 = vadd.f32 %v2079, 1e-09
        %v2100 = vadd.f32 %v2081, 1e-09
        %v2101 = vadd.f32 %v2083, 1e-09
        %v2102 = vadd.f32 %v2085, 1e-09
        %v2103 = vadd.f32 %v2087, 1e-09
        %v2104 = vrcp.pop %v2088
        %v2105 = vrcp.pop %v2089
        %v2106 = vrcp.pop %v2090
        %v2107 = vrcp.pop %v2091
        %v2108 = vrcp.pop %v2092
        %v2109 = vrcp.pop %v2093
        %v2110 = vrcp.pop %v2094
        %v2111 = vrcp.pop %v2095
        %v2112 = vrcp.pop %v2096
        %v2113 = vrcp.pop %v2097
        %v2114 = vrcp.pop %v2098
        %v2115 = vrcp.pop %v2099
        %v2116 = vrcp.pop %v2100
        %v2117 = vrcp.pop %v2101
        %v2118 = vrcp.pop %v2102
        %v2119 = vrcp.pop %v2103
        %v2120 = vpack.c.bf16 %v2041, %v2040
        %v2121 = vpack.c.bf16 %v2043, %v2042
        %v2122 = vpack.c.bf16 %v2045, %v2044
        %v2123 = vpack.c.bf16 %v2047, %v2046
        %v2124 = vpack.c.bf16 %v2049, %v2048
        %v2125 = vpack.c.bf16 %v2051, %v2050
        %v2126 = vpack.c.bf16 %v2053, %v2052
        %v2127 = vpack.c.bf16 %v2055, %v2054
        %v2128 = vpack.c.bf16 %v1805, %v1804
        %v2129 = vpack.c.bf16 %v1807, %v1806
        %v2130 = vpack.c.bf16 %v1809, %v1808
        %v2131 = vpack.c.bf16 %v1811, %v1810
        %v2132 = vpack.c.bf16 %v1813, %v1812
        %v2133 = vpack.c.bf16 %v1815, %v1814
        %v2134 = vpack.c.bf16 %v1817, %v1816
        %v2135 = vpack.c.bf16 %v1819, %v1818
        %2136 = vmatprep.subr.bf16.mxu0 0
        %2137 = vmatpush1.bf16.msra.mxu0 %v2135
        %2138 = vmatprep.subr.bf16.mxu0 0
        %2139 = vmatpush1.bf16.msra.mxu0 %v2134
        %2140 = vmatprep.subr.bf16.mxu0 0
        %2141 = vmatpush1.bf16.msra.mxu0 %v2133
        %2142 = vmatprep.subr.bf16.mxu0 0
        %2143 = vmatpush1.bf16.msra.mxu0 %v2132
        %2144 = vmatprep.subr.bf16.mxu0 0
        %2145 = vmatpush1.bf16.msra.mxu0 %v2131
        %2146 = vmatprep.subr.bf16.mxu0 0
        %2147 = vmatpush1.bf16.msra.mxu0 %v2130
        %2148 = vmatprep.subr.bf16.mxu0 0
        %2149 = vmatpush1.bf16.msra.mxu0 %v2129
        %2150 = vmatprep.subr.bf16.mxu0 0
        %2151 = vmatpush1.bf16.msra.mxu0 %v2128
        %2152 = vmatprep.subr.bf16.mxu0 0
        %2153 = vmatpush2.bf16.msra.mxu0 0
        %2154 = vmatprep.subr.bf16.mxu0 0
        %2155 = vmatpush2.bf16.msra.mxu0 0
        %2156 = vmatprep.subr.bf16.mxu0 0
        %2157 = vmatpush2.bf16.msra.mxu0 0
        %2158 = vmatprep.subr.bf16.mxu0 0
        %2159 = vmatpush2.bf16.msra.mxu0 0
        %2160 = vmatprep.subr.bf16.mxu0 0
        %2161 = vmatpush2.bf16.msra.mxu0 0
        %2162 = vmatprep.subr.bf16.mxu0 0
        %2163 = vmatpush2.bf16.msra.mxu0 0
        %2164 = vmatprep.subr.bf16.mxu0 0
        %2165 = vmatpush2.bf16.msra.mxu0 0
        %2166 = vmatprep.subr.bf16.mxu0 0
        %2167 = vmatpush2.bf16.msra.mxu0 0
        %2168 = vmatprep.mubr.bf16.mxu0 0
        %2169 = vmatmul.mubr.bf16.gmra.mxu0 %v2120
        %v2170 = vpop.f32.mrf.mxu0
        %v2171 = vadd.f32 0.0, %v2170
        %v2172 = vpop.f32.mrf.mxu0
        %v2173 = vpop.f32.mrf.mxu0
        %v2174 = vadd.f32 0.0, %v2173
        %v2175 = vpop.f32.mrf.mxu0
        %2176 = vmatprep.mubr.bf16.mxu0 0
        %2177 = vmatmul.mubr.bf16.gmra.mxu0 %v2121
        %v2178 = vpop.f32.mrf.mxu0
        %v2179 = vadd.f32 0.0, %v2178
        %v2180 = vpop.f32.mrf.mxu0
        %v2181 = vpop.f32.mrf.mxu0
        %v2182 = vadd.f32 0.0, %v2181
        %v2183 = vpop.f32.mrf.mxu0
        %2184 = vmatprep.mubr.bf16.mxu0 0
        %2185 = vmatmul.mubr.bf16.gmra.mxu0 %v2122
        %v2186 = vpop.f32.mrf.mxu0
        %v2187 = vadd.f32 0.0, %v2186
        %v2188 = vpop.f32.mrf.mxu0
        %v2189 = vpop.f32.mrf.mxu0
        %v2190 = vadd.f32 0.0, %v2189
        %v2191 = vpop.f32.mrf.mxu0
        %2192 = vmatprep.mubr.bf16.mxu0 0
        %2193 = vmatmul.mubr.bf16.gmra.mxu0 %v2123
        %v2194 = vpop.f32.mrf.mxu0
        %v2195 = vadd.f32 0.0, %v2194
        %v2196 = vpop.f32.mrf.mxu0
        %v2197 = vpop.f32.mrf.mxu0
        %v2198 = vadd.f32 0.0, %v2197
        %v2199 = vpop.f32.mrf.mxu0
        %2200 = vmatprep.mubr.bf16.mxu0 0
        %2201 = vmatmul.mubr.bf16.gmra.mxu0 %v2124
        %v2202 = vpop.f32.mrf.mxu0
        %v2203 = vadd.f32 0.0, %v2202
        %v2204 = vpop.f32.mrf.mxu0
        %v2205 = vpop.f32.mrf.mxu0
        %v2206 = vadd.f32 0.0, %v2205
        %v2207 = vpop.f32.mrf.mxu0
        %2208 = vmatprep.mubr.bf16.mxu0 0
        %2209 = vmatmul.mubr.bf16.gmra.mxu0 %v2125
        %v2210 = vpop.f32.mrf.mxu0
        %v2211 = vadd.f32 0.0, %v2210
        %v2212 = vpop.f32.mrf.mxu0
        %v2213 = vpop.f32.mrf.mxu0
        %v2214 = vadd.f32 0.0, %v2213
        %v2215 = vpop.f32.mrf.mxu0
        %2216 = vmatprep.mubr.bf16.mxu0 0
        %2217 = vmatmul.mubr.bf16.gmra.mxu0 %v2126
        %v2218 = vpop.f32.mrf.mxu0
        %v2219 = vadd.f32 0.0, %v2218
        %v2220 = vpop.f32.mrf.mxu0
        %v2221 = vpop.f32.mrf.mxu0
        %v2222 = vadd.f32 0.0, %v2221
        %v2223 = vpop.f32.mrf.mxu0
        %2224 = vmatprep.mubr.bf16.mxu0 0
        %2225 = vmatmul.mubr.bf16.gmra.mxu0 %v2127
        %v2226 = vpop.f32.mrf.mxu0
        %v2227 = vadd.f32 0.0, %v2226
        %v2228 = vpop.f32.mrf.mxu0
        %v2229 = vpop.f32.mrf.mxu0
        %v2230 = vadd.f32 0.0, %v2229
        %v2231 = vpop.f32.mrf.mxu0
        %2232 = vdwg.mxu0
        %v2233 = vmul.f32 %v2171, %v2104
        %v2234 = vmul.f32 %v2174, %v2105
        %v2235 = vmul.f32 %v2179, %v2106
        %v2236 = vmul.f32 %v2182, %v2107
        %v2237 = vmul.f32 %v2187, %v2108
        %v2238 = vmul.f32 %v2190, %v2109
        %v2239 = vmul.f32 %v2195, %v2110
        %v2240 = vmul.f32 %v2198, %v2111
        %v2241 = vmul.f32 %v2203, %v2112
        %v2242 = vmul.f32 %v2206, %v2113
        %v2243 = vmul.f32 %v2211, %v2114
        %v2244 = vmul.f32 %v2214, %v2115
        %v2245 = vmul.f32 %v2219, %v2116
        %v2246 = vmul.f32 %v2222, %v2117
        %v2247 = vmul.f32 %v2227, %v2118
        %v2248 = vmul.f32 %v2230, %v2119
        %v2249 = vsub.f32 %v1522, %v2233
        %v2250 = vsub.f32 %v1523, %v2234
        %v2251 = vsub.f32 %v1524, %v2235
        %v2252 = vsub.f32 %v1525, %v2236
        %v2253 = vsub.f32 %v1526, %v2237
        %v2254 = vsub.f32 %v1527, %v2238
        %v2255 = vsub.f32 %v1528, %v2239
        %v2256 = vsub.f32 %v1529, %v2240
        %v2257 = vsub.f32 %v1530, %v2241
        %v2258 = vsub.f32 %v1531, %v2242
        %v2259 = vsub.f32 %v1532, %v2243
        %v2260 = vsub.f32 %v1533, %v2244
        %v2261 = vsub.f32 %v1534, %v2245
        %v2262 = vsub.f32 %v1535, %v2246
        %v2263 = vsub.f32 %v1536, %v2247
        %v2264 = vsub.f32 %v1537, %v2248
        %v2265 = vpack.c.bf16 %v2250, %v2249
        %v2266 = vpack.c.bf16 %v2252, %v2251
        %v2267 = vpack.c.bf16 %v2254, %v2253
        %v2268 = vpack.c.bf16 %v2256, %v2255
        %v2269 = vpack.c.bf16 %v2258, %v2257
        %v2270 = vpack.c.bf16 %v2260, %v2259
        %v2271 = vpack.c.bf16 %v2262, %v2261
        %v2272 = vpack.c.bf16 %v2264, %v2263
        %s2273 = scalar_lea.vmem %s5, 64
        %v2274 = vld [vmem:[%s2273] sm:$0xf]
        %v2275 = vld [vmem:[%s2273 + $0x4] sm:$0xf]
        %v2276 = vld [vmem:[%s2273 + $0x8] sm:$0xf]
        %v2277 = vld [vmem:[%s2273 + $0xc] sm:$0xf]
        %v2278 = vld [vmem:[%s2273 + $0x10] sm:$0xf]
        %v2279 = vld [vmem:[%s2273 + $0x14] sm:$0xf]
        %v2280 = vld [vmem:[%s2273 + $0x18] sm:$0xf]
        %v2281 = vld [vmem:[%s2273 + $0x1c] sm:$0xf]
        %v2282 = vld [vmem:[%s2273 + $0x20] sm:$0xf]
        %v2283 = vld [vmem:[%s2273 + $0x24] sm:$0xf]
        %v2284 = vld [vmem:[%s2273 + $0x28] sm:$0xf]
        %v2285 = vld [vmem:[%s2273 + $0x2c] sm:$0xf]
        %v2286 = vld [vmem:[%s2273 + $0x30] sm:$0xf]
        %v2287 = vld [vmem:[%s2273 + $0x34] sm:$0xf]
        %v2288 = vld [vmem:[%s2273 + $0x38] sm:$0xf]
        %v2289 = vld [vmem:[%s2273 + $0x3c] sm:$0xf]
        %s2290 = scalar_lea.vmem %s6, 1
        %v2291 = vld [vmem:[%s2290] sm:$0x1]
        %v2293 = vlaneseq
        %v2294 = vshrl.u32 %v2293, 7
        %v2295 = vsub.s32 0, %v2294
        %v2296 = vrot.slane %v2291, %v2295
        %v2314 = vunpack.c.l.b16 %v2274
        %v2315 = vunpack.c.l.b16 %v2275
        %v2316 = vunpack.c.l.b16 %v2276
        %v2317 = vunpack.c.l.b16 %v2277
        %v2318 = vunpack.c.l.b16 %v2278
        %v2319 = vunpack.c.l.b16 %v2279
        %v2320 = vunpack.c.l.b16 %v2280
        %v2321 = vunpack.c.l.b16 %v2281
        %v2322 = vunpack.c.l.b16 %v2282
        %v2323 = vunpack.c.l.b16 %v2283
        %v2324 = vunpack.c.l.b16 %v2284
        %v2325 = vunpack.c.l.b16 %v2285
        %v2326 = vunpack.c.l.b16 %v2286
        %v2327 = vunpack.c.l.b16 %v2287
        %v2328 = vunpack.c.l.b16 %v2288
        %v2329 = vunpack.c.l.b16 %v2289
        %v2330 = vpack.c.b16 %v2315, %v2314
        %v2331 = vpack.c.b16 %v2317, %v2316
        %v2332 = vpack.c.b16 %v2319, %v2318
        %v2333 = vpack.c.b16 %v2321, %v2320
        %v2334 = vpack.c.b16 %v2323, %v2322
        %v2335 = vpack.c.b16 %v2325, %v2324
        %v2336 = vpack.c.b16 %v2327, %v2326
        %v2337 = vpack.c.b16 %v2329, %v2328
        %2346 = vmatprep.subr.bf16.mxu0 0
        %2347 = vmatpush1.bf16.msra.mxu0 %v2337
        %2348 = vmatprep.subr.bf16.mxu0 0
        %2349 = vmatpush1.bf16.msra.mxu0 %v2336
        %2350 = vmatprep.subr.bf16.mxu0 0
        %2351 = vmatpush1.bf16.msra.mxu0 %v2335
        %2352 = vmatprep.subr.bf16.mxu0 0
        %2353 = vmatpush1.bf16.msra.mxu0 %v2334
        %2354 = vmatprep.subr.bf16.mxu0 0
        %2355 = vmatpush1.bf16.msra.mxu0 %v2333
        %2356 = vmatprep.subr.bf16.mxu0 0
        %2357 = vmatpush1.bf16.msra.mxu0 %v2332
        %2358 = vmatprep.subr.bf16.mxu0 0
        %2359 = vmatpush1.bf16.msra.mxu0 %v2331
        %2360 = vmatprep.subr.bf16.mxu0 0
        %2361 = vmatpush1.bf16.msra.mxu0 %v2330
        %2362 = vmatprep.subr.bf16.mxu0 0
        %2363 = vmatpush2.bf16.msra.mxu0 0
        %2364 = vmatprep.subr.bf16.mxu0 0
        %2365 = vmatpush2.bf16.msra.mxu0 0
        %2366 = vmatprep.subr.bf16.mxu0 0
        %2367 = vmatpush2.bf16.msra.mxu0 0
        %2368 = vmatprep.subr.bf16.mxu0 0
        %2369 = vmatpush2.bf16.msra.mxu0 0
        %2370 = vmatprep.subr.bf16.mxu0 0
        %2371 = vmatpush2.bf16.msra.mxu0 0
        %2372 = vmatprep.subr.bf16.mxu0 0
        %2373 = vmatpush2.bf16.msra.mxu0 0
        %2374 = vmatprep.subr.bf16.mxu0 0
        %2375 = vmatpush2.bf16.msra.mxu0 0
        %2376 = vmatprep.subr.bf16.mxu0 0
        %2377 = vmatpush2.bf16.msra.mxu0 0
        %2378 = vmatprep.mubr.bf16.mxu0 0
        %2379 = vmatmul.mubr.bf16.gmra.mxu0 %v2265
        %v2380 = vpop.f32.mrf.mxu0
        %v2381 = vadd.f32 %v2296, %v2380
        %v2382 = vpop.f32.mrf.mxu0
        %v2383 = vpop.f32.mrf.mxu0
        %v2384 = vadd.f32 %v2296, %v2383
        %v2385 = vpop.f32.mrf.mxu0
        %2386 = vmatprep.mubr.bf16.mxu0 0
        %2387 = vmatmul.mubr.bf16.gmra.mxu0 %v2266
        %v2388 = vpop.f32.mrf.mxu0
        %v2389 = vadd.f32 %v2296, %v2388
        %v2390 = vpop.f32.mrf.mxu0
        %v2391 = vpop.f32.mrf.mxu0
        %v2392 = vadd.f32 %v2296, %v2391
        %v2393 = vpop.f32.mrf.mxu0
        %2394 = vmatprep.mubr.bf16.mxu0 0
        %2395 = vmatmul.mubr.bf16.gmra.mxu0 %v2267
        %v2396 = vpop.f32.mrf.mxu0
        %v2397 = vadd.f32 %v2296, %v2396
        %v2398 = vpop.f32.mrf.mxu0
        %v2399 = vpop.f32.mrf.mxu0
        %v2400 = vadd.f32 %v2296, %v2399
        %v2401 = vpop.f32.mrf.mxu0
        %2402 = vmatprep.mubr.bf16.mxu0 0
        %2403 = vmatmul.mubr.bf16.gmra.mxu0 %v2268
        %v2404 = vpop.f32.mrf.mxu0
        %v2405 = vadd.f32 %v2296, %v2404
        %v2406 = vpop.f32.mrf.mxu0
        %v2407 = vpop.f32.mrf.mxu0
        %v2408 = vadd.f32 %v2296, %v2407
        %v2409 = vpop.f32.mrf.mxu0
        %2410 = vmatprep.mubr.bf16.mxu0 0
        %2411 = vmatmul.mubr.bf16.gmra.mxu0 %v2269
        %v2412 = vpop.f32.mrf.mxu0
        %v2413 = vadd.f32 %v2296, %v2412
        %v2414 = vpop.f32.mrf.mxu0
        %v2415 = vpop.f32.mrf.mxu0
        %v2416 = vadd.f32 %v2296, %v2415
        %v2417 = vpop.f32.mrf.mxu0
        %2418 = vmatprep.mubr.bf16.mxu0 0
        %2419 = vmatmul.mubr.bf16.gmra.mxu0 %v2270
        %v2420 = vpop.f32.mrf.mxu0
        %v2421 = vadd.f32 %v2296, %v2420
        %v2422 = vpop.f32.mrf.mxu0
        %v2423 = vpop.f32.mrf.mxu0
        %v2424 = vadd.f32 %v2296, %v2423
        %v2425 = vpop.f32.mrf.mxu0
        %2426 = vmatprep.mubr.bf16.mxu0 0
        %2427 = vmatmul.mubr.bf16.gmra.mxu0 %v2271
        %v2428 = vpop.f32.mrf.mxu0
        %v2429 = vadd.f32 %v2296, %v2428
        %v2430 = vpop.f32.mrf.mxu0
        %v2431 = vpop.f32.mrf.mxu0
        %v2432 = vadd.f32 %v2296, %v2431
        %v2433 = vpop.f32.mrf.mxu0
        %2434 = vmatprep.mubr.bf16.mxu0 0
        %2435 = vmatmul.mubr.bf16.gmra.mxu0 %v2272
        %v2436 = vpop.f32.mrf.mxu0
        %v2437 = vadd.f32 %v2296, %v2436
        %v2438 = vpop.f32.mrf.mxu0
        %v2439 = vpop.f32.mrf.mxu0
        %v2440 = vadd.f32 %v2296, %v2439
        %v2441 = vpop.f32.mrf.mxu0
        %2442 = vdwg.mxu0
        %v2443 = vmax.f32 %v2381, 0.0
        %v2444 = vmax.f32 %v2384, 0.0
        %v2445 = vmax.f32 %v2389, 0.0
        %v2446 = vmax.f32 %v2392, 0.0
        %v2447 = vmax.f32 %v2397, 0.0
        %v2448 = vmax.f32 %v2400, 0.0
        %v2449 = vmax.f32 %v2405, 0.0
        %v2450 = vmax.f32 %v2408, 0.0
        %v2451 = vmax.f32 %v2413, 0.0
        %v2452 = vmax.f32 %v2416, 0.0
        %v2453 = vmax.f32 %v2421, 0.0
        %v2454 = vmax.f32 %v2424, 0.0
        %v2455 = vmax.f32 %v2429, 0.0
        %v2456 = vmax.f32 %v2432, 0.0
        %v2457 = vmax.f32 %v2437, 0.0
        %v2458 = vmax.f32 %v2440, 0.0
        %v2459 = vadd.f32 %v1522, %v2443
        %v2460 = vadd.f32 %v1523, %v2444
        %v2461 = vadd.f32 %v1524, %v2445
        %v2462 = vadd.f32 %v1525, %v2446
        %v2463 = vadd.f32 %v1526, %v2447
        %v2464 = vadd.f32 %v1527, %v2448
        %v2465 = vadd.f32 %v1528, %v2449
        %v2466 = vadd.f32 %v1529, %v2450
        %v2467 = vadd.f32 %v1530, %v2451
        %v2468 = vadd.f32 %v1531, %v2452
        %v2469 = vadd.f32 %v1532, %v2453
        %v2470 = vadd.f32 %v1533, %v2454
        %v2471 = vadd.f32 %v1534, %v2455
        %v2472 = vadd.f32 %v1535, %v2456
        %v2473 = vadd.f32 %v1536, %v2457
        %v2474 = vadd.f32 %v1537, %v2458
        %2475 = vxpose.xlu0.b32.start [1/16] %v2459, 128
        %2476 = vxpose.xlu0.b32.cont [2/16] %v2460, 128
        %2477 = vxpose.xlu0.b32.cont [3/16] %v2461, 128
        %2478 = vxpose.xlu0.b32.cont [4/16] %v2462, 128
        %2479 = vxpose.xlu0.b32.cont [5/16] %v2463, 128
        %2480 = vxpose.xlu0.b32.cont [6/16] %v2464, 128
        %2481 = vxpose.xlu0.b32.cont [7/16] %v2465, 128
        %2482 = vxpose.xlu0.b32.cont [8/16] %v2466, 128
        %2483 = vxpose.xlu0.b32.cont [9/16] %v2467, 128
        %2484 = vxpose.xlu0.b32.cont [10/16] %v2468, 128
        %2485 = vxpose.xlu0.b32.cont [11/16] %v2469, 128
        %2486 = vxpose.xlu0.b32.cont [12/16] %v2470, 128
        %2487 = vxpose.xlu0.b32.cont [13/16] %v2471, 128
        %2488 = vxpose.xlu0.b32.cont [14/16] %v2472, 128
        %2489 = vxpose.xlu0.b32.cont [15/16] %v2473, 128
        %2490 = vxpose.xlu0.b32.end [16/16] %v2474, 128
        %v2491 = vpop.trf.xlu0
        %v2492 = vpop.trf.xlu0
        %v2493 = vpop.trf.xlu0
        %v2494 = vpop.trf.xlu0
        %v2495 = vpop.trf.xlu0
        %v2496 = vpop.trf.xlu0
        %v2497 = vpop.trf.xlu0
        %v2498 = vpop.trf.xlu0
        %v2499 = vpop.trf.xlu0
        %v2500 = vpop.trf.xlu0
        %v2501 = vpop.trf.xlu0
        %v2502 = vpop.trf.xlu0
        %v2503 = vpop.trf.xlu0
        %v2504 = vpop.trf.xlu0
        %v2505 = vpop.trf.xlu0
        %v2506 = vpop.trf.xlu0
        %v2507 = vpack.c.bf16 %v2492, %v2491
        %v2508 = vpack.c.bf16 %v2494, %v2493
        %v2509 = vpack.c.bf16 %v2496, %v2495
        %v2510 = vpack.c.bf16 %v2498, %v2497
        %v2511 = vpack.c.bf16 %v2500, %v2499
        %v2512 = vpack.c.bf16 %v2502, %v2501
        %v2513 = vpack.c.bf16 %v2504, %v2503
        %v2514 = vpack.c.bf16 %v2506, %v2505
        %v2515 = vpack.c.bf16 %v2460, %v2459
        %v2516 = vpack.c.bf16 %v2462, %v2461
        %v2517 = vpack.c.bf16 %v2464, %v2463
        %v2518 = vpack.c.bf16 %v2466, %v2465
        %v2519 = vpack.c.bf16 %v2468, %v2467
        %v2520 = vpack.c.bf16 %v2470, %v2469
        %v2521 = vpack.c.bf16 %v2472, %v2471
        %v2522 = vpack.c.bf16 %v2474, %v2473
        %s2523 = scalar_lea.vmem %s3, 256
        %v2524 = vld [vmem:[%s2523] sm:$0xff]
        %v2525 = vld [vmem:[%s2523 + $0x8] sm:$0xff]
        %v2526 = vld [vmem:[%s2523 + $0x10] sm:$0xff]
        %v2527 = vld [vmem:[%s2523 + $0x18] sm:$0xff]
        %v2528 = vld [vmem:[%s2523 + $0x20] sm:$0xff]
        %v2529 = vld [vmem:[%s2523 + $0x28] sm:$0xff]
        %v2530 = vld [vmem:[%s2523 + $0x30] sm:$0xff]
        %v2531 = vld [vmem:[%s2523 + $0x38] sm:$0xff]
        %v2532 = vld [vmem:[%s2523 + $0x40] sm:$0xff]
        %v2533 = vld [vmem:[%s2523 + $0x48] sm:$0xff]
        %v2534 = vld [vmem:[%s2523 + $0x50] sm:$0xff]
        %v2535 = vld [vmem:[%s2523 + $0x58] sm:$0xff]
        %v2536 = vld [vmem:[%s2523 + $0x60] sm:$0xff]
        %v2537 = vld [vmem:[%s2523 + $0x68] sm:$0xff]
        %v2538 = vld [vmem:[%s2523 + $0x70] sm:$0xff]
        %v2539 = vld [vmem:[%s2523 + $0x78] sm:$0xff]
        %v2556 = vunpack.c.l.b16 %v2524
        %v2557 = vunpack.c.h.b16 %v2524
        %v2558 = vunpack.c.l.b16 %v2525
        %v2559 = vunpack.c.h.b16 %v2525
        %v2560 = vunpack.c.l.b16 %v2526
        %v2561 = vunpack.c.h.b16 %v2526
        %v2562 = vunpack.c.l.b16 %v2527
        %v2563 = vunpack.c.h.b16 %v2527
        %v2564 = vunpack.c.l.b16 %v2528
        %v2565 = vunpack.c.h.b16 %v2528
        %v2566 = vunpack.c.l.b16 %v2529
        %v2567 = vunpack.c.h.b16 %v2529
        %v2568 = vunpack.c.l.b16 %v2530
        %v2569 = vunpack.c.h.b16 %v2530
        %v2570 = vunpack.c.l.b16 %v2531
        %v2571 = vunpack.c.h.b16 %v2531
        %v2572 = vunpack.c.l.b16 %v2532
        %v2573 = vunpack.c.h.b16 %v2532
        %v2574 = vunpack.c.l.b16 %v2533
        %v2575 = vunpack.c.h.b16 %v2533
        %v2576 = vunpack.c.l.b16 %v2534
        %v2577 = vunpack.c.h.b16 %v2534
        %v2578 = vunpack.c.l.b16 %v2535
        %v2579 = vunpack.c.h.b16 %v2535
        %v2580 = vunpack.c.l.b16 %v2536
        %v2581 = vunpack.c.h.b16 %v2536
        %v2582 = vunpack.c.l.b16 %v2537
        %v2583 = vunpack.c.h.b16 %v2537
        %v2584 = vunpack.c.l.b16 %v2538
        %v2585 = vunpack.c.h.b16 %v2538
        %v2586 = vunpack.c.l.b16 %v2539
        %v2587 = vunpack.c.h.b16 %v2539
        %v2588 = vpack.c.b16 %v2558, %v2556
        %v2589 = vpack.c.b16 %v2559, %v2557
        %v2590 = vpack.c.b16 %v2562, %v2560
        %v2591 = vpack.c.b16 %v2563, %v2561
        %v2592 = vpack.c.b16 %v2566, %v2564
        %v2593 = vpack.c.b16 %v2567, %v2565
        %v2594 = vpack.c.b16 %v2570, %v2568
        %v2595 = vpack.c.b16 %v2571, %v2569
        %v2596 = vpack.c.b16 %v2574, %v2572
        %v2597 = vpack.c.b16 %v2575, %v2573
        %v2598 = vpack.c.b16 %v2578, %v2576
        %v2599 = vpack.c.b16 %v2579, %v2577
        %v2600 = vpack.c.b16 %v2582, %v2580
        %v2601 = vpack.c.b16 %v2583, %v2581
        %v2602 = vpack.c.b16 %v2586, %v2584
        %v2603 = vpack.c.b16 %v2587, %v2585
        %2620 = vmatprep.subr.bf16.mxu0 %v2603
        %2621 = vmatpush1.bf16.msra.mxu0 %v2602
        %2622 = vmatprep.subr.bf16.mxu0 %v2601
        %2623 = vmatpush1.bf16.msra.mxu0 %v2600
        %2624 = vmatprep.subr.bf16.mxu0 %v2599
        %2625 = vmatpush1.bf16.msra.mxu0 %v2598
        %2626 = vmatprep.subr.bf16.mxu0 %v2597
        %2627 = vmatpush1.bf16.msra.mxu0 %v2596
        %2628 = vmatprep.subr.bf16.mxu0 %v2595
        %2629 = vmatpush1.bf16.msra.mxu0 %v2594
        %2630 = vmatprep.subr.bf16.mxu0 %v2593
        %2631 = vmatpush1.bf16.msra.mxu0 %v2592
        %2632 = vmatprep.subr.bf16.mxu0 %v2591
        %2633 = vmatpush1.bf16.msra.mxu0 %v2590
        %2634 = vmatprep.subr.bf16.mxu0 %v2589
        %2635 = vmatpush1.bf16.msra.mxu0 %v2588
        %2636 = vmatprep.subr.bf16.mxu0 0
        %2637 = vmatpush2.bf16.msra.mxu0 0
        %2638 = vmatprep.subr.bf16.mxu0 0
        %2639 = vmatpush2.bf16.msra.mxu0 0
        %2640 = vmatprep.subr.bf16.mxu0 0
        %2641 = vmatpush2.bf16.msra.mxu0 0
        %2642 = vmatprep.subr.bf16.mxu0 0
        %2643 = vmatpush2.bf16.msra.mxu0 0
        %2644 = vmatprep.subr.bf16.mxu0 0
        %2645 = vmatpush2.bf16.msra.mxu0 0
        %2646 = vmatprep.subr.bf16.mxu0 0
        %2647 = vmatpush2.bf16.msra.mxu0 0
        %2648 = vmatprep.subr.bf16.mxu0 0
        %2649 = vmatpush2.bf16.msra.mxu0 0
        %2650 = vmatprep.subr.bf16.mxu0 0
        %2651 = vmatpush2.bf16.msra.mxu0 0
        %2652 = vmatprep.mubr.bf16.mxu0 0
        %2653 = vmatmul.mubr.bf16.gmra.mxu0 %v2515
        %v2654 = vpop.f32.mrf.mxu0
        %v2655 = vadd.f32 0.0, %v2654
        %v2656 = vpop.f32.mrf.mxu0
        %v2657 = vadd.f32 0.0, %v2656
        %v2658 = vpop.f32.mrf.mxu0
        %v2659 = vadd.f32 0.0, %v2658
        %v2660 = vpop.f32.mrf.mxu0
        %v2661 = vadd.f32 0.0, %v2660
        %2662 = vmatprep.mubr.bf16.mxu0 0
        %2663 = vmatmul.mubr.bf16.gmra.mxu0 %v2516
        %v2664 = vpop.f32.mrf.mxu0
        %v2665 = vadd.f32 0.0, %v2664
        %v2666 = vpop.f32.mrf.mxu0
        %v2667 = vadd.f32 0.0, %v2666
        %v2668 = vpop.f32.mrf.mxu0
        %v2669 = vadd.f32 0.0, %v2668
        %v2670 = vpop.f32.mrf.mxu0
        %v2671 = vadd.f32 0.0, %v2670
        %2672 = vmatprep.mubr.bf16.mxu0 0
        %2673 = vmatmul.mubr.bf16.gmra.mxu0 %v2517
        %v2674 = vpop.f32.mrf.mxu0
        %v2675 = vadd.f32 0.0, %v2674
        %v2676 = vpop.f32.mrf.mxu0
        %v2677 = vadd.f32 0.0, %v2676
        %v2678 = vpop.f32.mrf.mxu0
        %v2679 = vadd.f32 0.0, %v2678
        %v2680 = vpop.f32.mrf.mxu0
        %v2681 = vadd.f32 0.0, %v2680
        %2682 = vmatprep.mubr.bf16.mxu0 0
        %2683 = vmatmul.mubr.bf16.gmra.mxu0 %v2518
        %v2684 = vpop.f32.mrf.mxu0
        %v2685 = vadd.f32 0.0, %v2684
        %v2686 = vpop.f32.mrf.mxu0
        %v2687 = vadd.f32 0.0, %v2686
        %v2688 = vpop.f32.mrf.mxu0
        %v2689 = vadd.f32 0.0, %v2688
        %v2690 = vpop.f32.mrf.mxu0
        %v2691 = vadd.f32 0.0, %v2690
        %2692 = vmatprep.mubr.bf16.mxu0 0
        %2693 = vmatmul.mubr.bf16.gmra.mxu0 %v2519
        %v2694 = vpop.f32.mrf.mxu0
        %v2695 = vadd.f32 0.0, %v2694
        %v2696 = vpop.f32.mrf.mxu0
        %v2697 = vadd.f32 0.0, %v2696
        %v2698 = vpop.f32.mrf.mxu0
        %v2699 = vadd.f32 0.0, %v2698
        %v2700 = vpop.f32.mrf.mxu0
        %v2701 = vadd.f32 0.0, %v2700
        %2702 = vmatprep.mubr.bf16.mxu0 0
        %2703 = vmatmul.mubr.bf16.gmra.mxu0 %v2520
        %v2704 = vpop.f32.mrf.mxu0
        %v2705 = vadd.f32 0.0, %v2704
        %v2706 = vpop.f32.mrf.mxu0
        %v2707 = vadd.f32 0.0, %v2706
        %v2708 = vpop.f32.mrf.mxu0
        %v2709 = vadd.f32 0.0, %v2708
        %v2710 = vpop.f32.mrf.mxu0
        %v2711 = vadd.f32 0.0, %v2710
        %2712 = vmatprep.mubr.bf16.mxu0 0
        %2713 = vmatmul.mubr.bf16.gmra.mxu0 %v2521
        %v2714 = vpop.f32.mrf.mxu0
        %v2715 = vadd.f32 0.0, %v2714
        %v2716 = vpop.f32.mrf.mxu0
        %v2717 = vadd.f32 0.0, %v2716
        %v2718 = vpop.f32.mrf.mxu0
        %v2719 = vadd.f32 0.0, %v2718
        %v2720 = vpop.f32.mrf.mxu0
        %v2721 = vadd.f32 0.0, %v2720
        %2722 = vmatprep.mubr.bf16.mxu0 0
        %2723 = vmatmul.mubr.bf16.gmra.mxu0 %v2522
        %v2724 = vpop.f32.mrf.mxu0
        %v2725 = vadd.f32 0.0, %v2724
        %v2726 = vpop.f32.mrf.mxu0
        %v2727 = vadd.f32 0.0, %v2726
        %v2728 = vpop.f32.mrf.mxu0
        %v2729 = vadd.f32 0.0, %v2728
        %v2730 = vpop.f32.mrf.mxu0
        %v2731 = vadd.f32 0.0, %v2730
        %2732 = vdwg.mxu0
        %s2733 = scalar_lea.vmem %s4, 2
        %v2734 = vld [vmem:[%s2733] sm:$0x1]
        %v2736 = vlaneseq
        %v2737 = vshrl.u32 %v2736, 7
        %v2738 = vsub.s32 0, %v2737
        %v2739 = vrot.slane %v2734, %v2738
        %v2741 = vadd.f32 %v2655, %v2739
        %v2742 = vadd.f32 %v2659, %v2739
        %v2743 = vadd.f32 %v2665, %v2739
        %v2744 = vadd.f32 %v2669, %v2739
        %v2745 = vadd.f32 %v2675, %v2739
        %v2746 = vadd.f32 %v2679, %v2739
        %v2747 = vadd.f32 %v2685, %v2739
        %v2748 = vadd.f32 %v2689, %v2739
        %v2749 = vadd.f32 %v2695, %v2739
        %v2750 = vadd.f32 %v2699, %v2739
        %v2751 = vadd.f32 %v2705, %v2739
        %v2752 = vadd.f32 %v2709, %v2739
        %v2753 = vadd.f32 %v2715, %v2739
        %v2754 = vadd.f32 %v2719, %v2739
        %v2755 = vadd.f32 %v2725, %v2739
        %v2756 = vadd.f32 %v2729, %v2739
        %v2757 = vpack.c.bf16 %v2661, %v2657
        %v2758 = vpack.c.bf16 %v2671, %v2667
        %v2759 = vpack.c.bf16 %v2681, %v2677
        %v2760 = vpack.c.bf16 %v2691, %v2687
        %v2761 = vpack.c.bf16 %v2701, %v2697
        %v2762 = vpack.c.bf16 %v2711, %v2707
        %v2763 = vpack.c.bf16 %v2721, %v2717
        %v2764 = vpack.c.bf16 %v2731, %v2727
        %v2766 = vsel %vm892, %v2757, 0
        %v2769 = vsel %vm892, %v2758, 0
        %v2772 = vsel %vm892, %v2759, 0
        %v2775 = vsel %vm892, %v2760, 0
        %v2778 = vsel %vm892, %v2761, 0
        %v2781 = vsel %vm892, %v2762, 0
        %v2784 = vsel %vm892, %v2763, 0
        %v2787 = vsel %vm892, %v2764, 0
        %2789 = vmatprep.subr.bf16.mxu0 0
        %2790 = vmatpush1.bf16.xpose.msra.mxu0 %v2787
        %2791 = vmatprep.subr.bf16.mxu0 0
        %2792 = vmatpush1.bf16.xpose.msra.mxu0 %v2784
        %2793 = vmatprep.subr.bf16.mxu0 0
        %2794 = vmatpush1.bf16.xpose.msra.mxu0 %v2781
        %2795 = vmatprep.subr.bf16.mxu0 0
        %2796 = vmatpush1.bf16.xpose.msra.mxu0 %v2778
        %2797 = vmatprep.subr.bf16.mxu0 0
        %2798 = vmatpush1.bf16.xpose.msra.mxu0 %v2775
        %2799 = vmatprep.subr.bf16.mxu0 0
        %2800 = vmatpush1.bf16.xpose.msra.mxu0 %v2772
        %2801 = vmatprep.subr.bf16.mxu0 0
        %2802 = vmatpush1.bf16.xpose.msra.mxu0 %v2769
        %2803 = vmatprep.subr.bf16.mxu0 0
        %2804 = vmatpush1.bf16.xpose.msra.mxu0 %v2766
        %2805 = vmatprep.subr.bf16.mxu0 0
        %2806 = vmatpush2.bf16.xpose.msra.mxu0 0
        %2807 = vmatprep.subr.bf16.mxu0 0
        %2808 = vmatpush2.bf16.xpose.msra.mxu0 0
        %2809 = vmatprep.subr.bf16.mxu0 0
        %2810 = vmatpush2.bf16.xpose.msra.mxu0 0
        %2811 = vmatprep.subr.bf16.mxu0 0
        %2812 = vmatpush2.bf16.xpose.msra.mxu0 0
        %2813 = vmatprep.subr.bf16.mxu0 0
        %2814 = vmatpush2.bf16.xpose.msra.mxu0 0
        %2815 = vmatprep.subr.bf16.mxu0 0
        %2816 = vmatpush2.bf16.xpose.msra.mxu0 0
        %2817 = vmatprep.subr.bf16.mxu0 0
        %2818 = vmatpush2.bf16.xpose.msra.mxu0 0
        %2819 = vmatprep.subr.bf16.mxu0 0
        %2820 = vmatpush2.bf16.xpose.msra.mxu0 0
        %2821 = vmatprep.mubr.bf16.mxu0 0
        %2822 = vmatmul.mubr.bf16.gmra.mxu0 %v2766
        %v2823 = vpop.f32.mrf.mxu0
        %v2824 = vadd.f32 0.0, %v2823
        %v2825 = vpop.f32.mrf.mxu0
        %v2826 = vpop.f32.mrf.mxu0
        %v2827 = vadd.f32 0.0, %v2826
        %v2828 = vpop.f32.mrf.mxu0
        %2829 = vmatprep.mubr.bf16.mxu0 0
        %2830 = vmatmul.mubr.bf16.gmra.mxu0 %v2769
        %v2831 = vpop.f32.mrf.mxu0
        %v2832 = vadd.f32 0.0, %v2831
        %v2833 = vpop.f32.mrf.mxu0
        %v2834 = vpop.f32.mrf.mxu0
        %v2835 = vadd.f32 0.0, %v2834
        %v2836 = vpop.f32.mrf.mxu0
        %2837 = vmatprep.mubr.bf16.mxu0 0
        %2838 = vmatmul.mubr.bf16.gmra.mxu0 %v2772
        %v2839 = vpop.f32.mrf.mxu0
        %v2840 = vadd.f32 0.0, %v2839
        %v2841 = vpop.f32.mrf.mxu0
        %v2842 = vpop.f32.mrf.mxu0
        %v2843 = vadd.f32 0.0, %v2842
        %v2844 = vpop.f32.mrf.mxu0
        %2845 = vmatprep.mubr.bf16.mxu0 0
        %2846 = vmatmul.mubr.bf16.gmra.mxu0 %v2775
        %v2847 = vpop.f32.mrf.mxu0
        %v2848 = vadd.f32 0.0, %v2847
        %v2849 = vpop.f32.mrf.mxu0
        %v2850 = vpop.f32.mrf.mxu0
        %v2851 = vadd.f32 0.0, %v2850
        %v2852 = vpop.f32.mrf.mxu0
        %2853 = vmatprep.mubr.bf16.mxu0 0
        %2854 = vmatmul.mubr.bf16.gmra.mxu0 %v2778
        %v2855 = vpop.f32.mrf.mxu0
        %v2856 = vadd.f32 0.0, %v2855
        %v2857 = vpop.f32.mrf.mxu0
        %v2858 = vpop.f32.mrf.mxu0
        %v2859 = vadd.f32 0.0, %v2858
        %v2860 = vpop.f32.mrf.mxu0
        %2861 = vmatprep.mubr.bf16.mxu0 0
        %2862 = vmatmul.mubr.bf16.gmra.mxu0 %v2781
        %v2863 = vpop.f32.mrf.mxu0
        %v2864 = vadd.f32 0.0, %v2863
        %v2865 = vpop.f32.mrf.mxu0
        %v2866 = vpop.f32.mrf.mxu0
        %v2867 = vadd.f32 0.0, %v2866
        %v2868 = vpop.f32.mrf.mxu0
        %2869 = vmatprep.mubr.bf16.mxu0 0
        %2870 = vmatmul.mubr.bf16.gmra.mxu0 %v2784
        %v2871 = vpop.f32.mrf.mxu0
        %v2872 = vadd.f32 0.0, %v2871
        %v2873 = vpop.f32.mrf.mxu0
        %v2874 = vpop.f32.mrf.mxu0
        %v2875 = vadd.f32 0.0, %v2874
        %v2876 = vpop.f32.mrf.mxu0
        %2877 = vmatprep.mubr.bf16.mxu0 0
        %2878 = vmatmul.mubr.bf16.gmra.mxu0 %v2787
        %v2879 = vpop.f32.mrf.mxu0
        %v2880 = vadd.f32 0.0, %v2879
        %v2881 = vpop.f32.mrf.mxu0
        %v2882 = vpop.f32.mrf.mxu0
        %v2883 = vadd.f32 0.0, %v2882
        %v2884 = vpop.f32.mrf.mxu0
        %2885 = vdwg.mxu0
        %v2886 = vmax.f32 %v2824, %v2840
        %v2887 = vmax.f32 %v2827, %v2843
        %v2888 = vmax.f32 %v2832, %v2848
        %v2889 = vmax.f32 %v2835, %v2851
        %v2890 = vmax.f32 %v2886, %v2856
        %v2891 = vmax.f32 %v2887, %v2859
        %v2892 = vmax.f32 %v2888, %v2864
        %v2893 = vmax.f32 %v2889, %v2867
        %v2894 = vmax.f32 %v2890, %v2872
        %v2895 = vmax.f32 %v2891, %v2875
        %v2896 = vmax.f32 %v2892, %v2880
        %v2897 = vmax.f32 %v2893, %v2883
        %v2898 = vmax.f32 %v2894, %v2895
        %v2899 = vmax.f32 %v2896, %v2897
        %v2900 = vmax.f32 %v2898, %v2899
        %v2901 = vrot.slane %v2900, 4
        %v2902 = vmax.f32 %v2900, %v2901
        %v2903 = vrot.slane %v2902, 2
        %v2904 = vmax.f32 %v2902, %v2903
        %v2905 = vrot.slane %v2904, 1
        %v2906 = vmax.f32 %v2904, %v2905
        %v2907 = vsub.f32 %v2824, %v2906
        %v2908 = vsub.f32 %v2827, %v2906
        %v2909 = vsub.f32 %v2832, %v2906
        %v2910 = vsub.f32 %v2835, %v2906
        %v2911 = vsub.f32 %v2840, %v2906
        %v2912 = vsub.f32 %v2843, %v2906
        %v2913 = vsub.f32 %v2848, %v2906
        %v2914 = vsub.f32 %v2851, %v2906
        %v2915 = vsub.f32 %v2856, %v2906
        %v2916 = vsub.f32 %v2859, %v2906
        %v2917 = vsub.f32 %v2864, %v2906
        %v2918 = vsub.f32 %v2867, %v2906
        %v2919 = vsub.f32 %v2872, %v2906
        %v2920 = vsub.f32 %v2875, %v2906
        %v2921 = vsub.f32 %v2880, %v2906
        %v2922 = vsub.f32 %v2883, %v2906
        %v2923 = vmul.f32 %v2907, 1.442695
        %v2924 = vpow.pop %v2923
        %v2925 = vmul.f32 %v2908, 1.442695
        %v2926 = vpow.pop %v2925
        %v2927 = vmul.f32 %v2909, 1.442695
        %v2928 = vpow.pop %v2927
        %v2929 = vmul.f32 %v2910, 1.442695
        %v2930 = vpow.pop %v2929
        %v2931 = vmul.f32 %v2911, 1.442695
        %v2932 = vpow.pop %v2931
        %v2933 = vmul.f32 %v2912, 1.442695
        %v2934 = vpow.pop %v2933
        %v2935 = vmul.f32 %v2913, 1.442695
        %v2936 = vpow.pop %v2935
        %v2937 = vmul.f32 %v2914, 1.442695
        %v2938 = vpow.pop %v2937
        %v2939 = vmul.f32 %v2915, 1.442695
        %v2940 = vpow.pop %v2939
        %v2941 = vmul.f32 %v2916, 1.442695
        %v2942 = vpow.pop %v2941
        %v2943 = vmul.f32 %v2917, 1.442695
        %v2944 = vpow.pop %v2943
        %v2945 = vmul.f32 %v2918, 1.442695
        %v2946 = vpow.pop %v2945
        %v2947 = vmul.f32 %v2919, 1.442695
        %v2948 = vpow.pop %v2947
        %v2949 = vmul.f32 %v2920, 1.442695
        %v2950 = vpow.pop %v2949
        %v2951 = vmul.f32 %v2921, 1.442695
        %v2952 = vpow.pop %v2951
        %v2953 = vmul.f32 %v2922, 1.442695
        %v2954 = vpow.pop %v2953
        %v2955 = vadd.f32 %v2924, %v2926
        %v2956 = vadd.f32 %v2955, %v2928
        %v2957 = vadd.f32 %v2956, %v2930
        %v2958 = vadd.f32 %v2957, %v2932
        %v2959 = vadd.f32 %v2958, %v2934
        %v2960 = vadd.f32 %v2959, %v2936
        %v2961 = vadd.f32 %v2960, %v2938
        %v2962 = vadd.f32 %v2961, %v2940
        %v2963 = vadd.f32 %v2962, %v2942
        %v2964 = vadd.f32 %v2963, %v2944
        %v2965 = vadd.f32 %v2964, %v2946
        %v2966 = vadd.f32 %v2965, %v2948
        %v2967 = vadd.f32 %v2966, %v2950
        %v2968 = vadd.f32 %v2967, %v2952
        %v2969 = vadd.f32 %v2968, %v2954
        %v2970 = vrot.slane %v2969, 4
        %v2971 = vadd.f32 %v2969, %v2970
        %v2972 = vrot.slane %v2971, 2
        %v2973 = vadd.f32 %v2971, %v2972
        %v2974 = vrot.slane %v2973, 1
        %v2975 = vadd.f32 %v2973, %v2974
        %v2976 = vrcp.pop %v2975
        %v2977 = vmul.f32 %v2924, %v2976
        %v2978 = vmul.f32 %v2926, %v2976
        %v2979 = vmul.f32 %v2928, %v2976
        %v2980 = vmul.f32 %v2930, %v2976
        %v2981 = vmul.f32 %v2932, %v2976
        %v2982 = vmul.f32 %v2934, %v2976
        %v2983 = vmul.f32 %v2936, %v2976
        %v2984 = vmul.f32 %v2938, %v2976
        %v2985 = vmul.f32 %v2940, %v2976
        %v2986 = vmul.f32 %v2942, %v2976
        %v2987 = vmul.f32 %v2944, %v2976
        %v2988 = vmul.f32 %v2946, %v2976
        %v2989 = vmul.f32 %v2948, %v2976
        %v2990 = vmul.f32 %v2950, %v2976
        %v2991 = vmul.f32 %v2952, %v2976
        %v2992 = vmul.f32 %v2954, %v2976
        %2993 = vadd.xlane.f32.xlu0 %v2977
        %v2994 = vpop.xlane.xlu0 %2993
        %2995 = vadd.xlane.f32.xlu0 %v2978
        %v2996 = vpop.xlane.xlu0 %2995
        %2997 = vadd.xlane.f32.xlu0 %v2979
        %v2998 = vpop.xlane.xlu0 %2997
        %2999 = vadd.xlane.f32.xlu0 %v2980
        %v3000 = vpop.xlane.xlu0 %2999
        %3001 = vadd.xlane.f32.xlu0 %v2981
        %v3002 = vpop.xlane.xlu0 %3001
        %3003 = vadd.xlane.f32.xlu0 %v2982
        %v3004 = vpop.xlane.xlu0 %3003
        %3005 = vadd.xlane.f32.xlu0 %v2983
        %v3006 = vpop.xlane.xlu0 %3005
        %3007 = vadd.xlane.f32.xlu0 %v2984
        %v3008 = vpop.xlane.xlu0 %3007
        %3009 = vadd.xlane.f32.xlu0 %v2985
        %v3010 = vpop.xlane.xlu0 %3009
        %3011 = vadd.xlane.f32.xlu0 %v2986
        %v3012 = vpop.xlane.xlu0 %3011
        %3013 = vadd.xlane.f32.xlu0 %v2987
        %v3014 = vpop.xlane.xlu0 %3013
        %3015 = vadd.xlane.f32.xlu0 %v2988
        %v3016 = vpop.xlane.xlu0 %3015
        %3017 = vadd.xlane.f32.xlu0 %v2989
        %v3018 = vpop.xlane.xlu0 %3017
        %3019 = vadd.xlane.f32.xlu0 %v2990
        %v3020 = vpop.xlane.xlu0 %3019
        %3021 = vadd.xlane.f32.xlu0 %v2991
        %v3022 = vpop.xlane.xlu0 %3021
        %3023 = vadd.xlane.f32.xlu0 %v2992
        %v3024 = vpop.xlane.xlu0 %3023
        %v3025 = vadd.f32 %v2994, 1e-09
        %v3026 = vadd.f32 %v2996, 1e-09
        %v3027 = vadd.f32 %v2998, 1e-09
        %v3028 = vadd.f32 %v3000, 1e-09
        %v3029 = vadd.f32 %v3002, 1e-09
        %v3030 = vadd.f32 %v3004, 1e-09
        %v3031 = vadd.f32 %v3006, 1e-09
        %v3032 = vadd.f32 %v3008, 1e-09
        %v3033 = vadd.f32 %v3010, 1e-09
        %v3034 = vadd.f32 %v3012, 1e-09
        %v3035 = vadd.f32 %v3014, 1e-09
        %v3036 = vadd.f32 %v3016, 1e-09
        %v3037 = vadd.f32 %v3018, 1e-09
        %v3038 = vadd.f32 %v3020, 1e-09
        %v3039 = vadd.f32 %v3022, 1e-09
        %v3040 = vadd.f32 %v3024, 1e-09
        %v3041 = vrcp.pop %v3025
        %v3042 = vrcp.pop %v3026
        %v3043 = vrcp.pop %v3027
        %v3044 = vrcp.pop %v3028
        %v3045 = vrcp.pop %v3029
        %v3046 = vrcp.pop %v3030
        %v3047 = vrcp.pop %v3031
        %v3048 = vrcp.pop %v3032
        %v3049 = vrcp.pop %v3033
        %v3050 = vrcp.pop %v3034
        %v3051 = vrcp.pop %v3035
        %v3052 = vrcp.pop %v3036
        %v3053 = vrcp.pop %v3037
        %v3054 = vrcp.pop %v3038
        %v3055 = vrcp.pop %v3039
        %v3056 = vrcp.pop %v3040
        %v3057 = vpack.c.bf16 %v2978, %v2977
        %v3058 = vpack.c.bf16 %v2980, %v2979
        %v3059 = vpack.c.bf16 %v2982, %v2981
        %v3060 = vpack.c.bf16 %v2984, %v2983
        %v3061 = vpack.c.bf16 %v2986, %v2985
        %v3062 = vpack.c.bf16 %v2988, %v2987
        %v3063 = vpack.c.bf16 %v2990, %v2989
        %v3064 = vpack.c.bf16 %v2992, %v2991
        %v3065 = vpack.c.bf16 %v2742, %v2741
        %v3066 = vpack.c.bf16 %v2744, %v2743
        %v3067 = vpack.c.bf16 %v2746, %v2745
        %v3068 = vpack.c.bf16 %v2748, %v2747
        %v3069 = vpack.c.bf16 %v2750, %v2749
        %v3070 = vpack.c.bf16 %v2752, %v2751
        %v3071 = vpack.c.bf16 %v2754, %v2753
        %v3072 = vpack.c.bf16 %v2756, %v2755
        %3073 = vmatprep.subr.bf16.mxu0 0
        %3074 = vmatpush1.bf16.msra.mxu0 %v3072
        %3075 = vmatprep.subr.bf16.mxu0 0
        %3076 = vmatpush1.bf16.msra.mxu0 %v3071
        %3077 = vmatprep.subr.bf16.mxu0 0
        %3078 = vmatpush1.bf16.msra.mxu0 %v3070
        %3079 = vmatprep.subr.bf16.mxu0 0
        %3080 = vmatpush1.bf16.msra.mxu0 %v3069
        %3081 = vmatprep.subr.bf16.mxu0 0
        %3082 = vmatpush1.bf16.msra.mxu0 %v3068
        %3083 = vmatprep.subr.bf16.mxu0 0
        %3084 = vmatpush1.bf16.msra.mxu0 %v3067
        %3085 = vmatprep.subr.bf16.mxu0 0
        %3086 = vmatpush1.bf16.msra.mxu0 %v3066
        %3087 = vmatprep.subr.bf16.mxu0 0
        %3088 = vmatpush1.bf16.msra.mxu0 %v3065
        %3089 = vmatprep.subr.bf16.mxu0 0
        %3090 = vmatpush2.bf16.msra.mxu0 0
        %3091 = vmatprep.subr.bf16.mxu0 0
        %3092 = vmatpush2.bf16.msra.mxu0 0
        %3093 = vmatprep.subr.bf16.mxu0 0
        %3094 = vmatpush2.bf16.msra.mxu0 0
        %3095 = vmatprep.subr.bf16.mxu0 0
        %3096 = vmatpush2.bf16.msra.mxu0 0
        %3097 = vmatprep.subr.bf16.mxu0 0
        %3098 = vmatpush2.bf16.msra.mxu0 0
        %3099 = vmatprep.subr.bf16.mxu0 0
        %3100 = vmatpush2.bf16.msra.mxu0 0
        %3101 = vmatprep.subr.bf16.mxu0 0
        %3102 = vmatpush2.bf16.msra.mxu0 0
        %3103 = vmatprep.subr.bf16.mxu0 0
        %3104 = vmatpush2.bf16.msra.mxu0 0
        %3105 = vmatprep.mubr.bf16.mxu0 0
        %3106 = vmatmul.mubr.bf16.gmra.mxu0 %v3057
        %v3107 = vpop.f32.mrf.mxu0
        %v3108 = vadd.f32 0.0, %v3107
        %v3109 = vpop.f32.mrf.mxu0
        %v3110 = vpop.f32.mrf.mxu0
        %v3111 = vadd.f32 0.0, %v3110
        %v3112 = vpop.f32.mrf.mxu0
        %3113 = vmatprep.mubr.bf16.mxu0 0
        %3114 = vmatmul.mubr.bf16.gmra.mxu0 %v3058
        %v3115 = vpop.f32.mrf.mxu0
        %v3116 = vadd.f32 0.0, %v3115
        %v3117 = vpop.f32.mrf.mxu0
        %v3118 = vpop.f32.mrf.mxu0
        %v3119 = vadd.f32 0.0, %v3118
        %v3120 = vpop.f32.mrf.mxu0
        %3121 = vmatprep.mubr.bf16.mxu0 0
        %3122 = vmatmul.mubr.bf16.gmra.mxu0 %v3059
        %v3123 = vpop.f32.mrf.mxu0
        %v3124 = vadd.f32 0.0, %v3123
        %v3125 = vpop.f32.mrf.mxu0
        %v3126 = vpop.f32.mrf.mxu0
        %v3127 = vadd.f32 0.0, %v3126
        %v3128 = vpop.f32.mrf.mxu0
        %3129 = vmatprep.mubr.bf16.mxu0 0
        %3130 = vmatmul.mubr.bf16.gmra.mxu0 %v3060
        %v3131 = vpop.f32.mrf.mxu0
        %v3132 = vadd.f32 0.0, %v3131
        %v3133 = vpop.f32.mrf.mxu0
        %v3134 = vpop.f32.mrf.mxu0
        %v3135 = vadd.f32 0.0, %v3134
        %v3136 = vpop.f32.mrf.mxu0
        %3137 = vmatprep.mubr.bf16.mxu0 0
        %3138 = vmatmul.mubr.bf16.gmra.mxu0 %v3061
        %v3139 = vpop.f32.mrf.mxu0
        %v3140 = vadd.f32 0.0, %v3139
        %v3141 = vpop.f32.mrf.mxu0
        %v3142 = vpop.f32.mrf.mxu0
        %v3143 = vadd.f32 0.0, %v3142
        %v3144 = vpop.f32.mrf.mxu0
        %3145 = vmatprep.mubr.bf16.mxu0 0
        %3146 = vmatmul.mubr.bf16.gmra.mxu0 %v3062
        %v3147 = vpop.f32.mrf.mxu0
        %v3148 = vadd.f32 0.0, %v3147
        %v3149 = vpop.f32.mrf.mxu0
        %v3150 = vpop.f32.mrf.mxu0
        %v3151 = vadd.f32 0.0, %v3150
        %v3152 = vpop.f32.mrf.mxu0
        %3153 = vmatprep.mubr.bf16.mxu0 0
        %3154 = vmatmul.mubr.bf16.gmra.mxu0 %v3063
        %v3155 = vpop.f32.mrf.mxu0
        %v3156 = vadd.f32 0.0, %v3155
        %v3157 = vpop.f32.mrf.mxu0
        %v3158 = vpop.f32.mrf.mxu0
        %v3159 = vadd.f32 0.0, %v3158
        %v3160 = vpop.f32.mrf.mxu0
        %3161 = vmatprep.mubr.bf16.mxu0 0
        %3162 = vmatmul.mubr.bf16.gmra.mxu0 %v3064
        %v3163 = vpop.f32.mrf.mxu0
        %v3164 = vadd.f32 0.0, %v3163
        %v3165 = vpop.f32.mrf.mxu0
        %v3166 = vpop.f32.mrf.mxu0
        %v3167 = vadd.f32 0.0, %v3166
        %v3168 = vpop.f32.mrf.mxu0
        %3169 = vdwg.mxu0
        %v3170 = vmul.f32 %v3108, %v3041
        %v3171 = vmul.f32 %v3111, %v3042
        %v3172 = vmul.f32 %v3116, %v3043
        %v3173 = vmul.f32 %v3119, %v3044
        %v3174 = vmul.f32 %v3124, %v3045
        %v3175 = vmul.f32 %v3127, %v3046
        %v3176 = vmul.f32 %v3132, %v3047
        %v3177 = vmul.f32 %v3135, %v3048
        %v3178 = vmul.f32 %v3140, %v3049
        %v3179 = vmul.f32 %v3143, %v3050
        %v3180 = vmul.f32 %v3148, %v3051
        %v3181 = vmul.f32 %v3151, %v3052
        %v3182 = vmul.f32 %v3156, %v3053
        %v3183 = vmul.f32 %v3159, %v3054
        %v3184 = vmul.f32 %v3164, %v3055
        %v3185 = vmul.f32 %v3167, %v3056
        %v3186 = vsub.f32 %v2459, %v3170
        %v3187 = vsub.f32 %v2460, %v3171
        %v3188 = vsub.f32 %v2461, %v3172
        %v3189 = vsub.f32 %v2462, %v3173
        %v3190 = vsub.f32 %v2463, %v3174
        %v3191 = vsub.f32 %v2464, %v3175
        %v3192 = vsub.f32 %v2465, %v3176
        %v3193 = vsub.f32 %v2466, %v3177
        %v3194 = vsub.f32 %v2467, %v3178
        %v3195 = vsub.f32 %v2468, %v3179
        %v3196 = vsub.f32 %v2469, %v3180
        %v3197 = vsub.f32 %v2470, %v3181
        %v3198 = vsub.f32 %v2471, %v3182
        %v3199 = vsub.f32 %v2472, %v3183
        %v3200 = vsub.f32 %v2473, %v3184
        %v3201 = vsub.f32 %v2474, %v3185
        %v3202 = vpack.c.bf16 %v3187, %v3186
        %v3203 = vpack.c.bf16 %v3189, %v3188
        %v3204 = vpack.c.bf16 %v3191, %v3190
        %v3205 = vpack.c.bf16 %v3193, %v3192
        %v3206 = vpack.c.bf16 %v3195, %v3194
        %v3207 = vpack.c.bf16 %v3197, %v3196
        %v3208 = vpack.c.bf16 %v3199, %v3198
        %v3209 = vpack.c.bf16 %v3201, %v3200
        %s3210 = scalar_lea.vmem %s5, 128
        %v3211 = vld [vmem:[%s3210] sm:$0xf]
        %v3212 = vld [vmem:[%s3210 + $0x4] sm:$0xf]
        %v3213 = vld [vmem:[%s3210 + $0x8] sm:$0xf]
        %v3214 = vld [vmem:[%s3210 + $0xc] sm:$0xf]
        %v3215 = vld [vmem:[%s3210 + $0x10] sm:$0xf]
        %v3216 = vld [vmem:[%s3210 + $0x14] sm:$0xf]
        %v3217 = vld [vmem:[%s3210 + $0x18] sm:$0xf]
        %v3218 = vld [vmem:[%s3210 + $0x1c] sm:$0xf]
        %v3219 = vld [vmem:[%s3210 + $0x20] sm:$0xf]
        %v3220 = vld [vmem:[%s3210 + $0x24] sm:$0xf]
        %v3221 = vld [vmem:[%s3210 + $0x28] sm:$0xf]
        %v3222 = vld [vmem:[%s3210 + $0x2c] sm:$0xf]
        %v3223 = vld [vmem:[%s3210 + $0x30] sm:$0xf]
        %v3224 = vld [vmem:[%s3210 + $0x34] sm:$0xf]
        %v3225 = vld [vmem:[%s3210 + $0x38] sm:$0xf]
        %v3226 = vld [vmem:[%s3210 + $0x3c] sm:$0xf]
        %s3227 = scalar_lea.vmem %s6, 2
        %v3228 = vld [vmem:[%s3227] sm:$0x1]
        %v3230 = vlaneseq
        %v3231 = vshrl.u32 %v3230, 7
        %v3232 = vsub.s32 0, %v3231
        %v3233 = vrot.slane %v3228, %v3232
        %v3251 = vunpack.c.l.b16 %v3211
        %v3252 = vunpack.c.l.b16 %v3212
        %v3253 = vunpack.c.l.b16 %v3213
        %v3254 = vunpack.c.l.b16 %v3214
        %v3255 = vunpack.c.l.b16 %v3215
        %v3256 = vunpack.c.l.b16 %v3216
        %v3257 = vunpack.c.l.b16 %v3217
        %v3258 = vunpack.c.l.b16 %v3218
        %v3259 = vunpack.c.l.b16 %v3219
        %v3260 = vunpack.c.l.b16 %v3220
        %v3261 = vunpack.c.l.b16 %v3221
        %v3262 = vunpack.c.l.b16 %v3222
        %v3263 = vunpack.c.l.b16 %v3223
        %v3264 = vunpack.c.l.b16 %v3224
        %v3265 = vunpack.c.l.b16 %v3225
        %v3266 = vunpack.c.l.b16 %v3226
        %v3267 = vpack.c.b16 %v3252, %v3251
        %v3268 = vpack.c.b16 %v3254, %v3253
        %v3269 = vpack.c.b16 %v3256, %v3255
        %v3270 = vpack.c.b16 %v3258, %v3257
        %v3271 = vpack.c.b16 %v3260, %v3259
        %v3272 = vpack.c.b16 %v3262, %v3261
        %v3273 = vpack.c.b16 %v3264, %v3263
        %v3274 = vpack.c.b16 %v3266, %v3265
        %3283 = vmatprep.subr.bf16.mxu0 0
        %3284 = vmatpush1.bf16.msra.mxu0 %v3274
        %3285 = vmatprep.subr.bf16.mxu0 0
        %3286 = vmatpush1.bf16.msra.mxu0 %v3273
        %3287 = vmatprep.subr.bf16.mxu0 0
        %3288 = vmatpush1.bf16.msra.mxu0 %v3272
        %3289 = vmatprep.subr.bf16.mxu0 0
        %3290 = vmatpush1.bf16.msra.mxu0 %v3271
        %3291 = vmatprep.subr.bf16.mxu0 0
        %3292 = vmatpush1.bf16.msra.mxu0 %v3270
        %3293 = vmatprep.subr.bf16.mxu0 0
        %3294 = vmatpush1.bf16.msra.mxu0 %v3269
        %3295 = vmatprep.subr.bf16.mxu0 0
        %3296 = vmatpush1.bf16.msra.mxu0 %v3268
        %3297 = vmatprep.subr.bf16.mxu0 0
        %3298 = vmatpush1.bf16.msra.mxu0 %v3267
        %3299 = vmatprep.subr.bf16.mxu0 0
        %3300 = vmatpush2.bf16.msra.mxu0 0
        %3301 = vmatprep.subr.bf16.mxu0 0
        %3302 = vmatpush2.bf16.msra.mxu0 0
        %3303 = vmatprep.subr.bf16.mxu0 0
        %3304 = vmatpush2.bf16.msra.mxu0 0
        %3305 = vmatprep.subr.bf16.mxu0 0
        %3306 = vmatpush2.bf16.msra.mxu0 0
        %3307 = vmatprep.subr.bf16.mxu0 0
        %3308 = vmatpush2.bf16.msra.mxu0 0
        %3309 = vmatprep.subr.bf16.mxu0 0
        %3310 = vmatpush2.bf16.msra.mxu0 0
        %3311 = vmatprep.subr.bf16.mxu0 0
        %3312 = vmatpush2.bf16.msra.mxu0 0
        %3313 = vmatprep.subr.bf16.mxu0 0
        %3314 = vmatpush2.bf16.msra.mxu0 0
        %3315 = vmatprep.mubr.bf16.mxu0 0
        %3316 = vmatmul.mubr.bf16.gmra.mxu0 %v3202
        %v3317 = vpop.f32.mrf.mxu0
        %v3318 = vadd.f32 %v3233, %v3317
        %v3319 = vpop.f32.mrf.mxu0
        %v3320 = vpop.f32.mrf.mxu0
        %v3321 = vadd.f32 %v3233, %v3320
        %v3322 = vpop.f32.mrf.mxu0
        %3323 = vmatprep.mubr.bf16.mxu0 0
        %3324 = vmatmul.mubr.bf16.gmra.mxu0 %v3203
        %v3325 = vpop.f32.mrf.mxu0
        %v3326 = vadd.f32 %v3233, %v3325
        %v3327 = vpop.f32.mrf.mxu0
        %v3328 = vpop.f32.mrf.mxu0
        %v3329 = vadd.f32 %v3233, %v3328
        %v3330 = vpop.f32.mrf.mxu0
        %3331 = vmatprep.mubr.bf16.mxu0 0
        %3332 = vmatmul.mubr.bf16.gmra.mxu0 %v3204
        %v3333 = vpop.f32.mrf.mxu0
        %v3334 = vadd.f32 %v3233, %v3333
        %v3335 = vpop.f32.mrf.mxu0
        %v3336 = vpop.f32.mrf.mxu0
        %v3337 = vadd.f32 %v3233, %v3336
        %v3338 = vpop.f32.mrf.mxu0
        %3339 = vmatprep.mubr.bf16.mxu0 0
        %3340 = vmatmul.mubr.bf16.gmra.mxu0 %v3205
        %v3341 = vpop.f32.mrf.mxu0
        %v3342 = vadd.f32 %v3233, %v3341
        %v3343 = vpop.f32.mrf.mxu0
        %v3344 = vpop.f32.mrf.mxu0
        %v3345 = vadd.f32 %v3233, %v3344
        %v3346 = vpop.f32.mrf.mxu0
        %3347 = vmatprep.mubr.bf16.mxu0 0
        %3348 = vmatmul.mubr.bf16.gmra.mxu0 %v3206
        %v3349 = vpop.f32.mrf.mxu0
        %v3350 = vadd.f32 %v3233, %v3349
        %v3351 = vpop.f32.mrf.mxu0
        %v3352 = vpop.f32.mrf.mxu0
        %v3353 = vadd.f32 %v3233, %v3352
        %v3354 = vpop.f32.mrf.mxu0
        %3355 = vmatprep.mubr.bf16.mxu0 0
        %3356 = vmatmul.mubr.bf16.gmra.mxu0 %v3207
        %v3357 = vpop.f32.mrf.mxu0
        %v3358 = vadd.f32 %v3233, %v3357
        %v3359 = vpop.f32.mrf.mxu0
        %v3360 = vpop.f32.mrf.mxu0
        %v3361 = vadd.f32 %v3233, %v3360
        %v3362 = vpop.f32.mrf.mxu0
        %3363 = vmatprep.mubr.bf16.mxu0 0
        %3364 = vmatmul.mubr.bf16.gmra.mxu0 %v3208
        %v3365 = vpop.f32.mrf.mxu0
        %v3366 = vadd.f32 %v3233, %v3365
        %v3367 = vpop.f32.mrf.mxu0
        %v3368 = vpop.f32.mrf.mxu0
        %v3369 = vadd.f32 %v3233, %v3368
        %v3370 = vpop.f32.mrf.mxu0
        %3371 = vmatprep.mubr.bf16.mxu0 0
        %3372 = vmatmul.mubr.bf16.gmra.mxu0 %v3209
        %v3373 = vpop.f32.mrf.mxu0
        %v3374 = vadd.f32 %v3233, %v3373
        %v3375 = vpop.f32.mrf.mxu0
        %v3376 = vpop.f32.mrf.mxu0
        %v3377 = vadd.f32 %v3233, %v3376
        %v3378 = vpop.f32.mrf.mxu0
        %3379 = vdwg.mxu0
        %v3380 = vmax.f32 %v3318, 0.0
        %v3381 = vmax.f32 %v3321, 0.0
        %v3382 = vmax.f32 %v3326, 0.0
        %v3383 = vmax.f32 %v3329, 0.0
        %v3384 = vmax.f32 %v3334, 0.0
        %v3385 = vmax.f32 %v3337, 0.0
        %v3386 = vmax.f32 %v3342, 0.0
        %v3387 = vmax.f32 %v3345, 0.0
        %v3388 = vmax.f32 %v3350, 0.0
        %v3389 = vmax.f32 %v3353, 0.0
        %v3390 = vmax.f32 %v3358, 0.0
        %v3391 = vmax.f32 %v3361, 0.0
        %v3392 = vmax.f32 %v3366, 0.0
        %v3393 = vmax.f32 %v3369, 0.0
        %v3394 = vmax.f32 %v3374, 0.0
        %v3395 = vmax.f32 %v3377, 0.0
        %v3396 = vadd.f32 %v2459, %v3380
        %v3397 = vadd.f32 %v2460, %v3381
        %v3398 = vadd.f32 %v2461, %v3382
        %v3399 = vadd.f32 %v2462, %v3383
        %v3400 = vadd.f32 %v2463, %v3384
        %v3401 = vadd.f32 %v2464, %v3385
        %v3402 = vadd.f32 %v2465, %v3386
        %v3403 = vadd.f32 %v2466, %v3387
        %v3404 = vadd.f32 %v2467, %v3388
        %v3405 = vadd.f32 %v2468, %v3389
        %v3406 = vadd.f32 %v2469, %v3390
        %v3407 = vadd.f32 %v2470, %v3391
        %v3408 = vadd.f32 %v2471, %v3392
        %v3409 = vadd.f32 %v2472, %v3393
        %v3410 = vadd.f32 %v2473, %v3394
        %v3411 = vadd.f32 %v2474, %v3395
        %3412 = vxpose.xlu0.b32.start [1/16] %v3396, 128
        %3413 = vxpose.xlu0.b32.cont [2/16] %v3397, 128
        %3414 = vxpose.xlu0.b32.cont [3/16] %v3398, 128
        %3415 = vxpose.xlu0.b32.cont [4/16] %v3399, 128
        %3416 = vxpose.xlu0.b32.cont [5/16] %v3400, 128
        %3417 = vxpose.xlu0.b32.cont [6/16] %v3401, 128
        %3418 = vxpose.xlu0.b32.cont [7/16] %v3402, 128
        %3419 = vxpose.xlu0.b32.cont [8/16] %v3403, 128
        %3420 = vxpose.xlu0.b32.cont [9/16] %v3404, 128
        %3421 = vxpose.xlu0.b32.cont [10/16] %v3405, 128
        %3422 = vxpose.xlu0.b32.cont [11/16] %v3406, 128
        %3423 = vxpose.xlu0.b32.cont [12/16] %v3407, 128
        %3424 = vxpose.xlu0.b32.cont [13/16] %v3408, 128
        %3425 = vxpose.xlu0.b32.cont [14/16] %v3409, 128
        %3426 = vxpose.xlu0.b32.cont [15/16] %v3410, 128
        %3427 = vxpose.xlu0.b32.end [16/16] %v3411, 128
        %v3428 = vpop.trf.xlu0
        %v3429 = vpop.trf.xlu0
        %v3430 = vpop.trf.xlu0
        %v3431 = vpop.trf.xlu0
        %v3432 = vpop.trf.xlu0
        %v3433 = vpop.trf.xlu0
        %v3434 = vpop.trf.xlu0
        %v3435 = vpop.trf.xlu0
        %v3436 = vpop.trf.xlu0
        %v3437 = vpop.trf.xlu0
        %v3438 = vpop.trf.xlu0
        %v3439 = vpop.trf.xlu0
        %v3440 = vpop.trf.xlu0
        %v3441 = vpop.trf.xlu0
        %v3442 = vpop.trf.xlu0
        %v3443 = vpop.trf.xlu0
        %v3444 = vpack.c.bf16 %v3429, %v3428
        %v3445 = vpack.c.bf16 %v3431, %v3430
        %v3446 = vpack.c.bf16 %v3433, %v3432
        %v3447 = vpack.c.bf16 %v3435, %v3434
        %v3448 = vpack.c.bf16 %v3437, %v3436
        %v3449 = vpack.c.bf16 %v3439, %v3438
        %v3450 = vpack.c.bf16 %v3441, %v3440
        %v3451 = vpack.c.bf16 %v3443, %v3442
        %v3452 = vpack.c.bf16 %v3397, %v3396
        %v3453 = vpack.c.bf16 %v3399, %v3398
        %v3454 = vpack.c.bf16 %v3401, %v3400
        %v3455 = vpack.c.bf16 %v3403, %v3402
        %v3456 = vpack.c.bf16 %v3405, %v3404
        %v3457 = vpack.c.bf16 %v3407, %v3406
        %v3458 = vpack.c.bf16 %v3409, %v3408
        %v3459 = vpack.c.bf16 %v3411, %v3410
        %s3460 = scalar_lea.vmem %s3, 384
        %v3461 = vld [vmem:[%s3460] sm:$0xff]
        %v3462 = vld [vmem:[%s3460 + $0x8] sm:$0xff]
        %v3463 = vld [vmem:[%s3460 + $0x10] sm:$0xff]
        %v3464 = vld [vmem:[%s3460 + $0x18] sm:$0xff]
        %v3465 = vld [vmem:[%s3460 + $0x20] sm:$0xff]
        %v3466 = vld [vmem:[%s3460 + $0x28] sm:$0xff]
        %v3467 = vld [vmem:[%s3460 + $0x30] sm:$0xff]
        %v3468 = vld [vmem:[%s3460 + $0x38] sm:$0xff]
        %v3469 = vld [vmem:[%s3460 + $0x40] sm:$0xff]
        %v3470 = vld [vmem:[%s3460 + $0x48] sm:$0xff]
        %v3471 = vld [vmem:[%s3460 + $0x50] sm:$0xff]
        %v3472 = vld [vmem:[%s3460 + $0x58] sm:$0xff]
        %v3473 = vld [vmem:[%s3460 + $0x60] sm:$0xff]
        %v3474 = vld [vmem:[%s3460 + $0x68] sm:$0xff]
        %v3475 = vld [vmem:[%s3460 + $0x70] sm:$0xff]
        %v3476 = vld [vmem:[%s3460 + $0x78] sm:$0xff]
        %v3493 = vunpack.c.l.b16 %v3461
        %v3494 = vunpack.c.h.b16 %v3461
        %v3495 = vunpack.c.l.b16 %v3462
        %v3496 = vunpack.c.h.b16 %v3462
        %v3497 = vunpack.c.l.b16 %v3463
        %v3498 = vunpack.c.h.b16 %v3463
        %v3499 = vunpack.c.l.b16 %v3464
        %v3500 = vunpack.c.h.b16 %v3464
        %v3501 = vunpack.c.l.b16 %v3465
        %v3502 = vunpack.c.h.b16 %v3465
        %v3503 = vunpack.c.l.b16 %v3466
        %v3504 = vunpack.c.h.b16 %v3466
        %v3505 = vunpack.c.l.b16 %v3467
        %v3506 = vunpack.c.h.b16 %v3467
        %v3507 = vunpack.c.l.b16 %v3468
        %v3508 = vunpack.c.h.b16 %v3468
        %v3509 = vunpack.c.l.b16 %v3469
        %v3510 = vunpack.c.h.b16 %v3469
        %v3511 = vunpack.c.l.b16 %v3470
        %v3512 = vunpack.c.h.b16 %v3470
        %v3513 = vunpack.c.l.b16 %v3471
        %v3514 = vunpack.c.h.b16 %v3471
        %v3515 = vunpack.c.l.b16 %v3472
        %v3516 = vunpack.c.h.b16 %v3472
        %v3517 = vunpack.c.l.b16 %v3473
        %v3518 = vunpack.c.h.b16 %v3473
        %v3519 = vunpack.c.l.b16 %v3474
        %v3520 = vunpack.c.h.b16 %v3474
        %v3521 = vunpack.c.l.b16 %v3475
        %v3522 = vunpack.c.h.b16 %v3475
        %v3523 = vunpack.c.l.b16 %v3476
        %v3524 = vunpack.c.h.b16 %v3476
        %v3525 = vpack.c.b16 %v3495, %v3493
        %v3526 = vpack.c.b16 %v3496, %v3494
        %v3527 = vpack.c.b16 %v3499, %v3497
        %v3528 = vpack.c.b16 %v3500, %v3498
        %v3529 = vpack.c.b16 %v3503, %v3501
        %v3530 = vpack.c.b16 %v3504, %v3502
        %v3531 = vpack.c.b16 %v3507, %v3505
        %v3532 = vpack.c.b16 %v3508, %v3506
        %v3533 = vpack.c.b16 %v3511, %v3509
        %v3534 = vpack.c.b16 %v3512, %v3510
        %v3535 = vpack.c.b16 %v3515, %v3513
        %v3536 = vpack.c.b16 %v3516, %v3514
        %v3537 = vpack.c.b16 %v3519, %v3517
        %v3538 = vpack.c.b16 %v3520, %v3518
        %v3539 = vpack.c.b16 %v3523, %v3521
        %v3540 = vpack.c.b16 %v3524, %v3522
        %3557 = vmatprep.subr.bf16.mxu0 %v3540
        %3558 = vmatpush1.bf16.msra.mxu0 %v3539
        %3559 = vmatprep.subr.bf16.mxu0 %v3538
        %3560 = vmatpush1.bf16.msra.mxu0 %v3537
        %3561 = vmatprep.subr.bf16.mxu0 %v3536
        %3562 = vmatpush1.bf16.msra.mxu0 %v3535
        %3563 = vmatprep.subr.bf16.mxu0 %v3534
        %3564 = vmatpush1.bf16.msra.mxu0 %v3533
        %3565 = vmatprep.subr.bf16.mxu0 %v3532
        %3566 = vmatpush1.bf16.msra.mxu0 %v3531
        %3567 = vmatprep.subr.bf16.mxu0 %v3530
        %3568 = vmatpush1.bf16.msra.mxu0 %v3529
        %3569 = vmatprep.subr.bf16.mxu0 %v3528
        %3570 = vmatpush1.bf16.msra.mxu0 %v3527
        %3571 = vmatprep.subr.bf16.mxu0 %v3526
        %3572 = vmatpush1.bf16.msra.mxu0 %v3525
        %3573 = vmatprep.subr.bf16.mxu0 0
        %3574 = vmatpush2.bf16.msra.mxu0 0
        %3575 = vmatprep.subr.bf16.mxu0 0
        %3576 = vmatpush2.bf16.msra.mxu0 0
        %3577 = vmatprep.subr.bf16.mxu0 0
        %3578 = vmatpush2.bf16.msra.mxu0 0
        %3579 = vmatprep.subr.bf16.mxu0 0
        %3580 = vmatpush2.bf16.msra.mxu0 0
        %3581 = vmatprep.subr.bf16.mxu0 0
        %3582 = vmatpush2.bf16.msra.mxu0 0
        %3583 = vmatprep.subr.bf16.mxu0 0
        %3584 = vmatpush2.bf16.msra.mxu0 0
        %3585 = vmatprep.subr.bf16.mxu0 0
        %3586 = vmatpush2.bf16.msra.mxu0 0
        %3587 = vmatprep.subr.bf16.mxu0 0
        %3588 = vmatpush2.bf16.msra.mxu0 0
        %3589 = vmatprep.mubr.bf16.mxu0 0
        %3590 = vmatmul.mubr.bf16.gmra.mxu0 %v3452
        %v3591 = vpop.f32.mrf.mxu0
        %v3592 = vadd.f32 0.0, %v3591
        %v3593 = vpop.f32.mrf.mxu0
        %v3594 = vadd.f32 0.0, %v3593
        %v3595 = vpop.f32.mrf.mxu0
        %v3596 = vadd.f32 0.0, %v3595
        %v3597 = vpop.f32.mrf.mxu0
        %v3598 = vadd.f32 0.0, %v3597
        %3599 = vmatprep.mubr.bf16.mxu0 0
        %3600 = vmatmul.mubr.bf16.gmra.mxu0 %v3453
        %v3601 = vpop.f32.mrf.mxu0
        %v3602 = vadd.f32 0.0, %v3601
        %v3603 = vpop.f32.mrf.mxu0
        %v3604 = vadd.f32 0.0, %v3603
        %v3605 = vpop.f32.mrf.mxu0
        %v3606 = vadd.f32 0.0, %v3605
        %v3607 = vpop.f32.mrf.mxu0
        %v3608 = vadd.f32 0.0, %v3607
        %3609 = vmatprep.mubr.bf16.mxu0 0
        %3610 = vmatmul.mubr.bf16.gmra.mxu0 %v3454
        %v3611 = vpop.f32.mrf.mxu0
        %v3612 = vadd.f32 0.0, %v3611
        %v3613 = vpop.f32.mrf.mxu0
        %v3614 = vadd.f32 0.0, %v3613
        %v3615 = vpop.f32.mrf.mxu0
        %v3616 = vadd.f32 0.0, %v3615
        %v3617 = vpop.f32.mrf.mxu0
        %v3618 = vadd.f32 0.0, %v3617
        %3619 = vmatprep.mubr.bf16.mxu0 0
        %3620 = vmatmul.mubr.bf16.gmra.mxu0 %v3455
        %v3621 = vpop.f32.mrf.mxu0
        %v3622 = vadd.f32 0.0, %v3621
        %v3623 = vpop.f32.mrf.mxu0
        %v3624 = vadd.f32 0.0, %v3623
        %v3625 = vpop.f32.mrf.mxu0
        %v3626 = vadd.f32 0.0, %v3625
        %v3627 = vpop.f32.mrf.mxu0
        %v3628 = vadd.f32 0.0, %v3627
        %3629 = vmatprep.mubr.bf16.mxu0 0
        %3630 = vmatmul.mubr.bf16.gmra.mxu0 %v3456
        %v3631 = vpop.f32.mrf.mxu0
        %v3632 = vadd.f32 0.0, %v3631
        %v3633 = vpop.f32.mrf.mxu0
        %v3634 = vadd.f32 0.0, %v3633
        %v3635 = vpop.f32.mrf.mxu0
        %v3636 = vadd.f32 0.0, %v3635
        %v3637 = vpop.f32.mrf.mxu0
        %v3638 = vadd.f32 0.0, %v3637
        %3639 = vmatprep.mubr.bf16.mxu0 0
        %3640 = vmatmul.mubr.bf16.gmra.mxu0 %v3457
        %v3641 = vpop.f32.mrf.mxu0
        %v3642 = vadd.f32 0.0, %v3641
        %v3643 = vpop.f32.mrf.mxu0
        %v3644 = vadd.f32 0.0, %v3643
        %v3645 = vpop.f32.mrf.mxu0
        %v3646 = vadd.f32 0.0, %v3645
        %v3647 = vpop.f32.mrf.mxu0
        %v3648 = vadd.f32 0.0, %v3647
        %3649 = vmatprep.mubr.bf16.mxu0 0
        %3650 = vmatmul.mubr.bf16.gmra.mxu0 %v3458
        %v3651 = vpop.f32.mrf.mxu0
        %v3652 = vadd.f32 0.0, %v3651
        %v3653 = vpop.f32.mrf.mxu0
        %v3654 = vadd.f32 0.0, %v3653
        %v3655 = vpop.f32.mrf.mxu0
        %v3656 = vadd.f32 0.0, %v3655
        %v3657 = vpop.f32.mrf.mxu0
        %v3658 = vadd.f32 0.0, %v3657
        %3659 = vmatprep.mubr.bf16.mxu0 0
        %3660 = vmatmul.mubr.bf16.gmra.mxu0 %v3459
        %v3661 = vpop.f32.mrf.mxu0
        %v3662 = vadd.f32 0.0, %v3661
        %v3663 = vpop.f32.mrf.mxu0
        %v3664 = vadd.f32 0.0, %v3663
        %v3665 = vpop.f32.mrf.mxu0
        %v3666 = vadd.f32 0.0, %v3665
        %v3667 = vpop.f32.mrf.mxu0
        %v3668 = vadd.f32 0.0, %v3667
        %3669 = vdwg.mxu0
        %s3670 = scalar_lea.vmem %s4, 3
        %v3671 = vld [vmem:[%s3670] sm:$0x1]
        %v3673 = vlaneseq
        %v3674 = vshrl.u32 %v3673, 7
        %v3675 = vsub.s32 0, %v3674
        %v3676 = vrot.slane %v3671, %v3675
        %v3678 = vadd.f32 %v3592, %v3676
        %v3679 = vadd.f32 %v3596, %v3676
        %v3680 = vadd.f32 %v3602, %v3676
        %v3681 = vadd.f32 %v3606, %v3676
        %v3682 = vadd.f32 %v3612, %v3676
        %v3683 = vadd.f32 %v3616, %v3676
        %v3684 = vadd.f32 %v3622, %v3676
        %v3685 = vadd.f32 %v3626, %v3676
        %v3686 = vadd.f32 %v3632, %v3676
        %v3687 = vadd.f32 %v3636, %v3676
        %v3688 = vadd.f32 %v3642, %v3676
        %v3689 = vadd.f32 %v3646, %v3676
        %v3690 = vadd.f32 %v3652, %v3676
        %v3691 = vadd.f32 %v3656, %v3676
        %v3692 = vadd.f32 %v3662, %v3676
        %v3693 = vadd.f32 %v3666, %v3676
        %v3694 = vpack.c.bf16 %v3598, %v3594
        %v3695 = vpack.c.bf16 %v3608, %v3604
        %v3696 = vpack.c.bf16 %v3618, %v3614
        %v3697 = vpack.c.bf16 %v3628, %v3624
        %v3698 = vpack.c.bf16 %v3638, %v3634
        %v3699 = vpack.c.bf16 %v3648, %v3644
        %v3700 = vpack.c.bf16 %v3658, %v3654
        %v3701 = vpack.c.bf16 %v3668, %v3664
        %v3703 = vsel %vm892, %v3694, 0
        %v3706 = vsel %vm892, %v3695, 0
        %v3709 = vsel %vm892, %v3696, 0
        %v3712 = vsel %vm892, %v3697, 0
        %v3715 = vsel %vm892, %v3698, 0
        %v3718 = vsel %vm892, %v3699, 0
        %v3721 = vsel %vm892, %v3700, 0
        %v3724 = vsel %vm892, %v3701, 0
        %3726 = vmatprep.subr.bf16.mxu0 0
        %3727 = vmatpush1.bf16.xpose.msra.mxu0 %v3724
        %3728 = vmatprep.subr.bf16.mxu0 0
        %3729 = vmatpush1.bf16.xpose.msra.mxu0 %v3721
        %3730 = vmatprep.subr.bf16.mxu0 0
        %3731 = vmatpush1.bf16.xpose.msra.mxu0 %v3718
        %3732 = vmatprep.subr.bf16.mxu0 0
        %3733 = vmatpush1.bf16.xpose.msra.mxu0 %v3715
        %3734 = vmatprep.subr.bf16.mxu0 0
        %3735 = vmatpush1.bf16.xpose.msra.mxu0 %v3712
        %3736 = vmatprep.subr.bf16.mxu0 0
        %3737 = vmatpush1.bf16.xpose.msra.mxu0 %v3709
        %3738 = vmatprep.subr.bf16.mxu0 0
        %3739 = vmatpush1.bf16.xpose.msra.mxu0 %v3706
        %3740 = vmatprep.subr.bf16.mxu0 0
        %3741 = vmatpush1.bf16.xpose.msra.mxu0 %v3703
        %3742 = vmatprep.subr.bf16.mxu0 0
        %3743 = vmatpush2.bf16.xpose.msra.mxu0 0
        %3744 = vmatprep.subr.bf16.mxu0 0
        %3745 = vmatpush2.bf16.xpose.msra.mxu0 0
        %3746 = vmatprep.subr.bf16.mxu0 0
        %3747 = vmatpush2.bf16.xpose.msra.mxu0 0
        %3748 = vmatprep.subr.bf16.mxu0 0
        %3749 = vmatpush2.bf16.xpose.msra.mxu0 0
        %3750 = vmatprep.subr.bf16.mxu0 0
        %3751 = vmatpush2.bf16.xpose.msra.mxu0 0
        %3752 = vmatprep.subr.bf16.mxu0 0
        %3753 = vmatpush2.bf16.xpose.msra.mxu0 0
        %3754 = vmatprep.subr.bf16.mxu0 0
        %3755 = vmatpush2.bf16.xpose.msra.mxu0 0
        %3756 = vmatprep.subr.bf16.mxu0 0
        %3757 = vmatpush2.bf16.xpose.msra.mxu0 0
        %3758 = vmatprep.mubr.bf16.mxu0 0
        %3759 = vmatmul.mubr.bf16.gmra.mxu0 %v3703
        %v3760 = vpop.f32.mrf.mxu0
        %v3761 = vadd.f32 0.0, %v3760
        %v3762 = vpop.f32.mrf.mxu0
        %v3763 = vpop.f32.mrf.mxu0
        %v3764 = vadd.f32 0.0, %v3763
        %v3765 = vpop.f32.mrf.mxu0
        %3766 = vmatprep.mubr.bf16.mxu0 0
        %3767 = vmatmul.mubr.bf16.gmra.mxu0 %v3706
        %v3768 = vpop.f32.mrf.mxu0
        %v3769 = vadd.f32 0.0, %v3768
        %v3770 = vpop.f32.mrf.mxu0
        %v3771 = vpop.f32.mrf.mxu0
        %v3772 = vadd.f32 0.0, %v3771
        %v3773 = vpop.f32.mrf.mxu0
        %3774 = vmatprep.mubr.bf16.mxu0 0
        %3775 = vmatmul.mubr.bf16.gmra.mxu0 %v3709
        %v3776 = vpop.f32.mrf.mxu0
        %v3777 = vadd.f32 0.0, %v3776
        %v3778 = vpop.f32.mrf.mxu0
        %v3779 = vpop.f32.mrf.mxu0
        %v3780 = vadd.f32 0.0, %v3779
        %v3781 = vpop.f32.mrf.mxu0
        %3782 = vmatprep.mubr.bf16.mxu0 0
        %3783 = vmatmul.mubr.bf16.gmra.mxu0 %v3712
        %v3784 = vpop.f32.mrf.mxu0
        %v3785 = vadd.f32 0.0, %v3784
        %v3786 = vpop.f32.mrf.mxu0
        %v3787 = vpop.f32.mrf.mxu0
        %v3788 = vadd.f32 0.0, %v3787
        %v3789 = vpop.f32.mrf.mxu0
        %3790 = vmatprep.mubr.bf16.mxu0 0
        %3791 = vmatmul.mubr.bf16.gmra.mxu0 %v3715
        %v3792 = vpop.f32.mrf.mxu0
        %v3793 = vadd.f32 0.0, %v3792
        %v3794 = vpop.f32.mrf.mxu0
        %v3795 = vpop.f32.mrf.mxu0
        %v3796 = vadd.f32 0.0, %v3795
        %v3797 = vpop.f32.mrf.mxu0
        %3798 = vmatprep.mubr.bf16.mxu0 0
        %3799 = vmatmul.mubr.bf16.gmra.mxu0 %v3718
        %v3800 = vpop.f32.mrf.mxu0
        %v3801 = vadd.f32 0.0, %v3800
        %v3802 = vpop.f32.mrf.mxu0
        %v3803 = vpop.f32.mrf.mxu0
        %v3804 = vadd.f32 0.0, %v3803
        %v3805 = vpop.f32.mrf.mxu0
        %3806 = vmatprep.mubr.bf16.mxu0 0
        %3807 = vmatmul.mubr.bf16.gmra.mxu0 %v3721
        %v3808 = vpop.f32.mrf.mxu0
        %v3809 = vadd.f32 0.0, %v3808
        %v3810 = vpop.f32.mrf.mxu0
        %v3811 = vpop.f32.mrf.mxu0
        %v3812 = vadd.f32 0.0, %v3811
        %v3813 = vpop.f32.mrf.mxu0
        %3814 = vmatprep.mubr.bf16.mxu0 0
        %3815 = vmatmul.mubr.bf16.gmra.mxu0 %v3724
        %v3816 = vpop.f32.mrf.mxu0
        %v3817 = vadd.f32 0.0, %v3816
        %v3818 = vpop.f32.mrf.mxu0
        %v3819 = vpop.f32.mrf.mxu0
        %v3820 = vadd.f32 0.0, %v3819
        %v3821 = vpop.f32.mrf.mxu0
        %3822 = vdwg.mxu0
        %v3823 = vmax.f32 %v3761, %v3777
        %v3824 = vmax.f32 %v3764, %v3780
        %v3825 = vmax.f32 %v3769, %v3785
        %v3826 = vmax.f32 %v3772, %v3788
        %v3827 = vmax.f32 %v3823, %v3793
        %v3828 = vmax.f32 %v3824, %v3796
        %v3829 = vmax.f32 %v3825, %v3801
        %v3830 = vmax.f32 %v3826, %v3804
        %v3831 = vmax.f32 %v3827, %v3809
        %v3832 = vmax.f32 %v3828, %v3812
        %v3833 = vmax.f32 %v3829, %v3817
        %v3834 = vmax.f32 %v3830, %v3820
        %v3835 = vmax.f32 %v3831, %v3832
        %v3836 = vmax.f32 %v3833, %v3834
        %v3837 = vmax.f32 %v3835, %v3836
        %v3838 = vrot.slane %v3837, 4
        %v3839 = vmax.f32 %v3837, %v3838
        %v3840 = vrot.slane %v3839, 2
        %v3841 = vmax.f32 %v3839, %v3840
        %v3842 = vrot.slane %v3841, 1
        %v3843 = vmax.f32 %v3841, %v3842
        %v3844 = vsub.f32 %v3761, %v3843
        %v3845 = vsub.f32 %v3764, %v3843
        %v3846 = vsub.f32 %v3769, %v3843
        %v3847 = vsub.f32 %v3772, %v3843
        %v3848 = vsub.f32 %v3777, %v3843
        %v3849 = vsub.f32 %v3780, %v3843
        %v3850 = vsub.f32 %v3785, %v3843
        %v3851 = vsub.f32 %v3788, %v3843
        %v3852 = vsub.f32 %v3793, %v3843
        %v3853 = vsub.f32 %v3796, %v3843
        %v3854 = vsub.f32 %v3801, %v3843
        %v3855 = vsub.f32 %v3804, %v3843
        %v3856 = vsub.f32 %v3809, %v3843
        %v3857 = vsub.f32 %v3812, %v3843
        %v3858 = vsub.f32 %v3817, %v3843
        %v3859 = vsub.f32 %v3820, %v3843
        %v3860 = vmul.f32 %v3844, 1.442695
        %v3861 = vpow.pop %v3860
        %v3862 = vmul.f32 %v3845, 1.442695
        %v3863 = vpow.pop %v3862
        %v3864 = vmul.f32 %v3846, 1.442695
        %v3865 = vpow.pop %v3864
        %v3866 = vmul.f32 %v3847, 1.442695
        %v3867 = vpow.pop %v3866
        %v3868 = vmul.f32 %v3848, 1.442695
        %v3869 = vpow.pop %v3868
        %v3870 = vmul.f32 %v3849, 1.442695
        %v3871 = vpow.pop %v3870
        %v3872 = vmul.f32 %v3850, 1.442695
        %v3873 = vpow.pop %v3872
        %v3874 = vmul.f32 %v3851, 1.442695
        %v3875 = vpow.pop %v3874
        %v3876 = vmul.f32 %v3852, 1.442695
        %v3877 = vpow.pop %v3876
        %v3878 = vmul.f32 %v3853, 1.442695
        %v3879 = vpow.pop %v3878
        %v3880 = vmul.f32 %v3854, 1.442695
        %v3881 = vpow.pop %v3880
        %v3882 = vmul.f32 %v3855, 1.442695
        %v3883 = vpow.pop %v3882
        %v3884 = vmul.f32 %v3856, 1.442695
        %v3885 = vpow.pop %v3884
        %v3886 = vmul.f32 %v3857, 1.442695
        %v3887 = vpow.pop %v3886
        %v3888 = vmul.f32 %v3858, 1.442695
        %v3889 = vpow.pop %v3888
        %v3890 = vmul.f32 %v3859, 1.442695
        %v3891 = vpow.pop %v3890
        %v3892 = vadd.f32 %v3861, %v3863
        %v3893 = vadd.f32 %v3892, %v3865
        %v3894 = vadd.f32 %v3893, %v3867
        %v3895 = vadd.f32 %v3894, %v3869
        %v3896 = vadd.f32 %v3895, %v3871
        %v3897 = vadd.f32 %v3896, %v3873
        %v3898 = vadd.f32 %v3897, %v3875
        %v3899 = vadd.f32 %v3898, %v3877
        %v3900 = vadd.f32 %v3899, %v3879
        %v3901 = vadd.f32 %v3900, %v3881
        %v3902 = vadd.f32 %v3901, %v3883
        %v3903 = vadd.f32 %v3902, %v3885
        %v3904 = vadd.f32 %v3903, %v3887
        %v3905 = vadd.f32 %v3904, %v3889
        %v3906 = vadd.f32 %v3905, %v3891
        %v3907 = vrot.slane %v3906, 4
        %v3908 = vadd.f32 %v3906, %v3907
        %v3909 = vrot.slane %v3908, 2
        %v3910 = vadd.f32 %v3908, %v3909
        %v3911 = vrot.slane %v3910, 1
        %v3912 = vadd.f32 %v3910, %v3911
        %v3913 = vrcp.pop %v3912
        %v3914 = vmul.f32 %v3861, %v3913
        %v3915 = vmul.f32 %v3863, %v3913
        %v3916 = vmul.f32 %v3865, %v3913
        %v3917 = vmul.f32 %v3867, %v3913
        %v3918 = vmul.f32 %v3869, %v3913
        %v3919 = vmul.f32 %v3871, %v3913
        %v3920 = vmul.f32 %v3873, %v3913
        %v3921 = vmul.f32 %v3875, %v3913
        %v3922 = vmul.f32 %v3877, %v3913
        %v3923 = vmul.f32 %v3879, %v3913
        %v3924 = vmul.f32 %v3881, %v3913
        %v3925 = vmul.f32 %v3883, %v3913
        %v3926 = vmul.f32 %v3885, %v3913
        %v3927 = vmul.f32 %v3887, %v3913
        %v3928 = vmul.f32 %v3889, %v3913
        %v3929 = vmul.f32 %v3891, %v3913
        %3930 = vadd.xlane.f32.xlu0 %v3914
        %v3931 = vpop.xlane.xlu0 %3930
        %3932 = vadd.xlane.f32.xlu0 %v3915
        %v3933 = vpop.xlane.xlu0 %3932
        %3934 = vadd.xlane.f32.xlu0 %v3916
        %v3935 = vpop.xlane.xlu0 %3934
        %3936 = vadd.xlane.f32.xlu0 %v3917
        %v3937 = vpop.xlane.xlu0 %3936
        %3938 = vadd.xlane.f32.xlu0 %v3918
        %v3939 = vpop.xlane.xlu0 %3938
        %3940 = vadd.xlane.f32.xlu0 %v3919
        %v3941 = vpop.xlane.xlu0 %3940
        %3942 = vadd.xlane.f32.xlu0 %v3920
        %v3943 = vpop.xlane.xlu0 %3942
        %3944 = vadd.xlane.f32.xlu0 %v3921
        %v3945 = vpop.xlane.xlu0 %3944
        %3946 = vadd.xlane.f32.xlu0 %v3922
        %v3947 = vpop.xlane.xlu0 %3946
        %3948 = vadd.xlane.f32.xlu0 %v3923
        %v3949 = vpop.xlane.xlu0 %3948
        %3950 = vadd.xlane.f32.xlu0 %v3924
        %v3951 = vpop.xlane.xlu0 %3950
        %3952 = vadd.xlane.f32.xlu0 %v3925
        %v3953 = vpop.xlane.xlu0 %3952
        %3954 = vadd.xlane.f32.xlu0 %v3926
        %v3955 = vpop.xlane.xlu0 %3954
        %3956 = vadd.xlane.f32.xlu0 %v3927
        %v3957 = vpop.xlane.xlu0 %3956
        %3958 = vadd.xlane.f32.xlu0 %v3928
        %v3959 = vpop.xlane.xlu0 %3958
        %3960 = vadd.xlane.f32.xlu0 %v3929
        %v3961 = vpop.xlane.xlu0 %3960
        %v3962 = vadd.f32 %v3931, 1e-09
        %v3963 = vadd.f32 %v3933, 1e-09
        %v3964 = vadd.f32 %v3935, 1e-09
        %v3965 = vadd.f32 %v3937, 1e-09
        %v3966 = vadd.f32 %v3939, 1e-09
        %v3967 = vadd.f32 %v3941, 1e-09
        %v3968 = vadd.f32 %v3943, 1e-09
        %v3969 = vadd.f32 %v3945, 1e-09
        %v3970 = vadd.f32 %v3947, 1e-09
        %v3971 = vadd.f32 %v3949, 1e-09
        %v3972 = vadd.f32 %v3951, 1e-09
        %v3973 = vadd.f32 %v3953, 1e-09
        %v3974 = vadd.f32 %v3955, 1e-09
        %v3975 = vadd.f32 %v3957, 1e-09
        %v3976 = vadd.f32 %v3959, 1e-09
        %v3977 = vadd.f32 %v3961, 1e-09
        %v3978 = vrcp.pop %v3962
        %v3979 = vrcp.pop %v3963
        %v3980 = vrcp.pop %v3964
        %v3981 = vrcp.pop %v3965
        %v3982 = vrcp.pop %v3966
        %v3983 = vrcp.pop %v3967
        %v3984 = vrcp.pop %v3968
        %v3985 = vrcp.pop %v3969
        %v3986 = vrcp.pop %v3970
        %v3987 = vrcp.pop %v3971
        %v3988 = vrcp.pop %v3972
        %v3989 = vrcp.pop %v3973
        %v3990 = vrcp.pop %v3974
        %v3991 = vrcp.pop %v3975
        %v3992 = vrcp.pop %v3976
        %v3993 = vrcp.pop %v3977
        %v3994 = vpack.c.bf16 %v3915, %v3914
        %v3995 = vpack.c.bf16 %v3917, %v3916
        %v3996 = vpack.c.bf16 %v3919, %v3918
        %v3997 = vpack.c.bf16 %v3921, %v3920
        %v3998 = vpack.c.bf16 %v3923, %v3922
        %v3999 = vpack.c.bf16 %v3925, %v3924
        %v4000 = vpack.c.bf16 %v3927, %v3926
        %v4001 = vpack.c.bf16 %v3929, %v3928
        %v4002 = vpack.c.bf16 %v3679, %v3678
        %v4003 = vpack.c.bf16 %v3681, %v3680
        %v4004 = vpack.c.bf16 %v3683, %v3682
        %v4005 = vpack.c.bf16 %v3685, %v3684
        %v4006 = vpack.c.bf16 %v3687, %v3686
        %v4007 = vpack.c.bf16 %v3689, %v3688
        %v4008 = vpack.c.bf16 %v3691, %v3690
        %v4009 = vpack.c.bf16 %v3693, %v3692
        %4010 = vmatprep.subr.bf16.mxu0 0
        %4011 = vmatpush1.bf16.msra.mxu0 %v4009
        %4012 = vmatprep.subr.bf16.mxu0 0
        %4013 = vmatpush1.bf16.msra.mxu0 %v4008
        %4014 = vmatprep.subr.bf16.mxu0 0
        %4015 = vmatpush1.bf16.msra.mxu0 %v4007
        %4016 = vmatprep.subr.bf16.mxu0 0
        %4017 = vmatpush1.bf16.msra.mxu0 %v4006
        %4018 = vmatprep.subr.bf16.mxu0 0
        %4019 = vmatpush1.bf16.msra.mxu0 %v4005
        %4020 = vmatprep.subr.bf16.mxu0 0
        %4021 = vmatpush1.bf16.msra.mxu0 %v4004
        %4022 = vmatprep.subr.bf16.mxu0 0
        %4023 = vmatpush1.bf16.msra.mxu0 %v4003
        %4024 = vmatprep.subr.bf16.mxu0 0
        %4025 = vmatpush1.bf16.msra.mxu0 %v4002
        %4026 = vmatprep.subr.bf16.mxu0 0
        %4027 = vmatpush2.bf16.msra.mxu0 0
        %4028 = vmatprep.subr.bf16.mxu0 0
        %4029 = vmatpush2.bf16.msra.mxu0 0
        %4030 = vmatprep.subr.bf16.mxu0 0
        %4031 = vmatpush2.bf16.msra.mxu0 0
        %4032 = vmatprep.subr.bf16.mxu0 0
        %4033 = vmatpush2.bf16.msra.mxu0 0
        %4034 = vmatprep.subr.bf16.mxu0 0
        %4035 = vmatpush2.bf16.msra.mxu0 0
        %4036 = vmatprep.subr.bf16.mxu0 0
        %4037 = vmatpush2.bf16.msra.mxu0 0
        %4038 = vmatprep.subr.bf16.mxu0 0
        %4039 = vmatpush2.bf16.msra.mxu0 0
        %4040 = vmatprep.subr.bf16.mxu0 0
        %4041 = vmatpush2.bf16.msra.mxu0 0
        %4042 = vmatprep.mubr.bf16.mxu0 0
        %4043 = vmatmul.mubr.bf16.gmra.mxu0 %v3994
        %v4044 = vpop.f32.mrf.mxu0
        %v4045 = vadd.f32 0.0, %v4044
        %v4046 = vpop.f32.mrf.mxu0
        %v4047 = vpop.f32.mrf.mxu0
        %v4048 = vadd.f32 0.0, %v4047
        %v4049 = vpop.f32.mrf.mxu0
        %4050 = vmatprep.mubr.bf16.mxu0 0
        %4051 = vmatmul.mubr.bf16.gmra.mxu0 %v3995
        %v4052 = vpop.f32.mrf.mxu0
        %v4053 = vadd.f32 0.0, %v4052
        %v4054 = vpop.f32.mrf.mxu0
        %v4055 = vpop.f32.mrf.mxu0
        %v4056 = vadd.f32 0.0, %v4055
        %v4057 = vpop.f32.mrf.mxu0
        %4058 = vmatprep.mubr.bf16.mxu0 0
        %4059 = vmatmul.mubr.bf16.gmra.mxu0 %v3996
        %v4060 = vpop.f32.mrf.mxu0
        %v4061 = vadd.f32 0.0, %v4060
        %v4062 = vpop.f32.mrf.mxu0
        %v4063 = vpop.f32.mrf.mxu0
        %v4064 = vadd.f32 0.0, %v4063
        %v4065 = vpop.f32.mrf.mxu0
        %4066 = vmatprep.mubr.bf16.mxu0 0
        %4067 = vmatmul.mubr.bf16.gmra.mxu0 %v3997
        %v4068 = vpop.f32.mrf.mxu0
        %v4069 = vadd.f32 0.0, %v4068
        %v4070 = vpop.f32.mrf.mxu0
        %v4071 = vpop.f32.mrf.mxu0
        %v4072 = vadd.f32 0.0, %v4071
        %v4073 = vpop.f32.mrf.mxu0
        %4074 = vmatprep.mubr.bf16.mxu0 0
        %4075 = vmatmul.mubr.bf16.gmra.mxu0 %v3998
        %v4076 = vpop.f32.mrf.mxu0
        %v4077 = vadd.f32 0.0, %v4076
        %v4078 = vpop.f32.mrf.mxu0
        %v4079 = vpop.f32.mrf.mxu0
        %v4080 = vadd.f32 0.0, %v4079
        %v4081 = vpop.f32.mrf.mxu0
        %4082 = vmatprep.mubr.bf16.mxu0 0
        %4083 = vmatmul.mubr.bf16.gmra.mxu0 %v3999
        %v4084 = vpop.f32.mrf.mxu0
        %v4085 = vadd.f32 0.0, %v4084
        %v4086 = vpop.f32.mrf.mxu0
        %v4087 = vpop.f32.mrf.mxu0
        %v4088 = vadd.f32 0.0, %v4087
        %v4089 = vpop.f32.mrf.mxu0
        %4090 = vmatprep.mubr.bf16.mxu0 0
        %4091 = vmatmul.mubr.bf16.gmra.mxu0 %v4000
        %v4092 = vpop.f32.mrf.mxu0
        %v4093 = vadd.f32 0.0, %v4092
        %v4094 = vpop.f32.mrf.mxu0
        %v4095 = vpop.f32.mrf.mxu0
        %v4096 = vadd.f32 0.0, %v4095
        %v4097 = vpop.f32.mrf.mxu0
        %4098 = vmatprep.mubr.bf16.mxu0 0
        %4099 = vmatmul.mubr.bf16.gmra.mxu0 %v4001
        %v4100 = vpop.f32.mrf.mxu0
        %v4101 = vadd.f32 0.0, %v4100
        %v4102 = vpop.f32.mrf.mxu0
        %v4103 = vpop.f32.mrf.mxu0
        %v4104 = vadd.f32 0.0, %v4103
        %v4105 = vpop.f32.mrf.mxu0
        %4106 = vdwg.mxu0
        %v4107 = vmul.f32 %v4045, %v3978
        %v4108 = vmul.f32 %v4048, %v3979
        %v4109 = vmul.f32 %v4053, %v3980
        %v4110 = vmul.f32 %v4056, %v3981
        %v4111 = vmul.f32 %v4061, %v3982
        %v4112 = vmul.f32 %v4064, %v3983
        %v4113 = vmul.f32 %v4069, %v3984
        %v4114 = vmul.f32 %v4072, %v3985
        %v4115 = vmul.f32 %v4077, %v3986
        %v4116 = vmul.f32 %v4080, %v3987
        %v4117 = vmul.f32 %v4085, %v3988
        %v4118 = vmul.f32 %v4088, %v3989
        %v4119 = vmul.f32 %v4093, %v3990
        %v4120 = vmul.f32 %v4096, %v3991
        %v4121 = vmul.f32 %v4101, %v3992
        %v4122 = vmul.f32 %v4104, %v3993
        %v4123 = vsub.f32 %v3396, %v4107
        %v4124 = vsub.f32 %v3397, %v4108
        %v4125 = vsub.f32 %v3398, %v4109
        %v4126 = vsub.f32 %v3399, %v4110
        %v4127 = vsub.f32 %v3400, %v4111
        %v4128 = vsub.f32 %v3401, %v4112
        %v4129 = vsub.f32 %v3402, %v4113
        %v4130 = vsub.f32 %v3403, %v4114
        %v4131 = vsub.f32 %v3404, %v4115
        %v4132 = vsub.f32 %v3405, %v4116
        %v4133 = vsub.f32 %v3406, %v4117
        %v4134 = vsub.f32 %v3407, %v4118
        %v4135 = vsub.f32 %v3408, %v4119
        %v4136 = vsub.f32 %v3409, %v4120
        %v4137 = vsub.f32 %v3410, %v4121
        %v4138 = vsub.f32 %v3411, %v4122
        %v4139 = vpack.c.bf16 %v4124, %v4123
        %v4140 = vpack.c.bf16 %v4126, %v4125
        %v4141 = vpack.c.bf16 %v4128, %v4127
        %v4142 = vpack.c.bf16 %v4130, %v4129
        %v4143 = vpack.c.bf16 %v4132, %v4131
        %v4144 = vpack.c.bf16 %v4134, %v4133
        %v4145 = vpack.c.bf16 %v4136, %v4135
        %v4146 = vpack.c.bf16 %v4138, %v4137
        %s4147 = scalar_lea.vmem %s5, 192
        %v4148 = vld [vmem:[%s4147] sm:$0xf]
        %v4149 = vld [vmem:[%s4147 + $0x4] sm:$0xf]
        %v4150 = vld [vmem:[%s4147 + $0x8] sm:$0xf]
        %v4151 = vld [vmem:[%s4147 + $0xc] sm:$0xf]
        %v4152 = vld [vmem:[%s4147 + $0x10] sm:$0xf]
        %v4153 = vld [vmem:[%s4147 + $0x14] sm:$0xf]
        %v4154 = vld [vmem:[%s4147 + $0x18] sm:$0xf]
        %v4155 = vld [vmem:[%s4147 + $0x1c] sm:$0xf]
        %v4156 = vld [vmem:[%s4147 + $0x20] sm:$0xf]
        %v4157 = vld [vmem:[%s4147 + $0x24] sm:$0xf]
        %v4158 = vld [vmem:[%s4147 + $0x28] sm:$0xf]
        %v4159 = vld [vmem:[%s4147 + $0x2c] sm:$0xf]
        %v4160 = vld [vmem:[%s4147 + $0x30] sm:$0xf]
        %v4161 = vld [vmem:[%s4147 + $0x34] sm:$0xf]
        %v4162 = vld [vmem:[%s4147 + $0x38] sm:$0xf]
        %v4163 = vld [vmem:[%s4147 + $0x3c] sm:$0xf]
        %s4164 = scalar_lea.vmem %s6, 3
        %v4165 = vld [vmem:[%s4164] sm:$0x1]
        %v4167 = vlaneseq
        %v4168 = vshrl.u32 %v4167, 7
        %v4169 = vsub.s32 0, %v4168
        %v4170 = vrot.slane %v4165, %v4169
        %v4188 = vunpack.c.l.b16 %v4148
        %v4189 = vunpack.c.l.b16 %v4149
        %v4190 = vunpack.c.l.b16 %v4150
        %v4191 = vunpack.c.l.b16 %v4151
        %v4192 = vunpack.c.l.b16 %v4152
        %v4193 = vunpack.c.l.b16 %v4153
        %v4194 = vunpack.c.l.b16 %v4154
        %v4195 = vunpack.c.l.b16 %v4155
        %v4196 = vunpack.c.l.b16 %v4156
        %v4197 = vunpack.c.l.b16 %v4157
        %v4198 = vunpack.c.l.b16 %v4158
        %v4199 = vunpack.c.l.b16 %v4159
        %v4200 = vunpack.c.l.b16 %v4160
        %v4201 = vunpack.c.l.b16 %v4161
        %v4202 = vunpack.c.l.b16 %v4162
        %v4203 = vunpack.c.l.b16 %v4163
        %v4204 = vpack.c.b16 %v4189, %v4188
        %v4205 = vpack.c.b16 %v4191, %v4190
        %v4206 = vpack.c.b16 %v4193, %v4192
        %v4207 = vpack.c.b16 %v4195, %v4194
        %v4208 = vpack.c.b16 %v4197, %v4196
        %v4209 = vpack.c.b16 %v4199, %v4198
        %v4210 = vpack.c.b16 %v4201, %v4200
        %v4211 = vpack.c.b16 %v4203, %v4202
        %4220 = vmatprep.subr.bf16.mxu0 0
        %4221 = vmatpush1.bf16.msra.mxu0 %v4211
        %4222 = vmatprep.subr.bf16.mxu0 0
        %4223 = vmatpush1.bf16.msra.mxu0 %v4210
        %4224 = vmatprep.subr.bf16.mxu0 0
        %4225 = vmatpush1.bf16.msra.mxu0 %v4209
        %4226 = vmatprep.subr.bf16.mxu0 0
        %4227 = vmatpush1.bf16.msra.mxu0 %v4208
        %4228 = vmatprep.subr.bf16.mxu0 0
        %4229 = vmatpush1.bf16.msra.mxu0 %v4207
        %4230 = vmatprep.subr.bf16.mxu0 0
        %4231 = vmatpush1.bf16.msra.mxu0 %v4206
        %4232 = vmatprep.subr.bf16.mxu0 0
        %4233 = vmatpush1.bf16.msra.mxu0 %v4205
        %4234 = vmatprep.subr.bf16.mxu0 0
        %4235 = vmatpush1.bf16.msra.mxu0 %v4204
        %4236 = vmatprep.subr.bf16.mxu0 0
        %4237 = vmatpush2.bf16.msra.mxu0 0
        %4238 = vmatprep.subr.bf16.mxu0 0
        %4239 = vmatpush2.bf16.msra.mxu0 0
        %4240 = vmatprep.subr.bf16.mxu0 0
        %4241 = vmatpush2.bf16.msra.mxu0 0
        %4242 = vmatprep.subr.bf16.mxu0 0
        %4243 = vmatpush2.bf16.msra.mxu0 0
        %4244 = vmatprep.subr.bf16.mxu0 0
        %4245 = vmatpush2.bf16.msra.mxu0 0
        %4246 = vmatprep.subr.bf16.mxu0 0
        %4247 = vmatpush2.bf16.msra.mxu0 0
        %4248 = vmatprep.subr.bf16.mxu0 0
        %4249 = vmatpush2.bf16.msra.mxu0 0
        %4250 = vmatprep.subr.bf16.mxu0 0
        %4251 = vmatpush2.bf16.msra.mxu0 0
        %4252 = vmatprep.mubr.bf16.mxu0 0
        %4253 = vmatmul.mubr.bf16.gmra.mxu0 %v4139
        %v4254 = vpop.f32.mrf.mxu0
        %v4255 = vadd.f32 %v4170, %v4254
        %v4256 = vpop.f32.mrf.mxu0
        %v4257 = vpop.f32.mrf.mxu0
        %v4258 = vadd.f32 %v4170, %v4257
        %v4259 = vpop.f32.mrf.mxu0
        %4260 = vmatprep.mubr.bf16.mxu0 0
        %4261 = vmatmul.mubr.bf16.gmra.mxu0 %v4140
        %v4262 = vpop.f32.mrf.mxu0
        %v4263 = vadd.f32 %v4170, %v4262
        %v4264 = vpop.f32.mrf.mxu0
        %v4265 = vpop.f32.mrf.mxu0
        %v4266 = vadd.f32 %v4170, %v4265
        %v4267 = vpop.f32.mrf.mxu0
        %4268 = vmatprep.mubr.bf16.mxu0 0
        %4269 = vmatmul.mubr.bf16.gmra.mxu0 %v4141
        %v4270 = vpop.f32.mrf.mxu0
        %v4271 = vadd.f32 %v4170, %v4270
        %v4272 = vpop.f32.mrf.mxu0
        %v4273 = vpop.f32.mrf.mxu0
        %v4274 = vadd.f32 %v4170, %v4273
        %v4275 = vpop.f32.mrf.mxu0
        %4276 = vmatprep.mubr.bf16.mxu0 0
        %4277 = vmatmul.mubr.bf16.gmra.mxu0 %v4142
        %v4278 = vpop.f32.mrf.mxu0
        %v4279 = vadd.f32 %v4170, %v4278
        %v4280 = vpop.f32.mrf.mxu0
        %v4281 = vpop.f32.mrf.mxu0
        %v4282 = vadd.f32 %v4170, %v4281
        %v4283 = vpop.f32.mrf.mxu0
        %4284 = vmatprep.mubr.bf16.mxu0 0
        %4285 = vmatmul.mubr.bf16.gmra.mxu0 %v4143
        %v4286 = vpop.f32.mrf.mxu0
        %v4287 = vadd.f32 %v4170, %v4286
        %v4288 = vpop.f32.mrf.mxu0
        %v4289 = vpop.f32.mrf.mxu0
        %v4290 = vadd.f32 %v4170, %v4289
        %v4291 = vpop.f32.mrf.mxu0
        %4292 = vmatprep.mubr.bf16.mxu0 0
        %4293 = vmatmul.mubr.bf16.gmra.mxu0 %v4144
        %v4294 = vpop.f32.mrf.mxu0
        %v4295 = vadd.f32 %v4170, %v4294
        %v4296 = vpop.f32.mrf.mxu0
        %v4297 = vpop.f32.mrf.mxu0
        %v4298 = vadd.f32 %v4170, %v4297
        %v4299 = vpop.f32.mrf.mxu0
        %4300 = vmatprep.mubr.bf16.mxu0 0
        %4301 = vmatmul.mubr.bf16.gmra.mxu0 %v4145
        %v4302 = vpop.f32.mrf.mxu0
        %v4303 = vadd.f32 %v4170, %v4302
        %v4304 = vpop.f32.mrf.mxu0
        %v4305 = vpop.f32.mrf.mxu0
        %v4306 = vadd.f32 %v4170, %v4305
        %v4307 = vpop.f32.mrf.mxu0
        %4308 = vmatprep.mubr.bf16.mxu0 0
        %4309 = vmatmul.mubr.bf16.gmra.mxu0 %v4146
        %v4310 = vpop.f32.mrf.mxu0
        %v4311 = vadd.f32 %v4170, %v4310
        %v4312 = vpop.f32.mrf.mxu0
        %v4313 = vpop.f32.mrf.mxu0
        %v4314 = vadd.f32 %v4170, %v4313
        %v4315 = vpop.f32.mrf.mxu0
        %4316 = vdwg.mxu0
        %v4317 = vmax.f32 %v4255, 0.0
        %v4318 = vmax.f32 %v4258, 0.0
        %v4319 = vmax.f32 %v4263, 0.0
        %v4320 = vmax.f32 %v4266, 0.0
        %v4321 = vmax.f32 %v4271, 0.0
        %v4322 = vmax.f32 %v4274, 0.0
        %v4323 = vmax.f32 %v4279, 0.0
        %v4324 = vmax.f32 %v4282, 0.0
        %v4325 = vmax.f32 %v4287, 0.0
        %v4326 = vmax.f32 %v4290, 0.0
        %v4327 = vmax.f32 %v4295, 0.0
        %v4328 = vmax.f32 %v4298, 0.0
        %v4329 = vmax.f32 %v4303, 0.0
        %v4330 = vmax.f32 %v4306, 0.0
        %v4331 = vmax.f32 %v4311, 0.0
        %v4332 = vmax.f32 %v4314, 0.0
        %v4333 = vadd.f32 %v3396, %v4317
        %v4334 = vadd.f32 %v3397, %v4318
        %v4335 = vadd.f32 %v3398, %v4319
        %v4336 = vadd.f32 %v3399, %v4320
        %v4337 = vadd.f32 %v3400, %v4321
        %v4338 = vadd.f32 %v3401, %v4322
        %v4339 = vadd.f32 %v3402, %v4323
        %v4340 = vadd.f32 %v3403, %v4324
        %v4341 = vadd.f32 %v3404, %v4325
        %v4342 = vadd.f32 %v3405, %v4326
        %v4343 = vadd.f32 %v3406, %v4327
        %v4344 = vadd.f32 %v3407, %v4328
        %v4345 = vadd.f32 %v3408, %v4329
        %v4346 = vadd.f32 %v3409, %v4330
        %v4347 = vadd.f32 %v3410, %v4331
        %v4348 = vadd.f32 %v3411, %v4332
        %4349 = vxpose.xlu0.b32.start [1/16] %v4333, 128
        %4350 = vxpose.xlu0.b32.cont [2/16] %v4334, 128
        %4351 = vxpose.xlu0.b32.cont [3/16] %v4335, 128
        %4352 = vxpose.xlu0.b32.cont [4/16] %v4336, 128
        %4353 = vxpose.xlu0.b32.cont [5/16] %v4337, 128
        %4354 = vxpose.xlu0.b32.cont [6/16] %v4338, 128
        %4355 = vxpose.xlu0.b32.cont [7/16] %v4339, 128
        %4356 = vxpose.xlu0.b32.cont [8/16] %v4340, 128
        %4357 = vxpose.xlu0.b32.cont [9/16] %v4341, 128
        %4358 = vxpose.xlu0.b32.cont [10/16] %v4342, 128
        %4359 = vxpose.xlu0.b32.cont [11/16] %v4343, 128
        %4360 = vxpose.xlu0.b32.cont [12/16] %v4344, 128
        %4361 = vxpose.xlu0.b32.cont [13/16] %v4345, 128
        %4362 = vxpose.xlu0.b32.cont [14/16] %v4346, 128
        %4363 = vxpose.xlu0.b32.cont [15/16] %v4347, 128
        %4364 = vxpose.xlu0.b32.end [16/16] %v4348, 128
        %v4365 = vpop.trf.xlu0
        %v4366 = vpop.trf.xlu0
        %v4367 = vpop.trf.xlu0
        %v4368 = vpop.trf.xlu0
        %v4369 = vpop.trf.xlu0
        %v4370 = vpop.trf.xlu0
        %v4371 = vpop.trf.xlu0
        %v4372 = vpop.trf.xlu0
        %v4373 = vpop.trf.xlu0
        %v4374 = vpop.trf.xlu0
        %v4375 = vpop.trf.xlu0
        %v4376 = vpop.trf.xlu0
        %v4377 = vpop.trf.xlu0
        %v4378 = vpop.trf.xlu0
        %v4379 = vpop.trf.xlu0
        %v4380 = vpop.trf.xlu0
        %v4381 = vpack.c.bf16 %v4366, %v4365
        %v4382 = vpack.c.bf16 %v4368, %v4367
        %v4383 = vpack.c.bf16 %v4370, %v4369
        %v4384 = vpack.c.bf16 %v4372, %v4371
        %v4385 = vpack.c.bf16 %v4374, %v4373
        %v4386 = vpack.c.bf16 %v4376, %v4375
        %v4387 = vpack.c.bf16 %v4378, %v4377
        %v4388 = vpack.c.bf16 %v4380, %v4379
        %s4389 = smul.u32 4, 128
        %s4390 = smul.u32 %s4389, 4
        %s4391 = sshll.u32 %s4390, 4
        %4392 = dma.done [#allocation3], %s4391
        %v4393 = vld [vmem:[#allocation2] sm:$0xff]
        %v4394 = vld [vmem:[#allocation2 + $0x8] sm:$0xff]
        %v4395 = vld [vmem:[#allocation2 + $0x10] sm:$0xff]
        %v4396 = vld [vmem:[#allocation2 + $0x18] sm:$0xff]
        %v4397 = vld [vmem:[#allocation2 + $0x20] sm:$0xff]
        %v4398 = vld [vmem:[#allocation2 + $0x28] sm:$0xff]
        %v4399 = vld [vmem:[#allocation2 + $0x30] sm:$0xff]
        %v4400 = vld [vmem:[#allocation2 + $0x38] sm:$0xff]
        %v4401 = vld [vmem:[#allocation2 + $0x40] sm:$0xff]
        %v4402 = vld [vmem:[#allocation2 + $0x48] sm:$0xff]
        %v4403 = vld [vmem:[#allocation2 + $0x50] sm:$0xff]
        %v4404 = vld [vmem:[#allocation2 + $0x58] sm:$0xff]
        %v4405 = vld [vmem:[#allocation2 + $0x60] sm:$0xff]
        %v4406 = vld [vmem:[#allocation2 + $0x68] sm:$0xff]
        %v4407 = vld [vmem:[#allocation2 + $0x70] sm:$0xff]
        %v4408 = vld [vmem:[#allocation2 + $0x78] sm:$0xff]
        %v4409 = vld [vmem:[#allocation2 + $0x80] sm:$0xff]
        %v4410 = vld [vmem:[#allocation2 + $0x88] sm:$0xff]
        %v4411 = vld [vmem:[#allocation2 + $0x90] sm:$0xff]
        %v4412 = vld [vmem:[#allocation2 + $0x98] sm:$0xff]
        %v4413 = vld [vmem:[#allocation2 + $0xa0] sm:$0xff]
        %v4414 = vld [vmem:[#allocation2 + $0xa8] sm:$0xff]
        %v4415 = vld [vmem:[#allocation2 + $0xb0] sm:$0xff]
        %v4416 = vld [vmem:[#allocation2 + $0xb8] sm:$0xff]
        %v4417 = vld [vmem:[#allocation2 + $0xc0] sm:$0xff]
        %v4418 = vld [vmem:[#allocation2 + $0xc8] sm:$0xff]
        %v4419 = vld [vmem:[#allocation2 + $0xd0] sm:$0xff]
        %v4420 = vld [vmem:[#allocation2 + $0xd8] sm:$0xff]
        %v4421 = vld [vmem:[#allocation2 + $0xe0] sm:$0xff]
        %v4422 = vld [vmem:[#allocation2 + $0xe8] sm:$0xff]
        %v4423 = vld [vmem:[#allocation2 + $0xf0] sm:$0xff]
        %v4424 = vld [vmem:[#allocation2 + $0xf8] sm:$0xff]
        %v4425 = vld [vmem:[#allocation2 + $0x100] sm:$0xff]
        %v4426 = vld [vmem:[#allocation2 + $0x108] sm:$0xff]
        %v4427 = vld [vmem:[#allocation2 + $0x110] sm:$0xff]
        %v4428 = vld [vmem:[#allocation2 + $0x118] sm:$0xff]
        %v4429 = vld [vmem:[#allocation2 + $0x120] sm:$0xff]
        %v4430 = vld [vmem:[#allocation2 + $0x128] sm:$0xff]
        %v4431 = vld [vmem:[#allocation2 + $0x130] sm:$0xff]
        %v4432 = vld [vmem:[#allocation2 + $0x138] sm:$0xff]
        %v4433 = vld [vmem:[#allocation2 + $0x140] sm:$0xff]
        %v4434 = vld [vmem:[#allocation2 + $0x148] sm:$0xff]
        %v4435 = vld [vmem:[#allocation2 + $0x150] sm:$0xff]
        %v4436 = vld [vmem:[#allocation2 + $0x158] sm:$0xff]
        %v4437 = vld [vmem:[#allocation2 + $0x160] sm:$0xff]
        %v4438 = vld [vmem:[#allocation2 + $0x168] sm:$0xff]
        %v4439 = vld [vmem:[#allocation2 + $0x170] sm:$0xff]
        %v4440 = vld [vmem:[#allocation2 + $0x178] sm:$0xff]
        %v4441 = vld [vmem:[#allocation2 + $0x180] sm:$0xff]
        %v4442 = vld [vmem:[#allocation2 + $0x188] sm:$0xff]
        %v4443 = vld [vmem:[#allocation2 + $0x190] sm:$0xff]
        %v4444 = vld [vmem:[#allocation2 + $0x198] sm:$0xff]
        %v4445 = vld [vmem:[#allocation2 + $0x1a0] sm:$0xff]
        %v4446 = vld [vmem:[#allocation2 + $0x1a8] sm:$0xff]
        %v4447 = vld [vmem:[#allocation2 + $0x1b0] sm:$0xff]
        %v4448 = vld [vmem:[#allocation2 + $0x1b8] sm:$0xff]
        %v4449 = vld [vmem:[#allocation2 + $0x1c0] sm:$0xff]
        %v4450 = vld [vmem:[#allocation2 + $0x1c8] sm:$0xff]
        %v4451 = vld [vmem:[#allocation2 + $0x1d0] sm:$0xff]
        %v4452 = vld [vmem:[#allocation2 + $0x1d8] sm:$0xff]
        %v4453 = vld [vmem:[#allocation2 + $0x1e0] sm:$0xff]
        %v4454 = vld [vmem:[#allocation2 + $0x1e8] sm:$0xff]
        %v4455 = vld [vmem:[#allocation2 + $0x1f0] sm:$0xff]
        %v4456 = vld [vmem:[#allocation2 + $0x1f8] sm:$0xff]
        %v4457 = vld [vmem:[#allocation2 + $0x200] sm:$0xff]
        %v4458 = vld [vmem:[#allocation2 + $0x208] sm:$0xff]
        %v4459 = vld [vmem:[#allocation2 + $0x210] sm:$0xff]
        %v4460 = vld [vmem:[#allocation2 + $0x218] sm:$0xff]
        %v4461 = vld [vmem:[#allocation2 + $0x220] sm:$0xff]
        %v4462 = vld [vmem:[#allocation2 + $0x228] sm:$0xff]
        %v4463 = vld [vmem:[#allocation2 + $0x230] sm:$0xff]
        %v4464 = vld [vmem:[#allocation2 + $0x238] sm:$0xff]
        %v4465 = vld [vmem:[#allocation2 + $0x240] sm:$0xff]
        %v4466 = vld [vmem:[#allocation2 + $0x248] sm:$0xff]
        %v4467 = vld [vmem:[#allocation2 + $0x250] sm:$0xff]
        %v4468 = vld [vmem:[#allocation2 + $0x258] sm:$0xff]
        %v4469 = vld [vmem:[#allocation2 + $0x260] sm:$0xff]
        %v4470 = vld [vmem:[#allocation2 + $0x268] sm:$0xff]
        %v4471 = vld [vmem:[#allocation2 + $0x270] sm:$0xff]
        %v4472 = vld [vmem:[#allocation2 + $0x278] sm:$0xff]
        %v4473 = vld [vmem:[#allocation2 + $0x280] sm:$0xff]
        %v4474 = vld [vmem:[#allocation2 + $0x288] sm:$0xff]
        %v4475 = vld [vmem:[#allocation2 + $0x290] sm:$0xff]
        %v4476 = vld [vmem:[#allocation2 + $0x298] sm:$0xff]
        %v4477 = vld [vmem:[#allocation2 + $0x2a0] sm:$0xff]
        %v4478 = vld [vmem:[#allocation2 + $0x2a8] sm:$0xff]
        %v4479 = vld [vmem:[#allocation2 + $0x2b0] sm:$0xff]
        %v4480 = vld [vmem:[#allocation2 + $0x2b8] sm:$0xff]
        %v4481 = vld [vmem:[#allocation2 + $0x2c0] sm:$0xff]
        %v4482 = vld [vmem:[#allocation2 + $0x2c8] sm:$0xff]
        %v4483 = vld [vmem:[#allocation2 + $0x2d0] sm:$0xff]
        %v4484 = vld [vmem:[#allocation2 + $0x2d8] sm:$0xff]
        %v4485 = vld [vmem:[#allocation2 + $0x2e0] sm:$0xff]
        %v4486 = vld [vmem:[#allocation2 + $0x2e8] sm:$0xff]
        %v4487 = vld [vmem:[#allocation2 + $0x2f0] sm:$0xff]
        %v4488 = vld [vmem:[#allocation2 + $0x2f8] sm:$0xff]
        %v4489 = vld [vmem:[#allocation2 + $0x300] sm:$0xff]
        %v4490 = vld [vmem:[#allocation2 + $0x308] sm:$0xff]
        %v4491 = vld [vmem:[#allocation2 + $0x310] sm:$0xff]
        %v4492 = vld [vmem:[#allocation2 + $0x318] sm:$0xff]
        %v4493 = vld [vmem:[#allocation2 + $0x320] sm:$0xff]
        %v4494 = vld [vmem:[#allocation2 + $0x328] sm:$0xff]
        %v4495 = vld [vmem:[#allocation2 + $0x330] sm:$0xff]
        %v4496 = vld [vmem:[#allocation2 + $0x338] sm:$0xff]
        %v4497 = vld [vmem:[#allocation2 + $0x340] sm:$0xff]
        %v4498 = vld [vmem:[#allocation2 + $0x348] sm:$0xff]
        %v4499 = vld [vmem:[#allocation2 + $0x350] sm:$0xff]
        %v4500 = vld [vmem:[#allocation2 + $0x358] sm:$0xff]
        %v4501 = vld [vmem:[#allocation2 + $0x360] sm:$0xff]
        %v4502 = vld [vmem:[#allocation2 + $0x368] sm:$0xff]
        %v4503 = vld [vmem:[#allocation2 + $0x370] sm:$0xff]
        %v4504 = vld [vmem:[#allocation2 + $0x378] sm:$0xff]
        %v4505 = vld [vmem:[#allocation2 + $0x380] sm:$0xff]
        %v4506 = vld [vmem:[#allocation2 + $0x388] sm:$0xff]
        %v4507 = vld [vmem:[#allocation2 + $0x390] sm:$0xff]
        %v4508 = vld [vmem:[#allocation2 + $0x398] sm:$0xff]
        %v4509 = vld [vmem:[#allocation2 + $0x3a0] sm:$0xff]
        %v4510 = vld [vmem:[#allocation2 + $0x3a8] sm:$0xff]
        %v4511 = vld [vmem:[#allocation2 + $0x3b0] sm:$0xff]
        %v4512 = vld [vmem:[#allocation2 + $0x3b8] sm:$0xff]
        %v4513 = vld [vmem:[#allocation2 + $0x3c0] sm:$0xff]
        %v4514 = vld [vmem:[#allocation2 + $0x3c8] sm:$0xff]
        %v4515 = vld [vmem:[#allocation2 + $0x3d0] sm:$0xff]
        %v4516 = vld [vmem:[#allocation2 + $0x3d8] sm:$0xff]
        %v4517 = vld [vmem:[#allocation2 + $0x3e0] sm:$0xff]
        %v4518 = vld [vmem:[#allocation2 + $0x3e8] sm:$0xff]
        %v4519 = vld [vmem:[#allocation2 + $0x3f0] sm:$0xff]
        %v4520 = vld [vmem:[#allocation2 + $0x3f8] sm:$0xff]
        %v4521 = vld [vmem:[#allocation2 + $0x400] sm:$0xff]
        %v4522 = vld [vmem:[#allocation2 + $0x408] sm:$0xff]
        %v4523 = vld [vmem:[#allocation2 + $0x410] sm:$0xff]
        %v4524 = vld [vmem:[#allocation2 + $0x418] sm:$0xff]
        %v4525 = vld [vmem:[#allocation2 + $0x420] sm:$0xff]
        %v4526 = vld [vmem:[#allocation2 + $0x428] sm:$0xff]
        %v4527 = vld [vmem:[#allocation2 + $0x430] sm:$0xff]
        %v4528 = vld [vmem:[#allocation2 + $0x438] sm:$0xff]
        %v4529 = vld [vmem:[#allocation2 + $0x440] sm:$0xff]
        %v4530 = vld [vmem:[#allocation2 + $0x448] sm:$0xff]
        %v4531 = vld [vmem:[#allocation2 + $0x450] sm:$0xff]
        %v4532 = vld [vmem:[#allocation2 + $0x458] sm:$0xff]
        %v4533 = vld [vmem:[#allocation2 + $0x460] sm:$0xff]
        %v4534 = vld [vmem:[#allocation2 + $0x468] sm:$0xff]
        %v4535 = vld [vmem:[#allocation2 + $0x470] sm:$0xff]
        %v4536 = vld [vmem:[#allocation2 + $0x478] sm:$0xff]
        %v4537 = vld [vmem:[#allocation2 + $0x480] sm:$0xff]
        %v4538 = vld [vmem:[#allocation2 + $0x488] sm:$0xff]
        %v4539 = vld [vmem:[#allocation2 + $0x490] sm:$0xff]
        %v4540 = vld [vmem:[#allocation2 + $0x498] sm:$0xff]
        %v4541 = vld [vmem:[#allocation2 + $0x4a0] sm:$0xff]
        %v4542 = vld [vmem:[#allocation2 + $0x4a8] sm:$0xff]
        %v4543 = vld [vmem:[#allocation2 + $0x4b0] sm:$0xff]
        %v4544 = vld [vmem:[#allocation2 + $0x4b8] sm:$0xff]
        %v4545 = vld [vmem:[#allocation2 + $0x4c0] sm:$0xff]
        %v4546 = vld [vmem:[#allocation2 + $0x4c8] sm:$0xff]
        %v4547 = vld [vmem:[#allocation2 + $0x4d0] sm:$0xff]
        %v4548 = vld [vmem:[#allocation2 + $0x4d8] sm:$0xff]
        %v4549 = vld [vmem:[#allocation2 + $0x4e0] sm:$0xff]
        %v4550 = vld [vmem:[#allocation2 + $0x4e8] sm:$0xff]
        %v4551 = vld [vmem:[#allocation2 + $0x4f0] sm:$0xff]
        %v4552 = vld [vmem:[#allocation2 + $0x4f8] sm:$0xff]
        %v4553 = vld [vmem:[#allocation2 + $0x500] sm:$0xff]
        %v4554 = vld [vmem:[#allocation2 + $0x508] sm:$0xff]
        %v4555 = vld [vmem:[#allocation2 + $0x510] sm:$0xff]
        %v4556 = vld [vmem:[#allocation2 + $0x518] sm:$0xff]
        %v4557 = vld [vmem:[#allocation2 + $0x520] sm:$0xff]
        %v4558 = vld [vmem:[#allocation2 + $0x528] sm:$0xff]
        %v4559 = vld [vmem:[#allocation2 + $0x530] sm:$0xff]
        %v4560 = vld [vmem:[#allocation2 + $0x538] sm:$0xff]
        %v4561 = vld [vmem:[#allocation2 + $0x540] sm:$0xff]
        %v4562 = vld [vmem:[#allocation2 + $0x548] sm:$0xff]
        %v4563 = vld [vmem:[#allocation2 + $0x550] sm:$0xff]
        %v4564 = vld [vmem:[#allocation2 + $0x558] sm:$0xff]
        %v4565 = vld [vmem:[#allocation2 + $0x560] sm:$0xff]
        %v4566 = vld [vmem:[#allocation2 + $0x568] sm:$0xff]
        %v4567 = vld [vmem:[#allocation2 + $0x570] sm:$0xff]
        %v4568 = vld [vmem:[#allocation2 + $0x578] sm:$0xff]
        %v4569 = vld [vmem:[#allocation2 + $0x580] sm:$0xff]
        %v4570 = vld [vmem:[#allocation2 + $0x588] sm:$0xff]
        %v4571 = vld [vmem:[#allocation2 + $0x590] sm:$0xff]
        %v4572 = vld [vmem:[#allocation2 + $0x598] sm:$0xff]
        %v4573 = vld [vmem:[#allocation2 + $0x5a0] sm:$0xff]
        %v4574 = vld [vmem:[#allocation2 + $0x5a8] sm:$0xff]
        %v4575 = vld [vmem:[#allocation2 + $0x5b0] sm:$0xff]
        %v4576 = vld [vmem:[#allocation2 + $0x5b8] sm:$0xff]
        %v4577 = vld [vmem:[#allocation2 + $0x5c0] sm:$0xff]
        %v4578 = vld [vmem:[#allocation2 + $0x5c8] sm:$0xff]
        %v4579 = vld [vmem:[#allocation2 + $0x5d0] sm:$0xff]
        %v4580 = vld [vmem:[#allocation2 + $0x5d8] sm:$0xff]
        %v4581 = vld [vmem:[#allocation2 + $0x5e0] sm:$0xff]
        %v4582 = vld [vmem:[#allocation2 + $0x5e8] sm:$0xff]
        %v4583 = vld [vmem:[#allocation2 + $0x5f0] sm:$0xff]
        %v4584 = vld [vmem:[#allocation2 + $0x5f8] sm:$0xff]
        %v4585 = vld [vmem:[#allocation2 + $0x600] sm:$0xff]
        %v4586 = vld [vmem:[#allocation2 + $0x608] sm:$0xff]
        %v4587 = vld [vmem:[#allocation2 + $0x610] sm:$0xff]
        %v4588 = vld [vmem:[#allocation2 + $0x618] sm:$0xff]
        %v4589 = vld [vmem:[#allocation2 + $0x620] sm:$0xff]
        %v4590 = vld [vmem:[#allocation2 + $0x628] sm:$0xff]
        %v4591 = vld [vmem:[#allocation2 + $0x630] sm:$0xff]
        %v4592 = vld [vmem:[#allocation2 + $0x638] sm:$0xff]
        %v4593 = vld [vmem:[#allocation2 + $0x640] sm:$0xff]
        %v4594 = vld [vmem:[#allocation2 + $0x648] sm:$0xff]
        %v4595 = vld [vmem:[#allocation2 + $0x650] sm:$0xff]
        %v4596 = vld [vmem:[#allocation2 + $0x658] sm:$0xff]
        %v4597 = vld [vmem:[#allocation2 + $0x660] sm:$0xff]
        %v4598 = vld [vmem:[#allocation2 + $0x668] sm:$0xff]
        %v4599 = vld [vmem:[#allocation2 + $0x670] sm:$0xff]
        %v4600 = vld [vmem:[#allocation2 + $0x678] sm:$0xff]
        %v4601 = vld [vmem:[#allocation2 + $0x680] sm:$0xff]
        %v4602 = vld [vmem:[#allocation2 + $0x688] sm:$0xff]
        %v4603 = vld [vmem:[#allocation2 + $0x690] sm:$0xff]
        %v4604 = vld [vmem:[#allocation2 + $0x698] sm:$0xff]
        %v4605 = vld [vmem:[#allocation2 + $0x6a0] sm:$0xff]
        %v4606 = vld [vmem:[#allocation2 + $0x6a8] sm:$0xff]
        %v4607 = vld [vmem:[#allocation2 + $0x6b0] sm:$0xff]
        %v4608 = vld [vmem:[#allocation2 + $0x6b8] sm:$0xff]
        %v4609 = vld [vmem:[#allocation2 + $0x6c0] sm:$0xff]
        %v4610 = vld [vmem:[#allocation2 + $0x6c8] sm:$0xff]
        %v4611 = vld [vmem:[#allocation2 + $0x6d0] sm:$0xff]
        %v4612 = vld [vmem:[#allocation2 + $0x6d8] sm:$0xff]
        %v4613 = vld [vmem:[#allocation2 + $0x6e0] sm:$0xff]
        %v4614 = vld [vmem:[#allocation2 + $0x6e8] sm:$0xff]
        %v4615 = vld [vmem:[#allocation2 + $0x6f0] sm:$0xff]
        %v4616 = vld [vmem:[#allocation2 + $0x6f8] sm:$0xff]
        %v4617 = vld [vmem:[#allocation2 + $0x700] sm:$0xff]
        %v4618 = vld [vmem:[#allocation2 + $0x708] sm:$0xff]
        %v4619 = vld [vmem:[#allocation2 + $0x710] sm:$0xff]
        %v4620 = vld [vmem:[#allocation2 + $0x718] sm:$0xff]
        %v4621 = vld [vmem:[#allocation2 + $0x720] sm:$0xff]
        %v4622 = vld [vmem:[#allocation2 + $0x728] sm:$0xff]
        %v4623 = vld [vmem:[#allocation2 + $0x730] sm:$0xff]
        %v4624 = vld [vmem:[#allocation2 + $0x738] sm:$0xff]
        %v4625 = vld [vmem:[#allocation2 + $0x740] sm:$0xff]
        %v4626 = vld [vmem:[#allocation2 + $0x748] sm:$0xff]
        %v4627 = vld [vmem:[#allocation2 + $0x750] sm:$0xff]
        %v4628 = vld [vmem:[#allocation2 + $0x758] sm:$0xff]
        %v4629 = vld [vmem:[#allocation2 + $0x760] sm:$0xff]
        %v4630 = vld [vmem:[#allocation2 + $0x768] sm:$0xff]
        %v4631 = vld [vmem:[#allocation2 + $0x770] sm:$0xff]
        %v4632 = vld [vmem:[#allocation2 + $0x778] sm:$0xff]
        %v4633 = vld [vmem:[#allocation2 + $0x780] sm:$0xff]
        %v4634 = vld [vmem:[#allocation2 + $0x788] sm:$0xff]
        %v4635 = vld [vmem:[#allocation2 + $0x790] sm:$0xff]
        %v4636 = vld [vmem:[#allocation2 + $0x798] sm:$0xff]
        %v4637 = vld [vmem:[#allocation2 + $0x7a0] sm:$0xff]
        %v4638 = vld [vmem:[#allocation2 + $0x7a8] sm:$0xff]
        %v4639 = vld [vmem:[#allocation2 + $0x7b0] sm:$0xff]
        %v4640 = vld [vmem:[#allocation2 + $0x7b8] sm:$0xff]
        %v4641 = vld [vmem:[#allocation2 + $0x7c0] sm:$0xff]
        %v4642 = vld [vmem:[#allocation2 + $0x7c8] sm:$0xff]
        %v4643 = vld [vmem:[#allocation2 + $0x7d0] sm:$0xff]
        %v4644 = vld [vmem:[#allocation2 + $0x7d8] sm:$0xff]
        %v4645 = vld [vmem:[#allocation2 + $0x7e0] sm:$0xff]
        %v4646 = vld [vmem:[#allocation2 + $0x7e8] sm:$0xff]
        %v4647 = vld [vmem:[#allocation2 + $0x7f0] sm:$0xff]
        %v4648 = vld [vmem:[#allocation2 + $0x7f8] sm:$0xff]
        %v4649 = vld [vmem:[%s8] sm:$0xff]
        %v4650 = vld [vmem:[%s8 + $0x8] sm:$0xff]
        %v4651 = vld [vmem:[%s8 + $0x10] sm:$0xff]
        %v4652 = vld [vmem:[%s8 + $0x18] sm:$0xff]
        %v4653 = vld [vmem:[%s8 + $0x20] sm:$0xff]
        %v4654 = vld [vmem:[%s8 + $0x28] sm:$0xff]
        %v4655 = vld [vmem:[%s8 + $0x30] sm:$0xff]
        %v4656 = vld [vmem:[%s8 + $0x38] sm:$0xff]
        %v4657 = vld [vmem:[%s8 + $0x40] sm:$0xff]
        %v4658 = vld [vmem:[%s8 + $0x48] sm:$0xff]
        %v4659 = vld [vmem:[%s8 + $0x50] sm:$0xff]
        %v4660 = vld [vmem:[%s8 + $0x58] sm:$0xff]
        %v4661 = vld [vmem:[%s8 + $0x60] sm:$0xff]
        %v4662 = vld [vmem:[%s8 + $0x68] sm:$0xff]
        %v4663 = vld [vmem:[%s8 + $0x70] sm:$0xff]
        %v4664 = vld [vmem:[%s8 + $0x78] sm:$0xff]
        %v4665 = vld [vmem:[%s8 + $0x80] sm:$0xff]
        %v4666 = vld [vmem:[%s8 + $0x88] sm:$0xff]
        %v4667 = vld [vmem:[%s8 + $0x90] sm:$0xff]
        %v4668 = vld [vmem:[%s8 + $0x98] sm:$0xff]
        %v4669 = vld [vmem:[%s8 + $0xa0] sm:$0xff]
        %v4670 = vld [vmem:[%s8 + $0xa8] sm:$0xff]
        %v4671 = vld [vmem:[%s8 + $0xb0] sm:$0xff]
        %v4672 = vld [vmem:[%s8 + $0xb8] sm:$0xff]
        %v4673 = vld [vmem:[%s8 + $0xc0] sm:$0xff]
        %v4674 = vld [vmem:[%s8 + $0xc8] sm:$0xff]
        %v4675 = vld [vmem:[%s8 + $0xd0] sm:$0xff]
        %v4676 = vld [vmem:[%s8 + $0xd8] sm:$0xff]
        %v4677 = vld [vmem:[%s8 + $0xe0] sm:$0xff]
        %v4678 = vld [vmem:[%s8 + $0xe8] sm:$0xff]
        %v4679 = vld [vmem:[%s8 + $0xf0] sm:$0xff]
        %v4680 = vld [vmem:[%s8 + $0xf8] sm:$0xff]
        %v4681 = vld [vmem:[%s8 + $0x100] sm:$0xff]
        %v4682 = vld [vmem:[%s8 + $0x108] sm:$0xff]
        %v4683 = vld [vmem:[%s8 + $0x110] sm:$0xff]
        %v4684 = vld [vmem:[%s8 + $0x118] sm:$0xff]
        %v4685 = vld [vmem:[%s8 + $0x120] sm:$0xff]
        %v4686 = vld [vmem:[%s8 + $0x128] sm:$0xff]
        %v4687 = vld [vmem:[%s8 + $0x130] sm:$0xff]
        %v4688 = vld [vmem:[%s8 + $0x138] sm:$0xff]
        %v4689 = vld [vmem:[%s8 + $0x140] sm:$0xff]
        %v4690 = vld [vmem:[%s8 + $0x148] sm:$0xff]
        %v4691 = vld [vmem:[%s8 + $0x150] sm:$0xff]
        %v4692 = vld [vmem:[%s8 + $0x158] sm:$0xff]
        %v4693 = vld [vmem:[%s8 + $0x160] sm:$0xff]
        %v4694 = vld [vmem:[%s8 + $0x168] sm:$0xff]
        %v4695 = vld [vmem:[%s8 + $0x170] sm:$0xff]
        %v4696 = vld [vmem:[%s8 + $0x178] sm:$0xff]
        %v4697 = vld [vmem:[%s8 + $0x180] sm:$0xff]
        %v4698 = vld [vmem:[%s8 + $0x188] sm:$0xff]
        %v4699 = vld [vmem:[%s8 + $0x190] sm:$0xff]
        %v4700 = vld [vmem:[%s8 + $0x198] sm:$0xff]
        %v4701 = vld [vmem:[%s8 + $0x1a0] sm:$0xff]
        %v4702 = vld [vmem:[%s8 + $0x1a8] sm:$0xff]
        %v4703 = vld [vmem:[%s8 + $0x1b0] sm:$0xff]
        %v4704 = vld [vmem:[%s8 + $0x1b8] sm:$0xff]
        %v4705 = vld [vmem:[%s8 + $0x1c0] sm:$0xff]
        %v4706 = vld [vmem:[%s8 + $0x1c8] sm:$0xff]
        %v4707 = vld [vmem:[%s8 + $0x1d0] sm:$0xff]
        %v4708 = vld [vmem:[%s8 + $0x1d8] sm:$0xff]
        %v4709 = vld [vmem:[%s8 + $0x1e0] sm:$0xff]
        %v4710 = vld [vmem:[%s8 + $0x1e8] sm:$0xff]
        %v4711 = vld [vmem:[%s8 + $0x1f0] sm:$0xff]
        %v4712 = vld [vmem:[%s8 + $0x1f8] sm:$0xff]
        %v4713 = vld [vmem:[%s8 + $0x200] sm:$0xff]
        %v4714 = vld [vmem:[%s8 + $0x208] sm:$0xff]
        %v4715 = vld [vmem:[%s8 + $0x210] sm:$0xff]
        %v4716 = vld [vmem:[%s8 + $0x218] sm:$0xff]
        %v4717 = vld [vmem:[%s8 + $0x220] sm:$0xff]
        %v4718 = vld [vmem:[%s8 + $0x228] sm:$0xff]
        %v4719 = vld [vmem:[%s8 + $0x230] sm:$0xff]
        %v4720 = vld [vmem:[%s8 + $0x238] sm:$0xff]
        %v4721 = vld [vmem:[%s8 + $0x240] sm:$0xff]
        %v4722 = vld [vmem:[%s8 + $0x248] sm:$0xff]
        %v4723 = vld [vmem:[%s8 + $0x250] sm:$0xff]
        %v4724 = vld [vmem:[%s8 + $0x258] sm:$0xff]
        %v4725 = vld [vmem:[%s8 + $0x260] sm:$0xff]
        %v4726 = vld [vmem:[%s8 + $0x268] sm:$0xff]
        %v4727 = vld [vmem:[%s8 + $0x270] sm:$0xff]
        %v4728 = vld [vmem:[%s8 + $0x278] sm:$0xff]
        %v4729 = vld [vmem:[%s8 + $0x280] sm:$0xff]
        %v4730 = vld [vmem:[%s8 + $0x288] sm:$0xff]
        %v4731 = vld [vmem:[%s8 + $0x290] sm:$0xff]
        %v4732 = vld [vmem:[%s8 + $0x298] sm:$0xff]
        %v4733 = vld [vmem:[%s8 + $0x2a0] sm:$0xff]
        %v4734 = vld [vmem:[%s8 + $0x2a8] sm:$0xff]
        %v4735 = vld [vmem:[%s8 + $0x2b0] sm:$0xff]
        %v4736 = vld [vmem:[%s8 + $0x2b8] sm:$0xff]
        %v4737 = vld [vmem:[%s8 + $0x2c0] sm:$0xff]
        %v4738 = vld [vmem:[%s8 + $0x2c8] sm:$0xff]
        %v4739 = vld [vmem:[%s8 + $0x2d0] sm:$0xff]
        %v4740 = vld [vmem:[%s8 + $0x2d8] sm:$0xff]
        %v4741 = vld [vmem:[%s8 + $0x2e0] sm:$0xff]
        %v4742 = vld [vmem:[%s8 + $0x2e8] sm:$0xff]
        %v4743 = vld [vmem:[%s8 + $0x2f0] sm:$0xff]
        %v4744 = vld [vmem:[%s8 + $0x2f8] sm:$0xff]
        %v4745 = vld [vmem:[%s8 + $0x300] sm:$0xff]
        %v4746 = vld [vmem:[%s8 + $0x308] sm:$0xff]
        %v4747 = vld [vmem:[%s8 + $0x310] sm:$0xff]
        %v4748 = vld [vmem:[%s8 + $0x318] sm:$0xff]
        %v4749 = vld [vmem:[%s8 + $0x320] sm:$0xff]
        %v4750 = vld [vmem:[%s8 + $0x328] sm:$0xff]
        %v4751 = vld [vmem:[%s8 + $0x330] sm:$0xff]
        %v4752 = vld [vmem:[%s8 + $0x338] sm:$0xff]
        %v4753 = vld [vmem:[%s8 + $0x340] sm:$0xff]
        %v4754 = vld [vmem:[%s8 + $0x348] sm:$0xff]
        %v4755 = vld [vmem:[%s8 + $0x350] sm:$0xff]
        %v4756 = vld [vmem:[%s8 + $0x358] sm:$0xff]
        %v4757 = vld [vmem:[%s8 + $0x360] sm:$0xff]
        %v4758 = vld [vmem:[%s8 + $0x368] sm:$0xff]
        %v4759 = vld [vmem:[%s8 + $0x370] sm:$0xff]
        %v4760 = vld [vmem:[%s8 + $0x378] sm:$0xff]
        %v4761 = vld [vmem:[%s8 + $0x380] sm:$0xff]
        %v4762 = vld [vmem:[%s8 + $0x388] sm:$0xff]
        %v4763 = vld [vmem:[%s8 + $0x390] sm:$0xff]
        %v4764 = vld [vmem:[%s8 + $0x398] sm:$0xff]
        %v4765 = vld [vmem:[%s8 + $0x3a0] sm:$0xff]
        %v4766 = vld [vmem:[%s8 + $0x3a8] sm:$0xff]
        %v4767 = vld [vmem:[%s8 + $0x3b0] sm:$0xff]
        %v4768 = vld [vmem:[%s8 + $0x3b8] sm:$0xff]
        %v4769 = vld [vmem:[%s8 + $0x3c0] sm:$0xff]
        %v4770 = vld [vmem:[%s8 + $0x3c8] sm:$0xff]
        %v4771 = vld [vmem:[%s8 + $0x3d0] sm:$0xff]
        %v4772 = vld [vmem:[%s8 + $0x3d8] sm:$0xff]
        %v4773 = vld [vmem:[%s8 + $0x3e0] sm:$0xff]
        %v4774 = vld [vmem:[%s8 + $0x3e8] sm:$0xff]
        %v4775 = vld [vmem:[%s8 + $0x3f0] sm:$0xff]
        %v4776 = vld [vmem:[%s8 + $0x3f8] sm:$0xff]
        %4778 = vset.pattern.permute.xlu0 0
        %4779 = vperm.xlu0 %4778, %v4649
        %v4780 = vpop.permute.xlu0 %4779
        %4783 = vset.pattern.permute.xlu0 0
        %4784 = vperm.xlu0 %4783, %v4650
        %v4785 = vpop.permute.xlu0 %4784
        %4788 = vset.pattern.permute.xlu0 0
        %4789 = vperm.xlu0 %4788, %v4651
        %v4790 = vpop.permute.xlu0 %4789
        %4793 = vset.pattern.permute.xlu0 0
        %4794 = vperm.xlu0 %4793, %v4652
        %v4795 = vpop.permute.xlu0 %4794
        %4798 = vset.pattern.permute.xlu0 0
        %4799 = vperm.xlu0 %4798, %v4653
        %v4800 = vpop.permute.xlu0 %4799
        %4803 = vset.pattern.permute.xlu0 0
        %4804 = vperm.xlu0 %4803, %v4654
        %v4805 = vpop.permute.xlu0 %4804
        %4808 = vset.pattern.permute.xlu0 0
        %4809 = vperm.xlu0 %4808, %v4655
        %v4810 = vpop.permute.xlu0 %4809
        %4813 = vset.pattern.permute.xlu0 0
        %4814 = vperm.xlu0 %4813, %v4656
        %v4815 = vpop.permute.xlu0 %4814
        %4818 = vset.pattern.permute.xlu0 0
        %4819 = vperm.xlu0 %4818, %v4657
        %v4820 = vpop.permute.xlu0 %4819
        %4823 = vset.pattern.permute.xlu0 0
        %4824 = vperm.xlu0 %4823, %v4658
        %v4825 = vpop.permute.xlu0 %4824
        %4828 = vset.pattern.permute.xlu0 0
        %4829 = vperm.xlu0 %4828, %v4659
        %v4830 = vpop.permute.xlu0 %4829
        %4833 = vset.pattern.permute.xlu0 0
        %4834 = vperm.xlu0 %4833, %v4660
        %v4835 = vpop.permute.xlu0 %4834
        %4838 = vset.pattern.permute.xlu0 0
        %4839 = vperm.xlu0 %4838, %v4661
        %v4840 = vpop.permute.xlu0 %4839
        %4843 = vset.pattern.permute.xlu0 0
        %4844 = vperm.xlu0 %4843, %v4662
        %v4845 = vpop.permute.xlu0 %4844
        %4848 = vset.pattern.permute.xlu0 0
        %4849 = vperm.xlu0 %4848, %v4663
        %v4850 = vpop.permute.xlu0 %4849
        %4853 = vset.pattern.permute.xlu0 0
        %4854 = vperm.xlu0 %4853, %v4664
        %v4855 = vpop.permute.xlu0 %4854
        %4858 = vset.pattern.permute.xlu0 0
        %4859 = vperm.xlu0 %4858, %v4665
        %v4860 = vpop.permute.xlu0 %4859
        %4863 = vset.pattern.permute.xlu0 0
        %4864 = vperm.xlu0 %4863, %v4666
        %v4865 = vpop.permute.xlu0 %4864
        %4868 = vset.pattern.permute.xlu0 0
        %4869 = vperm.xlu0 %4868, %v4667
        %v4870 = vpop.permute.xlu0 %4869
        %4873 = vset.pattern.permute.xlu0 0
        %4874 = vperm.xlu0 %4873, %v4668
        %v4875 = vpop.permute.xlu0 %4874
        %4878 = vset.pattern.permute.xlu0 0
        %4879 = vperm.xlu0 %4878, %v4669
        %v4880 = vpop.permute.xlu0 %4879
        %4883 = vset.pattern.permute.xlu0 0
        %4884 = vperm.xlu0 %4883, %v4670
        %v4885 = vpop.permute.xlu0 %4884
        %4888 = vset.pattern.permute.xlu0 0
        %4889 = vperm.xlu0 %4888, %v4671
        %v4890 = vpop.permute.xlu0 %4889
        %4893 = vset.pattern.permute.xlu0 0
        %4894 = vperm.xlu0 %4893, %v4672
        %v4895 = vpop.permute.xlu0 %4894
        %4898 = vset.pattern.permute.xlu0 0
        %4899 = vperm.xlu0 %4898, %v4673
        %v4900 = vpop.permute.xlu0 %4899
        %4903 = vset.pattern.permute.xlu0 0
        %4904 = vperm.xlu0 %4903, %v4674
        %v4905 = vpop.permute.xlu0 %4904
        %4908 = vset.pattern.permute.xlu0 0
        %4909 = vperm.xlu0 %4908, %v4675
        %v4910 = vpop.permute.xlu0 %4909
        %4913 = vset.pattern.permute.xlu0 0
        %4914 = vperm.xlu0 %4913, %v4676
        %v4915 = vpop.permute.xlu0 %4914
        %4918 = vset.pattern.permute.xlu0 0
        %4919 = vperm.xlu0 %4918, %v4677
        %v4920 = vpop.permute.xlu0 %4919
        %4923 = vset.pattern.permute.xlu0 0
        %4924 = vperm.xlu0 %4923, %v4678
        %v4925 = vpop.permute.xlu0 %4924
        %4928 = vset.pattern.permute.xlu0 0
        %4929 = vperm.xlu0 %4928, %v4679
        %v4930 = vpop.permute.xlu0 %4929
        %4933 = vset.pattern.permute.xlu0 0
        %4934 = vperm.xlu0 %4933, %v4680
        %v4935 = vpop.permute.xlu0 %4934
        %4938 = vset.pattern.permute.xlu0 0
        %4939 = vperm.xlu0 %4938, %v4681
        %v4940 = vpop.permute.xlu0 %4939
        %4943 = vset.pattern.permute.xlu0 0
        %4944 = vperm.xlu0 %4943, %v4682
        %v4945 = vpop.permute.xlu0 %4944
        %4948 = vset.pattern.permute.xlu0 0
        %4949 = vperm.xlu0 %4948, %v4683
        %v4950 = vpop.permute.xlu0 %4949
        %4953 = vset.pattern.permute.xlu0 0
        %4954 = vperm.xlu0 %4953, %v4684
        %v4955 = vpop.permute.xlu0 %4954
        %4958 = vset.pattern.permute.xlu0 0
        %4959 = vperm.xlu0 %4958, %v4685
        %v4960 = vpop.permute.xlu0 %4959
        %4963 = vset.pattern.permute.xlu0 0
        %4964 = vperm.xlu0 %4963, %v4686
        %v4965 = vpop.permute.xlu0 %4964
        %4968 = vset.pattern.permute.xlu0 0
        %4969 = vperm.xlu0 %4968, %v4687
        %v4970 = vpop.permute.xlu0 %4969
        %4973 = vset.pattern.permute.xlu0 0
        %4974 = vperm.xlu0 %4973, %v4688
        %v4975 = vpop.permute.xlu0 %4974
        %4978 = vset.pattern.permute.xlu0 0
        %4979 = vperm.xlu0 %4978, %v4689
        %v4980 = vpop.permute.xlu0 %4979
        %4983 = vset.pattern.permute.xlu0 0
        %4984 = vperm.xlu0 %4983, %v4690
        %v4985 = vpop.permute.xlu0 %4984
        %4988 = vset.pattern.permute.xlu0 0
        %4989 = vperm.xlu0 %4988, %v4691
        %v4990 = vpop.permute.xlu0 %4989
        %4993 = vset.pattern.permute.xlu0 0
        %4994 = vperm.xlu0 %4993, %v4692
        %v4995 = vpop.permute.xlu0 %4994
        %4998 = vset.pattern.permute.xlu0 0
        %4999 = vperm.xlu0 %4998, %v4693
        %v5000 = vpop.permute.xlu0 %4999
        %5003 = vset.pattern.permute.xlu0 0
        %5004 = vperm.xlu0 %5003, %v4694
        %v5005 = vpop.permute.xlu0 %5004
        %5008 = vset.pattern.permute.xlu0 0
        %5009 = vperm.xlu0 %5008, %v4695
        %v5010 = vpop.permute.xlu0 %5009
        %5013 = vset.pattern.permute.xlu0 0
        %5014 = vperm.xlu0 %5013, %v4696
        %v5015 = vpop.permute.xlu0 %5014
        %5018 = vset.pattern.permute.xlu0 0
        %5019 = vperm.xlu0 %5018, %v4697
        %v5020 = vpop.permute.xlu0 %5019
        %5023 = vset.pattern.permute.xlu0 0
        %5024 = vperm.xlu0 %5023, %v4698
        %v5025 = vpop.permute.xlu0 %5024
        %5028 = vset.pattern.permute.xlu0 0
        %5029 = vperm.xlu0 %5028, %v4699
        %v5030 = vpop.permute.xlu0 %5029
        %5033 = vset.pattern.permute.xlu0 0
        %5034 = vperm.xlu0 %5033, %v4700
        %v5035 = vpop.permute.xlu0 %5034
        %5038 = vset.pattern.permute.xlu0 0
        %5039 = vperm.xlu0 %5038, %v4701
        %v5040 = vpop.permute.xlu0 %5039
        %5043 = vset.pattern.permute.xlu0 0
        %5044 = vperm.xlu0 %5043, %v4702
        %v5045 = vpop.permute.xlu0 %5044
        %5048 = vset.pattern.permute.xlu0 0
        %5049 = vperm.xlu0 %5048, %v4703
        %v5050 = vpop.permute.xlu0 %5049
        %5053 = vset.pattern.permute.xlu0 0
        %5054 = vperm.xlu0 %5053, %v4704
        %v5055 = vpop.permute.xlu0 %5054
        %5058 = vset.pattern.permute.xlu0 0
        %5059 = vperm.xlu0 %5058, %v4705
        %v5060 = vpop.permute.xlu0 %5059
        %5063 = vset.pattern.permute.xlu0 0
        %5064 = vperm.xlu0 %5063, %v4706
        %v5065 = vpop.permute.xlu0 %5064
        %5068 = vset.pattern.permute.xlu0 0
        %5069 = vperm.xlu0 %5068, %v4707
        %v5070 = vpop.permute.xlu0 %5069
        %5073 = vset.pattern.permute.xlu0 0
        %5074 = vperm.xlu0 %5073, %v4708
        %v5075 = vpop.permute.xlu0 %5074
        %5078 = vset.pattern.permute.xlu0 0
        %5079 = vperm.xlu0 %5078, %v4709
        %v5080 = vpop.permute.xlu0 %5079
        %5083 = vset.pattern.permute.xlu0 0
        %5084 = vperm.xlu0 %5083, %v4710
        %v5085 = vpop.permute.xlu0 %5084
        %5088 = vset.pattern.permute.xlu0 0
        %5089 = vperm.xlu0 %5088, %v4711
        %v5090 = vpop.permute.xlu0 %5089
        %5093 = vset.pattern.permute.xlu0 0
        %5094 = vperm.xlu0 %5093, %v4712
        %v5095 = vpop.permute.xlu0 %5094
        %5098 = vset.pattern.permute.xlu0 0
        %5099 = vperm.xlu0 %5098, %v4713
        %v5100 = vpop.permute.xlu0 %5099
        %5103 = vset.pattern.permute.xlu0 0
        %5104 = vperm.xlu0 %5103, %v4714
        %v5105 = vpop.permute.xlu0 %5104
        %5108 = vset.pattern.permute.xlu0 0
        %5109 = vperm.xlu0 %5108, %v4715
        %v5110 = vpop.permute.xlu0 %5109
        %5113 = vset.pattern.permute.xlu0 0
        %5114 = vperm.xlu0 %5113, %v4716
        %v5115 = vpop.permute.xlu0 %5114
        %5118 = vset.pattern.permute.xlu0 0
        %5119 = vperm.xlu0 %5118, %v4717
        %v5120 = vpop.permute.xlu0 %5119
        %5123 = vset.pattern.permute.xlu0 0
        %5124 = vperm.xlu0 %5123, %v4718
        %v5125 = vpop.permute.xlu0 %5124
        %5128 = vset.pattern.permute.xlu0 0
        %5129 = vperm.xlu0 %5128, %v4719
        %v5130 = vpop.permute.xlu0 %5129
        %5133 = vset.pattern.permute.xlu0 0
        %5134 = vperm.xlu0 %5133, %v4720
        %v5135 = vpop.permute.xlu0 %5134
        %5138 = vset.pattern.permute.xlu0 0
        %5139 = vperm.xlu0 %5138, %v4721
        %v5140 = vpop.permute.xlu0 %5139
        %5143 = vset.pattern.permute.xlu0 0
        %5144 = vperm.xlu0 %5143, %v4722
        %v5145 = vpop.permute.xlu0 %5144
        %5148 = vset.pattern.permute.xlu0 0
        %5149 = vperm.xlu0 %5148, %v4723
        %v5150 = vpop.permute.xlu0 %5149
        %5153 = vset.pattern.permute.xlu0 0
        %5154 = vperm.xlu0 %5153, %v4724
        %v5155 = vpop.permute.xlu0 %5154
        %5158 = vset.pattern.permute.xlu0 0
        %5159 = vperm.xlu0 %5158, %v4725
        %v5160 = vpop.permute.xlu0 %5159
        %5163 = vset.pattern.permute.xlu0 0
        %5164 = vperm.xlu0 %5163, %v4726
        %v5165 = vpop.permute.xlu0 %5164
        %5168 = vset.pattern.permute.xlu0 0
        %5169 = vperm.xlu0 %5168, %v4727
        %v5170 = vpop.permute.xlu0 %5169
        %5173 = vset.pattern.permute.xlu0 0
        %5174 = vperm.xlu0 %5173, %v4728
        %v5175 = vpop.permute.xlu0 %5174
        %5178 = vset.pattern.permute.xlu0 0
        %5179 = vperm.xlu0 %5178, %v4729
        %v5180 = vpop.permute.xlu0 %5179
        %5183 = vset.pattern.permute.xlu0 0
        %5184 = vperm.xlu0 %5183, %v4730
        %v5185 = vpop.permute.xlu0 %5184
        %5188 = vset.pattern.permute.xlu0 0
        %5189 = vperm.xlu0 %5188, %v4731
        %v5190 = vpop.permute.xlu0 %5189
        %5193 = vset.pattern.permute.xlu0 0
        %5194 = vperm.xlu0 %5193, %v4732
        %v5195 = vpop.permute.xlu0 %5194
        %5198 = vset.pattern.permute.xlu0 0
        %5199 = vperm.xlu0 %5198, %v4733
        %v5200 = vpop.permute.xlu0 %5199
        %5203 = vset.pattern.permute.xlu0 0
        %5204 = vperm.xlu0 %5203, %v4734
        %v5205 = vpop.permute.xlu0 %5204
        %5208 = vset.pattern.permute.xlu0 0
        %5209 = vperm.xlu0 %5208, %v4735
        %v5210 = vpop.permute.xlu0 %5209
        %5213 = vset.pattern.permute.xlu0 0
        %5214 = vperm.xlu0 %5213, %v4736
        %v5215 = vpop.permute.xlu0 %5214
        %5218 = vset.pattern.permute.xlu0 0
        %5219 = vperm.xlu0 %5218, %v4737
        %v5220 = vpop.permute.xlu0 %5219
        %5223 = vset.pattern.permute.xlu0 0
        %5224 = vperm.xlu0 %5223, %v4738
        %v5225 = vpop.permute.xlu0 %5224
        %5228 = vset.pattern.permute.xlu0 0
        %5229 = vperm.xlu0 %5228, %v4739
        %v5230 = vpop.permute.xlu0 %5229
        %5233 = vset.pattern.permute.xlu0 0
        %5234 = vperm.xlu0 %5233, %v4740
        %v5235 = vpop.permute.xlu0 %5234
        %5238 = vset.pattern.permute.xlu0 0
        %5239 = vperm.xlu0 %5238, %v4741
        %v5240 = vpop.permute.xlu0 %5239
        %5243 = vset.pattern.permute.xlu0 0
        %5244 = vperm.xlu0 %5243, %v4742
        %v5245 = vpop.permute.xlu0 %5244
        %5248 = vset.pattern.permute.xlu0 0
        %5249 = vperm.xlu0 %5248, %v4743
        %v5250 = vpop.permute.xlu0 %5249
        %5253 = vset.pattern.permute.xlu0 0
        %5254 = vperm.xlu0 %5253, %v4744
        %v5255 = vpop.permute.xlu0 %5254
        %5258 = vset.pattern.permute.xlu0 0
        %5259 = vperm.xlu0 %5258, %v4745
        %v5260 = vpop.permute.xlu0 %5259
        %5263 = vset.pattern.permute.xlu0 0
        %5264 = vperm.xlu0 %5263, %v4746
        %v5265 = vpop.permute.xlu0 %5264
        %5268 = vset.pattern.permute.xlu0 0
        %5269 = vperm.xlu0 %5268, %v4747
        %v5270 = vpop.permute.xlu0 %5269
        %5273 = vset.pattern.permute.xlu0 0
        %5274 = vperm.xlu0 %5273, %v4748
        %v5275 = vpop.permute.xlu0 %5274
        %5278 = vset.pattern.permute.xlu0 0
        %5279 = vperm.xlu0 %5278, %v4749
        %v5280 = vpop.permute.xlu0 %5279
        %5283 = vset.pattern.permute.xlu0 0
        %5284 = vperm.xlu0 %5283, %v4750
        %v5285 = vpop.permute.xlu0 %5284
        %5288 = vset.pattern.permute.xlu0 0
        %5289 = vperm.xlu0 %5288, %v4751
        %v5290 = vpop.permute.xlu0 %5289
        %5293 = vset.pattern.permute.xlu0 0
        %5294 = vperm.xlu0 %5293, %v4752
        %v5295 = vpop.permute.xlu0 %5294
        %5298 = vset.pattern.permute.xlu0 0
        %5299 = vperm.xlu0 %5298, %v4753
        %v5300 = vpop.permute.xlu0 %5299
        %5303 = vset.pattern.permute.xlu0 0
        %5304 = vperm.xlu0 %5303, %v4754
        %v5305 = vpop.permute.xlu0 %5304
        %5308 = vset.pattern.permute.xlu0 0
        %5309 = vperm.xlu0 %5308, %v4755
        %v5310 = vpop.permute.xlu0 %5309
        %5313 = vset.pattern.permute.xlu0 0
        %5314 = vperm.xlu0 %5313, %v4756
        %v5315 = vpop.permute.xlu0 %5314
        %5318 = vset.pattern.permute.xlu0 0
        %5319 = vperm.xlu0 %5318, %v4757
        %v5320 = vpop.permute.xlu0 %5319
        %5323 = vset.pattern.permute.xlu0 0
        %5324 = vperm.xlu0 %5323, %v4758
        %v5325 = vpop.permute.xlu0 %5324
        %5328 = vset.pattern.permute.xlu0 0
        %5329 = vperm.xlu0 %5328, %v4759
        %v5330 = vpop.permute.xlu0 %5329
        %5333 = vset.pattern.permute.xlu0 0
        %5334 = vperm.xlu0 %5333, %v4760
        %v5335 = vpop.permute.xlu0 %5334
        %5338 = vset.pattern.permute.xlu0 0
        %5339 = vperm.xlu0 %5338, %v4761
        %v5340 = vpop.permute.xlu0 %5339
        %5343 = vset.pattern.permute.xlu0 0
        %5344 = vperm.xlu0 %5343, %v4762
        %v5345 = vpop.permute.xlu0 %5344
        %5348 = vset.pattern.permute.xlu0 0
        %5349 = vperm.xlu0 %5348, %v4763
        %v5350 = vpop.permute.xlu0 %5349
        %5353 = vset.pattern.permute.xlu0 0
        %5354 = vperm.xlu0 %5353, %v4764
        %v5355 = vpop.permute.xlu0 %5354
        %5358 = vset.pattern.permute.xlu0 0
        %5359 = vperm.xlu0 %5358, %v4765
        %v5360 = vpop.permute.xlu0 %5359
        %5363 = vset.pattern.permute.xlu0 0
        %5364 = vperm.xlu0 %5363, %v4766
        %v5365 = vpop.permute.xlu0 %5364
        %5368 = vset.pattern.permute.xlu0 0
        %5369 = vperm.xlu0 %5368, %v4767
        %v5370 = vpop.permute.xlu0 %5369
        %5373 = vset.pattern.permute.xlu0 0
        %5374 = vperm.xlu0 %5373, %v4768
        %v5375 = vpop.permute.xlu0 %5374
        %5378 = vset.pattern.permute.xlu0 0
        %5379 = vperm.xlu0 %5378, %v4769
        %v5380 = vpop.permute.xlu0 %5379
        %5383 = vset.pattern.permute.xlu0 0
        %5384 = vperm.xlu0 %5383, %v4770
        %v5385 = vpop.permute.xlu0 %5384
        %5388 = vset.pattern.permute.xlu0 0
        %5389 = vperm.xlu0 %5388, %v4771
        %v5390 = vpop.permute.xlu0 %5389
        %5393 = vset.pattern.permute.xlu0 0
        %5394 = vperm.xlu0 %5393, %v4772
        %v5395 = vpop.permute.xlu0 %5394
        %5398 = vset.pattern.permute.xlu0 0
        %5399 = vperm.xlu0 %5398, %v4773
        %v5400 = vpop.permute.xlu0 %5399
        %5403 = vset.pattern.permute.xlu0 0
        %5404 = vperm.xlu0 %5403, %v4774
        %v5405 = vpop.permute.xlu0 %5404
        %5408 = vset.pattern.permute.xlu0 0
        %5409 = vperm.xlu0 %5408, %v4775
        %v5410 = vpop.permute.xlu0 %5409
        %5413 = vset.pattern.permute.xlu0 0
        %5414 = vperm.xlu0 %5413, %v4776
        %v5415 = vpop.permute.xlu0 %5414
        %v5673 = vunpack.c.l.b16 %v4393
        %v5674 = vunpack.c.h.b16 %v4393
        %v5675 = vunpack.c.l.b16 %v4394
        %v5676 = vunpack.c.h.b16 %v4394
        %v5677 = vunpack.c.l.b16 %v4395
        %v5678 = vunpack.c.h.b16 %v4395
        %v5679 = vunpack.c.l.b16 %v4396
        %v5680 = vunpack.c.h.b16 %v4396
        %v5681 = vunpack.c.l.b16 %v4397
        %v5682 = vunpack.c.h.b16 %v4397
        %v5683 = vunpack.c.l.b16 %v4398
        %v5684 = vunpack.c.h.b16 %v4398
        %v5685 = vunpack.c.l.b16 %v4399
        %v5686 = vunpack.c.h.b16 %v4399
        %v5687 = vunpack.c.l.b16 %v4400
        %v5688 = vunpack.c.h.b16 %v4400
        %v5689 = vunpack.c.l.b16 %v4401
        %v5690 = vunpack.c.h.b16 %v4401
        %v5691 = vunpack.c.l.b16 %v4402
        %v5692 = vunpack.c.h.b16 %v4402
        %v5693 = vunpack.c.l.b16 %v4403
        %v5694 = vunpack.c.h.b16 %v4403
        %v5695 = vunpack.c.l.b16 %v4404
        %v5696 = vunpack.c.h.b16 %v4404
        %v5697 = vunpack.c.l.b16 %v4405
        %v5698 = vunpack.c.h.b16 %v4405
        %v5699 = vunpack.c.l.b16 %v4406
        %v5700 = vunpack.c.h.b16 %v4406
        %v5701 = vunpack.c.l.b16 %v4407
        %v5702 = vunpack.c.h.b16 %v4407
        %v5703 = vunpack.c.l.b16 %v4408
        %v5704 = vunpack.c.h.b16 %v4408
        %v5705 = vunpack.c.l.b16 %v4409
        %v5706 = vunpack.c.h.b16 %v4409
        %v5707 = vunpack.c.l.b16 %v4410
        %v5708 = vunpack.c.h.b16 %v4410
        %v5709 = vunpack.c.l.b16 %v4411
        %v5710 = vunpack.c.h.b16 %v4411
        %v5711 = vunpack.c.l.b16 %v4412
        %v5712 = vunpack.c.h.b16 %v4412
        %v5713 = vunpack.c.l.b16 %v4413
        %v5714 = vunpack.c.h.b16 %v4413
        %v5715 = vunpack.c.l.b16 %v4414
        %v5716 = vunpack.c.h.b16 %v4414
        %v5717 = vunpack.c.l.b16 %v4415
        %v5718 = vunpack.c.h.b16 %v4415
        %v5719 = vunpack.c.l.b16 %v4416
        %v5720 = vunpack.c.h.b16 %v4416
        %v5721 = vunpack.c.l.b16 %v4417
        %v5722 = vunpack.c.h.b16 %v4417
        %v5723 = vunpack.c.l.b16 %v4418
        %v5724 = vunpack.c.h.b16 %v4418
        %v5725 = vunpack.c.l.b16 %v4419
        %v5726 = vunpack.c.h.b16 %v4419
        %v5727 = vunpack.c.l.b16 %v4420
        %v5728 = vunpack.c.h.b16 %v4420
        %v5729 = vunpack.c.l.b16 %v4421
        %v5730 = vunpack.c.h.b16 %v4421
        %v5731 = vunpack.c.l.b16 %v4422
        %v5732 = vunpack.c.h.b16 %v4422
        %v5733 = vunpack.c.l.b16 %v4423
        %v5734 = vunpack.c.h.b16 %v4423
        %v5735 = vunpack.c.l.b16 %v4424
        %v5736 = vunpack.c.h.b16 %v4424
        %v5737 = vunpack.c.l.b16 %v4425
        %v5738 = vunpack.c.h.b16 %v4425
        %v5739 = vunpack.c.l.b16 %v4426
        %v5740 = vunpack.c.h.b16 %v4426
        %v5741 = vunpack.c.l.b16 %v4427
        %v5742 = vunpack.c.h.b16 %v4427
        %v5743 = vunpack.c.l.b16 %v4428
        %v5744 = vunpack.c.h.b16 %v4428
        %v5745 = vunpack.c.l.b16 %v4429
        %v5746 = vunpack.c.h.b16 %v4429
        %v5747 = vunpack.c.l.b16 %v4430
        %v5748 = vunpack.c.h.b16 %v4430
        %v5749 = vunpack.c.l.b16 %v4431
        %v5750 = vunpack.c.h.b16 %v4431
        %v5751 = vunpack.c.l.b16 %v4432
        %v5752 = vunpack.c.h.b16 %v4432
        %v5753 = vunpack.c.l.b16 %v4433
        %v5754 = vunpack.c.h.b16 %v4433
        %v5755 = vunpack.c.l.b16 %v4434
        %v5756 = vunpack.c.h.b16 %v4434
        %v5757 = vunpack.c.l.b16 %v4435
        %v5758 = vunpack.c.h.b16 %v4435
        %v5759 = vunpack.c.l.b16 %v4436
        %v5760 = vunpack.c.h.b16 %v4436
        %v5761 = vunpack.c.l.b16 %v4437
        %v5762 = vunpack.c.h.b16 %v4437
        %v5763 = vunpack.c.l.b16 %v4438
        %v5764 = vunpack.c.h.b16 %v4438
        %v5765 = vunpack.c.l.b16 %v4439
        %v5766 = vunpack.c.h.b16 %v4439
        %v5767 = vunpack.c.l.b16 %v4440
        %v5768 = vunpack.c.h.b16 %v4440
        %v5769 = vunpack.c.l.b16 %v4441
        %v5770 = vunpack.c.h.b16 %v4441
        %v5771 = vunpack.c.l.b16 %v4442
        %v5772 = vunpack.c.h.b16 %v4442
        %v5773 = vunpack.c.l.b16 %v4443
        %v5774 = vunpack.c.h.b16 %v4443
        %v5775 = vunpack.c.l.b16 %v4444
        %v5776 = vunpack.c.h.b16 %v4444
        %v5777 = vunpack.c.l.b16 %v4445
        %v5778 = vunpack.c.h.b16 %v4445
        %v5779 = vunpack.c.l.b16 %v4446
        %v5780 = vunpack.c.h.b16 %v4446
        %v5781 = vunpack.c.l.b16 %v4447
        %v5782 = vunpack.c.h.b16 %v4447
        %v5783 = vunpack.c.l.b16 %v4448
        %v5784 = vunpack.c.h.b16 %v4448
        %v5785 = vunpack.c.l.b16 %v4449
        %v5786 = vunpack.c.h.b16 %v4449
        %v5787 = vunpack.c.l.b16 %v4450
        %v5788 = vunpack.c.h.b16 %v4450
        %v5789 = vunpack.c.l.b16 %v4451
        %v5790 = vunpack.c.h.b16 %v4451
        %v5791 = vunpack.c.l.b16 %v4452
        %v5792 = vunpack.c.h.b16 %v4452
        %v5793 = vunpack.c.l.b16 %v4453
        %v5794 = vunpack.c.h.b16 %v4453
        %v5795 = vunpack.c.l.b16 %v4454
        %v5796 = vunpack.c.h.b16 %v4454
        %v5797 = vunpack.c.l.b16 %v4455
        %v5798 = vunpack.c.h.b16 %v4455
        %v5799 = vunpack.c.l.b16 %v4456
        %v5800 = vunpack.c.h.b16 %v4456
        %v5801 = vunpack.c.l.b16 %v4457
        %v5802 = vunpack.c.h.b16 %v4457
        %v5803 = vunpack.c.l.b16 %v4458
        %v5804 = vunpack.c.h.b16 %v4458
        %v5805 = vunpack.c.l.b16 %v4459
        %v5806 = vunpack.c.h.b16 %v4459
        %v5807 = vunpack.c.l.b16 %v4460
        %v5808 = vunpack.c.h.b16 %v4460
        %v5809 = vunpack.c.l.b16 %v4461
        %v5810 = vunpack.c.h.b16 %v4461
        %v5811 = vunpack.c.l.b16 %v4462
        %v5812 = vunpack.c.h.b16 %v4462
        %v5813 = vunpack.c.l.b16 %v4463
        %v5814 = vunpack.c.h.b16 %v4463
        %v5815 = vunpack.c.l.b16 %v4464
        %v5816 = vunpack.c.h.b16 %v4464
        %v5817 = vunpack.c.l.b16 %v4465
        %v5818 = vunpack.c.h.b16 %v4465
        %v5819 = vunpack.c.l.b16 %v4466
        %v5820 = vunpack.c.h.b16 %v4466
        %v5821 = vunpack.c.l.b16 %v4467
        %v5822 = vunpack.c.h.b16 %v4467
        %v5823 = vunpack.c.l.b16 %v4468
        %v5824 = vunpack.c.h.b16 %v4468
        %v5825 = vunpack.c.l.b16 %v4469
        %v5826 = vunpack.c.h.b16 %v4469
        %v5827 = vunpack.c.l.b16 %v4470
        %v5828 = vunpack.c.h.b16 %v4470
        %v5829 = vunpack.c.l.b16 %v4471
        %v5830 = vunpack.c.h.b16 %v4471
        %v5831 = vunpack.c.l.b16 %v4472
        %v5832 = vunpack.c.h.b16 %v4472
        %v5833 = vunpack.c.l.b16 %v4473
        %v5834 = vunpack.c.h.b16 %v4473
        %v5835 = vunpack.c.l.b16 %v4474
        %v5836 = vunpack.c.h.b16 %v4474
        %v5837 = vunpack.c.l.b16 %v4475
        %v5838 = vunpack.c.h.b16 %v4475
        %v5839 = vunpack.c.l.b16 %v4476
        %v5840 = vunpack.c.h.b16 %v4476
        %v5841 = vunpack.c.l.b16 %v4477
        %v5842 = vunpack.c.h.b16 %v4477
        %v5843 = vunpack.c.l.b16 %v4478
        %v5844 = vunpack.c.h.b16 %v4478
        %v5845 = vunpack.c.l.b16 %v4479
        %v5846 = vunpack.c.h.b16 %v4479
        %v5847 = vunpack.c.l.b16 %v4480
        %v5848 = vunpack.c.h.b16 %v4480
        %v5849 = vunpack.c.l.b16 %v4481
        %v5850 = vunpack.c.h.b16 %v4481
        %v5851 = vunpack.c.l.b16 %v4482
        %v5852 = vunpack.c.h.b16 %v4482
        %v5853 = vunpack.c.l.b16 %v4483
        %v5854 = vunpack.c.h.b16 %v4483
        %v5855 = vunpack.c.l.b16 %v4484
        %v5856 = vunpack.c.h.b16 %v4484
        %v5857 = vunpack.c.l.b16 %v4485
        %v5858 = vunpack.c.h.b16 %v4485
        %v5859 = vunpack.c.l.b16 %v4486
        %v5860 = vunpack.c.h.b16 %v4486
        %v5861 = vunpack.c.l.b16 %v4487
        %v5862 = vunpack.c.h.b16 %v4487
        %v5863 = vunpack.c.l.b16 %v4488
        %v5864 = vunpack.c.h.b16 %v4488
        %v5865 = vunpack.c.l.b16 %v4489
        %v5866 = vunpack.c.h.b16 %v4489
        %v5867 = vunpack.c.l.b16 %v4490
        %v5868 = vunpack.c.h.b16 %v4490
        %v5869 = vunpack.c.l.b16 %v4491
        %v5870 = vunpack.c.h.b16 %v4491
        %v5871 = vunpack.c.l.b16 %v4492
        %v5872 = vunpack.c.h.b16 %v4492
        %v5873 = vunpack.c.l.b16 %v4493
        %v5874 = vunpack.c.h.b16 %v4493
        %v5875 = vunpack.c.l.b16 %v4494
        %v5876 = vunpack.c.h.b16 %v4494
        %v5877 = vunpack.c.l.b16 %v4495
        %v5878 = vunpack.c.h.b16 %v4495
        %v5879 = vunpack.c.l.b16 %v4496
        %v5880 = vunpack.c.h.b16 %v4496
        %v5881 = vunpack.c.l.b16 %v4497
        %v5882 = vunpack.c.h.b16 %v4497
        %v5883 = vunpack.c.l.b16 %v4498
        %v5884 = vunpack.c.h.b16 %v4498
        %v5885 = vunpack.c.l.b16 %v4499
        %v5886 = vunpack.c.h.b16 %v4499
        %v5887 = vunpack.c.l.b16 %v4500
        %v5888 = vunpack.c.h.b16 %v4500
        %v5889 = vunpack.c.l.b16 %v4501
        %v5890 = vunpack.c.h.b16 %v4501
        %v5891 = vunpack.c.l.b16 %v4502
        %v5892 = vunpack.c.h.b16 %v4502
        %v5893 = vunpack.c.l.b16 %v4503
        %v5894 = vunpack.c.h.b16 %v4503
        %v5895 = vunpack.c.l.b16 %v4504
        %v5896 = vunpack.c.h.b16 %v4504
        %v5897 = vunpack.c.l.b16 %v4505
        %v5898 = vunpack.c.h.b16 %v4505
        %v5899 = vunpack.c.l.b16 %v4506
        %v5900 = vunpack.c.h.b16 %v4506
        %v5901 = vunpack.c.l.b16 %v4507
        %v5902 = vunpack.c.h.b16 %v4507
        %v5903 = vunpack.c.l.b16 %v4508
        %v5904 = vunpack.c.h.b16 %v4508
        %v5905 = vunpack.c.l.b16 %v4509
        %v5906 = vunpack.c.h.b16 %v4509
        %v5907 = vunpack.c.l.b16 %v4510
        %v5908 = vunpack.c.h.b16 %v4510
        %v5909 = vunpack.c.l.b16 %v4511
        %v5910 = vunpack.c.h.b16 %v4511
        %v5911 = vunpack.c.l.b16 %v4512
        %v5912 = vunpack.c.h.b16 %v4512
        %v5913 = vunpack.c.l.b16 %v4513
        %v5914 = vunpack.c.h.b16 %v4513
        %v5915 = vunpack.c.l.b16 %v4514
        %v5916 = vunpack.c.h.b16 %v4514
        %v5917 = vunpack.c.l.b16 %v4515
        %v5918 = vunpack.c.h.b16 %v4515
        %v5919 = vunpack.c.l.b16 %v4516
        %v5920 = vunpack.c.h.b16 %v4516
        %v5921 = vunpack.c.l.b16 %v4517
        %v5922 = vunpack.c.h.b16 %v4517
        %v5923 = vunpack.c.l.b16 %v4518
        %v5924 = vunpack.c.h.b16 %v4518
        %v5925 = vunpack.c.l.b16 %v4519
        %v5926 = vunpack.c.h.b16 %v4519
        %v5927 = vunpack.c.l.b16 %v4520
        %v5928 = vunpack.c.h.b16 %v4520
        %v5929 = vunpack.c.l.b16 %v4521
        %v5930 = vunpack.c.h.b16 %v4521
        %v5931 = vunpack.c.l.b16 %v4522
        %v5932 = vunpack.c.h.b16 %v4522
        %v5933 = vunpack.c.l.b16 %v4523
        %v5934 = vunpack.c.h.b16 %v4523
        %v5935 = vunpack.c.l.b16 %v4524
        %v5936 = vunpack.c.h.b16 %v4524
        %v5937 = vunpack.c.l.b16 %v4525
        %v5938 = vunpack.c.h.b16 %v4525
        %v5939 = vunpack.c.l.b16 %v4526
        %v5940 = vunpack.c.h.b16 %v4526
        %v5941 = vunpack.c.l.b16 %v4527
        %v5942 = vunpack.c.h.b16 %v4527
        %v5943 = vunpack.c.l.b16 %v4528
        %v5944 = vunpack.c.h.b16 %v4528
        %v5945 = vunpack.c.l.b16 %v4529
        %v5946 = vunpack.c.h.b16 %v4529
        %v5947 = vunpack.c.l.b16 %v4530
        %v5948 = vunpack.c.h.b16 %v4530
        %v5949 = vunpack.c.l.b16 %v4531
        %v5950 = vunpack.c.h.b16 %v4531
        %v5951 = vunpack.c.l.b16 %v4532
        %v5952 = vunpack.c.h.b16 %v4532
        %v5953 = vunpack.c.l.b16 %v4533
        %v5954 = vunpack.c.h.b16 %v4533
        %v5955 = vunpack.c.l.b16 %v4534
        %v5956 = vunpack.c.h.b16 %v4534
        %v5957 = vunpack.c.l.b16 %v4535
        %v5958 = vunpack.c.h.b16 %v4535
        %v5959 = vunpack.c.l.b16 %v4536
        %v5960 = vunpack.c.h.b16 %v4536
        %v5961 = vunpack.c.l.b16 %v4537
        %v5962 = vunpack.c.h.b16 %v4537
        %v5963 = vunpack.c.l.b16 %v4538
        %v5964 = vunpack.c.h.b16 %v4538
        %v5965 = vunpack.c.l.b16 %v4539
        %v5966 = vunpack.c.h.b16 %v4539
        %v5967 = vunpack.c.l.b16 %v4540
        %v5968 = vunpack.c.h.b16 %v4540
        %v5969 = vunpack.c.l.b16 %v4541
        %v5970 = vunpack.c.h.b16 %v4541
        %v5971 = vunpack.c.l.b16 %v4542
        %v5972 = vunpack.c.h.b16 %v4542
        %v5973 = vunpack.c.l.b16 %v4543
        %v5974 = vunpack.c.h.b16 %v4543
        %v5975 = vunpack.c.l.b16 %v4544
        %v5976 = vunpack.c.h.b16 %v4544
        %v5977 = vunpack.c.l.b16 %v4545
        %v5978 = vunpack.c.h.b16 %v4545
        %v5979 = vunpack.c.l.b16 %v4546
        %v5980 = vunpack.c.h.b16 %v4546
        %v5981 = vunpack.c.l.b16 %v4547
        %v5982 = vunpack.c.h.b16 %v4547
        %v5983 = vunpack.c.l.b16 %v4548
        %v5984 = vunpack.c.h.b16 %v4548
        %v5985 = vunpack.c.l.b16 %v4549
        %v5986 = vunpack.c.h.b16 %v4549
        %v5987 = vunpack.c.l.b16 %v4550
        %v5988 = vunpack.c.h.b16 %v4550
        %v5989 = vunpack.c.l.b16 %v4551
        %v5990 = vunpack.c.h.b16 %v4551
        %v5991 = vunpack.c.l.b16 %v4552
        %v5992 = vunpack.c.h.b16 %v4552
        %v5993 = vunpack.c.l.b16 %v4553
        %v5994 = vunpack.c.h.b16 %v4553
        %v5995 = vunpack.c.l.b16 %v4554
        %v5996 = vunpack.c.h.b16 %v4554
        %v5997 = vunpack.c.l.b16 %v4555
        %v5998 = vunpack.c.h.b16 %v4555
        %v5999 = vunpack.c.l.b16 %v4556
        %v6000 = vunpack.c.h.b16 %v4556
        %v6001 = vunpack.c.l.b16 %v4557
        %v6002 = vunpack.c.h.b16 %v4557
        %v6003 = vunpack.c.l.b16 %v4558
        %v6004 = vunpack.c.h.b16 %v4558
        %v6005 = vunpack.c.l.b16 %v4559
        %v6006 = vunpack.c.h.b16 %v4559
        %v6007 = vunpack.c.l.b16 %v4560
        %v6008 = vunpack.c.h.b16 %v4560
        %v6009 = vunpack.c.l.b16 %v4561
        %v6010 = vunpack.c.h.b16 %v4561
        %v6011 = vunpack.c.l.b16 %v4562
        %v6012 = vunpack.c.h.b16 %v4562
        %v6013 = vunpack.c.l.b16 %v4563
        %v6014 = vunpack.c.h.b16 %v4563
        %v6015 = vunpack.c.l.b16 %v4564
        %v6016 = vunpack.c.h.b16 %v4564
        %v6017 = vunpack.c.l.b16 %v4565
        %v6018 = vunpack.c.h.b16 %v4565
        %v6019 = vunpack.c.l.b16 %v4566
        %v6020 = vunpack.c.h.b16 %v4566
        %v6021 = vunpack.c.l.b16 %v4567
        %v6022 = vunpack.c.h.b16 %v4567
        %v6023 = vunpack.c.l.b16 %v4568
        %v6024 = vunpack.c.h.b16 %v4568
        %v6025 = vunpack.c.l.b16 %v4569
        %v6026 = vunpack.c.h.b16 %v4569
        %v6027 = vunpack.c.l.b16 %v4570
        %v6028 = vunpack.c.h.b16 %v4570
        %v6029 = vunpack.c.l.b16 %v4571
        %v6030 = vunpack.c.h.b16 %v4571
        %v6031 = vunpack.c.l.b16 %v4572
        %v6032 = vunpack.c.h.b16 %v4572
        %v6033 = vunpack.c.l.b16 %v4573
        %v6034 = vunpack.c.h.b16 %v4573
        %v6035 = vunpack.c.l.b16 %v4574
        %v6036 = vunpack.c.h.b16 %v4574
        %v6037 = vunpack.c.l.b16 %v4575
        %v6038 = vunpack.c.h.b16 %v4575
        %v6039 = vunpack.c.l.b16 %v4576
        %v6040 = vunpack.c.h.b16 %v4576
        %v6041 = vunpack.c.l.b16 %v4577
        %v6042 = vunpack.c.h.b16 %v4577
        %v6043 = vunpack.c.l.b16 %v4578
        %v6044 = vunpack.c.h.b16 %v4578
        %v6045 = vunpack.c.l.b16 %v4579
        %v6046 = vunpack.c.h.b16 %v4579
        %v6047 = vunpack.c.l.b16 %v4580
        %v6048 = vunpack.c.h.b16 %v4580
        %v6049 = vunpack.c.l.b16 %v4581
        %v6050 = vunpack.c.h.b16 %v4581
        %v6051 = vunpack.c.l.b16 %v4582
        %v6052 = vunpack.c.h.b16 %v4582
        %v6053 = vunpack.c.l.b16 %v4583
        %v6054 = vunpack.c.h.b16 %v4583
        %v6055 = vunpack.c.l.b16 %v4584
        %v6056 = vunpack.c.h.b16 %v4584
        %v6057 = vunpack.c.l.b16 %v4585
        %v6058 = vunpack.c.h.b16 %v4585
        %v6059 = vunpack.c.l.b16 %v4586
        %v6060 = vunpack.c.h.b16 %v4586
        %v6061 = vunpack.c.l.b16 %v4587
        %v6062 = vunpack.c.h.b16 %v4587
        %v6063 = vunpack.c.l.b16 %v4588
        %v6064 = vunpack.c.h.b16 %v4588
        %v6065 = vunpack.c.l.b16 %v4589
        %v6066 = vunpack.c.h.b16 %v4589
        %v6067 = vunpack.c.l.b16 %v4590
        %v6068 = vunpack.c.h.b16 %v4590
        %v6069 = vunpack.c.l.b16 %v4591
        %v6070 = vunpack.c.h.b16 %v4591
        %v6071 = vunpack.c.l.b16 %v4592
        %v6072 = vunpack.c.h.b16 %v4592
        %v6073 = vunpack.c.l.b16 %v4593
        %v6074 = vunpack.c.h.b16 %v4593
        %v6075 = vunpack.c.l.b16 %v4594
        %v6076 = vunpack.c.h.b16 %v4594
        %v6077 = vunpack.c.l.b16 %v4595
        %v6078 = vunpack.c.h.b16 %v4595
        %v6079 = vunpack.c.l.b16 %v4596
        %v6080 = vunpack.c.h.b16 %v4596
        %v6081 = vunpack.c.l.b16 %v4597
        %v6082 = vunpack.c.h.b16 %v4597
        %v6083 = vunpack.c.l.b16 %v4598
        %v6084 = vunpack.c.h.b16 %v4598
        %v6085 = vunpack.c.l.b16 %v4599
        %v6086 = vunpack.c.h.b16 %v4599
        %v6087 = vunpack.c.l.b16 %v4600
        %v6088 = vunpack.c.h.b16 %v4600
        %v6089 = vunpack.c.l.b16 %v4601
        %v6090 = vunpack.c.h.b16 %v4601
        %v6091 = vunpack.c.l.b16 %v4602
        %v6092 = vunpack.c.h.b16 %v4602
        %v6093 = vunpack.c.l.b16 %v4603
        %v6094 = vunpack.c.h.b16 %v4603
        %v6095 = vunpack.c.l.b16 %v4604
        %v6096 = vunpack.c.h.b16 %v4604
        %v6097 = vunpack.c.l.b16 %v4605
        %v6098 = vunpack.c.h.b16 %v4605
        %v6099 = vunpack.c.l.b16 %v4606
        %v6100 = vunpack.c.h.b16 %v4606
        %v6101 = vunpack.c.l.b16 %v4607
        %v6102 = vunpack.c.h.b16 %v4607
        %v6103 = vunpack.c.l.b16 %v4608
        %v6104 = vunpack.c.h.b16 %v4608
        %v6105 = vunpack.c.l.b16 %v4609
        %v6106 = vunpack.c.h.b16 %v4609
        %v6107 = vunpack.c.l.b16 %v4610
        %v6108 = vunpack.c.h.b16 %v4610
        %v6109 = vunpack.c.l.b16 %v4611
        %v6110 = vunpack.c.h.b16 %v4611
        %v6111 = vunpack.c.l.b16 %v4612
        %v6112 = vunpack.c.h.b16 %v4612
        %v6113 = vunpack.c.l.b16 %v4613
        %v6114 = vunpack.c.h.b16 %v4613
        %v6115 = vunpack.c.l.b16 %v4614
        %v6116 = vunpack.c.h.b16 %v4614
        %v6117 = vunpack.c.l.b16 %v4615
        %v6118 = vunpack.c.h.b16 %v4615
        %v6119 = vunpack.c.l.b16 %v4616
        %v6120 = vunpack.c.h.b16 %v4616
        %v6121 = vunpack.c.l.b16 %v4617
        %v6122 = vunpack.c.h.b16 %v4617
        %v6123 = vunpack.c.l.b16 %v4618
        %v6124 = vunpack.c.h.b16 %v4618
        %v6125 = vunpack.c.l.b16 %v4619
        %v6126 = vunpack.c.h.b16 %v4619
        %v6127 = vunpack.c.l.b16 %v4620
        %v6128 = vunpack.c.h.b16 %v4620
        %v6129 = vunpack.c.l.b16 %v4621
        %v6130 = vunpack.c.h.b16 %v4621
        %v6131 = vunpack.c.l.b16 %v4622
        %v6132 = vunpack.c.h.b16 %v4622
        %v6133 = vunpack.c.l.b16 %v4623
        %v6134 = vunpack.c.h.b16 %v4623
        %v6135 = vunpack.c.l.b16 %v4624
        %v6136 = vunpack.c.h.b16 %v4624
        %v6137 = vunpack.c.l.b16 %v4625
        %v6138 = vunpack.c.h.b16 %v4625
        %v6139 = vunpack.c.l.b16 %v4626
        %v6140 = vunpack.c.h.b16 %v4626
        %v6141 = vunpack.c.l.b16 %v4627
        %v6142 = vunpack.c.h.b16 %v4627
        %v6143 = vunpack.c.l.b16 %v4628
        %v6144 = vunpack.c.h.b16 %v4628
        %v6145 = vunpack.c.l.b16 %v4629
        %v6146 = vunpack.c.h.b16 %v4629
        %v6147 = vunpack.c.l.b16 %v4630
        %v6148 = vunpack.c.h.b16 %v4630
        %v6149 = vunpack.c.l.b16 %v4631
        %v6150 = vunpack.c.h.b16 %v4631
        %v6151 = vunpack.c.l.b16 %v4632
        %v6152 = vunpack.c.h.b16 %v4632
        %v6153 = vunpack.c.l.b16 %v4633
        %v6154 = vunpack.c.h.b16 %v4633
        %v6155 = vunpack.c.l.b16 %v4634
        %v6156 = vunpack.c.h.b16 %v4634
        %v6157 = vunpack.c.l.b16 %v4635
        %v6158 = vunpack.c.h.b16 %v4635
        %v6159 = vunpack.c.l.b16 %v4636
        %v6160 = vunpack.c.h.b16 %v4636
        %v6161 = vunpack.c.l.b16 %v4637
        %v6162 = vunpack.c.h.b16 %v4637
        %v6163 = vunpack.c.l.b16 %v4638
        %v6164 = vunpack.c.h.b16 %v4638
        %v6165 = vunpack.c.l.b16 %v4639
        %v6166 = vunpack.c.h.b16 %v4639
        %v6167 = vunpack.c.l.b16 %v4640
        %v6168 = vunpack.c.h.b16 %v4640
        %v6169 = vunpack.c.l.b16 %v4641
        %v6170 = vunpack.c.h.b16 %v4641
        %v6171 = vunpack.c.l.b16 %v4642
        %v6172 = vunpack.c.h.b16 %v4642
        %v6173 = vunpack.c.l.b16 %v4643
        %v6174 = vunpack.c.h.b16 %v4643
        %v6175 = vunpack.c.l.b16 %v4644
        %v6176 = vunpack.c.h.b16 %v4644
        %v6177 = vunpack.c.l.b16 %v4645
        %v6178 = vunpack.c.h.b16 %v4645
        %v6179 = vunpack.c.l.b16 %v4646
        %v6180 = vunpack.c.h.b16 %v4646
        %v6181 = vunpack.c.l.b16 %v4647
        %v6182 = vunpack.c.h.b16 %v4647
        %v6183 = vunpack.c.l.b16 %v4648
        %v6184 = vunpack.c.h.b16 %v4648
        %v6185 = vpack.c.b16 %v5677, %v5673
        %v6186 = vpack.c.b16 %v5678, %v5674
        %v6187 = vpack.c.b16 %v5679, %v5675
        %v6188 = vpack.c.b16 %v5680, %v5676
        %v6189 = vpack.c.b16 %v5685, %v5681
        %v6190 = vpack.c.b16 %v5686, %v5682
        %v6191 = vpack.c.b16 %v5687, %v5683
        %v6192 = vpack.c.b16 %v5688, %v5684
        %v6193 = vpack.c.b16 %v5693, %v5689
        %v6194 = vpack.c.b16 %v5694, %v5690
        %v6195 = vpack.c.b16 %v5695, %v5691
        %v6196 = vpack.c.b16 %v5696, %v5692
        %v6197 = vpack.c.b16 %v5701, %v5697
        %v6198 = vpack.c.b16 %v5702, %v5698
        %v6199 = vpack.c.b16 %v5703, %v5699
        %v6200 = vpack.c.b16 %v5704, %v5700
        %v6201 = vpack.c.b16 %v5709, %v5705
        %v6202 = vpack.c.b16 %v5710, %v5706
        %v6203 = vpack.c.b16 %v5711, %v5707
        %v6204 = vpack.c.b16 %v5712, %v5708
        %v6205 = vpack.c.b16 %v5717, %v5713
        %v6206 = vpack.c.b16 %v5718, %v5714
        %v6207 = vpack.c.b16 %v5719, %v5715
        %v6208 = vpack.c.b16 %v5720, %v5716
        %v6209 = vpack.c.b16 %v5725, %v5721
        %v6210 = vpack.c.b16 %v5726, %v5722
        %v6211 = vpack.c.b16 %v5727, %v5723
        %v6212 = vpack.c.b16 %v5728, %v5724
        %v6213 = vpack.c.b16 %v5733, %v5729
        %v6214 = vpack.c.b16 %v5734, %v5730
        %v6215 = vpack.c.b16 %v5735, %v5731
        %v6216 = vpack.c.b16 %v5736, %v5732
        %v6217 = vpack.c.b16 %v5741, %v5737
        %v6218 = vpack.c.b16 %v5742, %v5738
        %v6219 = vpack.c.b16 %v5743, %v5739
        %v6220 = vpack.c.b16 %v5744, %v5740
        %v6221 = vpack.c.b16 %v5749, %v5745
        %v6222 = vpack.c.b16 %v5750, %v5746
        %v6223 = vpack.c.b16 %v5751, %v5747
        %v6224 = vpack.c.b16 %v5752, %v5748
        %v6225 = vpack.c.b16 %v5757, %v5753
        %v6226 = vpack.c.b16 %v5758, %v5754
        %v6227 = vpack.c.b16 %v5759, %v5755
        %v6228 = vpack.c.b16 %v5760, %v5756
        %v6229 = vpack.c.b16 %v5765, %v5761
        %v6230 = vpack.c.b16 %v5766, %v5762
        %v6231 = vpack.c.b16 %v5767, %v5763
        %v6232 = vpack.c.b16 %v5768, %v5764
        %v6233 = vpack.c.b16 %v5773, %v5769
        %v6234 = vpack.c.b16 %v5774, %v5770
        %v6235 = vpack.c.b16 %v5775, %v5771
        %v6236 = vpack.c.b16 %v5776, %v5772
        %v6237 = vpack.c.b16 %v5781, %v5777
        %v6238 = vpack.c.b16 %v5782, %v5778
        %v6239 = vpack.c.b16 %v5783, %v5779
        %v6240 = vpack.c.b16 %v5784, %v5780
        %v6241 = vpack.c.b16 %v5789, %v5785
        %v6242 = vpack.c.b16 %v5790, %v5786
        %v6243 = vpack.c.b16 %v5791, %v5787
        %v6244 = vpack.c.b16 %v5792, %v5788
        %v6245 = vpack.c.b16 %v5797, %v5793
        %v6246 = vpack.c.b16 %v5798, %v5794
        %v6247 = vpack.c.b16 %v5799, %v5795
        %v6248 = vpack.c.b16 %v5800, %v5796
        %v6249 = vpack.c.b16 %v5805, %v5801
        %v6250 = vpack.c.b16 %v5806, %v5802
        %v6251 = vpack.c.b16 %v5807, %v5803
        %v6252 = vpack.c.b16 %v5808, %v5804
        %v6253 = vpack.c.b16 %v5813, %v5809
        %v6254 = vpack.c.b16 %v5814, %v5810
        %v6255 = vpack.c.b16 %v5815, %v5811
        %v6256 = vpack.c.b16 %v5816, %v5812
        %v6257 = vpack.c.b16 %v5821, %v5817
        %v6258 = vpack.c.b16 %v5822, %v5818
        %v6259 = vpack.c.b16 %v5823, %v5819
        %v6260 = vpack.c.b16 %v5824, %v5820
        %v6261 = vpack.c.b16 %v5829, %v5825
        %v6262 = vpack.c.b16 %v5830, %v5826
        %v6263 = vpack.c.b16 %v5831, %v5827
        %v6264 = vpack.c.b16 %v5832, %v5828
        %v6265 = vpack.c.b16 %v5837, %v5833
        %v6266 = vpack.c.b16 %v5838, %v5834
        %v6267 = vpack.c.b16 %v5839, %v5835
        %v6268 = vpack.c.b16 %v5840, %v5836
        %v6269 = vpack.c.b16 %v5845, %v5841
        %v6270 = vpack.c.b16 %v5846, %v5842
        %v6271 = vpack.c.b16 %v5847, %v5843
        %v6272 = vpack.c.b16 %v5848, %v5844
        %v6273 = vpack.c.b16 %v5853, %v5849
        %v6274 = vpack.c.b16 %v5854, %v5850
        %v6275 = vpack.c.b16 %v5855, %v5851
        %v6276 = vpack.c.b16 %v5856, %v5852
        %v6277 = vpack.c.b16 %v5861, %v5857
        %v6278 = vpack.c.b16 %v5862, %v5858
        %v6279 = vpack.c.b16 %v5863, %v5859
        %v6280 = vpack.c.b16 %v5864, %v5860
        %v6281 = vpack.c.b16 %v5869, %v5865
        %v6282 = vpack.c.b16 %v5870, %v5866
        %v6283 = vpack.c.b16 %v5871, %v5867
        %v6284 = vpack.c.b16 %v5872, %v5868
        %v6285 = vpack.c.b16 %v5877, %v5873
        %v6286 = vpack.c.b16 %v5878, %v5874
        %v6287 = vpack.c.b16 %v5879, %v5875
        %v6288 = vpack.c.b16 %v5880, %v5876
        %v6289 = vpack.c.b16 %v5885, %v5881
        %v6290 = vpack.c.b16 %v5886, %v5882
        %v6291 = vpack.c.b16 %v5887, %v5883
        %v6292 = vpack.c.b16 %v5888, %v5884
        %v6293 = vpack.c.b16 %v5893, %v5889
        %v6294 = vpack.c.b16 %v5894, %v5890
        %v6295 = vpack.c.b16 %v5895, %v5891
        %v6296 = vpack.c.b16 %v5896, %v5892
        %v6297 = vpack.c.b16 %v5901, %v5897
        %v6298 = vpack.c.b16 %v5902, %v5898
        %v6299 = vpack.c.b16 %v5903, %v5899
        %v6300 = vpack.c.b16 %v5904, %v5900
        %v6301 = vpack.c.b16 %v5909, %v5905
        %v6302 = vpack.c.b16 %v5910, %v5906
        %v6303 = vpack.c.b16 %v5911, %v5907
        %v6304 = vpack.c.b16 %v5912, %v5908
        %v6305 = vpack.c.b16 %v5917, %v5913
        %v6306 = vpack.c.b16 %v5918, %v5914
        %v6307 = vpack.c.b16 %v5919, %v5915
        %v6308 = vpack.c.b16 %v5920, %v5916
        %v6309 = vpack.c.b16 %v5925, %v5921
        %v6310 = vpack.c.b16 %v5926, %v5922
        %v6311 = vpack.c.b16 %v5927, %v5923
        %v6312 = vpack.c.b16 %v5928, %v5924
        %v6313 = vpack.c.b16 %v5933, %v5929
        %v6314 = vpack.c.b16 %v5934, %v5930
        %v6315 = vpack.c.b16 %v5935, %v5931
        %v6316 = vpack.c.b16 %v5936, %v5932
        %v6317 = vpack.c.b16 %v5941, %v5937
        %v6318 = vpack.c.b16 %v5942, %v5938
        %v6319 = vpack.c.b16 %v5943, %v5939
        %v6320 = vpack.c.b16 %v5944, %v5940
        %v6321 = vpack.c.b16 %v5949, %v5945
        %v6322 = vpack.c.b16 %v5950, %v5946
        %v6323 = vpack.c.b16 %v5951, %v5947
        %v6324 = vpack.c.b16 %v5952, %v5948
        %v6325 = vpack.c.b16 %v5957, %v5953
        %v6326 = vpack.c.b16 %v5958, %v5954
        %v6327 = vpack.c.b16 %v5959, %v5955
        %v6328 = vpack.c.b16 %v5960, %v5956
        %v6329 = vpack.c.b16 %v5965, %v5961
        %v6330 = vpack.c.b16 %v5966, %v5962
        %v6331 = vpack.c.b16 %v5967, %v5963
        %v6332 = vpack.c.b16 %v5968, %v5964
        %v6333 = vpack.c.b16 %v5973, %v5969
        %v6334 = vpack.c.b16 %v5974, %v5970
        %v6335 = vpack.c.b16 %v5975, %v5971
        %v6336 = vpack.c.b16 %v5976, %v5972
        %v6337 = vpack.c.b16 %v5981, %v5977
        %v6338 = vpack.c.b16 %v5982, %v5978
        %v6339 = vpack.c.b16 %v5983, %v5979
        %v6340 = vpack.c.b16 %v5984, %v5980
        %v6341 = vpack.c.b16 %v5989, %v5985
        %v6342 = vpack.c.b16 %v5990, %v5986
        %v6343 = vpack.c.b16 %v5991, %v5987
        %v6344 = vpack.c.b16 %v5992, %v5988
        %v6345 = vpack.c.b16 %v5997, %v5993
        %v6346 = vpack.c.b16 %v5998, %v5994
        %v6347 = vpack.c.b16 %v5999, %v5995
        %v6348 = vpack.c.b16 %v6000, %v5996
        %v6349 = vpack.c.b16 %v6005, %v6001
        %v6350 = vpack.c.b16 %v6006, %v6002
        %v6351 = vpack.c.b16 %v6007, %v6003
        %v6352 = vpack.c.b16 %v6008, %v6004
        %v6353 = vpack.c.b16 %v6013, %v6009
        %v6354 = vpack.c.b16 %v6014, %v6010
        %v6355 = vpack.c.b16 %v6015, %v6011
        %v6356 = vpack.c.b16 %v6016, %v6012
        %v6357 = vpack.c.b16 %v6021, %v6017
        %v6358 = vpack.c.b16 %v6022, %v6018
        %v6359 = vpack.c.b16 %v6023, %v6019
        %v6360 = vpack.c.b16 %v6024, %v6020
        %v6361 = vpack.c.b16 %v6029, %v6025
        %v6362 = vpack.c.b16 %v6030, %v6026
        %v6363 = vpack.c.b16 %v6031, %v6027
        %v6364 = vpack.c.b16 %v6032, %v6028
        %v6365 = vpack.c.b16 %v6037, %v6033
        %v6366 = vpack.c.b16 %v6038, %v6034
        %v6367 = vpack.c.b16 %v6039, %v6035
        %v6368 = vpack.c.b16 %v6040, %v6036
        %v6369 = vpack.c.b16 %v6045, %v6041
        %v6370 = vpack.c.b16 %v6046, %v6042
        %v6371 = vpack.c.b16 %v6047, %v6043
        %v6372 = vpack.c.b16 %v6048, %v6044
        %v6373 = vpack.c.b16 %v6053, %v6049
        %v6374 = vpack.c.b16 %v6054, %v6050
        %v6375 = vpack.c.b16 %v6055, %v6051
        %v6376 = vpack.c.b16 %v6056, %v6052
        %v6377 = vpack.c.b16 %v6061, %v6057
        %v6378 = vpack.c.b16 %v6062, %v6058
        %v6379 = vpack.c.b16 %v6063, %v6059
        %v6380 = vpack.c.b16 %v6064, %v6060
        %v6381 = vpack.c.b16 %v6069, %v6065
        %v6382 = vpack.c.b16 %v6070, %v6066
        %v6383 = vpack.c.b16 %v6071, %v6067
        %v6384 = vpack.c.b16 %v6072, %v6068
        %v6385 = vpack.c.b16 %v6077, %v6073
        %v6386 = vpack.c.b16 %v6078, %v6074
        %v6387 = vpack.c.b16 %v6079, %v6075
        %v6388 = vpack.c.b16 %v6080, %v6076
        %v6389 = vpack.c.b16 %v6085, %v6081
        %v6390 = vpack.c.b16 %v6086, %v6082
        %v6391 = vpack.c.b16 %v6087, %v6083
        %v6392 = vpack.c.b16 %v6088, %v6084
        %v6393 = vpack.c.b16 %v6093, %v6089
        %v6394 = vpack.c.b16 %v6094, %v6090
        %v6395 = vpack.c.b16 %v6095, %v6091
        %v6396 = vpack.c.b16 %v6096, %v6092
        %v6397 = vpack.c.b16 %v6101, %v6097
        %v6398 = vpack.c.b16 %v6102, %v6098
        %v6399 = vpack.c.b16 %v6103, %v6099
        %v6400 = vpack.c.b16 %v6104, %v6100
        %v6401 = vpack.c.b16 %v6109, %v6105
        %v6402 = vpack.c.b16 %v6110, %v6106
        %v6403 = vpack.c.b16 %v6111, %v6107
        %v6404 = vpack.c.b16 %v6112, %v6108
        %v6405 = vpack.c.b16 %v6117, %v6113
        %v6406 = vpack.c.b16 %v6118, %v6114
        %v6407 = vpack.c.b16 %v6119, %v6115
        %v6408 = vpack.c.b16 %v6120, %v6116
        %v6409 = vpack.c.b16 %v6125, %v6121
        %v6410 = vpack.c.b16 %v6126, %v6122
        %v6411 = vpack.c.b16 %v6127, %v6123
        %v6412 = vpack.c.b16 %v6128, %v6124
        %v6413 = vpack.c.b16 %v6133, %v6129
        %v6414 = vpack.c.b16 %v6134, %v6130
        %v6415 = vpack.c.b16 %v6135, %v6131
        %v6416 = vpack.c.b16 %v6136, %v6132
        %v6417 = vpack.c.b16 %v6141, %v6137
        %v6418 = vpack.c.b16 %v6142, %v6138
        %v6419 = vpack.c.b16 %v6143, %v6139
        %v6420 = vpack.c.b16 %v6144, %v6140
        %v6421 = vpack.c.b16 %v6149, %v6145
        %v6422 = vpack.c.b16 %v6150, %v6146
        %v6423 = vpack.c.b16 %v6151, %v6147
        %v6424 = vpack.c.b16 %v6152, %v6148
        %v6425 = vpack.c.b16 %v6157, %v6153
        %v6426 = vpack.c.b16 %v6158, %v6154
        %v6427 = vpack.c.b16 %v6159, %v6155
        %v6428 = vpack.c.b16 %v6160, %v6156
        %v6429 = vpack.c.b16 %v6165, %v6161
        %v6430 = vpack.c.b16 %v6166, %v6162
        %v6431 = vpack.c.b16 %v6167, %v6163
        %v6432 = vpack.c.b16 %v6168, %v6164
        %v6433 = vpack.c.b16 %v6173, %v6169
        %v6434 = vpack.c.b16 %v6174, %v6170
        %v6435 = vpack.c.b16 %v6175, %v6171
        %v6436 = vpack.c.b16 %v6176, %v6172
        %v6437 = vpack.c.b16 %v6181, %v6177
        %v6438 = vpack.c.b16 %v6182, %v6178
        %v6439 = vpack.c.b16 %v6183, %v6179
        %v6440 = vpack.c.b16 %v6184, %v6180
        %6697 = vmatprep.subr.bf16.mxu0 0
        %6698 = vmatpush1.bf16.msra.mxu0 %v1577
        %6699 = vmatprep.subr.bf16.mxu0 0
        %6700 = vmatpush1.bf16.msra.mxu0 %v1576
        %6701 = vmatprep.subr.bf16.mxu0 0
        %6702 = vmatpush1.bf16.msra.mxu0 %v1575
        %6703 = vmatprep.subr.bf16.mxu0 0
        %6704 = vmatpush1.bf16.msra.mxu0 %v1574
        %6705 = vmatprep.subr.bf16.mxu0 0
        %6706 = vmatpush1.bf16.msra.mxu0 %v1573
        %6707 = vmatprep.subr.bf16.mxu0 0
        %6708 = vmatpush1.bf16.msra.mxu0 %v1572
        %6709 = vmatprep.subr.bf16.mxu0 0
        %6710 = vmatpush1.bf16.msra.mxu0 %v1571
        %6711 = vmatprep.subr.bf16.mxu0 0
        %6712 = vmatpush1.bf16.msra.mxu0 %v1570
        %6713 = vmatprep.subr.bf16.mxu0 0
        %6714 = vmatpush2.bf16.msra.mxu0 %v2514
        %6715 = vmatprep.subr.bf16.mxu0 0
        %6716 = vmatpush2.bf16.msra.mxu0 %v2513
        %6717 = vmatprep.subr.bf16.mxu0 0
        %6718 = vmatpush2.bf16.msra.mxu0 %v2512
        %6719 = vmatprep.subr.bf16.mxu0 0
        %6720 = vmatpush2.bf16.msra.mxu0 %v2511
        %6721 = vmatprep.subr.bf16.mxu0 0
        %6722 = vmatpush2.bf16.msra.mxu0 %v2510
        %6723 = vmatprep.subr.bf16.mxu0 0
        %6724 = vmatpush2.bf16.msra.mxu0 %v2509
        %6725 = vmatprep.subr.bf16.mxu0 0
        %6726 = vmatpush2.bf16.msra.mxu0 %v2508
        %6727 = vmatprep.subr.bf16.mxu0 0
        %6728 = vmatpush2.bf16.msra.mxu0 %v2507
        %6729 = vmatprep.mubr.bf16.mxu0 %v6186
        %6730 = vmatmul.mubr.bf16.gmra.mxu0 %v6185
        %v6731 = vpop.f32.mrf.mxu0
        %v6732 = vadd.f32 %v4780, %v6731
        %v6733 = vpop.f32.mrf.mxu0
        %v6734 = vpop.f32.mrf.mxu0
        %v6735 = vadd.f32 %v4785, %v6734
        %v6736 = vpop.f32.mrf.mxu0
        %6737 = vmatprep.mubr.bf16.mxu0 %v6190
        %6738 = vmatmul.mubr.bf16.gmra.mxu0 %v6189
        %v6739 = vpop.f32.mrf.mxu0
        %v6740 = vadd.f32 %v4790, %v6739
        %v6741 = vpop.f32.mrf.mxu0
        %v6742 = vpop.f32.mrf.mxu0
        %v6743 = vadd.f32 %v4795, %v6742
        %v6744 = vpop.f32.mrf.mxu0
        %6745 = vmatprep.mubr.bf16.mxu0 %v6194
        %6746 = vmatmul.mubr.bf16.gmra.mxu0 %v6193
        %v6747 = vpop.f32.mrf.mxu0
        %v6748 = vadd.f32 %v4800, %v6747
        %v6749 = vpop.f32.mrf.mxu0
        %v6750 = vpop.f32.mrf.mxu0
        %v6751 = vadd.f32 %v4805, %v6750
        %v6752 = vpop.f32.mrf.mxu0
        %6753 = vmatprep.mubr.bf16.mxu0 %v6198
        %6754 = vmatmul.mubr.bf16.gmra.mxu0 %v6197
        %v6755 = vpop.f32.mrf.mxu0
        %v6756 = vadd.f32 %v4810, %v6755
        %v6757 = vpop.f32.mrf.mxu0
        %v6758 = vpop.f32.mrf.mxu0
        %v6759 = vadd.f32 %v4815, %v6758
        %v6760 = vpop.f32.mrf.mxu0
        %6761 = vmatprep.mubr.bf16.mxu0 %v6202
        %6762 = vmatmul.mubr.bf16.gmra.mxu0 %v6201
        %v6763 = vpop.f32.mrf.mxu0
        %v6764 = vadd.f32 %v4820, %v6763
        %v6765 = vpop.f32.mrf.mxu0
        %v6766 = vpop.f32.mrf.mxu0
        %v6767 = vadd.f32 %v4825, %v6766
        %v6768 = vpop.f32.mrf.mxu0
        %6769 = vmatprep.mubr.bf16.mxu0 %v6206
        %6770 = vmatmul.mubr.bf16.gmra.mxu0 %v6205
        %v6771 = vpop.f32.mrf.mxu0
        %v6772 = vadd.f32 %v4830, %v6771
        %v6773 = vpop.f32.mrf.mxu0
        %v6774 = vpop.f32.mrf.mxu0
        %v6775 = vadd.f32 %v4835, %v6774
        %v6776 = vpop.f32.mrf.mxu0
        %6777 = vmatprep.mubr.bf16.mxu0 %v6210
        %6778 = vmatmul.mubr.bf16.gmra.mxu0 %v6209
        %v6779 = vpop.f32.mrf.mxu0
        %v6780 = vadd.f32 %v4840, %v6779
        %v6781 = vpop.f32.mrf.mxu0
        %v6782 = vpop.f32.mrf.mxu0
        %v6783 = vadd.f32 %v4845, %v6782
        %v6784 = vpop.f32.mrf.mxu0
        %6785 = vmatprep.mubr.bf16.mxu0 %v6214
        %6786 = vmatmul.mubr.bf16.gmra.mxu0 %v6213
        %v6787 = vpop.f32.mrf.mxu0
        %v6788 = vadd.f32 %v4850, %v6787
        %v6789 = vpop.f32.mrf.mxu0
        %v6790 = vpop.f32.mrf.mxu0
        %v6791 = vadd.f32 %v4855, %v6790
        %v6792 = vpop.f32.mrf.mxu0
        %6793 = vmatprep.mubr.bf16.mxu0 %v6218
        %6794 = vmatmul.mubr.bf16.gmra.mxu0 %v6217
        %v6795 = vpop.f32.mrf.mxu0
        %v6796 = vadd.f32 %v4860, %v6795
        %v6797 = vpop.f32.mrf.mxu0
        %v6798 = vpop.f32.mrf.mxu0
        %v6799 = vadd.f32 %v4865, %v6798
        %v6800 = vpop.f32.mrf.mxu0
        %6801 = vmatprep.mubr.bf16.mxu0 %v6222
        %6802 = vmatmul.mubr.bf16.gmra.mxu0 %v6221
        %v6803 = vpop.f32.mrf.mxu0
        %v6804 = vadd.f32 %v4870, %v6803
        %v6805 = vpop.f32.mrf.mxu0
        %v6806 = vpop.f32.mrf.mxu0
        %v6807 = vadd.f32 %v4875, %v6806
        %v6808 = vpop.f32.mrf.mxu0
        %6809 = vmatprep.mubr.bf16.mxu0 %v6226
        %6810 = vmatmul.mubr.bf16.gmra.mxu0 %v6225
        %v6811 = vpop.f32.mrf.mxu0
        %v6812 = vadd.f32 %v4880, %v6811
        %v6813 = vpop.f32.mrf.mxu0
        %v6814 = vpop.f32.mrf.mxu0
        %v6815 = vadd.f32 %v4885, %v6814
        %v6816 = vpop.f32.mrf.mxu0
        %6817 = vmatprep.mubr.bf16.mxu0 %v6230
        %6818 = vmatmul.mubr.bf16.gmra.mxu0 %v6229
        %v6819 = vpop.f32.mrf.mxu0
        %v6820 = vadd.f32 %v4890, %v6819
        %v6821 = vpop.f32.mrf.mxu0
        %v6822 = vpop.f32.mrf.mxu0
        %v6823 = vadd.f32 %v4895, %v6822
        %v6824 = vpop.f32.mrf.mxu0
        %6825 = vmatprep.mubr.bf16.mxu0 %v6234
        %6826 = vmatmul.mubr.bf16.gmra.mxu0 %v6233
        %v6827 = vpop.f32.mrf.mxu0
        %v6828 = vadd.f32 %v4900, %v6827
        %v6829 = vpop.f32.mrf.mxu0
        %v6830 = vpop.f32.mrf.mxu0
        %v6831 = vadd.f32 %v4905, %v6830
        %v6832 = vpop.f32.mrf.mxu0
        %6833 = vmatprep.mubr.bf16.mxu0 %v6238
        %6834 = vmatmul.mubr.bf16.gmra.mxu0 %v6237
        %v6835 = vpop.f32.mrf.mxu0
        %v6836 = vadd.f32 %v4910, %v6835
        %v6837 = vpop.f32.mrf.mxu0
        %v6838 = vpop.f32.mrf.mxu0
        %v6839 = vadd.f32 %v4915, %v6838
        %v6840 = vpop.f32.mrf.mxu0
        %6841 = vmatprep.mubr.bf16.mxu0 %v6242
        %6842 = vmatmul.mubr.bf16.gmra.mxu0 %v6241
        %v6843 = vpop.f32.mrf.mxu0
        %v6844 = vadd.f32 %v4920, %v6843
        %v6845 = vpop.f32.mrf.mxu0
        %v6846 = vpop.f32.mrf.mxu0
        %v6847 = vadd.f32 %v4925, %v6846
        %v6848 = vpop.f32.mrf.mxu0
        %6849 = vmatprep.mubr.bf16.mxu0 %v6246
        %6850 = vmatmul.mubr.bf16.gmra.mxu0 %v6245
        %v6851 = vpop.f32.mrf.mxu0
        %v6852 = vadd.f32 %v4930, %v6851
        %v6853 = vpop.f32.mrf.mxu0
        %v6854 = vpop.f32.mrf.mxu0
        %v6855 = vadd.f32 %v4935, %v6854
        %v6856 = vpop.f32.mrf.mxu0
        %6857 = vmatprep.mubr.bf16.mxu0 %v6250
        %6858 = vmatmul.mubr.bf16.gmra.mxu0 %v6249
        %v6859 = vpop.f32.mrf.mxu0
        %v6860 = vadd.f32 %v4940, %v6859
        %v6861 = vpop.f32.mrf.mxu0
        %v6862 = vpop.f32.mrf.mxu0
        %v6863 = vadd.f32 %v4945, %v6862
        %v6864 = vpop.f32.mrf.mxu0
        %6865 = vmatprep.mubr.bf16.mxu0 %v6254
        %6866 = vmatmul.mubr.bf16.gmra.mxu0 %v6253
        %v6867 = vpop.f32.mrf.mxu0
        %v6868 = vadd.f32 %v4950, %v6867
        %v6869 = vpop.f32.mrf.mxu0
        %v6870 = vpop.f32.mrf.mxu0
        %v6871 = vadd.f32 %v4955, %v6870
        %v6872 = vpop.f32.mrf.mxu0
        %6873 = vmatprep.mubr.bf16.mxu0 %v6258
        %6874 = vmatmul.mubr.bf16.gmra.mxu0 %v6257
        %v6875 = vpop.f32.mrf.mxu0
        %v6876 = vadd.f32 %v4960, %v6875
        %v6877 = vpop.f32.mrf.mxu0
        %v6878 = vpop.f32.mrf.mxu0
        %v6879 = vadd.f32 %v4965, %v6878
        %v6880 = vpop.f32.mrf.mxu0
        %6881 = vmatprep.mubr.bf16.mxu0 %v6262
        %6882 = vmatmul.mubr.bf16.gmra.mxu0 %v6261
        %v6883 = vpop.f32.mrf.mxu0
        %v6884 = vadd.f32 %v4970, %v6883
        %v6885 = vpop.f32.mrf.mxu0
        %v6886 = vpop.f32.mrf.mxu0
        %v6887 = vadd.f32 %v4975, %v6886
        %v6888 = vpop.f32.mrf.mxu0
        %6889 = vmatprep.mubr.bf16.mxu0 %v6266
        %6890 = vmatmul.mubr.bf16.gmra.mxu0 %v6265
        %v6891 = vpop.f32.mrf.mxu0
        %v6892 = vadd.f32 %v4980, %v6891
        %v6893 = vpop.f32.mrf.mxu0
        %v6894 = vpop.f32.mrf.mxu0
        %v6895 = vadd.f32 %v4985, %v6894
        %v6896 = vpop.f32.mrf.mxu0
        %6897 = vmatprep.mubr.bf16.mxu0 %v6270
        %6898 = vmatmul.mubr.bf16.gmra.mxu0 %v6269
        %v6899 = vpop.f32.mrf.mxu0
        %v6900 = vadd.f32 %v4990, %v6899
        %v6901 = vpop.f32.mrf.mxu0
        %v6902 = vpop.f32.mrf.mxu0
        %v6903 = vadd.f32 %v4995, %v6902
        %v6904 = vpop.f32.mrf.mxu0
        %6905 = vmatprep.mubr.bf16.mxu0 %v6274
        %6906 = vmatmul.mubr.bf16.gmra.mxu0 %v6273
        %v6907 = vpop.f32.mrf.mxu0
        %v6908 = vadd.f32 %v5000, %v6907
        %v6909 = vpop.f32.mrf.mxu0
        %v6910 = vpop.f32.mrf.mxu0
        %v6911 = vadd.f32 %v5005, %v6910
        %v6912 = vpop.f32.mrf.mxu0
        %6913 = vmatprep.mubr.bf16.mxu0 %v6278
        %6914 = vmatmul.mubr.bf16.gmra.mxu0 %v6277
        %v6915 = vpop.f32.mrf.mxu0
        %v6916 = vadd.f32 %v5010, %v6915
        %v6917 = vpop.f32.mrf.mxu0
        %v6918 = vpop.f32.mrf.mxu0
        %v6919 = vadd.f32 %v5015, %v6918
        %v6920 = vpop.f32.mrf.mxu0
        %6921 = vmatprep.mubr.bf16.mxu0 %v6282
        %6922 = vmatmul.mubr.bf16.gmra.mxu0 %v6281
        %v6923 = vpop.f32.mrf.mxu0
        %v6924 = vadd.f32 %v5020, %v6923
        %v6925 = vpop.f32.mrf.mxu0
        %v6926 = vpop.f32.mrf.mxu0
        %v6927 = vadd.f32 %v5025, %v6926
        %v6928 = vpop.f32.mrf.mxu0
        %6929 = vmatprep.mubr.bf16.mxu0 %v6286
        %6930 = vmatmul.mubr.bf16.gmra.mxu0 %v6285
        %v6931 = vpop.f32.mrf.mxu0
        %v6932 = vadd.f32 %v5030, %v6931
        %v6933 = vpop.f32.mrf.mxu0
        %v6934 = vpop.f32.mrf.mxu0
        %v6935 = vadd.f32 %v5035, %v6934
        %v6936 = vpop.f32.mrf.mxu0
        %6937 = vmatprep.mubr.bf16.mxu0 %v6290
        %6938 = vmatmul.mubr.bf16.gmra.mxu0 %v6289
        %v6939 = vpop.f32.mrf.mxu0
        %v6940 = vadd.f32 %v5040, %v6939
        %v6941 = vpop.f32.mrf.mxu0
        %v6942 = vpop.f32.mrf.mxu0
        %v6943 = vadd.f32 %v5045, %v6942
        %v6944 = vpop.f32.mrf.mxu0
        %6945 = vmatprep.mubr.bf16.mxu0 %v6294
        %6946 = vmatmul.mubr.bf16.gmra.mxu0 %v6293
        %v6947 = vpop.f32.mrf.mxu0
        %v6948 = vadd.f32 %v5050, %v6947
        %v6949 = vpop.f32.mrf.mxu0
        %v6950 = vpop.f32.mrf.mxu0
        %v6951 = vadd.f32 %v5055, %v6950
        %v6952 = vpop.f32.mrf.mxu0
        %6953 = vmatprep.mubr.bf16.mxu0 %v6298
        %6954 = vmatmul.mubr.bf16.gmra.mxu0 %v6297
        %v6955 = vpop.f32.mrf.mxu0
        %v6956 = vadd.f32 %v5060, %v6955
        %v6957 = vpop.f32.mrf.mxu0
        %v6958 = vpop.f32.mrf.mxu0
        %v6959 = vadd.f32 %v5065, %v6958
        %v6960 = vpop.f32.mrf.mxu0
        %6961 = vmatprep.mubr.bf16.mxu0 %v6302
        %6962 = vmatmul.mubr.bf16.gmra.mxu0 %v6301
        %v6963 = vpop.f32.mrf.mxu0
        %v6964 = vadd.f32 %v5070, %v6963
        %v6965 = vpop.f32.mrf.mxu0
        %v6966 = vpop.f32.mrf.mxu0
        %v6967 = vadd.f32 %v5075, %v6966
        %v6968 = vpop.f32.mrf.mxu0
        %6969 = vmatprep.mubr.bf16.mxu0 %v6306
        %6970 = vmatmul.mubr.bf16.gmra.mxu0 %v6305
        %v6971 = vpop.f32.mrf.mxu0
        %v6972 = vadd.f32 %v5080, %v6971
        %v6973 = vpop.f32.mrf.mxu0
        %v6974 = vpop.f32.mrf.mxu0
        %v6975 = vadd.f32 %v5085, %v6974
        %v6976 = vpop.f32.mrf.mxu0
        %6977 = vmatprep.mubr.bf16.mxu0 %v6310
        %6978 = vmatmul.mubr.bf16.gmra.mxu0 %v6309
        %v6979 = vpop.f32.mrf.mxu0
        %v6980 = vadd.f32 %v5090, %v6979
        %v6981 = vpop.f32.mrf.mxu0
        %v6982 = vpop.f32.mrf.mxu0
        %v6983 = vadd.f32 %v5095, %v6982
        %v6984 = vpop.f32.mrf.mxu0
        %6985 = vmatprep.mubr.bf16.mxu0 %v6314
        %6986 = vmatmul.mubr.bf16.gmra.mxu0 %v6313
        %v6987 = vpop.f32.mrf.mxu0
        %v6988 = vadd.f32 %v5100, %v6987
        %v6989 = vpop.f32.mrf.mxu0
        %v6990 = vpop.f32.mrf.mxu0
        %v6991 = vadd.f32 %v5105, %v6990
        %v6992 = vpop.f32.mrf.mxu0
        %6993 = vmatprep.mubr.bf16.mxu0 %v6318
        %6994 = vmatmul.mubr.bf16.gmra.mxu0 %v6317
        %v6995 = vpop.f32.mrf.mxu0
        %v6996 = vadd.f32 %v5110, %v6995
        %v6997 = vpop.f32.mrf.mxu0
        %v6998 = vpop.f32.mrf.mxu0
        %v6999 = vadd.f32 %v5115, %v6998
        %v7000 = vpop.f32.mrf.mxu0
        %7001 = vmatprep.mubr.bf16.mxu0 %v6322
        %7002 = vmatmul.mubr.bf16.gmra.mxu0 %v6321
        %v7003 = vpop.f32.mrf.mxu0
        %v7004 = vadd.f32 %v5120, %v7003
        %v7005 = vpop.f32.mrf.mxu0
        %v7006 = vpop.f32.mrf.mxu0
        %v7007 = vadd.f32 %v5125, %v7006
        %v7008 = vpop.f32.mrf.mxu0
        %7009 = vmatprep.mubr.bf16.mxu0 %v6326
        %7010 = vmatmul.mubr.bf16.gmra.mxu0 %v6325
        %v7011 = vpop.f32.mrf.mxu0
        %v7012 = vadd.f32 %v5130, %v7011
        %v7013 = vpop.f32.mrf.mxu0
        %v7014 = vpop.f32.mrf.mxu0
        %v7015 = vadd.f32 %v5135, %v7014
        %v7016 = vpop.f32.mrf.mxu0
        %7017 = vmatprep.mubr.bf16.mxu0 %v6330
        %7018 = vmatmul.mubr.bf16.gmra.mxu0 %v6329
        %v7019 = vpop.f32.mrf.mxu0
        %v7020 = vadd.f32 %v5140, %v7019
        %v7021 = vpop.f32.mrf.mxu0
        %v7022 = vpop.f32.mrf.mxu0
        %v7023 = vadd.f32 %v5145, %v7022
        %v7024 = vpop.f32.mrf.mxu0
        %7025 = vmatprep.mubr.bf16.mxu0 %v6334
        %7026 = vmatmul.mubr.bf16.gmra.mxu0 %v6333
        %v7027 = vpop.f32.mrf.mxu0
        %v7028 = vadd.f32 %v5150, %v7027
        %v7029 = vpop.f32.mrf.mxu0
        %v7030 = vpop.f32.mrf.mxu0
        %v7031 = vadd.f32 %v5155, %v7030
        %v7032 = vpop.f32.mrf.mxu0
        %7033 = vmatprep.mubr.bf16.mxu0 %v6338
        %7034 = vmatmul.mubr.bf16.gmra.mxu0 %v6337
        %v7035 = vpop.f32.mrf.mxu0
        %v7036 = vadd.f32 %v5160, %v7035
        %v7037 = vpop.f32.mrf.mxu0
        %v7038 = vpop.f32.mrf.mxu0
        %v7039 = vadd.f32 %v5165, %v7038
        %v7040 = vpop.f32.mrf.mxu0
        %7041 = vmatprep.mubr.bf16.mxu0 %v6342
        %7042 = vmatmul.mubr.bf16.gmra.mxu0 %v6341
        %v7043 = vpop.f32.mrf.mxu0
        %v7044 = vadd.f32 %v5170, %v7043
        %v7045 = vpop.f32.mrf.mxu0
        %v7046 = vpop.f32.mrf.mxu0
        %v7047 = vadd.f32 %v5175, %v7046
        %v7048 = vpop.f32.mrf.mxu0
        %7049 = vmatprep.mubr.bf16.mxu0 %v6346
        %7050 = vmatmul.mubr.bf16.gmra.mxu0 %v6345
        %v7051 = vpop.f32.mrf.mxu0
        %v7052 = vadd.f32 %v5180, %v7051
        %v7053 = vpop.f32.mrf.mxu0
        %v7054 = vpop.f32.mrf.mxu0
        %v7055 = vadd.f32 %v5185, %v7054
        %v7056 = vpop.f32.mrf.mxu0
        %7057 = vmatprep.mubr.bf16.mxu0 %v6350
        %7058 = vmatmul.mubr.bf16.gmra.mxu0 %v6349
        %v7059 = vpop.f32.mrf.mxu0
        %v7060 = vadd.f32 %v5190, %v7059
        %v7061 = vpop.f32.mrf.mxu0
        %v7062 = vpop.f32.mrf.mxu0
        %v7063 = vadd.f32 %v5195, %v7062
        %v7064 = vpop.f32.mrf.mxu0
        %7065 = vmatprep.mubr.bf16.mxu0 %v6354
        %7066 = vmatmul.mubr.bf16.gmra.mxu0 %v6353
        %v7067 = vpop.f32.mrf.mxu0
        %v7068 = vadd.f32 %v5200, %v7067
        %v7069 = vpop.f32.mrf.mxu0
        %v7070 = vpop.f32.mrf.mxu0
        %v7071 = vadd.f32 %v5205, %v7070
        %v7072 = vpop.f32.mrf.mxu0
        %7073 = vmatprep.mubr.bf16.mxu0 %v6358
        %7074 = vmatmul.mubr.bf16.gmra.mxu0 %v6357
        %v7075 = vpop.f32.mrf.mxu0
        %v7076 = vadd.f32 %v5210, %v7075
        %v7077 = vpop.f32.mrf.mxu0
        %v7078 = vpop.f32.mrf.mxu0
        %v7079 = vadd.f32 %v5215, %v7078
        %v7080 = vpop.f32.mrf.mxu0
        %7081 = vmatprep.mubr.bf16.mxu0 %v6362
        %7082 = vmatmul.mubr.bf16.gmra.mxu0 %v6361
        %v7083 = vpop.f32.mrf.mxu0
        %v7084 = vadd.f32 %v5220, %v7083
        %v7085 = vpop.f32.mrf.mxu0
        %v7086 = vpop.f32.mrf.mxu0
        %v7087 = vadd.f32 %v5225, %v7086
        %v7088 = vpop.f32.mrf.mxu0
        %7089 = vmatprep.mubr.bf16.mxu0 %v6366
        %7090 = vmatmul.mubr.bf16.gmra.mxu0 %v6365
        %v7091 = vpop.f32.mrf.mxu0
        %v7092 = vadd.f32 %v5230, %v7091
        %v7093 = vpop.f32.mrf.mxu0
        %v7094 = vpop.f32.mrf.mxu0
        %v7095 = vadd.f32 %v5235, %v7094
        %v7096 = vpop.f32.mrf.mxu0
        %7097 = vmatprep.mubr.bf16.mxu0 %v6370
        %7098 = vmatmul.mubr.bf16.gmra.mxu0 %v6369
        %v7099 = vpop.f32.mrf.mxu0
        %v7100 = vadd.f32 %v5240, %v7099
        %v7101 = vpop.f32.mrf.mxu0
        %v7102 = vpop.f32.mrf.mxu0
        %v7103 = vadd.f32 %v5245, %v7102
        %v7104 = vpop.f32.mrf.mxu0
        %7105 = vmatprep.mubr.bf16.mxu0 %v6374
        %7106 = vmatmul.mubr.bf16.gmra.mxu0 %v6373
        %v7107 = vpop.f32.mrf.mxu0
        %v7108 = vadd.f32 %v5250, %v7107
        %v7109 = vpop.f32.mrf.mxu0
        %v7110 = vpop.f32.mrf.mxu0
        %v7111 = vadd.f32 %v5255, %v7110
        %v7112 = vpop.f32.mrf.mxu0
        %7113 = vmatprep.mubr.bf16.mxu0 %v6378
        %7114 = vmatmul.mubr.bf16.gmra.mxu0 %v6377
        %v7115 = vpop.f32.mrf.mxu0
        %v7116 = vadd.f32 %v5260, %v7115
        %v7117 = vpop.f32.mrf.mxu0
        %v7118 = vpop.f32.mrf.mxu0
        %v7119 = vadd.f32 %v5265, %v7118
        %v7120 = vpop.f32.mrf.mxu0
        %7121 = vmatprep.mubr.bf16.mxu0 %v6382
        %7122 = vmatmul.mubr.bf16.gmra.mxu0 %v6381
        %v7123 = vpop.f32.mrf.mxu0
        %v7124 = vadd.f32 %v5270, %v7123
        %v7125 = vpop.f32.mrf.mxu0
        %v7126 = vpop.f32.mrf.mxu0
        %v7127 = vadd.f32 %v5275, %v7126
        %v7128 = vpop.f32.mrf.mxu0
        %7129 = vmatprep.mubr.bf16.mxu0 %v6386
        %7130 = vmatmul.mubr.bf16.gmra.mxu0 %v6385
        %v7131 = vpop.f32.mrf.mxu0
        %v7132 = vadd.f32 %v5280, %v7131
        %v7133 = vpop.f32.mrf.mxu0
        %v7134 = vpop.f32.mrf.mxu0
        %v7135 = vadd.f32 %v5285, %v7134
        %v7136 = vpop.f32.mrf.mxu0
        %7137 = vmatprep.mubr.bf16.mxu0 %v6390
        %7138 = vmatmul.mubr.bf16.gmra.mxu0 %v6389
        %v7139 = vpop.f32.mrf.mxu0
        %v7140 = vadd.f32 %v5290, %v7139
        %v7141 = vpop.f32.mrf.mxu0
        %v7142 = vpop.f32.mrf.mxu0
        %v7143 = vadd.f32 %v5295, %v7142
        %v7144 = vpop.f32.mrf.mxu0
        %7145 = vmatprep.mubr.bf16.mxu0 %v6394
        %7146 = vmatmul.mubr.bf16.gmra.mxu0 %v6393
        %v7147 = vpop.f32.mrf.mxu0
        %v7148 = vadd.f32 %v5300, %v7147
        %v7149 = vpop.f32.mrf.mxu0
        %v7150 = vpop.f32.mrf.mxu0
        %v7151 = vadd.f32 %v5305, %v7150
        %v7152 = vpop.f32.mrf.mxu0
        %7153 = vmatprep.mubr.bf16.mxu0 %v6398
        %7154 = vmatmul.mubr.bf16.gmra.mxu0 %v6397
        %v7155 = vpop.f32.mrf.mxu0
        %v7156 = vadd.f32 %v5310, %v7155
        %v7157 = vpop.f32.mrf.mxu0
        %v7158 = vpop.f32.mrf.mxu0
        %v7159 = vadd.f32 %v5315, %v7158
        %v7160 = vpop.f32.mrf.mxu0
        %7161 = vmatprep.mubr.bf16.mxu0 %v6402
        %7162 = vmatmul.mubr.bf16.gmra.mxu0 %v6401
        %v7163 = vpop.f32.mrf.mxu0
        %v7164 = vadd.f32 %v5320, %v7163
        %v7165 = vpop.f32.mrf.mxu0
        %v7166 = vpop.f32.mrf.mxu0
        %v7167 = vadd.f32 %v5325, %v7166
        %v7168 = vpop.f32.mrf.mxu0
        %7169 = vmatprep.mubr.bf16.mxu0 %v6406
        %7170 = vmatmul.mubr.bf16.gmra.mxu0 %v6405
        %v7171 = vpop.f32.mrf.mxu0
        %v7172 = vadd.f32 %v5330, %v7171
        %v7173 = vpop.f32.mrf.mxu0
        %v7174 = vpop.f32.mrf.mxu0
        %v7175 = vadd.f32 %v5335, %v7174
        %v7176 = vpop.f32.mrf.mxu0
        %7177 = vmatprep.mubr.bf16.mxu0 %v6410
        %7178 = vmatmul.mubr.bf16.gmra.mxu0 %v6409
        %v7179 = vpop.f32.mrf.mxu0
        %v7180 = vadd.f32 %v5340, %v7179
        %v7181 = vpop.f32.mrf.mxu0
        %v7182 = vpop.f32.mrf.mxu0
        %v7183 = vadd.f32 %v5345, %v7182
        %v7184 = vpop.f32.mrf.mxu0
        %7185 = vmatprep.mubr.bf16.mxu0 %v6414
        %7186 = vmatmul.mubr.bf16.gmra.mxu0 %v6413
        %v7187 = vpop.f32.mrf.mxu0
        %v7188 = vadd.f32 %v5350, %v7187
        %v7189 = vpop.f32.mrf.mxu0
        %v7190 = vpop.f32.mrf.mxu0
        %v7191 = vadd.f32 %v5355, %v7190
        %v7192 = vpop.f32.mrf.mxu0
        %7193 = vmatprep.mubr.bf16.mxu0 %v6418
        %7194 = vmatmul.mubr.bf16.gmra.mxu0 %v6417
        %v7195 = vpop.f32.mrf.mxu0
        %v7196 = vadd.f32 %v5360, %v7195
        %v7197 = vpop.f32.mrf.mxu0
        %v7198 = vpop.f32.mrf.mxu0
        %v7199 = vadd.f32 %v5365, %v7198
        %v7200 = vpop.f32.mrf.mxu0
        %7201 = vmatprep.mubr.bf16.mxu0 %v6422
        %7202 = vmatmul.mubr.bf16.gmra.mxu0 %v6421
        %v7203 = vpop.f32.mrf.mxu0
        %v7204 = vadd.f32 %v5370, %v7203
        %v7205 = vpop.f32.mrf.mxu0
        %v7206 = vpop.f32.mrf.mxu0
        %v7207 = vadd.f32 %v5375, %v7206
        %v7208 = vpop.f32.mrf.mxu0
        %7209 = vmatprep.mubr.bf16.mxu0 %v6426
        %7210 = vmatmul.mubr.bf16.gmra.mxu0 %v6425
        %v7211 = vpop.f32.mrf.mxu0
        %v7212 = vadd.f32 %v5380, %v7211
        %v7213 = vpop.f32.mrf.mxu0
        %v7214 = vpop.f32.mrf.mxu0
        %v7215 = vadd.f32 %v5385, %v7214
        %v7216 = vpop.f32.mrf.mxu0
        %7217 = vmatprep.mubr.bf16.mxu0 %v6430
        %7218 = vmatmul.mubr.bf16.gmra.mxu0 %v6429
        %v7219 = vpop.f32.mrf.mxu0
        %v7220 = vadd.f32 %v5390, %v7219
        %v7221 = vpop.f32.mrf.mxu0
        %v7222 = vpop.f32.mrf.mxu0
        %v7223 = vadd.f32 %v5395, %v7222
        %v7224 = vpop.f32.mrf.mxu0
        %7225 = vmatprep.mubr.bf16.mxu0 %v6434
        %7226 = vmatmul.mubr.bf16.gmra.mxu0 %v6433
        %v7227 = vpop.f32.mrf.mxu0
        %v7228 = vadd.f32 %v5400, %v7227
        %v7229 = vpop.f32.mrf.mxu0
        %v7230 = vpop.f32.mrf.mxu0
        %v7231 = vadd.f32 %v5405, %v7230
        %v7232 = vpop.f32.mrf.mxu0
        %7233 = vmatprep.mubr.bf16.mxu0 %v6438
        %7234 = vmatmul.mubr.bf16.gmra.mxu0 %v6437
        %v7235 = vpop.f32.mrf.mxu0
        %v7236 = vadd.f32 %v5410, %v7235
        %v7237 = vpop.f32.mrf.mxu0
        %v7238 = vpop.f32.mrf.mxu0
        %v7239 = vadd.f32 %v5415, %v7238
        %v7240 = vpop.f32.mrf.mxu0
        %7241 = vdwg.mxu0
        %7242 = vmatprep.subr.bf16.mxu0 0
        %7243 = vmatpush1.bf16.msra.mxu0 %v3451
        %7244 = vmatprep.subr.bf16.mxu0 0
        %7245 = vmatpush1.bf16.msra.mxu0 %v3450
        %7246 = vmatprep.subr.bf16.mxu0 0
        %7247 = vmatpush1.bf16.msra.mxu0 %v3449
        %7248 = vmatprep.subr.bf16.mxu0 0
        %7249 = vmatpush1.bf16.msra.mxu0 %v3448
        %7250 = vmatprep.subr.bf16.mxu0 0
        %7251 = vmatpush1.bf16.msra.mxu0 %v3447
        %7252 = vmatprep.subr.bf16.mxu0 0
        %7253 = vmatpush1.bf16.msra.mxu0 %v3446
        %7254 = vmatprep.subr.bf16.mxu0 0
        %7255 = vmatpush1.bf16.msra.mxu0 %v3445
        %7256 = vmatprep.subr.bf16.mxu0 0
        %7257 = vmatpush1.bf16.msra.mxu0 %v3444
        %7258 = vmatprep.subr.bf16.mxu0 0
        %7259 = vmatpush2.bf16.msra.mxu0 %v4388
        %7260 = vmatprep.subr.bf16.mxu0 0
        %7261 = vmatpush2.bf16.msra.mxu0 %v4387
        %7262 = vmatprep.subr.bf16.mxu0 0
        %7263 = vmatpush2.bf16.msra.mxu0 %v4386
        %7264 = vmatprep.subr.bf16.mxu0 0
        %7265 = vmatpush2.bf16.msra.mxu0 %v4385
        %7266 = vmatprep.subr.bf16.mxu0 0
        %7267 = vmatpush2.bf16.msra.mxu0 %v4384
        %7268 = vmatprep.subr.bf16.mxu0 0
        %7269 = vmatpush2.bf16.msra.mxu0 %v4383
        %7270 = vmatprep.subr.bf16.mxu0 0
        %7271 = vmatpush2.bf16.msra.mxu0 %v4382
        %7272 = vmatprep.subr.bf16.mxu0 0
        %7273 = vmatpush2.bf16.msra.mxu0 %v4381
        %7274 = vmatprep.mubr.bf16.mxu0 %v6188
        %7275 = vmatmul.mubr.bf16.gmra.mxu0 %v6187
        %v7276 = vpop.f32.mrf.mxu0
        %v7277 = vadd.f32 %v6732, %v7276
        %v7278 = vpop.f32.mrf.mxu0
        %v7279 = vpop.f32.mrf.mxu0
        %v7280 = vadd.f32 %v6735, %v7279
        %v7281 = vpop.f32.mrf.mxu0
        %7282 = vmatprep.mubr.bf16.mxu0 %v6192
        %7283 = vmatmul.mubr.bf16.gmra.mxu0 %v6191
        %v7284 = vpop.f32.mrf.mxu0
        %v7285 = vadd.f32 %v6740, %v7284
        %v7286 = vpop.f32.mrf.mxu0
        %v7287 = vpop.f32.mrf.mxu0
        %v7288 = vadd.f32 %v6743, %v7287
        %v7289 = vpop.f32.mrf.mxu0
        %7290 = vmatprep.mubr.bf16.mxu0 %v6196
        %7291 = vmatmul.mubr.bf16.gmra.mxu0 %v6195
        %v7292 = vpop.f32.mrf.mxu0
        %v7293 = vadd.f32 %v6748, %v7292
        %v7294 = vpop.f32.mrf.mxu0
        %v7295 = vpop.f32.mrf.mxu0
        %v7296 = vadd.f32 %v6751, %v7295
        %v7297 = vpop.f32.mrf.mxu0
        %7298 = vmatprep.mubr.bf16.mxu0 %v6200
        %7299 = vmatmul.mubr.bf16.gmra.mxu0 %v6199
        %v7300 = vpop.f32.mrf.mxu0
        %v7301 = vadd.f32 %v6756, %v7300
        %v7302 = vpop.f32.mrf.mxu0
        %v7303 = vpop.f32.mrf.mxu0
        %v7304 = vadd.f32 %v6759, %v7303
        %v7305 = vpop.f32.mrf.mxu0
        %7306 = vmatprep.mubr.bf16.mxu0 %v6204
        %7307 = vmatmul.mubr.bf16.gmra.mxu0 %v6203
        %v7308 = vpop.f32.mrf.mxu0
        %v7309 = vadd.f32 %v6764, %v7308
        %v7310 = vpop.f32.mrf.mxu0
        %v7311 = vpop.f32.mrf.mxu0
        %v7312 = vadd.f32 %v6767, %v7311
        %v7313 = vpop.f32.mrf.mxu0
        %7314 = vmatprep.mubr.bf16.mxu0 %v6208
        %7315 = vmatmul.mubr.bf16.gmra.mxu0 %v6207
        %v7316 = vpop.f32.mrf.mxu0
        %v7317 = vadd.f32 %v6772, %v7316
        %v7318 = vpop.f32.mrf.mxu0
        %v7319 = vpop.f32.mrf.mxu0
        %v7320 = vadd.f32 %v6775, %v7319
        %v7321 = vpop.f32.mrf.mxu0
        %7322 = vmatprep.mubr.bf16.mxu0 %v6212
        %7323 = vmatmul.mubr.bf16.gmra.mxu0 %v6211
        %v7324 = vpop.f32.mrf.mxu0
        %v7325 = vadd.f32 %v6780, %v7324
        %v7326 = vpop.f32.mrf.mxu0
        %v7327 = vpop.f32.mrf.mxu0
        %v7328 = vadd.f32 %v6783, %v7327
        %v7329 = vpop.f32.mrf.mxu0
        %7330 = vmatprep.mubr.bf16.mxu0 %v6216
        %7331 = vmatmul.mubr.bf16.gmra.mxu0 %v6215
        %v7332 = vpop.f32.mrf.mxu0
        %v7333 = vadd.f32 %v6788, %v7332
        %v7334 = vpop.f32.mrf.mxu0
        %v7335 = vpop.f32.mrf.mxu0
        %v7336 = vadd.f32 %v6791, %v7335
        %v7337 = vpop.f32.mrf.mxu0
        %7338 = vmatprep.mubr.bf16.mxu0 %v6220
        %7339 = vmatmul.mubr.bf16.gmra.mxu0 %v6219
        %v7340 = vpop.f32.mrf.mxu0
        %v7341 = vadd.f32 %v6796, %v7340
        %v7342 = vpop.f32.mrf.mxu0
        %v7343 = vpop.f32.mrf.mxu0
        %v7344 = vadd.f32 %v6799, %v7343
        %v7345 = vpop.f32.mrf.mxu0
        %7346 = vmatprep.mubr.bf16.mxu0 %v6224
        %7347 = vmatmul.mubr.bf16.gmra.mxu0 %v6223
        %v7348 = vpop.f32.mrf.mxu0
        %v7349 = vadd.f32 %v6804, %v7348
        %v7350 = vpop.f32.mrf.mxu0
        %v7351 = vpop.f32.mrf.mxu0
        %v7352 = vadd.f32 %v6807, %v7351
        %v7353 = vpop.f32.mrf.mxu0
        %7354 = vmatprep.mubr.bf16.mxu0 %v6228
        %7355 = vmatmul.mubr.bf16.gmra.mxu0 %v6227
        %v7356 = vpop.f32.mrf.mxu0
        %v7357 = vadd.f32 %v6812, %v7356
        %v7358 = vpop.f32.mrf.mxu0
        %v7359 = vpop.f32.mrf.mxu0
        %v7360 = vadd.f32 %v6815, %v7359
        %v7361 = vpop.f32.mrf.mxu0
        %7362 = vmatprep.mubr.bf16.mxu0 %v6232
        %7363 = vmatmul.mubr.bf16.gmra.mxu0 %v6231
        %v7364 = vpop.f32.mrf.mxu0
        %v7365 = vadd.f32 %v6820, %v7364
        %v7366 = vpop.f32.mrf.mxu0
        %v7367 = vpop.f32.mrf.mxu0
        %v7368 = vadd.f32 %v6823, %v7367
        %v7369 = vpop.f32.mrf.mxu0
        %7370 = vmatprep.mubr.bf16.mxu0 %v6236
        %7371 = vmatmul.mubr.bf16.gmra.mxu0 %v6235
        %v7372 = vpop.f32.mrf.mxu0
        %v7373 = vadd.f32 %v6828, %v7372
        %v7374 = vpop.f32.mrf.mxu0
        %v7375 = vpop.f32.mrf.mxu0
        %v7376 = vadd.f32 %v6831, %v7375
        %v7377 = vpop.f32.mrf.mxu0
        %7378 = vmatprep.mubr.bf16.mxu0 %v6240
        %7379 = vmatmul.mubr.bf16.gmra.mxu0 %v6239
        %v7380 = vpop.f32.mrf.mxu0
        %v7381 = vadd.f32 %v6836, %v7380
        %v7382 = vpop.f32.mrf.mxu0
        %v7383 = vpop.f32.mrf.mxu0
        %v7384 = vadd.f32 %v6839, %v7383
        %v7385 = vpop.f32.mrf.mxu0
        %7386 = vmatprep.mubr.bf16.mxu0 %v6244
        %7387 = vmatmul.mubr.bf16.gmra.mxu0 %v6243
        %v7388 = vpop.f32.mrf.mxu0
        %v7389 = vadd.f32 %v6844, %v7388
        %v7390 = vpop.f32.mrf.mxu0
        %v7391 = vpop.f32.mrf.mxu0
        %v7392 = vadd.f32 %v6847, %v7391
        %v7393 = vpop.f32.mrf.mxu0
        %7394 = vmatprep.mubr.bf16.mxu0 %v6248
        %7395 = vmatmul.mubr.bf16.gmra.mxu0 %v6247
        %v7396 = vpop.f32.mrf.mxu0
        %v7397 = vadd.f32 %v6852, %v7396
        %v7398 = vpop.f32.mrf.mxu0
        %v7399 = vpop.f32.mrf.mxu0
        %v7400 = vadd.f32 %v6855, %v7399
        %v7401 = vpop.f32.mrf.mxu0
        %7402 = vmatprep.mubr.bf16.mxu0 %v6252
        %7403 = vmatmul.mubr.bf16.gmra.mxu0 %v6251
        %v7404 = vpop.f32.mrf.mxu0
        %v7405 = vadd.f32 %v6860, %v7404
        %v7406 = vpop.f32.mrf.mxu0
        %v7407 = vpop.f32.mrf.mxu0
        %v7408 = vadd.f32 %v6863, %v7407
        %v7409 = vpop.f32.mrf.mxu0
        %7410 = vmatprep.mubr.bf16.mxu0 %v6256
        %7411 = vmatmul.mubr.bf16.gmra.mxu0 %v6255
        %v7412 = vpop.f32.mrf.mxu0
        %v7413 = vadd.f32 %v6868, %v7412
        %v7414 = vpop.f32.mrf.mxu0
        %v7415 = vpop.f32.mrf.mxu0
        %v7416 = vadd.f32 %v6871, %v7415
        %v7417 = vpop.f32.mrf.mxu0
        %7418 = vmatprep.mubr.bf16.mxu0 %v6260
        %7419 = vmatmul.mubr.bf16.gmra.mxu0 %v6259
        %v7420 = vpop.f32.mrf.mxu0
        %v7421 = vadd.f32 %v6876, %v7420
        %v7422 = vpop.f32.mrf.mxu0
        %v7423 = vpop.f32.mrf.mxu0
        %v7424 = vadd.f32 %v6879, %v7423
        %v7425 = vpop.f32.mrf.mxu0
        %7426 = vmatprep.mubr.bf16.mxu0 %v6264
        %7427 = vmatmul.mubr.bf16.gmra.mxu0 %v6263
        %v7428 = vpop.f32.mrf.mxu0
        %v7429 = vadd.f32 %v6884, %v7428
        %v7430 = vpop.f32.mrf.mxu0
        %v7431 = vpop.f32.mrf.mxu0
        %v7432 = vadd.f32 %v6887, %v7431
        %v7433 = vpop.f32.mrf.mxu0
        %7434 = vmatprep.mubr.bf16.mxu0 %v6268
        %7435 = vmatmul.mubr.bf16.gmra.mxu0 %v6267
        %v7436 = vpop.f32.mrf.mxu0
        %v7437 = vadd.f32 %v6892, %v7436
        %v7438 = vpop.f32.mrf.mxu0
        %v7439 = vpop.f32.mrf.mxu0
        %v7440 = vadd.f32 %v6895, %v7439
        %v7441 = vpop.f32.mrf.mxu0
        %7442 = vmatprep.mubr.bf16.mxu0 %v6272
        %7443 = vmatmul.mubr.bf16.gmra.mxu0 %v6271
        %v7444 = vpop.f32.mrf.mxu0
        %v7445 = vadd.f32 %v6900, %v7444
        %v7446 = vpop.f32.mrf.mxu0
        %v7447 = vpop.f32.mrf.mxu0
        %v7448 = vadd.f32 %v6903, %v7447
        %v7449 = vpop.f32.mrf.mxu0
        %7450 = vmatprep.mubr.bf16.mxu0 %v6276
        %7451 = vmatmul.mubr.bf16.gmra.mxu0 %v6275
        %v7452 = vpop.f32.mrf.mxu0
        %v7453 = vadd.f32 %v6908, %v7452
        %v7454 = vpop.f32.mrf.mxu0
        %v7455 = vpop.f32.mrf.mxu0
        %v7456 = vadd.f32 %v6911, %v7455
        %v7457 = vpop.f32.mrf.mxu0
        %7458 = vmatprep.mubr.bf16.mxu0 %v6280
        %7459 = vmatmul.mubr.bf16.gmra.mxu0 %v6279
        %v7460 = vpop.f32.mrf.mxu0
        %v7461 = vadd.f32 %v6916, %v7460
        %v7462 = vpop.f32.mrf.mxu0
        %v7463 = vpop.f32.mrf.mxu0
        %v7464 = vadd.f32 %v6919, %v7463
        %v7465 = vpop.f32.mrf.mxu0
        %7466 = vmatprep.mubr.bf16.mxu0 %v6284
        %7467 = vmatmul.mubr.bf16.gmra.mxu0 %v6283
        %v7468 = vpop.f32.mrf.mxu0
        %v7469 = vadd.f32 %v6924, %v7468
        %v7470 = vpop.f32.mrf.mxu0
        %v7471 = vpop.f32.mrf.mxu0
        %v7472 = vadd.f32 %v6927, %v7471
        %v7473 = vpop.f32.mrf.mxu0
        %7474 = vmatprep.mubr.bf16.mxu0 %v6288
        %7475 = vmatmul.mubr.bf16.gmra.mxu0 %v6287
        %v7476 = vpop.f32.mrf.mxu0
        %v7477 = vadd.f32 %v6932, %v7476
        %v7478 = vpop.f32.mrf.mxu0
        %v7479 = vpop.f32.mrf.mxu0
        %v7480 = vadd.f32 %v6935, %v7479
        %v7481 = vpop.f32.mrf.mxu0
        %7482 = vmatprep.mubr.bf16.mxu0 %v6292
        %7483 = vmatmul.mubr.bf16.gmra.mxu0 %v6291
        %v7484 = vpop.f32.mrf.mxu0
        %v7485 = vadd.f32 %v6940, %v7484
        %v7486 = vpop.f32.mrf.mxu0
        %v7487 = vpop.f32.mrf.mxu0
        %v7488 = vadd.f32 %v6943, %v7487
        %v7489 = vpop.f32.mrf.mxu0
        %7490 = vmatprep.mubr.bf16.mxu0 %v6296
        %7491 = vmatmul.mubr.bf16.gmra.mxu0 %v6295
        %v7492 = vpop.f32.mrf.mxu0
        %v7493 = vadd.f32 %v6948, %v7492
        %v7494 = vpop.f32.mrf.mxu0
        %v7495 = vpop.f32.mrf.mxu0
        %v7496 = vadd.f32 %v6951, %v7495
        %v7497 = vpop.f32.mrf.mxu0
        %7498 = vmatprep.mubr.bf16.mxu0 %v6300
        %7499 = vmatmul.mubr.bf16.gmra.mxu0 %v6299
        %v7500 = vpop.f32.mrf.mxu0
        %v7501 = vadd.f32 %v6956, %v7500
        %v7502 = vpop.f32.mrf.mxu0
        %v7503 = vpop.f32.mrf.mxu0
        %v7504 = vadd.f32 %v6959, %v7503
        %v7505 = vpop.f32.mrf.mxu0
        %7506 = vmatprep.mubr.bf16.mxu0 %v6304
        %7507 = vmatmul.mubr.bf16.gmra.mxu0 %v6303
        %v7508 = vpop.f32.mrf.mxu0
        %v7509 = vadd.f32 %v6964, %v7508
        %v7510 = vpop.f32.mrf.mxu0
        %v7511 = vpop.f32.mrf.mxu0
        %v7512 = vadd.f32 %v6967, %v7511
        %v7513 = vpop.f32.mrf.mxu0
        %7514 = vmatprep.mubr.bf16.mxu0 %v6308
        %7515 = vmatmul.mubr.bf16.gmra.mxu0 %v6307
        %v7516 = vpop.f32.mrf.mxu0
        %v7517 = vadd.f32 %v6972, %v7516
        %v7518 = vpop.f32.mrf.mxu0
        %v7519 = vpop.f32.mrf.mxu0
        %v7520 = vadd.f32 %v6975, %v7519
        %v7521 = vpop.f32.mrf.mxu0
        %7522 = vmatprep.mubr.bf16.mxu0 %v6312
        %7523 = vmatmul.mubr.bf16.gmra.mxu0 %v6311
        %v7524 = vpop.f32.mrf.mxu0
        %v7525 = vadd.f32 %v6980, %v7524
        %v7526 = vpop.f32.mrf.mxu0
        %v7527 = vpop.f32.mrf.mxu0
        %v7528 = vadd.f32 %v6983, %v7527
        %v7529 = vpop.f32.mrf.mxu0
        %7530 = vmatprep.mubr.bf16.mxu0 %v6316
        %7531 = vmatmul.mubr.bf16.gmra.mxu0 %v6315
        %v7532 = vpop.f32.mrf.mxu0
        %v7533 = vadd.f32 %v6988, %v7532
        %v7534 = vpop.f32.mrf.mxu0
        %v7535 = vpop.f32.mrf.mxu0
        %v7536 = vadd.f32 %v6991, %v7535
        %v7537 = vpop.f32.mrf.mxu0
        %7538 = vmatprep.mubr.bf16.mxu0 %v6320
        %7539 = vmatmul.mubr.bf16.gmra.mxu0 %v6319
        %v7540 = vpop.f32.mrf.mxu0
        %v7541 = vadd.f32 %v6996, %v7540
        %v7542 = vpop.f32.mrf.mxu0
        %v7543 = vpop.f32.mrf.mxu0
        %v7544 = vadd.f32 %v6999, %v7543
        %v7545 = vpop.f32.mrf.mxu0
        %7546 = vmatprep.mubr.bf16.mxu0 %v6324
        %7547 = vmatmul.mubr.bf16.gmra.mxu0 %v6323
        %v7548 = vpop.f32.mrf.mxu0
        %v7549 = vadd.f32 %v7004, %v7548
        %v7550 = vpop.f32.mrf.mxu0
        %v7551 = vpop.f32.mrf.mxu0
        %v7552 = vadd.f32 %v7007, %v7551
        %v7553 = vpop.f32.mrf.mxu0
        %7554 = vmatprep.mubr.bf16.mxu0 %v6328
        %7555 = vmatmul.mubr.bf16.gmra.mxu0 %v6327
        %v7556 = vpop.f32.mrf.mxu0
        %v7557 = vadd.f32 %v7012, %v7556
        %v7558 = vpop.f32.mrf.mxu0
        %v7559 = vpop.f32.mrf.mxu0
        %v7560 = vadd.f32 %v7015, %v7559
        %v7561 = vpop.f32.mrf.mxu0
        %7562 = vmatprep.mubr.bf16.mxu0 %v6332
        %7563 = vmatmul.mubr.bf16.gmra.mxu0 %v6331
        %v7564 = vpop.f32.mrf.mxu0
        %v7565 = vadd.f32 %v7020, %v7564
        %v7566 = vpop.f32.mrf.mxu0
        %v7567 = vpop.f32.mrf.mxu0
        %v7568 = vadd.f32 %v7023, %v7567
        %v7569 = vpop.f32.mrf.mxu0
        %7570 = vmatprep.mubr.bf16.mxu0 %v6336
        %7571 = vmatmul.mubr.bf16.gmra.mxu0 %v6335
        %v7572 = vpop.f32.mrf.mxu0
        %v7573 = vadd.f32 %v7028, %v7572
        %v7574 = vpop.f32.mrf.mxu0
        %v7575 = vpop.f32.mrf.mxu0
        %v7576 = vadd.f32 %v7031, %v7575
        %v7577 = vpop.f32.mrf.mxu0
        %7578 = vmatprep.mubr.bf16.mxu0 %v6340
        %7579 = vmatmul.mubr.bf16.gmra.mxu0 %v6339
        %v7580 = vpop.f32.mrf.mxu0
        %v7581 = vadd.f32 %v7036, %v7580
        %v7582 = vpop.f32.mrf.mxu0
        %v7583 = vpop.f32.mrf.mxu0
        %v7584 = vadd.f32 %v7039, %v7583
        %v7585 = vpop.f32.mrf.mxu0
        %7586 = vmatprep.mubr.bf16.mxu0 %v6344
        %7587 = vmatmul.mubr.bf16.gmra.mxu0 %v6343
        %v7588 = vpop.f32.mrf.mxu0
        %v7589 = vadd.f32 %v7044, %v7588
        %v7590 = vpop.f32.mrf.mxu0
        %v7591 = vpop.f32.mrf.mxu0
        %v7592 = vadd.f32 %v7047, %v7591
        %v7593 = vpop.f32.mrf.mxu0
        %7594 = vmatprep.mubr.bf16.mxu0 %v6348
        %7595 = vmatmul.mubr.bf16.gmra.mxu0 %v6347
        %v7596 = vpop.f32.mrf.mxu0
        %v7597 = vadd.f32 %v7052, %v7596
        %v7598 = vpop.f32.mrf.mxu0
        %v7599 = vpop.f32.mrf.mxu0
        %v7600 = vadd.f32 %v7055, %v7599
        %v7601 = vpop.f32.mrf.mxu0
        %7602 = vmatprep.mubr.bf16.mxu0 %v6352
        %7603 = vmatmul.mubr.bf16.gmra.mxu0 %v6351
        %v7604 = vpop.f32.mrf.mxu0
        %v7605 = vadd.f32 %v7060, %v7604
        %v7606 = vpop.f32.mrf.mxu0
        %v7607 = vpop.f32.mrf.mxu0
        %v7608 = vadd.f32 %v7063, %v7607
        %v7609 = vpop.f32.mrf.mxu0
        %7610 = vmatprep.mubr.bf16.mxu0 %v6356
        %7611 = vmatmul.mubr.bf16.gmra.mxu0 %v6355
        %v7612 = vpop.f32.mrf.mxu0
        %v7613 = vadd.f32 %v7068, %v7612
        %v7614 = vpop.f32.mrf.mxu0
        %v7615 = vpop.f32.mrf.mxu0
        %v7616 = vadd.f32 %v7071, %v7615
        %v7617 = vpop.f32.mrf.mxu0
        %7618 = vmatprep.mubr.bf16.mxu0 %v6360
        %7619 = vmatmul.mubr.bf16.gmra.mxu0 %v6359
        %v7620 = vpop.f32.mrf.mxu0
        %v7621 = vadd.f32 %v7076, %v7620
        %v7622 = vpop.f32.mrf.mxu0
        %v7623 = vpop.f32.mrf.mxu0
        %v7624 = vadd.f32 %v7079, %v7623
        %v7625 = vpop.f32.mrf.mxu0
        %7626 = vmatprep.mubr.bf16.mxu0 %v6364
        %7627 = vmatmul.mubr.bf16.gmra.mxu0 %v6363
        %v7628 = vpop.f32.mrf.mxu0
        %v7629 = vadd.f32 %v7084, %v7628
        %v7630 = vpop.f32.mrf.mxu0
        %v7631 = vpop.f32.mrf.mxu0
        %v7632 = vadd.f32 %v7087, %v7631
        %v7633 = vpop.f32.mrf.mxu0
        %7634 = vmatprep.mubr.bf16.mxu0 %v6368
        %7635 = vmatmul.mubr.bf16.gmra.mxu0 %v6367
        %v7636 = vpop.f32.mrf.mxu0
        %v7637 = vadd.f32 %v7092, %v7636
        %v7638 = vpop.f32.mrf.mxu0
        %v7639 = vpop.f32.mrf.mxu0
        %v7640 = vadd.f32 %v7095, %v7639
        %v7641 = vpop.f32.mrf.mxu0
        %7642 = vmatprep.mubr.bf16.mxu0 %v6372
        %7643 = vmatmul.mubr.bf16.gmra.mxu0 %v6371
        %v7644 = vpop.f32.mrf.mxu0
        %v7645 = vadd.f32 %v7100, %v7644
        %v7646 = vpop.f32.mrf.mxu0
        %v7647 = vpop.f32.mrf.mxu0
        %v7648 = vadd.f32 %v7103, %v7647
        %v7649 = vpop.f32.mrf.mxu0
        %7650 = vmatprep.mubr.bf16.mxu0 %v6376
        %7651 = vmatmul.mubr.bf16.gmra.mxu0 %v6375
        %v7652 = vpop.f32.mrf.mxu0
        %v7653 = vadd.f32 %v7108, %v7652
        %v7654 = vpop.f32.mrf.mxu0
        %v7655 = vpop.f32.mrf.mxu0
        %v7656 = vadd.f32 %v7111, %v7655
        %v7657 = vpop.f32.mrf.mxu0
        %7658 = vmatprep.mubr.bf16.mxu0 %v6380
        %7659 = vmatmul.mubr.bf16.gmra.mxu0 %v6379
        %v7660 = vpop.f32.mrf.mxu0
        %v7661 = vadd.f32 %v7116, %v7660
        %v7662 = vpop.f32.mrf.mxu0
        %v7663 = vpop.f32.mrf.mxu0
        %v7664 = vadd.f32 %v7119, %v7663
        %v7665 = vpop.f32.mrf.mxu0
        %7666 = vmatprep.mubr.bf16.mxu0 %v6384
        %7667 = vmatmul.mubr.bf16.gmra.mxu0 %v6383
        %v7668 = vpop.f32.mrf.mxu0
        %v7669 = vadd.f32 %v7124, %v7668
        %v7670 = vpop.f32.mrf.mxu0
        %v7671 = vpop.f32.mrf.mxu0
        %v7672 = vadd.f32 %v7127, %v7671
        %v7673 = vpop.f32.mrf.mxu0
        %7674 = vmatprep.mubr.bf16.mxu0 %v6388
        %7675 = vmatmul.mubr.bf16.gmra.mxu0 %v6387
        %v7676 = vpop.f32.mrf.mxu0
        %v7677 = vadd.f32 %v7132, %v7676
        %v7678 = vpop.f32.mrf.mxu0
        %v7679 = vpop.f32.mrf.mxu0
        %v7680 = vadd.f32 %v7135, %v7679
        %v7681 = vpop.f32.mrf.mxu0
        %7682 = vmatprep.mubr.bf16.mxu0 %v6392
        %7683 = vmatmul.mubr.bf16.gmra.mxu0 %v6391
        %v7684 = vpop.f32.mrf.mxu0
        %v7685 = vadd.f32 %v7140, %v7684
        %v7686 = vpop.f32.mrf.mxu0
        %v7687 = vpop.f32.mrf.mxu0
        %v7688 = vadd.f32 %v7143, %v7687
        %v7689 = vpop.f32.mrf.mxu0
        %7690 = vmatprep.mubr.bf16.mxu0 %v6396
        %7691 = vmatmul.mubr.bf16.gmra.mxu0 %v6395
        %v7692 = vpop.f32.mrf.mxu0
        %v7693 = vadd.f32 %v7148, %v7692
        %v7694 = vpop.f32.mrf.mxu0
        %v7695 = vpop.f32.mrf.mxu0
        %v7696 = vadd.f32 %v7151, %v7695
        %v7697 = vpop.f32.mrf.mxu0
        %7698 = vmatprep.mubr.bf16.mxu0 %v6400
        %7699 = vmatmul.mubr.bf16.gmra.mxu0 %v6399
        %v7700 = vpop.f32.mrf.mxu0
        %v7701 = vadd.f32 %v7156, %v7700
        %v7702 = vpop.f32.mrf.mxu0
        %v7703 = vpop.f32.mrf.mxu0
        %v7704 = vadd.f32 %v7159, %v7703
        %v7705 = vpop.f32.mrf.mxu0
        %7706 = vmatprep.mubr.bf16.mxu0 %v6404
        %7707 = vmatmul.mubr.bf16.gmra.mxu0 %v6403
        %v7708 = vpop.f32.mrf.mxu0
        %v7709 = vadd.f32 %v7164, %v7708
        %v7710 = vpop.f32.mrf.mxu0
        %v7711 = vpop.f32.mrf.mxu0
        %v7712 = vadd.f32 %v7167, %v7711
        %v7713 = vpop.f32.mrf.mxu0
        %7714 = vmatprep.mubr.bf16.mxu0 %v6408
        %7715 = vmatmul.mubr.bf16.gmra.mxu0 %v6407
        %v7716 = vpop.f32.mrf.mxu0
        %v7717 = vadd.f32 %v7172, %v7716
        %v7718 = vpop.f32.mrf.mxu0
        %v7719 = vpop.f32.mrf.mxu0
        %v7720 = vadd.f32 %v7175, %v7719
        %v7721 = vpop.f32.mrf.mxu0
        %7722 = vmatprep.mubr.bf16.mxu0 %v6412
        %7723 = vmatmul.mubr.bf16.gmra.mxu0 %v6411
        %v7724 = vpop.f32.mrf.mxu0
        %v7725 = vadd.f32 %v7180, %v7724
        %v7726 = vpop.f32.mrf.mxu0
        %v7727 = vpop.f32.mrf.mxu0
        %v7728 = vadd.f32 %v7183, %v7727
        %v7729 = vpop.f32.mrf.mxu0
        %7730 = vmatprep.mubr.bf16.mxu0 %v6416
        %7731 = vmatmul.mubr.bf16.gmra.mxu0 %v6415
        %v7732 = vpop.f32.mrf.mxu0
        %v7733 = vadd.f32 %v7188, %v7732
        %v7734 = vpop.f32.mrf.mxu0
        %v7735 = vpop.f32.mrf.mxu0
        %v7736 = vadd.f32 %v7191, %v7735
        %v7737 = vpop.f32.mrf.mxu0
        %7738 = vmatprep.mubr.bf16.mxu0 %v6420
        %7739 = vmatmul.mubr.bf16.gmra.mxu0 %v6419
        %v7740 = vpop.f32.mrf.mxu0
        %v7741 = vadd.f32 %v7196, %v7740
        %v7742 = vpop.f32.mrf.mxu0
        %v7743 = vpop.f32.mrf.mxu0
        %v7744 = vadd.f32 %v7199, %v7743
        %v7745 = vpop.f32.mrf.mxu0
        %7746 = vmatprep.mubr.bf16.mxu0 %v6424
        %7747 = vmatmul.mubr.bf16.gmra.mxu0 %v6423
        %v7748 = vpop.f32.mrf.mxu0
        %v7749 = vadd.f32 %v7204, %v7748
        %v7750 = vpop.f32.mrf.mxu0
        %v7751 = vpop.f32.mrf.mxu0
        %v7752 = vadd.f32 %v7207, %v7751
        %v7753 = vpop.f32.mrf.mxu0
        %7754 = vmatprep.mubr.bf16.mxu0 %v6428
        %7755 = vmatmul.mubr.bf16.gmra.mxu0 %v6427
        %v7756 = vpop.f32.mrf.mxu0
        %v7757 = vadd.f32 %v7212, %v7756
        %v7758 = vpop.f32.mrf.mxu0
        %v7759 = vpop.f32.mrf.mxu0
        %v7760 = vadd.f32 %v7215, %v7759
        %v7761 = vpop.f32.mrf.mxu0
        %7762 = vmatprep.mubr.bf16.mxu0 %v6432
        %7763 = vmatmul.mubr.bf16.gmra.mxu0 %v6431
        %v7764 = vpop.f32.mrf.mxu0
        %v7765 = vadd.f32 %v7220, %v7764
        %v7766 = vpop.f32.mrf.mxu0
        %v7767 = vpop.f32.mrf.mxu0
        %v7768 = vadd.f32 %v7223, %v7767
        %v7769 = vpop.f32.mrf.mxu0
        %7770 = vmatprep.mubr.bf16.mxu0 %v6436
        %7771 = vmatmul.mubr.bf16.gmra.mxu0 %v6435
        %v7772 = vpop.f32.mrf.mxu0
        %v7773 = vadd.f32 %v7228, %v7772
        %v7774 = vpop.f32.mrf.mxu0
        %v7775 = vpop.f32.mrf.mxu0
        %v7776 = vadd.f32 %v7231, %v7775
        %v7777 = vpop.f32.mrf.mxu0
        %7778 = vmatprep.mubr.bf16.mxu0 %v6440
        %7779 = vmatmul.mubr.bf16.gmra.mxu0 %v6439
        %v7780 = vpop.f32.mrf.mxu0
        %v7781 = vadd.f32 %v7236, %v7780
        %v7782 = vpop.f32.mrf.mxu0
        %v7783 = vpop.f32.mrf.mxu0
        %v7784 = vadd.f32 %v7239, %v7783
        %v7785 = vpop.f32.mrf.mxu0
        %7786 = vdwg.mxu0
        %vm7787 = vcmp.gt.f32.partialorder %v7277, 0.0
        %vm7788 = vcmp.gt.f32.partialorder %v7280, 0.0
        %vm7789 = vcmp.gt.f32.partialorder %v7285, 0.0
        %vm7790 = vcmp.gt.f32.partialorder %v7288, 0.0
        %vm7791 = vcmp.gt.f32.partialorder %v7293, 0.0
        %vm7792 = vcmp.gt.f32.partialorder %v7296, 0.0
        %vm7793 = vcmp.gt.f32.partialorder %v7301, 0.0
        %vm7794 = vcmp.gt.f32.partialorder %v7304, 0.0
        %vm7795 = vcmp.gt.f32.partialorder %v7309, 0.0
        %vm7796 = vcmp.gt.f32.partialorder %v7312, 0.0
        %vm7797 = vcmp.gt.f32.partialorder %v7317, 0.0
        %vm7798 = vcmp.gt.f32.partialorder %v7320, 0.0
        %vm7799 = vcmp.gt.f32.partialorder %v7325, 0.0
        %vm7800 = vcmp.gt.f32.partialorder %v7328, 0.0
        %vm7801 = vcmp.gt.f32.partialorder %v7333, 0.0
        %vm7802 = vcmp.gt.f32.partialorder %v7336, 0.0
        %vm7803 = vcmp.gt.f32.partialorder %v7341, 0.0
        %vm7804 = vcmp.gt.f32.partialorder %v7344, 0.0
        %vm7805 = vcmp.gt.f32.partialorder %v7349, 0.0
        %vm7806 = vcmp.gt.f32.partialorder %v7352, 0.0
        %vm7807 = vcmp.gt.f32.partialorder %v7357, 0.0
        %vm7808 = vcmp.gt.f32.partialorder %v7360, 0.0
        %vm7809 = vcmp.gt.f32.partialorder %v7365, 0.0
        %vm7810 = vcmp.gt.f32.partialorder %v7368, 0.0
        %vm7811 = vcmp.gt.f32.partialorder %v7373, 0.0
        %vm7812 = vcmp.gt.f32.partialorder %v7376, 0.0
        %vm7813 = vcmp.gt.f32.partialorder %v7381, 0.0
        %vm7814 = vcmp.gt.f32.partialorder %v7384, 0.0
        %vm7815 = vcmp.gt.f32.partialorder %v7389, 0.0
        %vm7816 = vcmp.gt.f32.partialorder %v7392, 0.0
        %vm7817 = vcmp.gt.f32.partialorder %v7397, 0.0
        %vm7818 = vcmp.gt.f32.partialorder %v7400, 0.0
        %vm7819 = vcmp.gt.f32.partialorder %v7405, 0.0
        %vm7820 = vcmp.gt.f32.partialorder %v7408, 0.0
        %vm7821 = vcmp.gt.f32.partialorder %v7413, 0.0
        %vm7822 = vcmp.gt.f32.partialorder %v7416, 0.0
        %vm7823 = vcmp.gt.f32.partialorder %v7421, 0.0
        %vm7824 = vcmp.gt.f32.partialorder %v7424, 0.0
        %vm7825 = vcmp.gt.f32.partialorder %v7429, 0.0
        %vm7826 = vcmp.gt.f32.partialorder %v7432, 0.0
        %vm7827 = vcmp.gt.f32.partialorder %v7437, 0.0
        %vm7828 = vcmp.gt.f32.partialorder %v7440, 0.0
        %vm7829 = vcmp.gt.f32.partialorder %v7445, 0.0
        %vm7830 = vcmp.gt.f32.partialorder %v7448, 0.0
        %vm7831 = vcmp.gt.f32.partialorder %v7453, 0.0
        %vm7832 = vcmp.gt.f32.partialorder %v7456, 0.0
        %vm7833 = vcmp.gt.f32.partialorder %v7461, 0.0
        %vm7834 = vcmp.gt.f32.partialorder %v7464, 0.0
        %vm7835 = vcmp.gt.f32.partialorder %v7469, 0.0
        %vm7836 = vcmp.gt.f32.partialorder %v7472, 0.0
        %vm7837 = vcmp.gt.f32.partialorder %v7477, 0.0
        %vm7838 = vcmp.gt.f32.partialorder %v7480, 0.0
        %vm7839 = vcmp.gt.f32.partialorder %v7485, 0.0
        %vm7840 = vcmp.gt.f32.partialorder %v7488, 0.0
        %vm7841 = vcmp.gt.f32.partialorder %v7493, 0.0
        %vm7842 = vcmp.gt.f32.partialorder %v7496, 0.0
        %vm7843 = vcmp.gt.f32.partialorder %v7501, 0.0
        %vm7844 = vcmp.gt.f32.partialorder %v7504, 0.0
        %vm7845 = vcmp.gt.f32.partialorder %v7509, 0.0
        %vm7846 = vcmp.gt.f32.partialorder %v7512, 0.0
        %vm7847 = vcmp.gt.f32.partialorder %v7517, 0.0
        %vm7848 = vcmp.gt.f32.partialorder %v7520, 0.0
        %vm7849 = vcmp.gt.f32.partialorder %v7525, 0.0
        %vm7850 = vcmp.gt.f32.partialorder %v7528, 0.0
        %vm7851 = vcmp.gt.f32.partialorder %v7533, 0.0
        %vm7852 = vcmp.gt.f32.partialorder %v7536, 0.0
        %vm7853 = vcmp.gt.f32.partialorder %v7541, 0.0
        %vm7854 = vcmp.gt.f32.partialorder %v7544, 0.0
        %vm7855 = vcmp.gt.f32.partialorder %v7549, 0.0
        %vm7856 = vcmp.gt.f32.partialorder %v7552, 0.0
        %vm7857 = vcmp.gt.f32.partialorder %v7557, 0.0
        %vm7858 = vcmp.gt.f32.partialorder %v7560, 0.0
        %vm7859 = vcmp.gt.f32.partialorder %v7565, 0.0
        %vm7860 = vcmp.gt.f32.partialorder %v7568, 0.0
        %vm7861 = vcmp.gt.f32.partialorder %v7573, 0.0
        %vm7862 = vcmp.gt.f32.partialorder %v7576, 0.0
        %vm7863 = vcmp.gt.f32.partialorder %v7581, 0.0
        %vm7864 = vcmp.gt.f32.partialorder %v7584, 0.0
        %vm7865 = vcmp.gt.f32.partialorder %v7589, 0.0
        %vm7866 = vcmp.gt.f32.partialorder %v7592, 0.0
        %vm7867 = vcmp.gt.f32.partialorder %v7597, 0.0
        %vm7868 = vcmp.gt.f32.partialorder %v7600, 0.0
        %vm7869 = vcmp.gt.f32.partialorder %v7605, 0.0
        %vm7870 = vcmp.gt.f32.partialorder %v7608, 0.0
        %vm7871 = vcmp.gt.f32.partialorder %v7613, 0.0
        %vm7872 = vcmp.gt.f32.partialorder %v7616, 0.0
        %vm7873 = vcmp.gt.f32.partialorder %v7621, 0.0
        %vm7874 = vcmp.gt.f32.partialorder %v7624, 0.0
        %vm7875 = vcmp.gt.f32.partialorder %v7629, 0.0
        %vm7876 = vcmp.gt.f32.partialorder %v7632, 0.0
        %vm7877 = vcmp.gt.f32.partialorder %v7637, 0.0
        %vm7878 = vcmp.gt.f32.partialorder %v7640, 0.0
        %vm7879 = vcmp.gt.f32.partialorder %v7645, 0.0
        %vm7880 = vcmp.gt.f32.partialorder %v7648, 0.0
        %vm7881 = vcmp.gt.f32.partialorder %v7653, 0.0
        %vm7882 = vcmp.gt.f32.partialorder %v7656, 0.0
        %vm7883 = vcmp.gt.f32.partialorder %v7661, 0.0
        %vm7884 = vcmp.gt.f32.partialorder %v7664, 0.0
        %vm7885 = vcmp.gt.f32.partialorder %v7669, 0.0
        %vm7886 = vcmp.gt.f32.partialorder %v7672, 0.0
        %vm7887 = vcmp.gt.f32.partialorder %v7677, 0.0
        %vm7888 = vcmp.gt.f32.partialorder %v7680, 0.0
        %vm7889 = vcmp.gt.f32.partialorder %v7685, 0.0
        %vm7890 = vcmp.gt.f32.partialorder %v7688, 0.0
        %vm7891 = vcmp.gt.f32.partialorder %v7693, 0.0
        %vm7892 = vcmp.gt.f32.partialorder %v7696, 0.0
        %vm7893 = vcmp.gt.f32.partialorder %v7701, 0.0
        %vm7894 = vcmp.gt.f32.partialorder %v7704, 0.0
        %vm7895 = vcmp.gt.f32.partialorder %v7709, 0.0
        %vm7896 = vcmp.gt.f32.partialorder %v7712, 0.0
        %vm7897 = vcmp.gt.f32.partialorder %v7717, 0.0
        %vm7898 = vcmp.gt.f32.partialorder %v7720, 0.0
        %vm7899 = vcmp.gt.f32.partialorder %v7725, 0.0
        %vm7900 = vcmp.gt.f32.partialorder %v7728, 0.0
        %vm7901 = vcmp.gt.f32.partialorder %v7733, 0.0
        %vm7902 = vcmp.gt.f32.partialorder %v7736, 0.0
        %vm7903 = vcmp.gt.f32.partialorder %v7741, 0.0
        %vm7904 = vcmp.gt.f32.partialorder %v7744, 0.0
        %vm7905 = vcmp.gt.f32.partialorder %v7749, 0.0
        %vm7906 = vcmp.gt.f32.partialorder %v7752, 0.0
        %vm7907 = vcmp.gt.f32.partialorder %v7757, 0.0
        %vm7908 = vcmp.gt.f32.partialorder %v7760, 0.0
        %vm7909 = vcmp.gt.f32.partialorder %v7765, 0.0
        %vm7910 = vcmp.gt.f32.partialorder %v7768, 0.0
        %vm7911 = vcmp.gt.f32.partialorder %v7773, 0.0
        %vm7912 = vcmp.gt.f32.partialorder %v7776, 0.0
        %vm7913 = vcmp.gt.f32.partialorder %v7781, 0.0
        %vm7914 = vcmp.gt.f32.partialorder %v7784, 0.0
        %v7915 = vmul.f32 %v7277, 0.2
        %v7916 = vmul.f32 %v7280, 0.2
        %v7917 = vmul.f32 %v7285, 0.2
        %v7918 = vmul.f32 %v7288, 0.2
        %v7919 = vmul.f32 %v7293, 0.2
        %v7920 = vmul.f32 %v7296, 0.2
        %v7921 = vmul.f32 %v7301, 0.2
        %v7922 = vmul.f32 %v7304, 0.2
        %v7923 = vmul.f32 %v7309, 0.2
        %v7924 = vmul.f32 %v7312, 0.2
        %v7925 = vmul.f32 %v7317, 0.2
        %v7926 = vmul.f32 %v7320, 0.2
        %v7927 = vmul.f32 %v7325, 0.2
        %v7928 = vmul.f32 %v7328, 0.2
        %v7929 = vmul.f32 %v7333, 0.2
        %v7930 = vmul.f32 %v7336, 0.2
        %v7931 = vmul.f32 %v7341, 0.2
        %v7932 = vmul.f32 %v7344, 0.2
        %v7933 = vmul.f32 %v7349, 0.2
        %v7934 = vmul.f32 %v7352, 0.2
        %v7935 = vmul.f32 %v7357, 0.2
        %v7936 = vmul.f32 %v7360, 0.2
        %v7937 = vmul.f32 %v7365, 0.2
        %v7938 = vmul.f32 %v7368, 0.2
        %v7939 = vmul.f32 %v7373, 0.2
        %v7940 = vmul.f32 %v7376, 0.2
        %v7941 = vmul.f32 %v7381, 0.2
        %v7942 = vmul.f32 %v7384, 0.2
        %v7943 = vmul.f32 %v7389, 0.2
        %v7944 = vmul.f32 %v7392, 0.2
        %v7945 = vmul.f32 %v7397, 0.2
        %v7946 = vmul.f32 %v7400, 0.2
        %v7947 = vmul.f32 %v7405, 0.2
        %v7948 = vmul.f32 %v7408, 0.2
        %v7949 = vmul.f32 %v7413, 0.2
        %v7950 = vmul.f32 %v7416, 0.2
        %v7951 = vmul.f32 %v7421, 0.2
        %v7952 = vmul.f32 %v7424, 0.2
        %v7953 = vmul.f32 %v7429, 0.2
        %v7954 = vmul.f32 %v7432, 0.2
        %v7955 = vmul.f32 %v7437, 0.2
        %v7956 = vmul.f32 %v7440, 0.2
        %v7957 = vmul.f32 %v7445, 0.2
        %v7958 = vmul.f32 %v7448, 0.2
        %v7959 = vmul.f32 %v7453, 0.2
        %v7960 = vmul.f32 %v7456, 0.2
        %v7961 = vmul.f32 %v7461, 0.2
        %v7962 = vmul.f32 %v7464, 0.2
        %v7963 = vmul.f32 %v7469, 0.2
        %v7964 = vmul.f32 %v7472, 0.2
        %v7965 = vmul.f32 %v7477, 0.2
        %v7966 = vmul.f32 %v7480, 0.2
        %v7967 = vmul.f32 %v7485, 0.2
        %v7968 = vmul.f32 %v7488, 0.2
        %v7969 = vmul.f32 %v7493, 0.2
        %v7970 = vmul.f32 %v7496, 0.2
        %v7971 = vmul.f32 %v7501, 0.2
        %v7972 = vmul.f32 %v7504, 0.2
        %v7973 = vmul.f32 %v7509, 0.2
        %v7974 = vmul.f32 %v7512, 0.2
        %v7975 = vmul.f32 %v7517, 0.2
        %v7976 = vmul.f32 %v7520, 0.2
        %v7977 = vmul.f32 %v7525, 0.2
        %v7978 = vmul.f32 %v7528, 0.2
        %v7979 = vmul.f32 %v7533, 0.2
        %v7980 = vmul.f32 %v7536, 0.2
        %v7981 = vmul.f32 %v7541, 0.2
        %v7982 = vmul.f32 %v7544, 0.2
        %v7983 = vmul.f32 %v7549, 0.2
        %v7984 = vmul.f32 %v7552, 0.2
        %v7985 = vmul.f32 %v7557, 0.2
        %v7986 = vmul.f32 %v7560, 0.2
        %v7987 = vmul.f32 %v7565, 0.2
        %v7988 = vmul.f32 %v7568, 0.2
        %v7989 = vmul.f32 %v7573, 0.2
        %v7990 = vmul.f32 %v7576, 0.2
        %v7991 = vmul.f32 %v7581, 0.2
        %v7992 = vmul.f32 %v7584, 0.2
        %v7993 = vmul.f32 %v7589, 0.2
        %v7994 = vmul.f32 %v7592, 0.2
        %v7995 = vmul.f32 %v7597, 0.2
        %v7996 = vmul.f32 %v7600, 0.2
        %v7997 = vmul.f32 %v7605, 0.2
        %v7998 = vmul.f32 %v7608, 0.2
        %v7999 = vmul.f32 %v7613, 0.2
        %v8000 = vmul.f32 %v7616, 0.2
        %v8001 = vmul.f32 %v7621, 0.2
        %v8002 = vmul.f32 %v7624, 0.2
        %v8003 = vmul.f32 %v7629, 0.2
        %v8004 = vmul.f32 %v7632, 0.2
        %v8005 = vmul.f32 %v7637, 0.2
        %v8006 = vmul.f32 %v7640, 0.2
        %v8007 = vmul.f32 %v7645, 0.2
        %v8008 = vmul.f32 %v7648, 0.2
        %v8009 = vmul.f32 %v7653, 0.2
        %v8010 = vmul.f32 %v7656, 0.2
        %v8011 = vmul.f32 %v7661, 0.2
        %v8012 = vmul.f32 %v7664, 0.2
        %v8013 = vmul.f32 %v7669, 0.2
        %v8014 = vmul.f32 %v7672, 0.2
        %v8015 = vmul.f32 %v7677, 0.2
        %v8016 = vmul.f32 %v7680, 0.2
        %v8017 = vmul.f32 %v7685, 0.2
        %v8018 = vmul.f32 %v7688, 0.2
        %v8019 = vmul.f32 %v7693, 0.2
        %v8020 = vmul.f32 %v7696, 0.2
        %v8021 = vmul.f32 %v7701, 0.2
        %v8022 = vmul.f32 %v7704, 0.2
        %v8023 = vmul.f32 %v7709, 0.2
        %v8024 = vmul.f32 %v7712, 0.2
        %v8025 = vmul.f32 %v7717, 0.2
        %v8026 = vmul.f32 %v7720, 0.2
        %v8027 = vmul.f32 %v7725, 0.2
        %v8028 = vmul.f32 %v7728, 0.2
        %v8029 = vmul.f32 %v7733, 0.2
        %v8030 = vmul.f32 %v7736, 0.2
        %v8031 = vmul.f32 %v7741, 0.2
        %v8032 = vmul.f32 %v7744, 0.2
        %v8033 = vmul.f32 %v7749, 0.2
        %v8034 = vmul.f32 %v7752, 0.2
        %v8035 = vmul.f32 %v7757, 0.2
        %v8036 = vmul.f32 %v7760, 0.2
        %v8037 = vmul.f32 %v7765, 0.2
        %v8038 = vmul.f32 %v7768, 0.2
        %v8039 = vmul.f32 %v7773, 0.2
        %v8040 = vmul.f32 %v7776, 0.2
        %v8041 = vmul.f32 %v7781, 0.2
        %v8042 = vmul.f32 %v7784, 0.2
        %v8043 = vsel %vm7787, %v7277, %v7915
        %v8044 = vsel %vm7788, %v7280, %v7916
        %v8045 = vsel %vm7789, %v7285, %v7917
        %v8046 = vsel %vm7790, %v7288, %v7918
        %v8047 = vsel %vm7791, %v7293, %v7919
        %v8048 = vsel %vm7792, %v7296, %v7920
        %v8049 = vsel %vm7793, %v7301, %v7921
        %v8050 = vsel %vm7794, %v7304, %v7922
        %v8051 = vsel %vm7795, %v7309, %v7923
        %v8052 = vsel %vm7796, %v7312, %v7924
        %v8053 = vsel %vm7797, %v7317, %v7925
        %v8054 = vsel %vm7798, %v7320, %v7926
        %v8055 = vsel %vm7799, %v7325, %v7927
        %v8056 = vsel %vm7800, %v7328, %v7928
        %v8057 = vsel %vm7801, %v7333, %v7929
        %v8058 = vsel %vm7802, %v7336, %v7930
        %v8059 = vsel %vm7803, %v7341, %v7931
        %v8060 = vsel %vm7804, %v7344, %v7932
        %v8061 = vsel %vm7805, %v7349, %v7933
        %v8062 = vsel %vm7806, %v7352, %v7934
        %v8063 = vsel %vm7807, %v7357, %v7935
        %v8064 = vsel %vm7808, %v7360, %v7936
        %v8065 = vsel %vm7809, %v7365, %v7937
        %v8066 = vsel %vm7810, %v7368, %v7938
        %v8067 = vsel %vm7811, %v7373, %v7939
        %v8068 = vsel %vm7812, %v7376, %v7940
        %v8069 = vsel %vm7813, %v7381, %v7941
        %v8070 = vsel %vm7814, %v7384, %v7942
        %v8071 = vsel %vm7815, %v7389, %v7943
        %v8072 = vsel %vm7816, %v7392, %v7944
        %v8073 = vsel %vm7817, %v7397, %v7945
        %v8074 = vsel %vm7818, %v7400, %v7946
        %v8075 = vsel %vm7819, %v7405, %v7947
        %v8076 = vsel %vm7820, %v7408, %v7948
        %v8077 = vsel %vm7821, %v7413, %v7949
        %v8078 = vsel %vm7822, %v7416, %v7950
        %v8079 = vsel %vm7823, %v7421, %v7951
        %v8080 = vsel %vm7824, %v7424, %v7952
        %v8081 = vsel %vm7825, %v7429, %v7953
        %v8082 = vsel %vm7826, %v7432, %v7954
        %v8083 = vsel %vm7827, %v7437, %v7955
        %v8084 = vsel %vm7828, %v7440, %v7956
        %v8085 = vsel %vm7829, %v7445, %v7957
        %v8086 = vsel %vm7830, %v7448, %v7958
        %v8087 = vsel %vm7831, %v7453, %v7959
        %v8088 = vsel %vm7832, %v7456, %v7960
        %v8089 = vsel %vm7833, %v7461, %v7961
        %v8090 = vsel %vm7834, %v7464, %v7962
        %v8091 = vsel %vm7835, %v7469, %v7963
        %v8092 = vsel %vm7836, %v7472, %v7964
        %v8093 = vsel %vm7837, %v7477, %v7965
        %v8094 = vsel %vm7838, %v7480, %v7966
        %v8095 = vsel %vm7839, %v7485, %v7967
        %v8096 = vsel %vm7840, %v7488, %v7968
        %v8097 = vsel %vm7841, %v7493, %v7969
        %v8098 = vsel %vm7842, %v7496, %v7970
        %v8099 = vsel %vm7843, %v7501, %v7971
        %v8100 = vsel %vm7844, %v7504, %v7972
        %v8101 = vsel %vm7845, %v7509, %v7973
        %v8102 = vsel %vm7846, %v7512, %v7974
        %v8103 = vsel %vm7847, %v7517, %v7975
        %v8104 = vsel %vm7848, %v7520, %v7976
        %v8105 = vsel %vm7849, %v7525, %v7977
        %v8106 = vsel %vm7850, %v7528, %v7978
        %v8107 = vsel %vm7851, %v7533, %v7979
        %v8108 = vsel %vm7852, %v7536, %v7980
        %v8109 = vsel %vm7853, %v7541, %v7981
        %v8110 = vsel %vm7854, %v7544, %v7982
        %v8111 = vsel %vm7855, %v7549, %v7983
        %v8112 = vsel %vm7856, %v7552, %v7984
        %v8113 = vsel %vm7857, %v7557, %v7985
        %v8114 = vsel %vm7858, %v7560, %v7986
        %v8115 = vsel %vm7859, %v7565, %v7987
        %v8116 = vsel %vm7860, %v7568, %v7988
        %v8117 = vsel %vm7861, %v7573, %v7989
        %v8118 = vsel %vm7862, %v7576, %v7990
        %v8119 = vsel %vm7863, %v7581, %v7991
        %v8120 = vsel %vm7864, %v7584, %v7992
        %v8121 = vsel %vm7865, %v7589, %v7993
        %v8122 = vsel %vm7866, %v7592, %v7994
        %v8123 = vsel %vm7867, %v7597, %v7995
        %v8124 = vsel %vm7868, %v7600, %v7996
        %v8125 = vsel %vm7869, %v7605, %v7997
        %v8126 = vsel %vm7870, %v7608, %v7998
        %v8127 = vsel %vm7871, %v7613, %v7999
        %v8128 = vsel %vm7872, %v7616, %v8000
        %v8129 = vsel %vm7873, %v7621, %v8001
        %v8130 = vsel %vm7874, %v7624, %v8002
        %v8131 = vsel %vm7875, %v7629, %v8003
        %v8132 = vsel %vm7876, %v7632, %v8004
        %v8133 = vsel %vm7877, %v7637, %v8005
        %v8134 = vsel %vm7878, %v7640, %v8006
        %v8135 = vsel %vm7879, %v7645, %v8007
        %v8136 = vsel %vm7880, %v7648, %v8008
        %v8137 = vsel %vm7881, %v7653, %v8009
        %v8138 = vsel %vm7882, %v7656, %v8010
        %v8139 = vsel %vm7883, %v7661, %v8011
        %v8140 = vsel %vm7884, %v7664, %v8012
        %v8141 = vsel %vm7885, %v7669, %v8013
        %v8142 = vsel %vm7886, %v7672, %v8014
        %v8143 = vsel %vm7887, %v7677, %v8015
        %v8144 = vsel %vm7888, %v7680, %v8016
        %v8145 = vsel %vm7889, %v7685, %v8017
        %v8146 = vsel %vm7890, %v7688, %v8018
        %v8147 = vsel %vm7891, %v7693, %v8019
        %v8148 = vsel %vm7892, %v7696, %v8020
        %v8149 = vsel %vm7893, %v7701, %v8021
        %v8150 = vsel %vm7894, %v7704, %v8022
        %v8151 = vsel %vm7895, %v7709, %v8023
        %v8152 = vsel %vm7896, %v7712, %v8024
        %v8153 = vsel %vm7897, %v7717, %v8025
        %v8154 = vsel %vm7898, %v7720, %v8026
        %v8155 = vsel %vm7899, %v7725, %v8027
        %v8156 = vsel %vm7900, %v7728, %v8028
        %v8157 = vsel %vm7901, %v7733, %v8029
        %v8158 = vsel %vm7902, %v7736, %v8030
        %v8159 = vsel %vm7903, %v7741, %v8031
        %v8160 = vsel %vm7904, %v7744, %v8032
        %v8161 = vsel %vm7905, %v7749, %v8033
        %v8162 = vsel %vm7906, %v7752, %v8034
        %v8163 = vsel %vm7907, %v7757, %v8035
        %v8164 = vsel %vm7908, %v7760, %v8036
        %v8165 = vsel %vm7909, %v7765, %v8037
        %v8166 = vsel %vm7910, %v7768, %v8038
        %v8167 = vsel %vm7911, %v7773, %v8039
        %v8168 = vsel %vm7912, %v7776, %v8040
        %v8169 = vsel %vm7913, %v7781, %v8041
        %v8170 = vsel %vm7914, %v7784, %v8042
        %8171 = vst [vmem:[%s354] sm:$0xff] %v8043
        %8172 = vst [vmem:[%s354 + $0x8] sm:$0xff] %v8044
        %8173 = vst [vmem:[%s354 + $0x10] sm:$0xff] %v8045
        %8174 = vst [vmem:[%s354 + $0x18] sm:$0xff] %v8046
        %8175 = vst [vmem:[%s354 + $0x20] sm:$0xff] %v8047
        %8176 = vst [vmem:[%s354 + $0x28] sm:$0xff] %v8048
        %8177 = vst [vmem:[%s354 + $0x30] sm:$0xff] %v8049
        %8178 = vst [vmem:[%s354 + $0x38] sm:$0xff] %v8050
        %8179 = vst [vmem:[%s354 + $0x40] sm:$0xff] %v8051
        %8180 = vst [vmem:[%s354 + $0x48] sm:$0xff] %v8052
        %8181 = vst [vmem:[%s354 + $0x50] sm:$0xff] %v8053
        %8182 = vst [vmem:[%s354 + $0x58] sm:$0xff] %v8054
        %8183 = vst [vmem:[%s354 + $0x60] sm:$0xff] %v8055
        %8184 = vst [vmem:[%s354 + $0x68] sm:$0xff] %v8056
        %8185 = vst [vmem:[%s354 + $0x70] sm:$0xff] %v8057
        %8186 = vst [vmem:[%s354 + $0x78] sm:$0xff] %v8058
        %8187 = vst [vmem:[%s354 + $0x80] sm:$0xff] %v8059
        %8188 = vst [vmem:[%s354 + $0x88] sm:$0xff] %v8060
        %8189 = vst [vmem:[%s354 + $0x90] sm:$0xff] %v8061
        %8190 = vst [vmem:[%s354 + $0x98] sm:$0xff] %v8062
        %8191 = vst [vmem:[%s354 + $0xa0] sm:$0xff] %v8063
        %8192 = vst [vmem:[%s354 + $0xa8] sm:$0xff] %v8064
        %8193 = vst [vmem:[%s354 + $0xb0] sm:$0xff] %v8065
        %8194 = vst [vmem:[%s354 + $0xb8] sm:$0xff] %v8066
        %8195 = vst [vmem:[%s354 + $0xc0] sm:$0xff] %v8067
        %8196 = vst [vmem:[%s354 + $0xc8] sm:$0xff] %v8068
        %8197 = vst [vmem:[%s354 + $0xd0] sm:$0xff] %v8069
        %8198 = vst [vmem:[%s354 + $0xd8] sm:$0xff] %v8070
        %8199 = vst [vmem:[%s354 + $0xe0] sm:$0xff] %v8071
        %8200 = vst [vmem:[%s354 + $0xe8] sm:$0xff] %v8072
        %8201 = vst [vmem:[%s354 + $0xf0] sm:$0xff] %v8073
        %8202 = vst [vmem:[%s354 + $0xf8] sm:$0xff] %v8074
        %8203 = vst [vmem:[%s354 + $0x100] sm:$0xff] %v8075
        %8204 = vst [vmem:[%s354 + $0x108] sm:$0xff] %v8076
        %8205 = vst [vmem:[%s354 + $0x110] sm:$0xff] %v8077
        %8206 = vst [vmem:[%s354 + $0x118] sm:$0xff] %v8078
        %8207 = vst [vmem:[%s354 + $0x120] sm:$0xff] %v8079
        %8208 = vst [vmem:[%s354 + $0x128] sm:$0xff] %v8080
        %8209 = vst [vmem:[%s354 + $0x130] sm:$0xff] %v8081
        %8210 = vst [vmem:[%s354 + $0x138] sm:$0xff] %v8082
        %8211 = vst [vmem:[%s354 + $0x140] sm:$0xff] %v8083
        %8212 = vst [vmem:[%s354 + $0x148] sm:$0xff] %v8084
        %8213 = vst [vmem:[%s354 + $0x150] sm:$0xff] %v8085
        %8214 = vst [vmem:[%s354 + $0x158] sm:$0xff] %v8086
        %8215 = vst [vmem:[%s354 + $0x160] sm:$0xff] %v8087
        %8216 = vst [vmem:[%s354 + $0x168] sm:$0xff] %v8088
        %8217 = vst [vmem:[%s354 + $0x170] sm:$0xff] %v8089
        %8218 = vst [vmem:[%s354 + $0x178] sm:$0xff] %v8090
        %8219 = vst [vmem:[%s354 + $0x180] sm:$0xff] %v8091
        %8220 = vst [vmem:[%s354 + $0x188] sm:$0xff] %v8092
        %8221 = vst [vmem:[%s354 + $0x190] sm:$0xff] %v8093
        %8222 = vst [vmem:[%s354 + $0x198] sm:$0xff] %v8094
        %8223 = vst [vmem:[%s354 + $0x1a0] sm:$0xff] %v8095
        %8224 = vst [vmem:[%s354 + $0x1a8] sm:$0xff] %v8096
        %8225 = vst [vmem:[%s354 + $0x1b0] sm:$0xff] %v8097
        %8226 = vst [vmem:[%s354 + $0x1b8] sm:$0xff] %v8098
        %8227 = vst [vmem:[%s354 + $0x1c0] sm:$0xff] %v8099
        %8228 = vst [vmem:[%s354 + $0x1c8] sm:$0xff] %v8100
        %8229 = vst [vmem:[%s354 + $0x1d0] sm:$0xff] %v8101
        %8230 = vst [vmem:[%s354 + $0x1d8] sm:$0xff] %v8102
        %8231 = vst [vmem:[%s354 + $0x1e0] sm:$0xff] %v8103
        %8232 = vst [vmem:[%s354 + $0x1e8] sm:$0xff] %v8104
        %8233 = vst [vmem:[%s354 + $0x1f0] sm:$0xff] %v8105
        %8234 = vst [vmem:[%s354 + $0x1f8] sm:$0xff] %v8106
        %8235 = vst [vmem:[%s354 + $0x200] sm:$0xff] %v8107
        %8236 = vst [vmem:[%s354 + $0x208] sm:$0xff] %v8108
        %8237 = vst [vmem:[%s354 + $0x210] sm:$0xff] %v8109
        %8238 = vst [vmem:[%s354 + $0x218] sm:$0xff] %v8110
        %8239 = vst [vmem:[%s354 + $0x220] sm:$0xff] %v8111
        %8240 = vst [vmem:[%s354 + $0x228] sm:$0xff] %v8112
        %8241 = vst [vmem:[%s354 + $0x230] sm:$0xff] %v8113
        %8242 = vst [vmem:[%s354 + $0x238] sm:$0xff] %v8114
        %8243 = vst [vmem:[%s354 + $0x240] sm:$0xff] %v8115
        %8244 = vst [vmem:[%s354 + $0x248] sm:$0xff] %v8116
        %8245 = vst [vmem:[%s354 + $0x250] sm:$0xff] %v8117
        %8246 = vst [vmem:[%s354 + $0x258] sm:$0xff] %v8118
        %8247 = vst [vmem:[%s354 + $0x260] sm:$0xff] %v8119
        %8248 = vst [vmem:[%s354 + $0x268] sm:$0xff] %v8120
        %8249 = vst [vmem:[%s354 + $0x270] sm:$0xff] %v8121
        %8250 = vst [vmem:[%s354 + $0x278] sm:$0xff] %v8122
        %8251 = vst [vmem:[%s354 + $0x280] sm:$0xff] %v8123
        %8252 = vst [vmem:[%s354 + $0x288] sm:$0xff] %v8124
        %8253 = vst [vmem:[%s354 + $0x290] sm:$0xff] %v8125
        %8254 = vst [vmem:[%s354 + $0x298] sm:$0xff] %v8126
        %8255 = vst [vmem:[%s354 + $0x2a0] sm:$0xff] %v8127
        %8256 = vst [vmem:[%s354 + $0x2a8] sm:$0xff] %v8128
        %8257 = vst [vmem:[%s354 + $0x2b0] sm:$0xff] %v8129
        %8258 = vst [vmem:[%s354 + $0x2b8] sm:$0xff] %v8130
        %8259 = vst [vmem:[%s354 + $0x2c0] sm:$0xff] %v8131
        %8260 = vst [vmem:[%s354 + $0x2c8] sm:$0xff] %v8132
        %8261 = vst [vmem:[%s354 + $0x2d0] sm:$0xff] %v8133
        %8262 = vst [vmem:[%s354 + $0x2d8] sm:$0xff] %v8134
        %8263 = vst [vmem:[%s354 + $0x2e0] sm:$0xff] %v8135
        %8264 = vst [vmem:[%s354 + $0x2e8] sm:$0xff] %v8136
        %8265 = vst [vmem:[%s354 + $0x2f0] sm:$0xff] %v8137
        %8266 = vst [vmem:[%s354 + $0x2f8] sm:$0xff] %v8138
        %8267 = vst [vmem:[%s354 + $0x300] sm:$0xff] %v8139
        %8268 = vst [vmem:[%s354 + $0x308] sm:$0xff] %v8140
        %8269 = vst [vmem:[%s354 + $0x310] sm:$0xff] %v8141
        %8270 = vst [vmem:[%s354 + $0x318] sm:$0xff] %v8142
        %8271 = vst [vmem:[%s354 + $0x320] sm:$0xff] %v8143
        %8272 = vst [vmem:[%s354 + $0x328] sm:$0xff] %v8144
        %8273 = vst [vmem:[%s354 + $0x330] sm:$0xff] %v8145
        %8274 = vst [vmem:[%s354 + $0x338] sm:$0xff] %v8146
        %8275 = vst [vmem:[%s354 + $0x340] sm:$0xff] %v8147
        %8276 = vst [vmem:[%s354 + $0x348] sm:$0xff] %v8148
        %8277 = vst [vmem:[%s354 + $0x350] sm:$0xff] %v8149
        %8278 = vst [vmem:[%s354 + $0x358] sm:$0xff] %v8150
        %8279 = vst [vmem:[%s354 + $0x360] sm:$0xff] %v8151
        %8280 = vst [vmem:[%s354 + $0x368] sm:$0xff] %v8152
        %8281 = vst [vmem:[%s354 + $0x370] sm:$0xff] %v8153
        %8282 = vst [vmem:[%s354 + $0x378] sm:$0xff] %v8154
        %8283 = vst [vmem:[%s354 + $0x380] sm:$0xff] %v8155
        %8284 = vst [vmem:[%s354 + $0x388] sm:$0xff] %v8156
        %8285 = vst [vmem:[%s354 + $0x390] sm:$0xff] %v8157
        %8286 = vst [vmem:[%s354 + $0x398] sm:$0xff] %v8158
        %8287 = vst [vmem:[%s354 + $0x3a0] sm:$0xff] %v8159
        %8288 = vst [vmem:[%s354 + $0x3a8] sm:$0xff] %v8160
        %8289 = vst [vmem:[%s354 + $0x3b0] sm:$0xff] %v8161
        %8290 = vst [vmem:[%s354 + $0x3b8] sm:$0xff] %v8162
        %8291 = vst [vmem:[%s354 + $0x3c0] sm:$0xff] %v8163
        %8292 = vst [vmem:[%s354 + $0x3c8] sm:$0xff] %v8164
        %8293 = vst [vmem:[%s354 + $0x3d0] sm:$0xff] %v8165
        %8294 = vst [vmem:[%s354 + $0x3d8] sm:$0xff] %v8166
        %8295 = vst [vmem:[%s354 + $0x3e0] sm:$0xff] %v8167
        %8296 = vst [vmem:[%s354 + $0x3e8] sm:$0xff] %v8168
        %8297 = vst [vmem:[%s354 + $0x3f0] sm:$0xff] %v8169
        %8298 = vst [vmem:[%s354 + $0x3f8] sm:$0xff] %v8170
        %8299 = vmax.xlane.f32.xlu0 %v8043
        %v8300 = vpop.xlane.xlu0 %8299
        %8301 = vmax.xlane.f32.xlu0 %v8044
        %v8302 = vpop.xlane.xlu0 %8301
        %8303 = vmax.xlane.f32.xlu0 %v8045
        %v8304 = vpop.xlane.xlu0 %8303
        %8305 = vmax.xlane.f32.xlu0 %v8046
        %v8306 = vpop.xlane.xlu0 %8305
        %8307 = vmax.xlane.f32.xlu0 %v8047
        %v8308 = vpop.xlane.xlu0 %8307
        %8309 = vmax.xlane.f32.xlu0 %v8048
        %v8310 = vpop.xlane.xlu0 %8309
        %8311 = vmax.xlane.f32.xlu0 %v8049
        %v8312 = vpop.xlane.xlu0 %8311
        %8313 = vmax.xlane.f32.xlu0 %v8050
        %v8314 = vpop.xlane.xlu0 %8313
        %8315 = vmax.xlane.f32.xlu0 %v8051
        %v8316 = vpop.xlane.xlu0 %8315
        %8317 = vmax.xlane.f32.xlu0 %v8052
        %v8318 = vpop.xlane.xlu0 %8317
        %8319 = vmax.xlane.f32.xlu0 %v8053
        %v8320 = vpop.xlane.xlu0 %8319
        %8321 = vmax.xlane.f32.xlu0 %v8054
        %v8322 = vpop.xlane.xlu0 %8321
        %8323 = vmax.xlane.f32.xlu0 %v8055
        %v8324 = vpop.xlane.xlu0 %8323
        %8325 = vmax.xlane.f32.xlu0 %v8056
        %v8326 = vpop.xlane.xlu0 %8325
        %8327 = vmax.xlane.f32.xlu0 %v8057
        %v8328 = vpop.xlane.xlu0 %8327
        %8329 = vmax.xlane.f32.xlu0 %v8058
        %v8330 = vpop.xlane.xlu0 %8329
        %8331 = vmax.xlane.f32.xlu0 %v8059
        %v8332 = vpop.xlane.xlu0 %8331
        %8333 = vmax.xlane.f32.xlu0 %v8060
        %v8334 = vpop.xlane.xlu0 %8333
        %8335 = vmax.xlane.f32.xlu0 %v8061
        %v8336 = vpop.xlane.xlu0 %8335
        %8337 = vmax.xlane.f32.xlu0 %v8062
        %v8338 = vpop.xlane.xlu0 %8337
        %8339 = vmax.xlane.f32.xlu0 %v8063
        %v8340 = vpop.xlane.xlu0 %8339
        %8341 = vmax.xlane.f32.xlu0 %v8064
        %v8342 = vpop.xlane.xlu0 %8341
        %8343 = vmax.xlane.f32.xlu0 %v8065
        %v8344 = vpop.xlane.xlu0 %8343
        %8345 = vmax.xlane.f32.xlu0 %v8066
        %v8346 = vpop.xlane.xlu0 %8345
        %8347 = vmax.xlane.f32.xlu0 %v8067
        %v8348 = vpop.xlane.xlu0 %8347
        %8349 = vmax.xlane.f32.xlu0 %v8068
        %v8350 = vpop.xlane.xlu0 %8349
        %8351 = vmax.xlane.f32.xlu0 %v8069
        %v8352 = vpop.xlane.xlu0 %8351
        %8353 = vmax.xlane.f32.xlu0 %v8070
        %v8354 = vpop.xlane.xlu0 %8353
        %8355 = vmax.xlane.f32.xlu0 %v8071
        %v8356 = vpop.xlane.xlu0 %8355
        %8357 = vmax.xlane.f32.xlu0 %v8072
        %v8358 = vpop.xlane.xlu0 %8357
        %8359 = vmax.xlane.f32.xlu0 %v8073
        %v8360 = vpop.xlane.xlu0 %8359
        %8361 = vmax.xlane.f32.xlu0 %v8074
        %v8362 = vpop.xlane.xlu0 %8361
        %8363 = vmax.xlane.f32.xlu0 %v8075
        %v8364 = vpop.xlane.xlu0 %8363
        %8365 = vmax.xlane.f32.xlu0 %v8076
        %v8366 = vpop.xlane.xlu0 %8365
        %8367 = vmax.xlane.f32.xlu0 %v8077
        %v8368 = vpop.xlane.xlu0 %8367
        %8369 = vmax.xlane.f32.xlu0 %v8078
        %v8370 = vpop.xlane.xlu0 %8369
        %8371 = vmax.xlane.f32.xlu0 %v8079
        %v8372 = vpop.xlane.xlu0 %8371
        %8373 = vmax.xlane.f32.xlu0 %v8080
        %v8374 = vpop.xlane.xlu0 %8373
        %8375 = vmax.xlane.f32.xlu0 %v8081
        %v8376 = vpop.xlane.xlu0 %8375
        %8377 = vmax.xlane.f32.xlu0 %v8082
        %v8378 = vpop.xlane.xlu0 %8377
        %8379 = vmax.xlane.f32.xlu0 %v8083
        %v8380 = vpop.xlane.xlu0 %8379
        %8381 = vmax.xlane.f32.xlu0 %v8084
        %v8382 = vpop.xlane.xlu0 %8381
        %8383 = vmax.xlane.f32.xlu0 %v8085
        %v8384 = vpop.xlane.xlu0 %8383
        %8385 = vmax.xlane.f32.xlu0 %v8086
        %v8386 = vpop.xlane.xlu0 %8385
        %8387 = vmax.xlane.f32.xlu0 %v8087
        %v8388 = vpop.xlane.xlu0 %8387
        %8389 = vmax.xlane.f32.xlu0 %v8088
        %v8390 = vpop.xlane.xlu0 %8389
        %8391 = vmax.xlane.f32.xlu0 %v8089
        %v8392 = vpop.xlane.xlu0 %8391
        %8393 = vmax.xlane.f32.xlu0 %v8090
        %v8394 = vpop.xlane.xlu0 %8393
        %8395 = vmax.xlane.f32.xlu0 %v8091
        %v8396 = vpop.xlane.xlu0 %8395
        %8397 = vmax.xlane.f32.xlu0 %v8092
        %v8398 = vpop.xlane.xlu0 %8397
        %8399 = vmax.xlane.f32.xlu0 %v8093
        %v8400 = vpop.xlane.xlu0 %8399
        %8401 = vmax.xlane.f32.xlu0 %v8094
        %v8402 = vpop.xlane.xlu0 %8401
        %8403 = vmax.xlane.f32.xlu0 %v8095
        %v8404 = vpop.xlane.xlu0 %8403
        %8405 = vmax.xlane.f32.xlu0 %v8096
        %v8406 = vpop.xlane.xlu0 %8405
        %8407 = vmax.xlane.f32.xlu0 %v8097
        %v8408 = vpop.xlane.xlu0 %8407
        %8409 = vmax.xlane.f32.xlu0 %v8098
        %v8410 = vpop.xlane.xlu0 %8409
        %8411 = vmax.xlane.f32.xlu0 %v8099
        %v8412 = vpop.xlane.xlu0 %8411
        %8413 = vmax.xlane.f32.xlu0 %v8100
        %v8414 = vpop.xlane.xlu0 %8413
        %8415 = vmax.xlane.f32.xlu0 %v8101
        %v8416 = vpop.xlane.xlu0 %8415
        %8417 = vmax.xlane.f32.xlu0 %v8102
        %v8418 = vpop.xlane.xlu0 %8417
        %8419 = vmax.xlane.f32.xlu0 %v8103
        %v8420 = vpop.xlane.xlu0 %8419
        %8421 = vmax.xlane.f32.xlu0 %v8104
        %v8422 = vpop.xlane.xlu0 %8421
        %8423 = vmax.xlane.f32.xlu0 %v8105
        %v8424 = vpop.xlane.xlu0 %8423
        %8425 = vmax.xlane.f32.xlu0 %v8106
        %v8426 = vpop.xlane.xlu0 %8425
        %8427 = vmax.xlane.f32.xlu0 %v8107
        %v8428 = vpop.xlane.xlu0 %8427
        %8429 = vmax.xlane.f32.xlu0 %v8108
        %v8430 = vpop.xlane.xlu0 %8429
        %8431 = vmax.xlane.f32.xlu0 %v8109
        %v8432 = vpop.xlane.xlu0 %8431
        %8433 = vmax.xlane.f32.xlu0 %v8110
        %v8434 = vpop.xlane.xlu0 %8433
        %8435 = vmax.xlane.f32.xlu0 %v8111
        %v8436 = vpop.xlane.xlu0 %8435
        %8437 = vmax.xlane.f32.xlu0 %v8112
        %v8438 = vpop.xlane.xlu0 %8437
        %8439 = vmax.xlane.f32.xlu0 %v8113
        %v8440 = vpop.xlane.xlu0 %8439
        %8441 = vmax.xlane.f32.xlu0 %v8114
        %v8442 = vpop.xlane.xlu0 %8441
        %8443 = vmax.xlane.f32.xlu0 %v8115
        %v8444 = vpop.xlane.xlu0 %8443
        %8445 = vmax.xlane.f32.xlu0 %v8116
        %v8446 = vpop.xlane.xlu0 %8445
        %8447 = vmax.xlane.f32.xlu0 %v8117
        %v8448 = vpop.xlane.xlu0 %8447
        %8449 = vmax.xlane.f32.xlu0 %v8118
        %v8450 = vpop.xlane.xlu0 %8449
        %8451 = vmax.xlane.f32.xlu0 %v8119
        %v8452 = vpop.xlane.xlu0 %8451
        %8453 = vmax.xlane.f32.xlu0 %v8120
        %v8454 = vpop.xlane.xlu0 %8453
        %8455 = vmax.xlane.f32.xlu0 %v8121
        %v8456 = vpop.xlane.xlu0 %8455
        %8457 = vmax.xlane.f32.xlu0 %v8122
        %v8458 = vpop.xlane.xlu0 %8457
        %8459 = vmax.xlane.f32.xlu0 %v8123
        %v8460 = vpop.xlane.xlu0 %8459
        %8461 = vmax.xlane.f32.xlu0 %v8124
        %v8462 = vpop.xlane.xlu0 %8461
        %8463 = vmax.xlane.f32.xlu0 %v8125
        %v8464 = vpop.xlane.xlu0 %8463
        %8465 = vmax.xlane.f32.xlu0 %v8126
        %v8466 = vpop.xlane.xlu0 %8465
        %8467 = vmax.xlane.f32.xlu0 %v8127
        %v8468 = vpop.xlane.xlu0 %8467
        %8469 = vmax.xlane.f32.xlu0 %v8128
        %v8470 = vpop.xlane.xlu0 %8469
        %8471 = vmax.xlane.f32.xlu0 %v8129
        %v8472 = vpop.xlane.xlu0 %8471
        %8473 = vmax.xlane.f32.xlu0 %v8130
        %v8474 = vpop.xlane.xlu0 %8473
        %8475 = vmax.xlane.f32.xlu0 %v8131
        %v8476 = vpop.xlane.xlu0 %8475
        %8477 = vmax.xlane.f32.xlu0 %v8132
        %v8478 = vpop.xlane.xlu0 %8477
        %8479 = vmax.xlane.f32.xlu0 %v8133
        %v8480 = vpop.xlane.xlu0 %8479
        %8481 = vmax.xlane.f32.xlu0 %v8134
        %v8482 = vpop.xlane.xlu0 %8481
        %8483 = vmax.xlane.f32.xlu0 %v8135
        %v8484 = vpop.xlane.xlu0 %8483
        %8485 = vmax.xlane.f32.xlu0 %v8136
        %v8486 = vpop.xlane.xlu0 %8485
        %8487 = vmax.xlane.f32.xlu0 %v8137
        %v8488 = vpop.xlane.xlu0 %8487
        %8489 = vmax.xlane.f32.xlu0 %v8138
        %v8490 = vpop.xlane.xlu0 %8489
        %8491 = vmax.xlane.f32.xlu0 %v8139
        %v8492 = vpop.xlane.xlu0 %8491
        %8493 = vmax.xlane.f32.xlu0 %v8140
        %v8494 = vpop.xlane.xlu0 %8493
        %8495 = vmax.xlane.f32.xlu0 %v8141
        %v8496 = vpop.xlane.xlu0 %8495
        %8497 = vmax.xlane.f32.xlu0 %v8142
        %v8498 = vpop.xlane.xlu0 %8497
        %8499 = vmax.xlane.f32.xlu0 %v8143
        %v8500 = vpop.xlane.xlu0 %8499
        %8501 = vmax.xlane.f32.xlu0 %v8144
        %v8502 = vpop.xlane.xlu0 %8501
        %8503 = vmax.xlane.f32.xlu0 %v8145
        %v8504 = vpop.xlane.xlu0 %8503
        %8505 = vmax.xlane.f32.xlu0 %v8146
        %v8506 = vpop.xlane.xlu0 %8505
        %8507 = vmax.xlane.f32.xlu0 %v8147
        %v8508 = vpop.xlane.xlu0 %8507
        %8509 = vmax.xlane.f32.xlu0 %v8148
        %v8510 = vpop.xlane.xlu0 %8509
        %8511 = vmax.xlane.f32.xlu0 %v8149
        %v8512 = vpop.xlane.xlu0 %8511
        %8513 = vmax.xlane.f32.xlu0 %v8150
        %v8514 = vpop.xlane.xlu0 %8513
        %8515 = vmax.xlane.f32.xlu0 %v8151
        %v8516 = vpop.xlane.xlu0 %8515
        %8517 = vmax.xlane.f32.xlu0 %v8152
        %v8518 = vpop.xlane.xlu0 %8517
        %8519 = vmax.xlane.f32.xlu0 %v8153
        %v8520 = vpop.xlane.xlu0 %8519
        %8521 = vmax.xlane.f32.xlu0 %v8154
        %v8522 = vpop.xlane.xlu0 %8521
        %8523 = vmax.xlane.f32.xlu0 %v8155
        %v8524 = vpop.xlane.xlu0 %8523
        %8525 = vmax.xlane.f32.xlu0 %v8156
        %v8526 = vpop.xlane.xlu0 %8525
        %8527 = vmax.xlane.f32.xlu0 %v8157
        %v8528 = vpop.xlane.xlu0 %8527
        %8529 = vmax.xlane.f32.xlu0 %v8158
        %v8530 = vpop.xlane.xlu0 %8529
        %8531 = vmax.xlane.f32.xlu0 %v8159
        %v8532 = vpop.xlane.xlu0 %8531
        %8533 = vmax.xlane.f32.xlu0 %v8160
        %v8534 = vpop.xlane.xlu0 %8533
        %8535 = vmax.xlane.f32.xlu0 %v8161
        %v8536 = vpop.xlane.xlu0 %8535
        %8537 = vmax.xlane.f32.xlu0 %v8162
        %v8538 = vpop.xlane.xlu0 %8537
        %8539 = vmax.xlane.f32.xlu0 %v8163
        %v8540 = vpop.xlane.xlu0 %8539
        %8541 = vmax.xlane.f32.xlu0 %v8164
        %v8542 = vpop.xlane.xlu0 %8541
        %8543 = vmax.xlane.f32.xlu0 %v8165
        %v8544 = vpop.xlane.xlu0 %8543
        %8545 = vmax.xlane.f32.xlu0 %v8166
        %v8546 = vpop.xlane.xlu0 %8545
        %8547 = vmax.xlane.f32.xlu0 %v8167
        %v8548 = vpop.xlane.xlu0 %8547
        %8549 = vmax.xlane.f32.xlu0 %v8168
        %v8550 = vpop.xlane.xlu0 %8549
        %8551 = vmax.xlane.f32.xlu0 %v8169
        %v8552 = vpop.xlane.xlu0 %8551
        %8553 = vmax.xlane.f32.xlu0 %v8170
        %v8554 = vpop.xlane.xlu0 %8553
        %vm8555 = vcmask 7168
        %8556 = vst.msk [vmem:[%s378] sm:$0xff] %vm8555, %v8300
        %8557 = vst.msk [vmem:[%s378 + $0x8] sm:$0xff] %vm8555, %v8302
        %8558 = vst.msk [vmem:[%s378 + $0x10] sm:$0xff] %vm8555, %v8304
        %8559 = vst.msk [vmem:[%s378 + $0x18] sm:$0xff] %vm8555, %v8306
        %8560 = vst.msk [vmem:[%s378 + $0x20] sm:$0xff] %vm8555, %v8308
        %8561 = vst.msk [vmem:[%s378 + $0x28] sm:$0xff] %vm8555, %v8310
        %8562 = vst.msk [vmem:[%s378 + $0x30] sm:$0xff] %vm8555, %v8312
        %8563 = vst.msk [vmem:[%s378 + $0x38] sm:$0xff] %vm8555, %v8314
        %8564 = vst.msk [vmem:[%s378 + $0x40] sm:$0xff] %vm8555, %v8316
        %8565 = vst.msk [vmem:[%s378 + $0x48] sm:$0xff] %vm8555, %v8318
        %8566 = vst.msk [vmem:[%s378 + $0x50] sm:$0xff] %vm8555, %v8320
        %8567 = vst.msk [vmem:[%s378 + $0x58] sm:$0xff] %vm8555, %v8322
        %8568 = vst.msk [vmem:[%s378 + $0x60] sm:$0xff] %vm8555, %v8324
        %8569 = vst.msk [vmem:[%s378 + $0x68] sm:$0xff] %vm8555, %v8326
        %8570 = vst.msk [vmem:[%s378 + $0x70] sm:$0xff] %vm8555, %v8328
        %8571 = vst.msk [vmem:[%s378 + $0x78] sm:$0xff] %vm8555, %v8330
        %8572 = vst.msk [vmem:[%s378 + $0x80] sm:$0xff] %vm8555, %v8332
        %8573 = vst.msk [vmem:[%s378 + $0x88] sm:$0xff] %vm8555, %v8334
        %8574 = vst.msk [vmem:[%s378 + $0x90] sm:$0xff] %vm8555, %v8336
        %8575 = vst.msk [vmem:[%s378 + $0x98] sm:$0xff] %vm8555, %v8338
        %8576 = vst.msk [vmem:[%s378 + $0xa0] sm:$0xff] %vm8555, %v8340
        %8577 = vst.msk [vmem:[%s378 + $0xa8] sm:$0xff] %vm8555, %v8342
        %8578 = vst.msk [vmem:[%s378 + $0xb0] sm:$0xff] %vm8555, %v8344
        %8579 = vst.msk [vmem:[%s378 + $0xb8] sm:$0xff] %vm8555, %v8346
        %8580 = vst.msk [vmem:[%s378 + $0xc0] sm:$0xff] %vm8555, %v8348
        %8581 = vst.msk [vmem:[%s378 + $0xc8] sm:$0xff] %vm8555, %v8350
        %8582 = vst.msk [vmem:[%s378 + $0xd0] sm:$0xff] %vm8555, %v8352
        %8583 = vst.msk [vmem:[%s378 + $0xd8] sm:$0xff] %vm8555, %v8354
        %8584 = vst.msk [vmem:[%s378 + $0xe0] sm:$0xff] %vm8555, %v8356
        %8585 = vst.msk [vmem:[%s378 + $0xe8] sm:$0xff] %vm8555, %v8358
        %8586 = vst.msk [vmem:[%s378 + $0xf0] sm:$0xff] %vm8555, %v8360
        %8587 = vst.msk [vmem:[%s378 + $0xf8] sm:$0xff] %vm8555, %v8362
        %8588 = vst.msk [vmem:[%s378 + $0x100] sm:$0xff] %vm8555, %v8364
        %8589 = vst.msk [vmem:[%s378 + $0x108] sm:$0xff] %vm8555, %v8366
        %8590 = vst.msk [vmem:[%s378 + $0x110] sm:$0xff] %vm8555, %v8368
        %8591 = vst.msk [vmem:[%s378 + $0x118] sm:$0xff] %vm8555, %v8370
        %8592 = vst.msk [vmem:[%s378 + $0x120] sm:$0xff] %vm8555, %v8372
        %8593 = vst.msk [vmem:[%s378 + $0x128] sm:$0xff] %vm8555, %v8374
        %8594 = vst.msk [vmem:[%s378 + $0x130] sm:$0xff] %vm8555, %v8376
        %8595 = vst.msk [vmem:[%s378 + $0x138] sm:$0xff] %vm8555, %v8378
        %8596 = vst.msk [vmem:[%s378 + $0x140] sm:$0xff] %vm8555, %v8380
        %8597 = vst.msk [vmem:[%s378 + $0x148] sm:$0xff] %vm8555, %v8382
        %8598 = vst.msk [vmem:[%s378 + $0x150] sm:$0xff] %vm8555, %v8384
        %8599 = vst.msk [vmem:[%s378 + $0x158] sm:$0xff] %vm8555, %v8386
        %8600 = vst.msk [vmem:[%s378 + $0x160] sm:$0xff] %vm8555, %v8388
        %8601 = vst.msk [vmem:[%s378 + $0x168] sm:$0xff] %vm8555, %v8390
        %8602 = vst.msk [vmem:[%s378 + $0x170] sm:$0xff] %vm8555, %v8392
        %8603 = vst.msk [vmem:[%s378 + $0x178] sm:$0xff] %vm8555, %v8394
        %8604 = vst.msk [vmem:[%s378 + $0x180] sm:$0xff] %vm8555, %v8396
        %8605 = vst.msk [vmem:[%s378 + $0x188] sm:$0xff] %vm8555, %v8398
        %8606 = vst.msk [vmem:[%s378 + $0x190] sm:$0xff] %vm8555, %v8400
        %8607 = vst.msk [vmem:[%s378 + $0x198] sm:$0xff] %vm8555, %v8402
        %8608 = vst.msk [vmem:[%s378 + $0x1a0] sm:$0xff] %vm8555, %v8404
        %8609 = vst.msk [vmem:[%s378 + $0x1a8] sm:$0xff] %vm8555, %v8406
        %8610 = vst.msk [vmem:[%s378 + $0x1b0] sm:$0xff] %vm8555, %v8408
        %8611 = vst.msk [vmem:[%s378 + $0x1b8] sm:$0xff] %vm8555, %v8410
        %8612 = vst.msk [vmem:[%s378 + $0x1c0] sm:$0xff] %vm8555, %v8412
        %8613 = vst.msk [vmem:[%s378 + $0x1c8] sm:$0xff] %vm8555, %v8414
        %8614 = vst.msk [vmem:[%s378 + $0x1d0] sm:$0xff] %vm8555, %v8416
        %8615 = vst.msk [vmem:[%s378 + $0x1d8] sm:$0xff] %vm8555, %v8418
        %8616 = vst.msk [vmem:[%s378 + $0x1e0] sm:$0xff] %vm8555, %v8420
        %8617 = vst.msk [vmem:[%s378 + $0x1e8] sm:$0xff] %vm8555, %v8422
        %8618 = vst.msk [vmem:[%s378 + $0x1f0] sm:$0xff] %vm8555, %v8424
        %8619 = vst.msk [vmem:[%s378 + $0x1f8] sm:$0xff] %vm8555, %v8426
        %8620 = vst.msk [vmem:[%s378 + $0x200] sm:$0xff] %vm8555, %v8428
        %8621 = vst.msk [vmem:[%s378 + $0x208] sm:$0xff] %vm8555, %v8430
        %8622 = vst.msk [vmem:[%s378 + $0x210] sm:$0xff] %vm8555, %v8432
        %8623 = vst.msk [vmem:[%s378 + $0x218] sm:$0xff] %vm8555, %v8434
        %8624 = vst.msk [vmem:[%s378 + $0x220] sm:$0xff] %vm8555, %v8436
        %8625 = vst.msk [vmem:[%s378 + $0x228] sm:$0xff] %vm8555, %v8438
        %8626 = vst.msk [vmem:[%s378 + $0x230] sm:$0xff] %vm8555, %v8440
        %8627 = vst.msk [vmem:[%s378 + $0x238] sm:$0xff] %vm8555, %v8442
        %8628 = vst.msk [vmem:[%s378 + $0x240] sm:$0xff] %vm8555, %v8444
        %8629 = vst.msk [vmem:[%s378 + $0x248] sm:$0xff] %vm8555, %v8446
        %8630 = vst.msk [vmem:[%s378 + $0x250] sm:$0xff] %vm8555, %v8448
        %8631 = vst.msk [vmem:[%s378 + $0x258] sm:$0xff] %vm8555, %v8450
        %8632 = vst.msk [vmem:[%s378 + $0x260] sm:$0xff] %vm8555, %v8452
        %8633 = vst.msk [vmem:[%s378 + $0x268] sm:$0xff] %vm8555, %v8454
        %8634 = vst.msk [vmem:[%s378 + $0x270] sm:$0xff] %vm8555, %v8456
        %8635 = vst.msk [vmem:[%s378 + $0x278] sm:$0xff] %vm8555, %v8458
        %8636 = vst.msk [vmem:[%s378 + $0x280] sm:$0xff] %vm8555, %v8460
        %8637 = vst.msk [vmem:[%s378 + $0x288] sm:$0xff] %vm8555, %v8462
        %8638 = vst.msk [vmem:[%s378 + $0x290] sm:$0xff] %vm8555, %v8464
        %8639 = vst.msk [vmem:[%s378 + $0x298] sm:$0xff] %vm8555, %v8466
        %8640 = vst.msk [vmem:[%s378 + $0x2a0] sm:$0xff] %vm8555, %v8468
        %8641 = vst.msk [vmem:[%s378 + $0x2a8] sm:$0xff] %vm8555, %v8470
        %8642 = vst.msk [vmem:[%s378 + $0x2b0] sm:$0xff] %vm8555, %v8472
        %8643 = vst.msk [vmem:[%s378 + $0x2b8] sm:$0xff] %vm8555, %v8474
        %8644 = vst.msk [vmem:[%s378 + $0x2c0] sm:$0xff] %vm8555, %v8476
        %8645 = vst.msk [vmem:[%s378 + $0x2c8] sm:$0xff] %vm8555, %v8478
        %8646 = vst.msk [vmem:[%s378 + $0x2d0] sm:$0xff] %vm8555, %v8480
        %8647 = vst.msk [vmem:[%s378 + $0x2d8] sm:$0xff] %vm8555, %v8482
        %8648 = vst.msk [vmem:[%s378 + $0x2e0] sm:$0xff] %vm8555, %v8484
        %8649 = vst.msk [vmem:[%s378 + $0x2e8] sm:$0xff] %vm8555, %v8486
        %8650 = vst.msk [vmem:[%s378 + $0x2f0] sm:$0xff] %vm8555, %v8488
        %8651 = vst.msk [vmem:[%s378 + $0x2f8] sm:$0xff] %vm8555, %v8490
        %8652 = vst.msk [vmem:[%s378 + $0x300] sm:$0xff] %vm8555, %v8492
        %8653 = vst.msk [vmem:[%s378 + $0x308] sm:$0xff] %vm8555, %v8494
        %8654 = vst.msk [vmem:[%s378 + $0x310] sm:$0xff] %vm8555, %v8496
        %8655 = vst.msk [vmem:[%s378 + $0x318] sm:$0xff] %vm8555, %v8498
        %8656 = vst.msk [vmem:[%s378 + $0x320] sm:$0xff] %vm8555, %v8500
        %8657 = vst.msk [vmem:[%s378 + $0x328] sm:$0xff] %vm8555, %v8502
        %8658 = vst.msk [vmem:[%s378 + $0x330] sm:$0xff] %vm8555, %v8504
        %8659 = vst.msk [vmem:[%s378 + $0x338] sm:$0xff] %vm8555, %v8506
        %8660 = vst.msk [vmem:[%s378 + $0x340] sm:$0xff] %vm8555, %v8508
        %8661 = vst.msk [vmem:[%s378 + $0x348] sm:$0xff] %vm8555, %v8510
        %8662 = vst.msk [vmem:[%s378 + $0x350] sm:$0xff] %vm8555, %v8512
        %8663 = vst.msk [vmem:[%s378 + $0x358] sm:$0xff] %vm8555, %v8514
        %8664 = vst.msk [vmem:[%s378 + $0x360] sm:$0xff] %vm8555, %v8516
        %8665 = vst.msk [vmem:[%s378 + $0x368] sm:$0xff] %vm8555, %v8518
        %8666 = vst.msk [vmem:[%s378 + $0x370] sm:$0xff] %vm8555, %v8520
        %8667 = vst.msk [vmem:[%s378 + $0x378] sm:$0xff] %vm8555, %v8522
        %8668 = vst.msk [vmem:[%s378 + $0x380] sm:$0xff] %vm8555, %v8524
        %8669 = vst.msk [vmem:[%s378 + $0x388] sm:$0xff] %vm8555, %v8526
        %8670 = vst.msk [vmem:[%s378 + $0x390] sm:$0xff] %vm8555, %v8528
        %8671 = vst.msk [vmem:[%s378 + $0x398] sm:$0xff] %vm8555, %v8530
        %8672 = vst.msk [vmem:[%s378 + $0x3a0] sm:$0xff] %vm8555, %v8532
        %8673 = vst.msk [vmem:[%s378 + $0x3a8] sm:$0xff] %vm8555, %v8534
        %8674 = vst.msk [vmem:[%s378 + $0x3b0] sm:$0xff] %vm8555, %v8536
        %8675 = vst.msk [vmem:[%s378 + $0x3b8] sm:$0xff] %vm8555, %v8538
        %8676 = vst.msk [vmem:[%s378 + $0x3c0] sm:$0xff] %vm8555, %v8540
        %8677 = vst.msk [vmem:[%s378 + $0x3c8] sm:$0xff] %vm8555, %v8542
        %8678 = vst.msk [vmem:[%s378 + $0x3d0] sm:$0xff] %vm8555, %v8544
        %8679 = vst.msk [vmem:[%s378 + $0x3d8] sm:$0xff] %vm8555, %v8546
        %8680 = vst.msk [vmem:[%s378 + $0x3e0] sm:$0xff] %vm8555, %v8548
        %8681 = vst.msk [vmem:[%s378 + $0x3e8] sm:$0xff] %vm8555, %v8550
        %8682 = vst.msk [vmem:[%s378 + $0x3f0] sm:$0xff] %vm8555, %v8552
        %8683 = vst.msk [vmem:[%s378 + $0x3f8] sm:$0xff] %vm8555, %v8554
        %8684 = vadd.xlane.f32.xlu0 %v8043
        %v8685 = vpop.xlane.xlu0 %8684
        %8686 = vadd.xlane.f32.xlu0 %v8044
        %v8687 = vpop.xlane.xlu0 %8686
        %8688 = vadd.xlane.f32.xlu0 %v8045
        %v8689 = vpop.xlane.xlu0 %8688
        %8690 = vadd.xlane.f32.xlu0 %v8046
        %v8691 = vpop.xlane.xlu0 %8690
        %8692 = vadd.xlane.f32.xlu0 %v8047
        %v8693 = vpop.xlane.xlu0 %8692
        %8694 = vadd.xlane.f32.xlu0 %v8048
        %v8695 = vpop.xlane.xlu0 %8694
        %8696 = vadd.xlane.f32.xlu0 %v8049
        %v8697 = vpop.xlane.xlu0 %8696
        %8698 = vadd.xlane.f32.xlu0 %v8050
        %v8699 = vpop.xlane.xlu0 %8698
        %8700 = vadd.xlane.f32.xlu0 %v8051
        %v8701 = vpop.xlane.xlu0 %8700
        %8702 = vadd.xlane.f32.xlu0 %v8052
        %v8703 = vpop.xlane.xlu0 %8702
        %8704 = vadd.xlane.f32.xlu0 %v8053
        %v8705 = vpop.xlane.xlu0 %8704
        %8706 = vadd.xlane.f32.xlu0 %v8054
        %v8707 = vpop.xlane.xlu0 %8706
        %8708 = vadd.xlane.f32.xlu0 %v8055
        %v8709 = vpop.xlane.xlu0 %8708
        %8710 = vadd.xlane.f32.xlu0 %v8056
        %v8711 = vpop.xlane.xlu0 %8710
        %8712 = vadd.xlane.f32.xlu0 %v8057
        %v8713 = vpop.xlane.xlu0 %8712
        %8714 = vadd.xlane.f32.xlu0 %v8058
        %v8715 = vpop.xlane.xlu0 %8714
        %8716 = vadd.xlane.f32.xlu0 %v8059
        %v8717 = vpop.xlane.xlu0 %8716
        %8718 = vadd.xlane.f32.xlu0 %v8060
        %v8719 = vpop.xlane.xlu0 %8718
        %8720 = vadd.xlane.f32.xlu0 %v8061
        %v8721 = vpop.xlane.xlu0 %8720
        %8722 = vadd.xlane.f32.xlu0 %v8062
        %v8723 = vpop.xlane.xlu0 %8722
        %8724 = vadd.xlane.f32.xlu0 %v8063
        %v8725 = vpop.xlane.xlu0 %8724
        %8726 = vadd.xlane.f32.xlu0 %v8064
        %v8727 = vpop.xlane.xlu0 %8726
        %8728 = vadd.xlane.f32.xlu0 %v8065
        %v8729 = vpop.xlane.xlu0 %8728
        %8730 = vadd.xlane.f32.xlu0 %v8066
        %v8731 = vpop.xlane.xlu0 %8730
        %8732 = vadd.xlane.f32.xlu0 %v8067
        %v8733 = vpop.xlane.xlu0 %8732
        %8734 = vadd.xlane.f32.xlu0 %v8068
        %v8735 = vpop.xlane.xlu0 %8734
        %8736 = vadd.xlane.f32.xlu0 %v8069
        %v8737 = vpop.xlane.xlu0 %8736
        %8738 = vadd.xlane.f32.xlu0 %v8070
        %v8739 = vpop.xlane.xlu0 %8738
        %8740 = vadd.xlane.f32.xlu0 %v8071
        %v8741 = vpop.xlane.xlu0 %8740
        %8742 = vadd.xlane.f32.xlu0 %v8072
        %v8743 = vpop.xlane.xlu0 %8742
        %8744 = vadd.xlane.f32.xlu0 %v8073
        %v8745 = vpop.xlane.xlu0 %8744
        %8746 = vadd.xlane.f32.xlu0 %v8074
        %v8747 = vpop.xlane.xlu0 %8746
        %8748 = vadd.xlane.f32.xlu0 %v8075
        %v8749 = vpop.xlane.xlu0 %8748
        %8750 = vadd.xlane.f32.xlu0 %v8076
        %v8751 = vpop.xlane.xlu0 %8750
        %8752 = vadd.xlane.f32.xlu0 %v8077
        %v8753 = vpop.xlane.xlu0 %8752
        %8754 = vadd.xlane.f32.xlu0 %v8078
        %v8755 = vpop.xlane.xlu0 %8754
        %8756 = vadd.xlane.f32.xlu0 %v8079
        %v8757 = vpop.xlane.xlu0 %8756
        %8758 = vadd.xlane.f32.xlu0 %v8080
        %v8759 = vpop.xlane.xlu0 %8758
        %8760 = vadd.xlane.f32.xlu0 %v8081
        %v8761 = vpop.xlane.xlu0 %8760
        %8762 = vadd.xlane.f32.xlu0 %v8082
        %v8763 = vpop.xlane.xlu0 %8762
        %8764 = vadd.xlane.f32.xlu0 %v8083
        %v8765 = vpop.xlane.xlu0 %8764
        %8766 = vadd.xlane.f32.xlu0 %v8084
        %v8767 = vpop.xlane.xlu0 %8766
        %8768 = vadd.xlane.f32.xlu0 %v8085
        %v8769 = vpop.xlane.xlu0 %8768
        %8770 = vadd.xlane.f32.xlu0 %v8086
        %v8771 = vpop.xlane.xlu0 %8770
        %8772 = vadd.xlane.f32.xlu0 %v8087
        %v8773 = vpop.xlane.xlu0 %8772
        %8774 = vadd.xlane.f32.xlu0 %v8088
        %v8775 = vpop.xlane.xlu0 %8774
        %8776 = vadd.xlane.f32.xlu0 %v8089
        %v8777 = vpop.xlane.xlu0 %8776
        %8778 = vadd.xlane.f32.xlu0 %v8090
        %v8779 = vpop.xlane.xlu0 %8778
        %8780 = vadd.xlane.f32.xlu0 %v8091
        %v8781 = vpop.xlane.xlu0 %8780
        %8782 = vadd.xlane.f32.xlu0 %v8092
        %v8783 = vpop.xlane.xlu0 %8782
        %8784 = vadd.xlane.f32.xlu0 %v8093
        %v8785 = vpop.xlane.xlu0 %8784
        %8786 = vadd.xlane.f32.xlu0 %v8094
        %v8787 = vpop.xlane.xlu0 %8786
        %8788 = vadd.xlane.f32.xlu0 %v8095
        %v8789 = vpop.xlane.xlu0 %8788
        %8790 = vadd.xlane.f32.xlu0 %v8096
        %v8791 = vpop.xlane.xlu0 %8790
        %8792 = vadd.xlane.f32.xlu0 %v8097
        %v8793 = vpop.xlane.xlu0 %8792
        %8794 = vadd.xlane.f32.xlu0 %v8098
        %v8795 = vpop.xlane.xlu0 %8794
        %8796 = vadd.xlane.f32.xlu0 %v8099
        %v8797 = vpop.xlane.xlu0 %8796
        %8798 = vadd.xlane.f32.xlu0 %v8100
        %v8799 = vpop.xlane.xlu0 %8798
        %8800 = vadd.xlane.f32.xlu0 %v8101
        %v8801 = vpop.xlane.xlu0 %8800
        %8802 = vadd.xlane.f32.xlu0 %v8102
        %v8803 = vpop.xlane.xlu0 %8802
        %8804 = vadd.xlane.f32.xlu0 %v8103
        %v8805 = vpop.xlane.xlu0 %8804
        %8806 = vadd.xlane.f32.xlu0 %v8104
        %v8807 = vpop.xlane.xlu0 %8806
        %8808 = vadd.xlane.f32.xlu0 %v8105
        %v8809 = vpop.xlane.xlu0 %8808
        %8810 = vadd.xlane.f32.xlu0 %v8106
        %v8811 = vpop.xlane.xlu0 %8810
        %8812 = vadd.xlane.f32.xlu0 %v8107
        %v8813 = vpop.xlane.xlu0 %8812
        %8814 = vadd.xlane.f32.xlu0 %v8108
        %v8815 = vpop.xlane.xlu0 %8814
        %8816 = vadd.xlane.f32.xlu0 %v8109
        %v8817 = vpop.xlane.xlu0 %8816
        %8818 = vadd.xlane.f32.xlu0 %v8110
        %v8819 = vpop.xlane.xlu0 %8818
        %8820 = vadd.xlane.f32.xlu0 %v8111
        %v8821 = vpop.xlane.xlu0 %8820
        %8822 = vadd.xlane.f32.xlu0 %v8112
        %v8823 = vpop.xlane.xlu0 %8822
        %8824 = vadd.xlane.f32.xlu0 %v8113
        %v8825 = vpop.xlane.xlu0 %8824
        %8826 = vadd.xlane.f32.xlu0 %v8114
        %v8827 = vpop.xlane.xlu0 %8826
        %8828 = vadd.xlane.f32.xlu0 %v8115
        %v8829 = vpop.xlane.xlu0 %8828
        %8830 = vadd.xlane.f32.xlu0 %v8116
        %v8831 = vpop.xlane.xlu0 %8830
        %8832 = vadd.xlane.f32.xlu0 %v8117
        %v8833 = vpop.xlane.xlu0 %8832
        %8834 = vadd.xlane.f32.xlu0 %v8118
        %v8835 = vpop.xlane.xlu0 %8834
        %8836 = vadd.xlane.f32.xlu0 %v8119
        %v8837 = vpop.xlane.xlu0 %8836
        %8838 = vadd.xlane.f32.xlu0 %v8120
        %v8839 = vpop.xlane.xlu0 %8838
        %8840 = vadd.xlane.f32.xlu0 %v8121
        %v8841 = vpop.xlane.xlu0 %8840
        %8842 = vadd.xlane.f32.xlu0 %v8122
        %v8843 = vpop.xlane.xlu0 %8842
        %8844 = vadd.xlane.f32.xlu0 %v8123
        %v8845 = vpop.xlane.xlu0 %8844
        %8846 = vadd.xlane.f32.xlu0 %v8124
        %v8847 = vpop.xlane.xlu0 %8846
        %8848 = vadd.xlane.f32.xlu0 %v8125
        %v8849 = vpop.xlane.xlu0 %8848
        %8850 = vadd.xlane.f32.xlu0 %v8126
        %v8851 = vpop.xlane.xlu0 %8850
        %8852 = vadd.xlane.f32.xlu0 %v8127
        %v8853 = vpop.xlane.xlu0 %8852
        %8854 = vadd.xlane.f32.xlu0 %v8128
        %v8855 = vpop.xlane.xlu0 %8854
        %8856 = vadd.xlane.f32.xlu0 %v8129
        %v8857 = vpop.xlane.xlu0 %8856
        %8858 = vadd.xlane.f32.xlu0 %v8130
        %v8859 = vpop.xlane.xlu0 %8858
        %8860 = vadd.xlane.f32.xlu0 %v8131
        %v8861 = vpop.xlane.xlu0 %8860
        %8862 = vadd.xlane.f32.xlu0 %v8132
        %v8863 = vpop.xlane.xlu0 %8862
        %8864 = vadd.xlane.f32.xlu0 %v8133
        %v8865 = vpop.xlane.xlu0 %8864
        %8866 = vadd.xlane.f32.xlu0 %v8134
        %v8867 = vpop.xlane.xlu0 %8866
        %8868 = vadd.xlane.f32.xlu0 %v8135
        %v8869 = vpop.xlane.xlu0 %8868
        %8870 = vadd.xlane.f32.xlu0 %v8136
        %v8871 = vpop.xlane.xlu0 %8870
        %8872 = vadd.xlane.f32.xlu0 %v8137
        %v8873 = vpop.xlane.xlu0 %8872
        %8874 = vadd.xlane.f32.xlu0 %v8138
        %v8875 = vpop.xlane.xlu0 %8874
        %8876 = vadd.xlane.f32.xlu0 %v8139
        %v8877 = vpop.xlane.xlu0 %8876
        %8878 = vadd.xlane.f32.xlu0 %v8140
        %v8879 = vpop.xlane.xlu0 %8878
        %8880 = vadd.xlane.f32.xlu0 %v8141
        %v8881 = vpop.xlane.xlu0 %8880
        %8882 = vadd.xlane.f32.xlu0 %v8142
        %v8883 = vpop.xlane.xlu0 %8882
        %8884 = vadd.xlane.f32.xlu0 %v8143
        %v8885 = vpop.xlane.xlu0 %8884
        %8886 = vadd.xlane.f32.xlu0 %v8144
        %v8887 = vpop.xlane.xlu0 %8886
        %8888 = vadd.xlane.f32.xlu0 %v8145
        %v8889 = vpop.xlane.xlu0 %8888
        %8890 = vadd.xlane.f32.xlu0 %v8146
        %v8891 = vpop.xlane.xlu0 %8890
        %8892 = vadd.xlane.f32.xlu0 %v8147
        %v8893 = vpop.xlane.xlu0 %8892
        %8894 = vadd.xlane.f32.xlu0 %v8148
        %v8895 = vpop.xlane.xlu0 %8894
        %8896 = vadd.xlane.f32.xlu0 %v8149
        %v8897 = vpop.xlane.xlu0 %8896
        %8898 = vadd.xlane.f32.xlu0 %v8150
        %v8899 = vpop.xlane.xlu0 %8898
        %8900 = vadd.xlane.f32.xlu0 %v8151
        %v8901 = vpop.xlane.xlu0 %8900
        %8902 = vadd.xlane.f32.xlu0 %v8152
        %v8903 = vpop.xlane.xlu0 %8902
        %8904 = vadd.xlane.f32.xlu0 %v8153
        %v8905 = vpop.xlane.xlu0 %8904
        %8906 = vadd.xlane.f32.xlu0 %v8154
        %v8907 = vpop.xlane.xlu0 %8906
        %8908 = vadd.xlane.f32.xlu0 %v8155
        %v8909 = vpop.xlane.xlu0 %8908
        %8910 = vadd.xlane.f32.xlu0 %v8156
        %v8911 = vpop.xlane.xlu0 %8910
        %8912 = vadd.xlane.f32.xlu0 %v8157
        %v8913 = vpop.xlane.xlu0 %8912
        %8914 = vadd.xlane.f32.xlu0 %v8158
        %v8915 = vpop.xlane.xlu0 %8914
        %8916 = vadd.xlane.f32.xlu0 %v8159
        %v8917 = vpop.xlane.xlu0 %8916
        %8918 = vadd.xlane.f32.xlu0 %v8160
        %v8919 = vpop.xlane.xlu0 %8918
        %8920 = vadd.xlane.f32.xlu0 %v8161
        %v8921 = vpop.xlane.xlu0 %8920
        %8922 = vadd.xlane.f32.xlu0 %v8162
        %v8923 = vpop.xlane.xlu0 %8922
        %8924 = vadd.xlane.f32.xlu0 %v8163
        %v8925 = vpop.xlane.xlu0 %8924
        %8926 = vadd.xlane.f32.xlu0 %v8164
        %v8927 = vpop.xlane.xlu0 %8926
        %8928 = vadd.xlane.f32.xlu0 %v8165
        %v8929 = vpop.xlane.xlu0 %8928
        %8930 = vadd.xlane.f32.xlu0 %v8166
        %v8931 = vpop.xlane.xlu0 %8930
        %8932 = vadd.xlane.f32.xlu0 %v8167
        %v8933 = vpop.xlane.xlu0 %8932
        %8934 = vadd.xlane.f32.xlu0 %v8168
        %v8935 = vpop.xlane.xlu0 %8934
        %8936 = vadd.xlane.f32.xlu0 %v8169
        %v8937 = vpop.xlane.xlu0 %8936
        %8938 = vadd.xlane.f32.xlu0 %v8170
        %v8939 = vpop.xlane.xlu0 %8938
        %v8940 = vrcp.pop 128.0
        %v8941 = vmul.f32 %v8685, %v8940
        %v8942 = vmul.f32 %v8687, %v8940
        %v8943 = vmul.f32 %v8689, %v8940
        %v8944 = vmul.f32 %v8691, %v8940
        %v8945 = vmul.f32 %v8693, %v8940
        %v8946 = vmul.f32 %v8695, %v8940
        %v8947 = vmul.f32 %v8697, %v8940
        %v8948 = vmul.f32 %v8699, %v8940
        %v8949 = vmul.f32 %v8701, %v8940
        %v8950 = vmul.f32 %v8703, %v8940
        %v8951 = vmul.f32 %v8705, %v8940
        %v8952 = vmul.f32 %v8707, %v8940
        %v8953 = vmul.f32 %v8709, %v8940
        %v8954 = vmul.f32 %v8711, %v8940
        %v8955 = vmul.f32 %v8713, %v8940
        %v8956 = vmul.f32 %v8715, %v8940
        %v8957 = vmul.f32 %v8717, %v8940
        %v8958 = vmul.f32 %v8719, %v8940
        %v8959 = vmul.f32 %v8721, %v8940
        %v8960 = vmul.f32 %v8723, %v8940
        %v8961 = vmul.f32 %v8725, %v8940
        %v8962 = vmul.f32 %v8727, %v8940
        %v8963 = vmul.f32 %v8729, %v8940
        %v8964 = vmul.f32 %v8731, %v8940
        %v8965 = vmul.f32 %v8733, %v8940
        %v8966 = vmul.f32 %v8735, %v8940
        %v8967 = vmul.f32 %v8737, %v8940
        %v8968 = vmul.f32 %v8739, %v8940
        %v8969 = vmul.f32 %v8741, %v8940
        %v8970 = vmul.f32 %v8743, %v8940
        %v8971 = vmul.f32 %v8745, %v8940
        %v8972 = vmul.f32 %v8747, %v8940
        %v8973 = vmul.f32 %v8749, %v8940
        %v8974 = vmul.f32 %v8751, %v8940
        %v8975 = vmul.f32 %v8753, %v8940
        %v8976 = vmul.f32 %v8755, %v8940
        %v8977 = vmul.f32 %v8757, %v8940
        %v8978 = vmul.f32 %v8759, %v8940
        %v8979 = vmul.f32 %v8761, %v8940
        %v8980 = vmul.f32 %v8763, %v8940
        %v8981 = vmul.f32 %v8765, %v8940
        %v8982 = vmul.f32 %v8767, %v8940
        %v8983 = vmul.f32 %v8769, %v8940
        %v8984 = vmul.f32 %v8771, %v8940
        %v8985 = vmul.f32 %v8773, %v8940
        %v8986 = vmul.f32 %v8775, %v8940
        %v8987 = vmul.f32 %v8777, %v8940
        %v8988 = vmul.f32 %v8779, %v8940
        %v8989 = vmul.f32 %v8781, %v8940
        %v8990 = vmul.f32 %v8783, %v8940
        %v8991 = vmul.f32 %v8785, %v8940
        %v8992 = vmul.f32 %v8787, %v8940
        %v8993 = vmul.f32 %v8789, %v8940
        %v8994 = vmul.f32 %v8791, %v8940
        %v8995 = vmul.f32 %v8793, %v8940
        %v8996 = vmul.f32 %v8795, %v8940
        %v8997 = vmul.f32 %v8797, %v8940
        %v8998 = vmul.f32 %v8799, %v8940
        %v8999 = vmul.f32 %v8801, %v8940
        %v9000 = vmul.f32 %v8803, %v8940
        %v9001 = vmul.f32 %v8805, %v8940
        %v9002 = vmul.f32 %v8807, %v8940
        %v9003 = vmul.f32 %v8809, %v8940
        %v9004 = vmul.f32 %v8811, %v8940
        %v9005 = vmul.f32 %v8813, %v8940
        %v9006 = vmul.f32 %v8815, %v8940
        %v9007 = vmul.f32 %v8817, %v8940
        %v9008 = vmul.f32 %v8819, %v8940
        %v9009 = vmul.f32 %v8821, %v8940
        %v9010 = vmul.f32 %v8823, %v8940
        %v9011 = vmul.f32 %v8825, %v8940
        %v9012 = vmul.f32 %v8827, %v8940
        %v9013 = vmul.f32 %v8829, %v8940
        %v9014 = vmul.f32 %v8831, %v8940
        %v9015 = vmul.f32 %v8833, %v8940
        %v9016 = vmul.f32 %v8835, %v8940
        %v9017 = vmul.f32 %v8837, %v8940
        %v9018 = vmul.f32 %v8839, %v8940
        %v9019 = vmul.f32 %v8841, %v8940
        %v9020 = vmul.f32 %v8843, %v8940
        %v9021 = vmul.f32 %v8845, %v8940
        %v9022 = vmul.f32 %v8847, %v8940
        %v9023 = vmul.f32 %v8849, %v8940
        %v9024 = vmul.f32 %v8851, %v8940
        %v9025 = vmul.f32 %v8853, %v8940
        %v9026 = vmul.f32 %v8855, %v8940
        %v9027 = vmul.f32 %v8857, %v8940
        %v9028 = vmul.f32 %v8859, %v8940
        %v9029 = vmul.f32 %v8861, %v8940
        %v9030 = vmul.f32 %v8863, %v8940
        %v9031 = vmul.f32 %v8865, %v8940
        %v9032 = vmul.f32 %v8867, %v8940
        %v9033 = vmul.f32 %v8869, %v8940
        %v9034 = vmul.f32 %v8871, %v8940
        %v9035 = vmul.f32 %v8873, %v8940
        %v9036 = vmul.f32 %v8875, %v8940
        %v9037 = vmul.f32 %v8877, %v8940
        %v9038 = vmul.f32 %v8879, %v8940
        %v9039 = vmul.f32 %v8881, %v8940
        %v9040 = vmul.f32 %v8883, %v8940
        %v9041 = vmul.f32 %v8885, %v8940
        %v9042 = vmul.f32 %v8887, %v8940
        %v9043 = vmul.f32 %v8889, %v8940
        %v9044 = vmul.f32 %v8891, %v8940
        %v9045 = vmul.f32 %v8893, %v8940
        %v9046 = vmul.f32 %v8895, %v8940
        %v9047 = vmul.f32 %v8897, %v8940
        %v9048 = vmul.f32 %v8899, %v8940
        %v9049 = vmul.f32 %v8901, %v8940
        %v9050 = vmul.f32 %v8903, %v8940
        %v9051 = vmul.f32 %v8905, %v8940
        %v9052 = vmul.f32 %v8907, %v8940
        %v9053 = vmul.f32 %v8909, %v8940
        %v9054 = vmul.f32 %v8911, %v8940
        %v9055 = vmul.f32 %v8913, %v8940
        %v9056 = vmul.f32 %v8915, %v8940
        %v9057 = vmul.f32 %v8917, %v8940
        %v9058 = vmul.f32 %v8919, %v8940
        %v9059 = vmul.f32 %v8921, %v8940
        %v9060 = vmul.f32 %v8923, %v8940
        %v9061 = vmul.f32 %v8925, %v8940
        %v9062 = vmul.f32 %v8927, %v8940
        %v9063 = vmul.f32 %v8929, %v8940
        %v9064 = vmul.f32 %v8931, %v8940
        %v9065 = vmul.f32 %v8933, %v8940
        %v9066 = vmul.f32 %v8935, %v8940
        %v9067 = vmul.f32 %v8937, %v8940
        %v9068 = vmul.f32 %v8939, %v8940
        %9069 = vst.msk [vmem:[%s383] sm:$0xff] %vm8555, %v8941
        %9070 = vst.msk [vmem:[%s383 + $0x8] sm:$0xff] %vm8555, %v8942
        %9071 = vst.msk [vmem:[%s383 + $0x10] sm:$0xff] %vm8555, %v8943
        %9072 = vst.msk [vmem:[%s383 + $0x18] sm:$0xff] %vm8555, %v8944
        %9073 = vst.msk [vmem:[%s383 + $0x20] sm:$0xff] %vm8555, %v8945
        %9074 = vst.msk [vmem:[%s383 + $0x28] sm:$0xff] %vm8555, %v8946
        %9075 = vst.msk [vmem:[%s383 + $0x30] sm:$0xff] %vm8555, %v8947
        %9076 = vst.msk [vmem:[%s383 + $0x38] sm:$0xff] %vm8555, %v8948
        %9077 = vst.msk [vmem:[%s383 + $0x40] sm:$0xff] %vm8555, %v8949
        %9078 = vst.msk [vmem:[%s383 + $0x48] sm:$0xff] %vm8555, %v8950
        %9079 = vst.msk [vmem:[%s383 + $0x50] sm:$0xff] %vm8555, %v8951
        %9080 = vst.msk [vmem:[%s383 + $0x58] sm:$0xff] %vm8555, %v8952
        %9081 = vst.msk [vmem:[%s383 + $0x60] sm:$0xff] %vm8555, %v8953
        %9082 = vst.msk [vmem:[%s383 + $0x68] sm:$0xff] %vm8555, %v8954
        %9083 = vst.msk [vmem:[%s383 + $0x70] sm:$0xff] %vm8555, %v8955
        %9084 = vst.msk [vmem:[%s383 + $0x78] sm:$0xff] %vm8555, %v8956
        %9085 = vst.msk [vmem:[%s383 + $0x80] sm:$0xff] %vm8555, %v8957
        %9086 = vst.msk [vmem:[%s383 + $0x88] sm:$0xff] %vm8555, %v8958
        %9087 = vst.msk [vmem:[%s383 + $0x90] sm:$0xff] %vm8555, %v8959
        %9088 = vst.msk [vmem:[%s383 + $0x98] sm:$0xff] %vm8555, %v8960
        %9089 = vst.msk [vmem:[%s383 + $0xa0] sm:$0xff] %vm8555, %v8961
        %9090 = vst.msk [vmem:[%s383 + $0xa8] sm:$0xff] %vm8555, %v8962
        %9091 = vst.msk [vmem:[%s383 + $0xb0] sm:$0xff] %vm8555, %v8963
        %9092 = vst.msk [vmem:[%s383 + $0xb8] sm:$0xff] %vm8555, %v8964
        %9093 = vst.msk [vmem:[%s383 + $0xc0] sm:$0xff] %vm8555, %v8965
        %9094 = vst.msk [vmem:[%s383 + $0xc8] sm:$0xff] %vm8555, %v8966
        %9095 = vst.msk [vmem:[%s383 + $0xd0] sm:$0xff] %vm8555, %v8967
        %9096 = vst.msk [vmem:[%s383 + $0xd8] sm:$0xff] %vm8555, %v8968
        %9097 = vst.msk [vmem:[%s383 + $0xe0] sm:$0xff] %vm8555, %v8969
        %9098 = vst.msk [vmem:[%s383 + $0xe8] sm:$0xff] %vm8555, %v8970
        %9099 = vst.msk [vmem:[%s383 + $0xf0] sm:$0xff] %vm8555, %v8971
        %9100 = vst.msk [vmem:[%s383 + $0xf8] sm:$0xff] %vm8555, %v8972
        %9101 = vst.msk [vmem:[%s383 + $0x100] sm:$0xff] %vm8555, %v8973
        %9102 = vst.msk [vmem:[%s383 + $0x108] sm:$0xff] %vm8555, %v8974
        %9103 = vst.msk [vmem:[%s383 + $0x110] sm:$0xff] %vm8555, %v8975
        %9104 = vst.msk [vmem:[%s383 + $0x118] sm:$0xff] %vm8555, %v8976
        %9105 = vst.msk [vmem:[%s383 + $0x120] sm:$0xff] %vm8555, %v8977
        %9106 = vst.msk [vmem:[%s383 + $0x128] sm:$0xff] %vm8555, %v8978
        %9107 = vst.msk [vmem:[%s383 + $0x130] sm:$0xff] %vm8555, %v8979
        %9108 = vst.msk [vmem:[%s383 + $0x138] sm:$0xff] %vm8555, %v8980
        %9109 = vst.msk [vmem:[%s383 + $0x140] sm:$0xff] %vm8555, %v8981
        %9110 = vst.msk [vmem:[%s383 + $0x148] sm:$0xff] %vm8555, %v8982
        %9111 = vst.msk [vmem:[%s383 + $0x150] sm:$0xff] %vm8555, %v8983
        %9112 = vst.msk [vmem:[%s383 + $0x158] sm:$0xff] %vm8555, %v8984
        %9113 = vst.msk [vmem:[%s383 + $0x160] sm:$0xff] %vm8555, %v8985
        %9114 = vst.msk [vmem:[%s383 + $0x168] sm:$0xff] %vm8555, %v8986
        %9115 = vst.msk [vmem:[%s383 + $0x170] sm:$0xff] %vm8555, %v8987
        %9116 = vst.msk [vmem:[%s383 + $0x178] sm:$0xff] %vm8555, %v8988
        %9117 = vst.msk [vmem:[%s383 + $0x180] sm:$0xff] %vm8555, %v8989
        %9118 = vst.msk [vmem:[%s383 + $0x188] sm:$0xff] %vm8555, %v8990
        %9119 = vst.msk [vmem:[%s383 + $0x190] sm:$0xff] %vm8555, %v8991
        %9120 = vst.msk [vmem:[%s383 + $0x198] sm:$0xff] %vm8555, %v8992
        %9121 = vst.msk [vmem:[%s383 + $0x1a0] sm:$0xff] %vm8555, %v8993
        %9122 = vst.msk [vmem:[%s383 + $0x1a8] sm:$0xff] %vm8555, %v8994
        %9123 = vst.msk [vmem:[%s383 + $0x1b0] sm:$0xff] %vm8555, %v8995
        %9124 = vst.msk [vmem:[%s383 + $0x1b8] sm:$0xff] %vm8555, %v8996
        %9125 = vst.msk [vmem:[%s383 + $0x1c0] sm:$0xff] %vm8555, %v8997
        %9126 = vst.msk [vmem:[%s383 + $0x1c8] sm:$0xff] %vm8555, %v8998
        %9127 = vst.msk [vmem:[%s383 + $0x1d0] sm:$0xff] %vm8555, %v8999
        %9128 = vst.msk [vmem:[%s383 + $0x1d8] sm:$0xff] %vm8555, %v9000
        %9129 = vst.msk [vmem:[%s383 + $0x1e0] sm:$0xff] %vm8555, %v9001
        %9130 = vst.msk [vmem:[%s383 + $0x1e8] sm:$0xff] %vm8555, %v9002
        %9131 = vst.msk [vmem:[%s383 + $0x1f0] sm:$0xff] %vm8555, %v9003
        %9132 = vst.msk [vmem:[%s383 + $0x1f8] sm:$0xff] %vm8555, %v9004
        %9133 = vst.msk [vmem:[%s383 + $0x200] sm:$0xff] %vm8555, %v9005
        %9134 = vst.msk [vmem:[%s383 + $0x208] sm:$0xff] %vm8555, %v9006
        %9135 = vst.msk [vmem:[%s383 + $0x210] sm:$0xff] %vm8555, %v9007
        %9136 = vst.msk [vmem:[%s383 + $0x218] sm:$0xff] %vm8555, %v9008
        %9137 = vst.msk [vmem:[%s383 + $0x220] sm:$0xff] %vm8555, %v9009
        %9138 = vst.msk [vmem:[%s383 + $0x228] sm:$0xff] %vm8555, %v9010
        %9139 = vst.msk [vmem:[%s383 + $0x230] sm:$0xff] %vm8555, %v9011
        %9140 = vst.msk [vmem:[%s383 + $0x238] sm:$0xff] %vm8555, %v9012
        %9141 = vst.msk [vmem:[%s383 + $0x240] sm:$0xff] %vm8555, %v9013
        %9142 = vst.msk [vmem:[%s383 + $0x248] sm:$0xff] %vm8555, %v9014
        %9143 = vst.msk [vmem:[%s383 + $0x250] sm:$0xff] %vm8555, %v9015
        %9144 = vst.msk [vmem:[%s383 + $0x258] sm:$0xff] %vm8555, %v9016
        %9145 = vst.msk [vmem:[%s383 + $0x260] sm:$0xff] %vm8555, %v9017
        %9146 = vst.msk [vmem:[%s383 + $0x268] sm:$0xff] %vm8555, %v9018
        %9147 = vst.msk [vmem:[%s383 + $0x270] sm:$0xff] %vm8555, %v9019
        %9148 = vst.msk [vmem:[%s383 + $0x278] sm:$0xff] %vm8555, %v9020
        %9149 = vst.msk [vmem:[%s383 + $0x280] sm:$0xff] %vm8555, %v9021
        %9150 = vst.msk [vmem:[%s383 + $0x288] sm:$0xff] %vm8555, %v9022
        %9151 = vst.msk [vmem:[%s383 + $0x290] sm:$0xff] %vm8555, %v9023
        %9152 = vst.msk [vmem:[%s383 + $0x298] sm:$0xff] %vm8555, %v9024
        %9153 = vst.msk [vmem:[%s383 + $0x2a0] sm:$0xff] %vm8555, %v9025
        %9154 = vst.msk [vmem:[%s383 + $0x2a8] sm:$0xff] %vm8555, %v9026
        %9155 = vst.msk [vmem:[%s383 + $0x2b0] sm:$0xff] %vm8555, %v9027
        %9156 = vst.msk [vmem:[%s383 + $0x2b8] sm:$0xff] %vm8555, %v9028
        %9157 = vst.msk [vmem:[%s383 + $0x2c0] sm:$0xff] %vm8555, %v9029
        %9158 = vst.msk [vmem:[%s383 + $0x2c8] sm:$0xff] %vm8555, %v9030
        %9159 = vst.msk [vmem:[%s383 + $0x2d0] sm:$0xff] %vm8555, %v9031
        %9160 = vst.msk [vmem:[%s383 + $0x2d8] sm:$0xff] %vm8555, %v9032
        %9161 = vst.msk [vmem:[%s383 + $0x2e0] sm:$0xff] %vm8555, %v9033
        %9162 = vst.msk [vmem:[%s383 + $0x2e8] sm:$0xff] %vm8555, %v9034
        %9163 = vst.msk [vmem:[%s383 + $0x2f0] sm:$0xff] %vm8555, %v9035
        %9164 = vst.msk [vmem:[%s383 + $0x2f8] sm:$0xff] %vm8555, %v9036
        %9165 = vst.msk [vmem:[%s383 + $0x300] sm:$0xff] %vm8555, %v9037
        %9166 = vst.msk [vmem:[%s383 + $0x308] sm:$0xff] %vm8555, %v9038
        %9167 = vst.msk [vmem:[%s383 + $0x310] sm:$0xff] %vm8555, %v9039
        %9168 = vst.msk [vmem:[%s383 + $0x318] sm:$0xff] %vm8555, %v9040
        %9169 = vst.msk [vmem:[%s383 + $0x320] sm:$0xff] %vm8555, %v9041
        %9170 = vst.msk [vmem:[%s383 + $0x328] sm:$0xff] %vm8555, %v9042
        %9171 = vst.msk [vmem:[%s383 + $0x330] sm:$0xff] %vm8555, %v9043
        %9172 = vst.msk [vmem:[%s383 + $0x338] sm:$0xff] %vm8555, %v9044
        %9173 = vst.msk [vmem:[%s383 + $0x340] sm:$0xff] %vm8555, %v9045
        %9174 = vst.msk [vmem:[%s383 + $0x348] sm:$0xff] %vm8555, %v9046
        %9175 = vst.msk [vmem:[%s383 + $0x350] sm:$0xff] %vm8555, %v9047
        %9176 = vst.msk [vmem:[%s383 + $0x358] sm:$0xff] %vm8555, %v9048
        %9177 = vst.msk [vmem:[%s383 + $0x360] sm:$0xff] %vm8555, %v9049
        %9178 = vst.msk [vmem:[%s383 + $0x368] sm:$0xff] %vm8555, %v9050
        %9179 = vst.msk [vmem:[%s383 + $0x370] sm:$0xff] %vm8555, %v9051
        %9180 = vst.msk [vmem:[%s383 + $0x378] sm:$0xff] %vm8555, %v9052
        %9181 = vst.msk [vmem:[%s383 + $0x380] sm:$0xff] %vm8555, %v9053
        %9182 = vst.msk [vmem:[%s383 + $0x388] sm:$0xff] %vm8555, %v9054
        %9183 = vst.msk [vmem:[%s383 + $0x390] sm:$0xff] %vm8555, %v9055
        %9184 = vst.msk [vmem:[%s383 + $0x398] sm:$0xff] %vm8555, %v9056
        %9185 = vst.msk [vmem:[%s383 + $0x3a0] sm:$0xff] %vm8555, %v9057
        %9186 = vst.msk [vmem:[%s383 + $0x3a8] sm:$0xff] %vm8555, %v9058
        %9187 = vst.msk [vmem:[%s383 + $0x3b0] sm:$0xff] %vm8555, %v9059
        %9188 = vst.msk [vmem:[%s383 + $0x3b8] sm:$0xff] %vm8555, %v9060
        %9189 = vst.msk [vmem:[%s383 + $0x3c0] sm:$0xff] %vm8555, %v9061
        %9190 = vst.msk [vmem:[%s383 + $0x3c8] sm:$0xff] %vm8555, %v9062
        %9191 = vst.msk [vmem:[%s383 + $0x3d0] sm:$0xff] %vm8555, %v9063
        %9192 = vst.msk [vmem:[%s383 + $0x3d8] sm:$0xff] %vm8555, %v9064
        %9193 = vst.msk [vmem:[%s383 + $0x3e0] sm:$0xff] %vm8555, %v9065
        %9194 = vst.msk [vmem:[%s383 + $0x3e8] sm:$0xff] %vm8555, %v9066
        %9195 = vst.msk [vmem:[%s383 + $0x3f0] sm:$0xff] %vm8555, %v9067
        %9196 = vst.msk [vmem:[%s383 + $0x3f8] sm:$0xff] %vm8555, %v9068
        %s9197 = sand.u32 %s207, 1
        %s9198 = scalar_lea.sflag [#allocation5], %s9197
        %s9199 = sand.u32 %s207, 1
        %s9200 = smul.addr %s9199, 1024
        %s9201 = scalar_lea.vmem [#allocation4], %s9200
        %p9202 = scmp.lt.s32.totalorder %s26, 1
        %s9203 = scalar_select %p9202, %s26, 1
        %s9204 = smul.addr %s9203, 128
        %s9205 = smul.addr %s9204, 8
        %s9206 = scalar_lea.vmem %s10, %s9205
        %p9207 = scmp.lt.s32.totalorder %s26, 1
        %s9208 = scalar_select %p9207, %s26, 1
        %s9209 = smul.addr %s9208, 128
        %s9210 = smul.addr %s9209, 8
        %s9211 = scalar_lea.vmem %s11, %s9210
        // Predicated region
        $region57: #{spct_forward.1} parent=51 // pred_check
          %p9212 = pneg %p217
        $region58: #{spct_forward.1} parent=51 // pred_check_branch
          %9214 = sbr.rel (%p9212) target = $region60
        $region59: #{spct_forward.1} parent=51 // pred_region
          %s9216 = ssub.s32 16384, 16384
          %9217 = vsyncadd %s9198, %s9216
          %s9218 = smul.addr %s26, 128
          %s9219 = smul.addr %s9218, 128
          %s9220 = scalar_lea.hbm %s9, %s9219
          %s9221 = sshll.u32 %s9201, 4
          %s9222 = int_to_ptr.vmem [resolvable:$true] %s9221
          %9227 = dma.vmem_to_hbm [thread:$0]  %s9222, 16384, %s9220, %s9198, 128, 128, 8
        $region60: #{spct_forward.1} parent=51 // pred_fallthru
          _
        // Predicated region
        $region61: #{spct_forward.1} parent=51 // pred_check
          %p9228 = pneg %p243
        $region62: #{spct_forward.1} parent=51 // pred_check_branch
          %9230 = sbr.rel (%p9228) target = $region64
        $region63: #{spct_forward.1} parent=51 // pred_region
          _
        $region64: #{spct_forward.1} parent=51 // pred_fallthru
          _
        // Predicated region
        $region65: #{spct_forward.1} parent=51 // pred_check
          %p9231 = pneg %p269
        $region66: #{spct_forward.1} parent=51 // pred_check_branch
          %9233 = sbr.rel (%p9231) target = $region68
        $region67: #{spct_forward.1} parent=51 // pred_region
          _
        $region68: #{spct_forward.1} parent=51 // pred_fallthru
          _
      $region52: #{spct_forward.1} parent=5 // pred_fallthru
        _
      %p9234 = scmp.le.s32.totalorder 2, %s21
      // Predicated region
      $region69: #{spct_forward.1} parent=5 // pred_check
        %p9235 = pneg %p9234
      $region70: #{spct_forward.1} parent=5 // pred_check_branch
        %9237 = sbr.rel (%p9235) target = $region72
      $region71: #{spct_forward.1} parent=5 // pred_region
        %s9238 = ssub.s32 %s21, 2
        // Predicated region
        $region73: #{spct_forward.1} parent=71 // pred_check
          %p9239 = pneg %p223
        $region74: #{spct_forward.1} parent=71 // pred_check_branch
          %9241 = sbr.rel (%p9239) target = $region76
        $region75: #{spct_forward.1} parent=71 // pred_region
          %s9242 = sand.u32 %s208, 1
          %s9243 = scalar_lea.sflag [#allocation5], %s9242
          %s9244 = sand.u32 %s208, 1
          %s9245 = smul.addr %s9244, 1024
          %s9246 = scalar_lea.vmem [#allocation4], %s9245
          %9247 = dma.done %s9243, 16384
        $region76: #{spct_forward.1} parent=71 // pred_fallthru
          _
        // Predicated region
        $region77: #{spct_forward.1} parent=71 // pred_check
          %p9248 = pneg %p249
        $region78: #{spct_forward.1} parent=71 // pred_check_branch
          %9250 = sbr.rel (%p9248) target = $region80
        $region79: #{spct_forward.1} parent=71 // pred_region
          %p9251 = scmp.lt.s32.totalorder %s27, 1
          %s9252 = scalar_select %p9251, %s27, 1
          %s9253 = smul.addr %s9252, 128
          %s9254 = smul.addr %s9253, 8
          %s9255 = scalar_lea.vmem %s10, %s9254
        $region80: #{spct_forward.1} parent=71 // pred_fallthru
          _
        // Predicated region
        $region81: #{spct_forward.1} parent=71 // pred_check
          %p9256 = pneg %p275
        $region82: #{spct_forward.1} parent=71 // pred_check_branch
          %9258 = sbr.rel (%p9256) target = $region84
        $region83: #{spct_forward.1} parent=71 // pred_region
          %p9259 = scmp.lt.s32.totalorder %s27, 1
          %s9260 = scalar_select %p9259, %s27, 1
          %s9261 = smul.addr %s9260, 128
          %s9262 = smul.addr %s9261, 8
          %s9263 = scalar_lea.vmem %s11, %s9262
        $region84: #{spct_forward.1} parent=71 // pred_fallthru
          _
      $region72: #{spct_forward.1} parent=5 // pred_fallthru
        _
    $region6: #{spct_forward.1} parent=1 // loop_footer
      %s25 = sadd.s32 1, %s21
    $region7: #{spct_forward.1} parent=1 // loop_footer_branch
      %20 = sbr.rel target = $region3
    $region8: #{spct_forward.1} parent=1 // loop_exit
      _
    %9264 = vsyncpa [#allocation5], 1
    %s9265 = scalar_lea.sflag [#allocation5], 1
    %9266 = vsyncpa %s9265, 1
  %9267 = vsyncmov [#allocation3]
  %s9268 = vpop.sfrf %9267
  %p9269 = scmp.eq.s32.totalorder %s9268, 0
  %p9270 = pneg %p9269
  %9272 = shalt.err (%p9270)

</llo_original>
